<compile_context>
chip_gen: v7x
topology: tpu7x:2x2x1
jax: 0.10.0
libtpu: 0.0.40
codegen_flags: <defaults>
</compile_context>

<pallas_src>
import functools
import numpy as np
import jax
import jax.numpy as jnp
from jax.experimental import pallas as pl
from jax.experimental.pallas import tpu as pltpu

GROUPS = 16
BN_EPS = 1e-5


# ------------------------------ Pallas kernels ------------------------------

def _branch_convs(x_ref, w1_ref, w3_ref, im2col_ref, *, H, Wp, C):
    """Pre-BN outputs of both branches for one padded image.

    x_ref      : ((H+3)*Wp, C) bf16  zero-padded image, flattened row-major.
    w1_ref     : (C, C)        bf16  1x1 conv weight laid out (Cin, Cout).
    w3_ref     : (9*C, C)      bf16  grouped 3x3 conv as block-diag (tap*Cin, Cout).
    im2col_ref : (H*Wp, 9*C)   bf16  VMEM scratch.

    Returns (y1, y3) f32 of shape (H*Wp, C).  Columns c' >= W of every image
    row are padding garbage (excluded from stats, sliced off by the wrapper).
    """
    rows = H * Wp
    # One contiguous row-slice per tap -> lane-offset column block of im2col.
    for k in range(9):
        kh, kw = divmod(k, 3)
        start = kh * Wp + kw
        im2col_ref[:, k * C:(k + 1) * C] = x_ref[start:start + rows, :]
    # Grouped 3x3 conv: a single K = 9*C MXU dot (accumulates inside the MXU).
    y3 = jnp.dot(im2col_ref[...], w3_ref[...], preferred_element_type=jnp.float32)
    # 1x1 conv re-uses the (already shifted) center tap of the im2col scratch.
    y1 = jnp.dot(im2col_ref[:, 4 * C:5 * C], w1_ref[...],
                 preferred_element_type=jnp.float32)
    return y1, y3


def _rb_stats_kernel(x_ref, w1_ref, w3_ref, s_ref, im2col_ref, *, H, W, Wp, C):
    """Per-image partial [sum(y1), sum(y1^2), sum(y3), sum(y3^2)] per channel."""
    y1, y3 = _branch_convs(x_ref, w1_ref, w3_ref, im2col_ref, H=H, Wp=Wp, C=C)
    # Mask the 2 padded columns of every image row out of the BN statistics.
    col = jax.lax.broadcasted_iota(jnp.int32, (H * Wp, 1), 0) % Wp
    m = (col < W).astype(jnp.float32)
    y1m = y1 * m
    y3m = y3 * m
    s_ref[...] = jnp.concatenate(
        [jnp.sum(y1m, axis=0, keepdims=True),
         jnp.sum(y1m * y1, axis=0, keepdims=True),
         jnp.sum(y3m, axis=0, keepdims=True),
         jnp.sum(y3m * y3, axis=0, keepdims=True)], axis=0)


def _rb_apply_kernel(x_ref, w1_ref, w3_ref, a_ref, o_ref, im2col_ref,
                     *, H, W, Wp, C):
    """Recompute convs, fused BN-affine + add + ReLU, dense bf16 store."""
    y1, y3 = _branch_convs(x_ref, w1_ref, w3_ref, im2col_ref, H=H, Wp=Wp, C=C)
    a = a_ref[...]                       # (4, C) f32: scale1, shift1, scale3, shift3
    out = y1 * a[0:1, :] + a[1:2, :] + y3 * a[2:3, :] + a[3:4, :]
    o_ref[...] = jnp.maximum(out, 0.0).astype(o_ref.dtype)


# --------------------------------- wrapper ----------------------------------

def _vmem_limit(block_bytes, scratch_bytes):
    # BlockSpec operands are double-buffered; leave 2x headroom for compiler
    # internals.  Floor at the 32 MiB default, cap at 48 MiB so the request is
    # always safe on v7x's 64 MiB VMEM (v5e/v6e have 128 MiB).
    need = 2 * block_bytes + scratch_bytes
    return int(min(max(2 * need, 32 << 20), 48 << 20))


def rb_forward_nhwc(params, x_nhwc):
    """x_nhwc: (B, H, W, C).  Returns the ReLU output as (B, H, W, C) bf16."""
    B, H, W, C = x_nhwc.shape
    Wp = W + 2                     # left/right zero columns
    rows_in = (H + 3) * Wp         # 1 top + 2 bottom zero rows keep every
    rows_out = H * Wp              # contiguous tap slice in bounds

    w1m, w3f = params['w1m'], params['w3f']
    g1, be1 = params['gamma1'], params['beta1']
    g3, be3 = params['gamma3'], params['beta3']

    # Single padded channels-last bf16 copy of the activation; the flat
    # (rows, C) view keeps every kernel load/store lane- and sublane-dense.
    x_pad = jnp.pad(x_nhwc.astype(jnp.bfloat16), ((0, 0), (1, 2), (1, 1), (0, 0)))
    x_flat = x_pad.reshape(B, rows_in, C)

    # Grid = (B,): one whole padded image per step ("parallel" -> megacore).
    # TODO(synk): for images too large to sit in VMEM (roughly H*W*C bf16 >
    # ~8 MiB), row-tile each image with halo windows (pl.Element offsets or a
    # manual-DMA pipeline) instead of whole-image blocks.
    x_spec = pl.BlockSpec((None, rows_in, C), lambda b: (b, 0, 0))
    w1_spec = pl.BlockSpec((C, C), lambda b: (0, 0))
    w3_spec = pl.BlockSpec((9 * C, C), lambda b: (0, 0))
    scratch = [pltpu.VMEM((rows_out, 9 * C), jnp.bfloat16)]

    block_bytes = ((rows_in + rows_out) * C + 10 * C * C) * 2 + 4 * C * 4
    scratch_bytes = rows_out * 9 * C * 2
    cp = pltpu.CompilerParams(
        dimension_semantics=("parallel",),
        vmem_limit_bytes=_vmem_limit(block_bytes, scratch_bytes))

    flops = 2 * B * rows_out * 10 * C * C        # per pass (9 taps + 1x1)
    wbytes = (w1m.size + w3f.size) * 2
    xbytes = x_flat.size * 2

    # ---- pass 1: per-channel partial sums / sums-of-squares of both branches ----
    partial = pl.pallas_call(
        functools.partial(_rb_stats_kernel, H=H, W=W, Wp=Wp, C=C),
        out_shape=jax.ShapeDtypeStruct((B, 4, C), jnp.float32),
        grid=(B,),
        in_specs=[x_spec, w1_spec, w3_spec],
        out_specs=pl.BlockSpec((None, 4, C), lambda b: (b, 0, 0)),
        scratch_shapes=scratch,
        compiler_params=cp,
        cost_estimate=pl.CostEstimate(flops=flops, transcendentals=0,
                                      bytes_accessed=xbytes + wbytes + B * 4 * C * 4),
    )(x_flat, w1m, w3f)

    sums = jnp.sum(partial, axis=0)              # (4, C) f32
    n = float(B * H * W)
    mean1_raw = sums[0] / n                      # E[x @ W1] (conv bias excluded)
    var1 = jnp.maximum(sums[1] / n - mean1_raw * mean1_raw, 0.0)
    mean3 = sums[2] / n
    var3 = jnp.maximum(sums[3] / n - mean3 * mean3, 0.0)
    # TODO(synk): E[y^2]-E[y]^2 in f32 (clamped at 0) -- switch to a centered /
    # Welford reduction if activations grow large enough for cancellation.

    scale1 = g1 * jax.lax.rsqrt(var1 + BN_EPS)
    # The Conv2d bias b1 shifts the batch mean by exactly b1, so it cancels in
    # training-mode BN; the fused shift reduces to be1 - mean1_raw * scale1.
    shift1 = be1 - mean1_raw * scale1
    scale3 = g3 * jax.lax.rsqrt(var3 + BN_EPS)
    shift3 = be3 - mean3 * scale3
    affine = jnp.stack([scale1, shift1, scale3, shift3], axis=0).astype(jnp.float32)

    # ---- pass 2: recompute convs, fused BN-affine + add + ReLU, bf16 store ----
    # TODO(synk): for dim >= ~512 (compute-bound regime) store y3 as bf16 from
    # pass 1 and make this pass load + affine + add + ReLU only.
    out_flat = pl.pallas_call(
        functools.partial(_rb_apply_kernel, H=H, W=W, Wp=Wp, C=C),
        out_shape=jax.ShapeDtypeStruct((B, rows_out, C), jnp.bfloat16),
        grid=(B,),
        in_specs=[x_spec, w1_spec, w3_spec,
                  pl.BlockSpec((4, C), lambda b: (0, 0))],
        out_specs=pl.BlockSpec((None, rows_out, C), lambda b: (b, 0, 0)),
        scratch_shapes=scratch,
        compiler_params=cp,
        cost_estimate=pl.CostEstimate(flops=flops, transcendentals=0,
                                      bytes_accessed=xbytes + wbytes + B * rows_out * C * 2),
    )(x_flat, w1m, w3f, affine)

    # Drop the 2 padded columns of every row; stay NHWC/bf16 for chained RBs.
    return out_flat.reshape(B, H, Wp, C)[:, :, :W, :]


def rb_forward(params, x):
    """Drop-in forward: x (B, C, H, W) f32 NCHW -> (B, C, H, W) f32 NCHW."""
    out = rb_forward_nhwc(params, jnp.transpose(x, (0, 2, 3, 1)))
    return jnp.transpose(out, (0, 3, 1, 2)).astype(jnp.float32)


# -------------------------------- parameters --------------------------------

def build_params(key, dim):
    assert dim % GROUPS == 0
    g = dim // GROUPS
    k1, k2, k3 = jax.random.split(key, 3)

    # PyTorch default initializations.
    bound1 = 1.0 / np.sqrt(dim)
    w1 = jax.random.uniform(k1, (dim, dim, 1, 1), jnp.float32, -bound1, bound1)
    b1 = jax.random.uniform(k2, (dim,), jnp.float32, -bound1, bound1)
    bound3 = 1.0 / np.sqrt(g * 9)
    w3 = jax.random.uniform(k3, (dim, g, 3, 3), jnp.float32, -bound3, bound3)

    # Kernel-ready layouts (built once, outside the per-call path):
    #   1x1 : (Cin, Cout) so y1 = rows @ w1m
    #   3x3 : block-diagonal (tap*Cin, Cout) so the grouped conv is a single
    #         K = 9*dim MXU dot against the im2col rows.
    w1m = jnp.asarray(np.asarray(w1).reshape(dim, dim).T, jnp.bfloat16)
    w3_np = np.asarray(w3)                            # (Cout, g, 3, 3)
    w3f_np = np.zeros((9, dim, dim), np.float32)      # (tap, Cin, Cout)
    for co in range(dim):
        gi = co // g
        w3f_np[:, gi * g:(gi + 1) * g, co] = w3_np[co].transpose(1, 2, 0).reshape(9, g)
    # TODO(synk): for dim >= ~512 keep the grouped weight compact (per-group
    # (3,3,Cin,g), groups packed to 128 lanes) and single-buffer it via a
    # one-shot DMA; the dense block-diagonal form is 16x oversized (VMEM on
    # v7x, MXU flops on v5e).  At dim=128 it is the right choice.
    w3f = jnp.asarray(w3f_np.reshape(9 * dim, dim), jnp.bfloat16)

    return dict(
        w1m=w1m, b1=b1, w3f=w3f,
        gamma1=jnp.ones((dim,), jnp.float32), beta1=jnp.zeros((dim,), jnp.float32),
        gamma3=jnp.ones((dim,), jnp.float32), beta3=jnp.zeros((dim,), jnp.float32),
    )


# ----------------------------------- main ------------------------------------

if __name__ == "__main__":
    key = jax.random.PRNGKey(0)
    dim, B, H, W = 128, 2, 16, 16          # dim % 16 == 0; C=128 keeps lanes dense
    kx, kp = jax.random.split(key)
    x = jax.random.normal(kx, (B, dim, H, W), jnp.float32)
    params = build_params(kp, dim)

    out = jax.jit(rb_forward)(params, x)
    out = jax.block_until_ready(out)
    assert out.shape == (B, dim, H, W)
    assert bool(jnp.all(jnp.isfinite(out)))
    assert bool(jnp.all(out >= 0.0))       # ReLU output
    print("KERNEL_OK")
</pallas_src>

<mosaic_0001>
module attributes {stable_mosaic.version = 11 : i64} {
  func.func @_rb_stats_kernel(%arg0: i32, %arg1: memref<1x342x128xbf16, #tpu.memory_space<vmem>>, %arg2: memref<128x128xbf16, #tpu.memory_space<vmem>>, %arg3: memref<1152x128xbf16, #tpu.memory_space<vmem>>, %arg4: memref<1x4x128xf32, #tpu.memory_space<vmem>>, %arg5: memref<288x1152xbf16, #tpu.memory_space<vmem>>) attributes {dimension_semantics = [#tpu.dimension_semantics<parallel>], iteration_bounds = array<i64: 2>, scalar_prefetch = 0 : i64, scratch_operands = 1 : i64, tpu.core_type = #tpu.core_type<tc>, window_params = [{transform_indices = @transform_0, window_bounds = array<i64: 1, 342, 128>}, {pipeline_mode = #tpu.pipeline_mode<synchronous>, transform_indices = @transform_1, window_bounds = array<i64: 128, 128>}, {pipeline_mode = #tpu.pipeline_mode<synchronous>, transform_indices = @transform_2, window_bounds = array<i64: 1152, 128>}, {transform_indices = @transform_3, window_bounds = array<i64: 1, 4, 128>}]} {
    %c0 = arith.constant 0 : index
    %c0_0 = arith.constant 0 : index
    %c0_1 = arith.constant 0 : index
    %0 = vector.load %arg1[%c0, %c0_0, %c0_1] : memref<1x342x128xbf16, #tpu.memory_space<vmem>>, vector<1x288x128xbf16>
    %1 = vector.shape_cast %0 : vector<1x288x128xbf16> to vector<288x128xbf16>
    %c0_2 = arith.constant 0 : index
    %c0_3 = arith.constant 0 : index
    %2 = vector.load %arg5[%c0_2, %c0_3] : memref<288x1152xbf16, #tpu.memory_space<vmem>>, vector<288x128xbf16>
    tpu.vector_store %arg5[%c0_2, %c0_3], %1 {strides = array<i32>} : memref<288x1152xbf16, #tpu.memory_space<vmem>>, vector<288x128xbf16>,
    %c0_4 = arith.constant 0 : index
    %c1 = arith.constant 1 : index
    %c0_5 = arith.constant 0 : index
    %3 = vector.load %arg1[%c0_4, %c1, %c0_5] : memref<1x342x128xbf16, #tpu.memory_space<vmem>>, vector<1x288x128xbf16>
    %4 = vector.shape_cast %3 : vector<1x288x128xbf16> to vector<288x128xbf16>
    %c0_6 = arith.constant 0 : index
    %c128 = arith.constant 128 : index
    %5 = vector.load %arg5[%c0_6, %c128] : memref<288x1152xbf16, #tpu.memory_space<vmem>>, vector<288x128xbf16>
    tpu.vector_store %arg5[%c0_6, %c128], %4 {strides = array<i32>} : memref<288x1152xbf16, #tpu.memory_space<vmem>>, vector<288x128xbf16>,
    %c0_7 = arith.constant 0 : index
    %c2 = arith.constant 2 : index
    %c0_8 = arith.constant 0 : index
    %6 = vector.load %arg1[%c0_7, %c2, %c0_8] : memref<1x342x128xbf16, #tpu.memory_space<vmem>>, vector<1x288x128xbf16>
    %7 = vector.shape_cast %6 : vector<1x288x128xbf16> to vector<288x128xbf16>
    %c0_9 = arith.constant 0 : index
    %c256 = arith.constant 256 : index
    %8 = vector.load %arg5[%c0_9, %c256] : memref<288x1152xbf16, #tpu.memory_space<vmem>>, vector<288x128xbf16>
    tpu.vector_store %arg5[%c0_9, %c256], %7 {strides = array<i32>} : memref<288x1152xbf16, #tpu.memory_space<vmem>>, vector<288x128xbf16>,
    %c0_10 = arith.constant 0 : index
    %c18 = arith.constant 18 : index
    %c0_11 = arith.constant 0 : index
    %9 = vector.load %arg1[%c0_10, %c18, %c0_11] : memref<1x342x128xbf16, #tpu.memory_space<vmem>>, vector<1x288x128xbf16>
    %10 = vector.shape_cast %9 : vector<1x288x128xbf16> to vector<288x128xbf16>
    %c0_12 = arith.constant 0 : index
    %c384 = arith.constant 384 : index
    %11 = vector.load %arg5[%c0_12, %c384] : memref<288x1152xbf16, #tpu.memory_space<vmem>>, vector<288x128xbf16>
    tpu.vector_store %arg5[%c0_12, %c384], %10 {strides = array<i32>} : memref<288x1152xbf16, #tpu.memory_space<vmem>>, vector<288x128xbf16>,
    %c0_13 = arith.constant 0 : index
    %c19 = arith.constant 19 : index
    %c0_14 = arith.constant 0 : index
    %12 = vector.load %arg1[%c0_13, %c19, %c0_14] : memref<1x342x128xbf16, #tpu.memory_space<vmem>>, vector<1x288x128xbf16>
    %13 = vector.shape_cast %12 : vector<1x288x128xbf16> to vector<288x128xbf16>
    %c0_15 = arith.constant 0 : index
    %c512 = arith.constant 512 : index
    %14 = vector.load %arg5[%c0_15, %c512] : memref<288x1152xbf16, #tpu.memory_space<vmem>>, vector<288x128xbf16>
    tpu.vector_store %arg5[%c0_15, %c512], %13 {strides = array<i32>} : memref<288x1152xbf16, #tpu.memory_space<vmem>>, vector<288x128xbf16>,
    %c0_16 = arith.constant 0 : index
    %c20 = arith.constant 20 : index
    %c0_17 = arith.constant 0 : index
    %15 = vector.load %arg1[%c0_16, %c20, %c0_17] : memref<1x342x128xbf16, #tpu.memory_space<vmem>>, vector<1x288x128xbf16>
    %16 = vector.shape_cast %15 : vector<1x288x128xbf16> to vector<288x128xbf16>
    %c0_18 = arith.constant 0 : index
    %c640 = arith.constant 640 : index
    %17 = vector.load %arg5[%c0_18, %c640] : memref<288x1152xbf16, #tpu.memory_space<vmem>>, vector<288x128xbf16>
    tpu.vector_store %arg5[%c0_18, %c640], %16 {strides = array<i32>} : memref<288x1152xbf16, #tpu.memory_space<vmem>>, vector<288x128xbf16>,
    %c0_19 = arith.constant 0 : index
    %c36 = arith.constant 36 : index
    %c0_20 = arith.constant 0 : index
    %18 = vector.load %arg1[%c0_19, %c36, %c0_20] : memref<1x342x128xbf16, #tpu.memory_space<vmem>>, vector<1x288x128xbf16>
    %19 = vector.shape_cast %18 : vector<1x288x128xbf16> to vector<288x128xbf16>
    %c0_21 = arith.constant 0 : index
    %c768 = arith.constant 768 : index
    %20 = vector.load %arg5[%c0_21, %c768] : memref<288x1152xbf16, #tpu.memory_space<vmem>>, vector<288x128xbf16>
    tpu.vector_store %arg5[%c0_21, %c768], %19 {strides = array<i32>} : memref<288x1152xbf16, #tpu.memory_space<vmem>>, vector<288x128xbf16>,
    %c0_22 = arith.constant 0 : index
    %c37 = arith.constant 37 : index
    %c0_23 = arith.constant 0 : index
    %21 = vector.load %arg1[%c0_22, %c37, %c0_23] : memref<1x342x128xbf16, #tpu.memory_space<vmem>>, vector<1x288x128xbf16>
    %22 = vector.shape_cast %21 : vector<1x288x128xbf16> to vector<288x128xbf16>
    %c0_24 = arith.constant 0 : index
    %c896 = arith.constant 896 : index
    %23 = vector.load %arg5[%c0_24, %c896] : memref<288x1152xbf16, #tpu.memory_space<vmem>>, vector<288x128xbf16>
    tpu.vector_store %arg5[%c0_24, %c896], %22 {strides = array<i32>} : memref<288x1152xbf16, #tpu.memory_space<vmem>>, vector<288x128xbf16>,
    %c0_25 = arith.constant 0 : index
    %c38 = arith.constant 38 : index
    %c0_26 = arith.constant 0 : index
    %24 = vector.load %arg1[%c0_25, %c38, %c0_26] : memref<1x342x128xbf16, #tpu.memory_space<vmem>>, vector<1x288x128xbf16>
    %25 = vector.shape_cast %24 : vector<1x288x128xbf16> to vector<288x128xbf16>
    %c0_27 = arith.constant 0 : index
    %c1024 = arith.constant 1024 : index
    %26 = vector.load %arg5[%c0_27, %c1024] : memref<288x1152xbf16, #tpu.memory_space<vmem>>, vector<288x128xbf16>
    tpu.vector_store %arg5[%c0_27, %c1024], %25 {strides = array<i32>} : memref<288x1152xbf16, #tpu.memory_space<vmem>>, vector<288x128xbf16>,
    %c0_28 = arith.constant 0 : index
    %c0_29 = arith.constant 0 : index
    %27 = vector.load %arg5[%c0_28, %c0_29] : memref<288x1152xbf16, #tpu.memory_space<vmem>>, vector<288x1152xbf16>
    %c0_30 = arith.constant 0 : index
    %c0_31 = arith.constant 0 : index
    %28 = vector.load %arg3[%c0_30, %c0_31] : memref<1152x128xbf16, #tpu.memory_space<vmem>>, vector<1152x128xbf16>
    %cst = arith.constant dense<0.000000e+00> : vector<288x128xf32>
    %29 = tpu.matmul %27, %28, %cst {dimension_numbers = #tpu.dot_dimension_numbers<[1], [0], [0], [1], [0, 0, 1, 1], [], []>} : vector<288x1152xbf16>, vector<1152x128xbf16>, vector<288x128xf32> -> vector<288x128xf32>
    %c0_32 = arith.constant 0 : index
    %c512_33 = arith.constant 512 : index
    %30 = vector.load %arg5[%c0_32, %c512_33] : memref<288x1152xbf16, #tpu.memory_space<vmem>>, vector<288x128xbf16>
    %c0_34 = arith.constant 0 : index
    %c0_35 = arith.constant 0 : index
    %31 = vector.load %arg2[%c0_34, %c0_35] : memref<128x128xbf16, #tpu.memory_space<vmem>>, vector<128x128xbf16>
    %cst_36 = arith.constant dense<0.000000e+00> : vector<288x128xf32>
    %32 = tpu.matmul %30, %31, %cst_36 {dimension_numbers = #tpu.dot_dimension_numbers<[1], [0], [0], [1], [0, 0, 1, 1], [], []>} : vector<288x128xbf16>, vector<128x128xbf16>, vector<288x128xf32> -> vector<288x128xf32>
    %33 = tpu.iota {dimensions = array<i32: 0>} : vector<288x1xi32>
    %c18_i32 = arith.constant 18 : i32
    %c0_i32 = arith.constant 0 : i32
    %34 = arith.cmpi eq, %c18_i32, %c0_i32 : i32
    %c1_i32 = arith.constant 1 : i32
    %35 = arith.select %34, %c1_i32, %c18_i32 : i32
    %36 = vector.broadcast %35 : i32 to vector<288x1xi32>
    %37 = arith.remsi %33, %36 : vector<288x1xi32>
    %c0_i32_37 = arith.constant 0 : i32
    %38 = vector.broadcast %c0_i32_37 : i32 to vector<288x1xi32>
    %39 = arith.cmpi ne, %37, %38 : vector<288x1xi32>
    %c0_i32_38 = arith.constant 0 : i32
    %40 = vector.broadcast %c0_i32_38 : i32 to vector<288x1xi32>
    %41 = arith.cmpi slt, %37, %40 : vector<288x1xi32>
    %c0_i32_39 = arith.constant 0 : i32
    %42 = arith.cmpi slt, %35, %c0_i32_39 : i32
    %43 = vector.broadcast %42 : i1 to vector<288x1xi1>
    %44 = vector.broadcast %43 : vector<288x1xi1> to vector<288x1xi1>
    %45 = arith.xori %41, %44 : vector<288x1xi1>
    %46 = arith.andi %45, %39 : vector<288x1xi1>
    %47 = vector.broadcast %35 : i32 to vector<288x1xi32>
    %48 = arith.addi %37, %47 : vector<288x1xi32>
    %49 = arith.select %46, %48, %37 : vector<288x1xi1>, vector<288x1xi32>
    %c16_i32 = arith.constant 16 : i32
    %50 = vector.broadcast %c16_i32 : i32 to vector<288x1xi32>
    %51 = arith.cmpi slt, %49, %50 : vector<288x1xi32>
    %52 = arith.extui %51 : vector<288x1xi1> to vector<288x1xi32>
    %53 = arith.sitofp %52 : vector<288x1xi32> to vector<288x1xf32>
    %54 = vector.broadcast %53 : vector<288x1xf32> to vector<288x128xf32>
    %55 = arith.mulf %32, %54 : vector<288x128xf32>
    %56 = vector.broadcast %53 : vector<288x1xf32> to vector<288x128xf32>
    %57 = arith.mulf %29, %56 : vector<288x128xf32>
    %cst_40 = arith.constant dense<0.000000e+00> : vector<128xf32>
    %58 = vector.multi_reduction <add>, %55, %cst_40 [0] : vector<288x128xf32> to vector<128xf32>
    %59 = vector.shape_cast %58 : vector<128xf32> to vector<1x128xf32>
    %60 = arith.mulf %55, %32 : vector<288x128xf32>
    %cst_41 = arith.constant dense<0.000000e+00> : vector<128xf32>
    %61 = vector.multi_reduction <add>, %60, %cst_41 [0] : vector<288x128xf32> to vector<128xf32>
    %62 = vector.shape_cast %61 : vector<128xf32> to vector<1x128xf32>
    %cst_42 = arith.constant dense<0.000000e+00> : vector<128xf32>
    %63 = vector.multi_reduction <add>, %57, %cst_42 [0] : vector<288x128xf32> to vector<128xf32>
    %64 = vector.shape_cast %63 : vector<128xf32> to vector<1x128xf32>
    %65 = arith.mulf %57, %29 : vector<288x128xf32>
    %cst_43 = arith.constant dense<0.000000e+00> : vector<128xf32>
    %66 = vector.multi_reduction <add>, %65, %cst_43 [0] : vector<288x128xf32> to vector<128xf32>
    %67 = vector.shape_cast %66 : vector<128xf32> to vector<1x128xf32>
    %68 = tpu.concatenate %59, %62, %64, %67 in 0 : vector<1x128xf32>, vector<1x128xf32>, vector<1x128xf32>, vector<1x128xf32> -> vector<4x128xf32>
    %c0_44 = arith.constant 0 : index
    %c0_45 = arith.constant 0 : index
    %c0_46 = arith.constant 0 : index
    %69 = vector.load %arg4[%c0_44, %c0_45, %c0_46] : memref<1x4x128xf32, #tpu.memory_space<vmem>>, vector<1x4x128xf32>
    %70 = vector.shape_cast %69 : vector<1x4x128xf32> to vector<4x128xf32>
    %71 = vector.shape_cast %68 : vector<4x128xf32> to vector<1x4x128xf32>
    tpu.vector_store %arg4[%c0_44, %c0_45, %c0_46], %71 {strides = array<i32>} : memref<1x4x128xf32, #tpu.memory_space<vmem>>, vector<1x4x128xf32>,
    return
  }
  func.func @transform_0(%arg0: i32) -> (i32, i32, i32) {
    %c0_i32 = arith.constant 0 : i32
    %c0_i32_0 = arith.constant 0 : i32
    %c0_i32_1 = arith.constant 0 : i32
    return %arg0, %c0_i32, %c0_i32_0 : i32, i32, i32
  }
  func.func @transform_1(%arg0: i32) -> (i32, i32) {
    %c0_i32 = arith.constant 0 : i32
    %c0_i32_0 = arith.constant 0 : i32
    %c0_i32_1 = arith.constant 0 : i32
    return %c0_i32, %c0_i32_0 : i32, i32
  }
  func.func @transform_2(%arg0: i32) -> (i32, i32) {
    %c0_i32 = arith.constant 0 : i32
    %c0_i32_0 = arith.constant 0 : i32
    %c0_i32_1 = arith.constant 0 : i32
    return %c0_i32, %c0_i32_0 : i32, i32
  }
  func.func @transform_3(%arg0: i32) -> (i32, i32, i32) {
    %c0_i32 = arith.constant 0 : i32
    %c0_i32_0 = arith.constant 0 : i32
    %c0_i32_1 = arith.constant 0 : i32
    return %arg0, %c0_i32, %c0_i32_0 : i32, i32, i32
  }
}

module attributes {stable_mosaic.version = 11 : i64} {
  func.func @_rb_apply_kernel(%arg0: i32, %arg1: memref<1x342x128xbf16, #tpu.memory_space<vmem>>, %arg2: memref<128x128xbf16, #tpu.memory_space<vmem>>, %arg3: memref<1152x128xbf16, #tpu.memory_space<vmem>>, %arg4: memref<4x128xf32, #tpu.memory_space<vmem>>, %arg5: memref<1x288x128xbf16, #tpu.memory_space<vmem>>, %arg6: memref<288x1152xbf16, #tpu.memory_space<vmem>>) attributes {dimension_semantics = [#tpu.dimension_semantics<parallel>], iteration_bounds = array<i64: 2>, scalar_prefetch = 0 : i64, scratch_operands = 1 : i64, tpu.core_type = #tpu.core_type<tc>, window_params = [{transform_indices = @transform_0, window_bounds = array<i64: 1, 342, 128>}, {pipeline_mode = #tpu.pipeline_mode<synchronous>, transform_indices = @transform_1, window_bounds = array<i64: 128, 128>}, {pipeline_mode = #tpu.pipeline_mode<synchronous>, transform_indices = @transform_2, window_bounds = array<i64: 1152, 128>}, {pipeline_mode = #tpu.pipeline_mode<synchronous>, transform_indices = @transform_3, window_bounds = array<i64: 4, 128>}, {transform_indices = @transform_4, window_bounds = array<i64: 1, 288, 128>}]} {
    %c0 = arith.constant 0 : index
    %c0_0 = arith.constant 0 : index
    %c0_1 = arith.constant 0 : index
    %0 = vector.load %arg1[%c0, %c0_0, %c0_1] : memref<1x342x128xbf16, #tpu.memory_space<vmem>>, vector<1x288x128xbf16>
    %1 = vector.shape_cast %0 : vector<1x288x128xbf16> to vector<288x128xbf16>
    %c0_2 = arith.constant 0 : index
    %c0_3 = arith.constant 0 : index
    %2 = vector.load %arg6[%c0_2, %c0_3] : memref<288x1152xbf16, #tpu.memory_space<vmem>>, vector<288x128xbf16>
    tpu.vector_store %arg6[%c0_2, %c0_3], %1 {strides = array<i32>} : memref<288x1152xbf16, #tpu.memory_space<vmem>>, vector<288x128xbf16>,
    %c0_4 = arith.constant 0 : index
    %c1 = arith.constant 1 : index
    %c0_5 = arith.constant 0 : index
    %3 = vector.load %arg1[%c0_4, %c1, %c0_5] : memref<1x342x128xbf16, #tpu.memory_space<vmem>>, vector<1x288x128xbf16>
    %4 = vector.shape_cast %3 : vector<1x288x128xbf16> to vector<288x128xbf16>
    %c0_6 = arith.constant 0 : index
    %c128 = arith.constant 128 : index
    %5 = vector.load %arg6[%c0_6, %c128] : memref<288x1152xbf16, #tpu.memory_space<vmem>>, vector<288x128xbf16>
    tpu.vector_store %arg6[%c0_6, %c128], %4 {strides = array<i32>} : memref<288x1152xbf16, #tpu.memory_space<vmem>>, vector<288x128xbf16>,
    %c0_7 = arith.constant 0 : index
    %c2 = arith.constant 2 : index
    %c0_8 = arith.constant 0 : index
    %6 = vector.load %arg1[%c0_7, %c2, %c0_8] : memref<1x342x128xbf16, #tpu.memory_space<vmem>>, vector<1x288x128xbf16>
    %7 = vector.shape_cast %6 : vector<1x288x128xbf16> to vector<288x128xbf16>
    %c0_9 = arith.constant 0 : index
    %c256 = arith.constant 256 : index
    %8 = vector.load %arg6[%c0_9, %c256] : memref<288x1152xbf16, #tpu.memory_space<vmem>>, vector<288x128xbf16>
    tpu.vector_store %arg6[%c0_9, %c256], %7 {strides = array<i32>} : memref<288x1152xbf16, #tpu.memory_space<vmem>>, vector<288x128xbf16>,
    %c0_10 = arith.constant 0 : index
    %c18 = arith.constant 18 : index
    %c0_11 = arith.constant 0 : index
    %9 = vector.load %arg1[%c0_10, %c18, %c0_11] : memref<1x342x128xbf16, #tpu.memory_space<vmem>>, vector<1x288x128xbf16>
    %10 = vector.shape_cast %9 : vector<1x288x128xbf16> to vector<288x128xbf16>
    %c0_12 = arith.constant 0 : index
    %c384 = arith.constant 384 : index
    %11 = vector.load %arg6[%c0_12, %c384] : memref<288x1152xbf16, #tpu.memory_space<vmem>>, vector<288x128xbf16>
    tpu.vector_store %arg6[%c0_12, %c384], %10 {strides = array<i32>} : memref<288x1152xbf16, #tpu.memory_space<vmem>>, vector<288x128xbf16>,
    %c0_13 = arith.constant 0 : index
    %c19 = arith.constant 19 : index
    %c0_14 = arith.constant 0 : index
    %12 = vector.load %arg1[%c0_13, %c19, %c0_14] : memref<1x342x128xbf16, #tpu.memory_space<vmem>>, vector<1x288x128xbf16>
    %13 = vector.shape_cast %12 : vector<1x288x128xbf16> to vector<288x128xbf16>
    %c0_15 = arith.constant 0 : index
    %c512 = arith.constant 512 : index
    %14 = vector.load %arg6[%c0_15, %c512] : memref<288x1152xbf16, #tpu.memory_space<vmem>>, vector<288x128xbf16>
    tpu.vector_store %arg6[%c0_15, %c512], %13 {strides = array<i32>} : memref<288x1152xbf16, #tpu.memory_space<vmem>>, vector<288x128xbf16>,
    %c0_16 = arith.constant 0 : index
    %c20 = arith.constant 20 : index
    %c0_17 = arith.constant 0 : index
    %15 = vector.load %arg1[%c0_16, %c20, %c0_17] : memref<1x342x128xbf16, #tpu.memory_space<vmem>>, vector<1x288x128xbf16>
    %16 = vector.shape_cast %15 : vector<1x288x128xbf16> to vector<288x128xbf16>
    %c0_18 = arith.constant 0 : index
    %c640 = arith.constant 640 : index
    %17 = vector.load %arg6[%c0_18, %c640] : memref<288x1152xbf16, #tpu.memory_space<vmem>>, vector<288x128xbf16>
    tpu.vector_store %arg6[%c0_18, %c640], %16 {strides = array<i32>} : memref<288x1152xbf16, #tpu.memory_space<vmem>>, vector<288x128xbf16>,
    %c0_19 = arith.constant 0 : index
    %c36 = arith.constant 36 : index
    %c0_20 = arith.constant 0 : index
    %18 = vector.load %arg1[%c0_19, %c36, %c0_20] : memref<1x342x128xbf16, #tpu.memory_space<vmem>>, vector<1x288x128xbf16>
    %19 = vector.shape_cast %18 : vector<1x288x128xbf16> to vector<288x128xbf16>
    %c0_21 = arith.constant 0 : index
    %c768 = arith.constant 768 : index
    %20 = vector.load %arg6[%c0_21, %c768] : memref<288x1152xbf16, #tpu.memory_space<vmem>>, vector<288x128xbf16>
    tpu.vector_store %arg6[%c0_21, %c768], %19 {strides = array<i32>} : memref<288x1152xbf16, #tpu.memory_space<vmem>>, vector<288x128xbf16>,
    %c0_22 = arith.constant 0 : index
    %c37 = arith.constant 37 : index
    %c0_23 = arith.constant 0 : index
    %21 = vector.load %arg1[%c0_22, %c37, %c0_23] : memref<1x342x128xbf16, #tpu.memory_space<vmem>>, vector<1x288x128xbf16>
    %22 = vector.shape_cast %21 : vector<1x288x128xbf16> to vector<288x128xbf16>
    %c0_24 = arith.constant 0 : index
    %c896 = arith.constant 896 : index
    %23 = vector.load %arg6[%c0_24, %c896] : memref<288x1152xbf16, #tpu.memory_space<vmem>>, vector<288x128xbf16>
    tpu.vector_store %arg6[%c0_24, %c896], %22 {strides = array<i32>} : memref<288x1152xbf16, #tpu.memory_space<vmem>>, vector<288x128xbf16>,
    %c0_25 = arith.constant 0 : index
    %c38 = arith.constant 38 : index
    %c0_26 = arith.constant 0 : index
    %24 = vector.load %arg1[%c0_25, %c38, %c0_26] : memref<1x342x128xbf16, #tpu.memory_space<vmem>>, vector<1x288x128xbf16>
    %25 = vector.shape_cast %24 : vector<1x288x128xbf16> to vector<288x128xbf16>
    %c0_27 = arith.constant 0 : index
    %c1024 = arith.constant 1024 : index
    %26 = vector.load %arg6[%c0_27, %c1024] : memref<288x1152xbf16, #tpu.memory_space<vmem>>, vector<288x128xbf16>
    tpu.vector_store %arg6[%c0_27, %c1024], %25 {strides = array<i32>} : memref<288x1152xbf16, #tpu.memory_space<vmem>>, vector<288x128xbf16>,
    %c0_28 = arith.constant 0 : index
    %c0_29 = arith.constant 0 : index
    %27 = vector.load %arg6[%c0_28, %c0_29] : memref<288x1152xbf16, #tpu.memory_space<vmem>>, vector<288x1152xbf16>
    %c0_30 = arith.constant 0 : index
    %c0_31 = arith.constant 0 : index
    %28 = vector.load %arg3[%c0_30, %c0_31] : memref<1152x128xbf16, #tpu.memory_space<vmem>>, vector<1152x128xbf16>
    %cst = arith.constant dense<0.000000e+00> : vector<288x128xf32>
    %29 = tpu.matmul %27, %28, %cst {dimension_numbers = #tpu.dot_dimension_numbers<[1], [0], [0], [1], [0, 0, 1, 1], [], []>} : vector<288x1152xbf16>, vector<1152x128xbf16>, vector<288x128xf32> -> vector<288x128xf32>
    %c0_32 = arith.constant 0 : index
    %c512_33 = arith.constant 512 : index
    %30 = vector.load %arg6[%c0_32, %c512_33] : memref<288x1152xbf16, #tpu.memory_space<vmem>>, vector<288x128xbf16>
    %c0_34 = arith.constant 0 : index
    %c0_35 = arith.constant 0 : index
    %31 = vector.load %arg2[%c0_34, %c0_35] : memref<128x128xbf16, #tpu.memory_space<vmem>>, vector<128x128xbf16>
    %cst_36 = arith.constant dense<0.000000e+00> : vector<288x128xf32>
    %32 = tpu.matmul %30, %31, %cst_36 {dimension_numbers = #tpu.dot_dimension_numbers<[1], [0], [0], [1], [0, 0, 1, 1], [], []>} : vector<288x128xbf16>, vector<128x128xbf16>, vector<288x128xf32> -> vector<288x128xf32>
    %c0_37 = arith.constant 0 : index
    %c0_38 = arith.constant 0 : index
    %33 = vector.load %arg4[%c0_37, %c0_38] : memref<4x128xf32, #tpu.memory_space<vmem>>, vector<4x128xf32>
    %34 = vector.extract_strided_slice %33 {offsets = [0, 0], sizes = [1, 128], strides = [1, 1]} : vector<4x128xf32> to vector<1x128xf32>
    %35 = vector.broadcast %34 : vector<1x128xf32> to vector<288x128xf32>
    %36 = arith.mulf %32, %35 : vector<288x128xf32>
    %37 = vector.extract_strided_slice %33 {offsets = [1, 0], sizes = [1, 128], strides = [1, 1]} : vector<4x128xf32> to vector<1x128xf32>
    %38 = vector.broadcast %37 : vector<1x128xf32> to vector<288x128xf32>
    %39 = arith.addf %36, %38 : vector<288x128xf32>
    %40 = vector.extract_strided_slice %33 {offsets = [2, 0], sizes = [1, 128], strides = [1, 1]} : vector<4x128xf32> to vector<1x128xf32>
    %41 = vector.broadcast %40 : vector<1x128xf32> to vector<288x128xf32>
    %42 = arith.mulf %29, %41 : vector<288x128xf32>
    %43 = arith.addf %39, %42 : vector<288x128xf32>
    %44 = vector.extract_strided_slice %33 {offsets = [3, 0], sizes = [1, 128], strides = [1, 1]} : vector<4x128xf32> to vector<1x128xf32>
    %45 = vector.broadcast %44 : vector<1x128xf32> to vector<288x128xf32>
    %46 = arith.addf %43, %45 : vector<288x128xf32>
    %cst_39 = arith.constant 0.000000e+00 : f32
    %47 = vector.broadcast %cst_39 : f32 to vector<288x128xf32>
    %48 = arith.maximumf %46, %47 : vector<288x128xf32>
    %49 = arith.truncf %48 : vector<288x128xf32> to vector<288x128xbf16>
    %c0_40 = arith.constant 0 : index
    %c0_41 = arith.constant 0 : index
    %c0_42 = arith.constant 0 : index
    %50 = vector.load %arg5[%c0_40, %c0_41, %c0_42] : memref<1x288x128xbf16, #tpu.memory_space<vmem>>, vector<1x288x128xbf16>
    %51 = vector.shape_cast %50 : vector<1x288x128xbf16> to vector<288x128xbf16>
    %52 = vector.shape_cast %49 : vector<288x128xbf16> to vector<1x288x128xbf16>
    tpu.vector_store %arg5[%c0_40, %c0_41, %c0_42], %52 {strides = array<i32>} : memref<1x288x128xbf16, #tpu.memory_space<vmem>>, vector<1x288x128xbf16>,
    return
  }
  func.func @transform_0(%arg0: i32) -> (i32, i32, i32) {
    %c0_i32 = arith.constant 0 : i32
    %c0_i32_0 = arith.constant 0 : i32
    %c0_i32_1 = arith.constant 0 : i32
    return %arg0, %c0_i32, %c0_i32_0 : i32, i32, i32
  }
  func.func @transform_1(%arg0: i32) -> (i32, i32) {
    %c0_i32 = arith.constant 0 : i32
    %c0_i32_0 = arith.constant 0 : i32
    %c0_i32_1 = arith.constant 0 : i32
    return %c0_i32, %c0_i32_0 : i32, i32
  }
  func.func @transform_2(%arg0: i32) -> (i32, i32) {
    %c0_i32 = arith.constant 0 : i32
    %c0_i32_0 = arith.constant 0 : i32
    %c0_i32_1 = arith.constant 0 : i32
    return %c0_i32, %c0_i32_0 : i32, i32
  }
  func.func @transform_3(%arg0: i32) -> (i32, i32) {
    %c0_i32 = arith.constant 0 : i32
    %c0_i32_0 = arith.constant 0 : i32
    %c0_i32_1 = arith.constant 0 : i32
    return %c0_i32, %c0_i32_0 : i32, i32
  }
  func.func @transform_4(%arg0: i32) -> (i32, i32, i32) {
    %c0_i32 = arith.constant 0 : i32
    %c0_i32_0 = arith.constant 0 : i32
    %c0_i32_1 = arith.constant 0 : i32
    return %arg0, %c0_i32, %c0_i32_0 : i32, i32, i32
  }
}

</mosaic_0001>

<llo_original>
// kernel: rb_forward.3
$region0: #{rb_forward.3}
  #allocation0 [shape = 'u32[]', space=smem, size = 0x4, offset = 0x4, fixed_abs, tag = 'smem constant byte address 0x4 - core index']
  #allocation1 [shape = 'u32[144,128]{1,0:T(1,128)}', space=vmem, size = 0x12000, scoped, tag = 'internal scratch']
  #allocation2 [shape = 'bf16[288,1152]{1,0:T(16,128)(2,1)}', space=vmem, size = 0xa2000, scoped, tag = 'scratch operand']
  %s0 = inlined_call_operand.vmem [shape: bf16[2,342,128], index: 0, kind: input, shape index: {}]
  %s1 = inlined_call_operand.vmem [shape: bf16[128,128], index: 1, kind: input, shape index: {}]
  %s2 = inlined_call_operand.vmem [shape: bf16[1152,128], index: 2, kind: input, shape index: {}]
  %s3 = inlined_call_operand.vmem [shape: f32[4,128], index: 3, kind: input, shape index: {}]
  %s4 = inlined_call_operand.vmem [shape: bf16[2,288,128], index: 4, kind: output, shape index: {}]
  %s5 = sld [smem:[#allocation0]]
  $region49: #{rb_forward.3} parent=0
    _
  %s7 = ssub.s32 1, %s5
  %s8 = scalar_select 0, %s7, %s5
  loop: start=0, step=1, limit=4
  $region2: #{rb_forward.3} parent=0 // loop_pre_header
    _
  $region3: #{rb_forward.3} parent=0 // loop_header
    %s10 = sphi 0, %s14
    %p11 = scmp.ge.s32.totalorder %s10, 4
    %s20 = sphi 0, %s22
    %s23 = sphi 0, %s20
    %s24 = sphi 0, %s23
    %s40 = sphi 0, %s24
    %s44 = sphi 0, %s44
    %s46 = sphi 0, %s44
    %s47 = sphi 0, %s46
    %s61 = sphi 0, %s47
    %s65 = sphi 0, %s65
    %s67 = sphi 0, %s65
    %s68 = sphi 0, %s67
    %s82 = sphi 0, %s68
    %s86 = sphi 0, %s86
    %s88 = sphi 0, %s86
    %s89 = sphi 0, %s88
    %s103 = sphi 0, %s89
    %s109 = sphi 0, %s111
    %s112 = sphi 0, %s109
    %s113 = sphi 0, %s112
    %s129 = sphi 0, %s113
  $region4: #{rb_forward.3} parent=0 // loop_header_branch
    %13 = sbr.rel (%p11) target = $region8
  $region5: #{rb_forward.3} parent=0 // loop_body
    %s15 = ssub.s32 %s10, 1
    %s16 = ssub.s32 %s10, 2
    %s17 = sadd.s32 %s10, 1
    %s18 = ssub.s32 %s10, %s17
    %p19 = scmp.eq.s32.totalorder %s18, 0
    %s21 = sadd.s32 %s20, 1
    %s22 = scalar_select %p19, %s20, %s21
    %p25 = pneg %p19
    %p26 = scmp.eq.s32.totalorder %s10, 1
    %p27 = por %p25, %p26
    %p28 = scmp.ne.s32.totalorder %s20, %s23
    %p29 = scmp.eq.s32.totalorder %s10, 0
    %p30 = por %p28, %p29
    %p31 = scmp.ne.s32.totalorder %s20, %s23
    %p32 = scmp.eq.s32.totalorder %s15, 1
    %p33 = por %p31, %p32
    %p34 = scmp.ne.s32.totalorder %s23, %s24
    %p35 = scmp.eq.s32.totalorder %s15, 0
    %p36 = por %p34, %p35
    %p37 = scmp.ne.s32.totalorder %s23, %s24
    %p38 = scmp.eq.s32.totalorder %s16, 1
    %p39 = por %p37, %p38
    %p41 = scmp.ne.s32.totalorder %s24, %s40
    %p42 = scmp.eq.s32.totalorder %s16, 0
    %p43 = por %p41, %p42
    %s45 = sadd.s32 %s44, 1
    %p48 = scmp.eq.s32.totalorder %s10, 1
    %p49 = scmp.ne.s32.totalorder %s44, %s46
    %p50 = scmp.eq.s32.totalorder %s10, 0
    %p51 = por %p49, %p50
    %p52 = scmp.ne.s32.totalorder %s44, %s46
    %p53 = scmp.eq.s32.totalorder %s15, 1
    %p54 = por %p52, %p53
    %p55 = scmp.ne.s32.totalorder %s46, %s47
    %p56 = scmp.eq.s32.totalorder %s15, 0
    %p57 = por %p55, %p56
    %p58 = scmp.ne.s32.totalorder %s46, %s47
    %p59 = scmp.eq.s32.totalorder %s16, 1
    %p60 = por %p58, %p59
    %p62 = scmp.ne.s32.totalorder %s47, %s61
    %p63 = scmp.eq.s32.totalorder %s16, 0
    %p64 = por %p62, %p63
    %s66 = sadd.s32 %s65, 1
    %p69 = scmp.eq.s32.totalorder %s10, 1
    %p70 = scmp.ne.s32.totalorder %s65, %s67
    %p71 = scmp.eq.s32.totalorder %s10, 0
    %p72 = por %p70, %p71
    %p73 = scmp.ne.s32.totalorder %s65, %s67
    %p74 = scmp.eq.s32.totalorder %s15, 1
    %p75 = por %p73, %p74
    %p76 = scmp.ne.s32.totalorder %s67, %s68
    %p77 = scmp.eq.s32.totalorder %s15, 0
    %p78 = por %p76, %p77
    %p79 = scmp.ne.s32.totalorder %s67, %s68
    %p80 = scmp.eq.s32.totalorder %s16, 1
    %p81 = por %p79, %p80
    %p83 = scmp.ne.s32.totalorder %s68, %s82
    %p84 = scmp.eq.s32.totalorder %s16, 0
    %p85 = por %p83, %p84
    %s87 = sadd.s32 %s86, 1
    %p90 = scmp.eq.s32.totalorder %s10, 1
    %p91 = scmp.ne.s32.totalorder %s86, %s88
    %p92 = scmp.eq.s32.totalorder %s10, 0
    %p93 = por %p91, %p92
    %p94 = scmp.ne.s32.totalorder %s86, %s88
    %p95 = scmp.eq.s32.totalorder %s15, 1
    %p96 = por %p94, %p95
    %p97 = scmp.ne.s32.totalorder %s88, %s89
    %p98 = scmp.eq.s32.totalorder %s15, 0
    %p99 = por %p97, %p98
    %p100 = scmp.ne.s32.totalorder %s88, %s89
    %p101 = scmp.eq.s32.totalorder %s16, 1
    %p102 = por %p100, %p101
    %p104 = scmp.ne.s32.totalorder %s89, %s103
    %p105 = scmp.eq.s32.totalorder %s16, 0
    %p106 = por %p104, %p105
    %s107 = ssub.s32 %s10, %s17
    %p108 = scmp.eq.s32.totalorder %s107, 0
    %s110 = sadd.s32 %s109, 1
    %s111 = scalar_select %p108, %s109, %s110
    %p114 = pneg %p108
    %p115 = scmp.eq.s32.totalorder %s10, 1
    %p116 = por %p114, %p115
    %p117 = scmp.ne.s32.totalorder %s109, %s112
    %p118 = scmp.eq.s32.totalorder %s10, 0
    %p119 = por %p117, %p118
    %p120 = scmp.ne.s32.totalorder %s109, %s112
    %p121 = scmp.eq.s32.totalorder %s15, 1
    %p122 = por %p120, %p121
    %p123 = scmp.ne.s32.totalorder %s112, %s113
    %p124 = scmp.eq.s32.totalorder %s15, 0
    %p125 = por %p123, %p124
    %p126 = scmp.ne.s32.totalorder %s112, %s113
    %p127 = scmp.eq.s32.totalorder %s16, 1
    %p128 = por %p126, %p127
    %p130 = scmp.ne.s32.totalorder %s113, %s129
    %p131 = scmp.eq.s32.totalorder %s16, 0
    %p132 = por %p130, %p131
    %p133 = scmp.le.s32.totalorder 1, %s10
    %p134 = scmp.lt.s32.totalorder %s10, 3
    %p135 = pnand %p133, %p134
    %p136 = pneg %p135
    // Predicated region
    $region9: #{rb_forward.3} parent=5 // pred_check
      _
    $region10: #{rb_forward.3} parent=5 // pred_check_branch
      %138 = sbr.rel (%p135) target = $region12
    $region11: #{rb_forward.3} parent=5 // pred_region
      %s139 = ssub.s32 %s10, 1
      // Predicated region
      $region13: #{rb_forward.3} parent=11 // pred_check
        %p140 = pneg %p57
      $region14: #{rb_forward.3} parent=11 // pred_check_branch
        %142 = sbr.rel (%p140) target = $region16
      $region15: #{rb_forward.3} parent=11 // pred_region
        _
      $region16: #{rb_forward.3} parent=11 // pred_fallthru
        _
      // Predicated region
      $region17: #{rb_forward.3} parent=11 // pred_check
        %p143 = pneg %p78
      $region18: #{rb_forward.3} parent=11 // pred_check_branch
        %145 = sbr.rel (%p143) target = $region20
      $region19: #{rb_forward.3} parent=11 // pred_region
        _
      $region20: #{rb_forward.3} parent=11 // pred_fallthru
        _
      // Predicated region
      $region21: #{rb_forward.3} parent=11 // pred_check
        %p146 = pneg %p99
      $region22: #{rb_forward.3} parent=11 // pred_check_branch
        %148 = sbr.rel (%p146) target = $region24
      $region23: #{rb_forward.3} parent=11 // pred_region
        _
      $region24: #{rb_forward.3} parent=11 // pred_fallthru
        _
    $region12: #{rb_forward.3} parent=5 // pred_fallthru
      _
    %p149 = scmp.lt.s32.totalorder %s10, 2
    // Predicated region
    $region25: #{rb_forward.3} parent=5 // pred_check
      %p150 = pneg %p149
    $region26: #{rb_forward.3} parent=5 // pred_check_branch
      %152 = sbr.rel (%p150) target = $region28
    $region27: #{rb_forward.3} parent=5 // pred_region
      // Predicated region
      $region29: #{rb_forward.3} parent=27 // pred_check
        %p153 = pneg %p30
      $region30: #{rb_forward.3} parent=27 // pred_check_branch
        %155 = sbr.rel (%p153) target = $region32
      $region31: #{rb_forward.3} parent=27 // pred_region
        %p156 = scmp.lt.s32.totalorder %s10, 1
        %s157 = scalar_select %p156, %s10, 1
        %s158 = smul.addr %s157, 43
        %s159 = smul.addr %s158, 4
        %s160 = scalar_lea.vmem %s0, %s159
      $region32: #{rb_forward.3} parent=27 // pred_fallthru
        _
    $region28: #{rb_forward.3} parent=5 // pred_fallthru
      _
    %p161 = scmp.le.s32.totalorder 1, %s10
    %p162 = scmp.lt.s32.totalorder %s10, 3
    %p163 = pnand %p161, %p162
    %p164 = pneg %p163
    // Predicated region
    $region33: #{rb_forward.3} parent=5 // pred_check
      _
    $region34: #{rb_forward.3} parent=5 // pred_check_branch
      %166 = sbr.rel (%p163) target = $region36
    $region35: #{rb_forward.3} parent=5 // pred_region
      %s167 = ssub.s32 %s10, 1
      %p168 = scmp.lt.s32.totalorder %s15, 1
      %s169 = scalar_select %p168, %s15, 1
      %s170 = smul.addr %s169, 43
      %s171 = smul.addr %s170, 4
      %s172 = scalar_lea.vmem %s0, %s171
      %p173 = pneg %p36
      %p174 = pneg %p33
      %p175 = pneg %p57
      %p176 = pneg %p54
      %p177 = pneg %p78
      %p178 = pneg %p75
      %p179 = pneg %p99
      %p180 = pneg %p96
      %p181 = pneg %p125
      %p182 = pneg %p122
      %p183 = scmp.lt.s32.totalorder %s15, 1
      %s184 = scalar_select %p183, %s15, 1
      %s185 = smul.addr %s184, 36
      %s186 = smul.addr %s185, 4
      %s187 = scalar_lea.vmem %s4, %s186
      %p188 = scmp.lt.s32.totalorder %s15, 1
      %s189 = scalar_select %p188, %s15, 1
      %s190 = smul.addr %s189, 43
      %s191 = smul.addr %s190, 4
      %s192 = scalar_lea.vmem %s0, %s191
      %p193 = scmp.lt.s32.totalorder %s15, 1
      %s194 = scalar_select %p193, %s15, 1
      %s195 = smul.addr %s194, 36
      %s196 = smul.addr %s195, 4
      %s197 = scalar_lea.vmem %s4, %s196
      %v199 = vld [vmem:[%s192] sm:$0xf]
      %v200 = vld [vmem:[%s192 + $0x4] sm:$0xf]
      %v201 = vld [vmem:[%s192 + $0x8] sm:$0xf]
      %v202 = vld [vmem:[%s192 + $0xc] sm:$0xf]
      %v203 = vld [vmem:[%s192 + $0x10] sm:$0xf]
      %v204 = vld [vmem:[%s192 + $0x14] sm:$0xf]
      %v205 = vld [vmem:[%s192 + $0x18] sm:$0xf]
      %v206 = vld [vmem:[%s192 + $0x1c] sm:$0xf]
      %v207 = vld [vmem:[%s192 + $0x20] sm:$0xf]
      %v208 = vld [vmem:[%s192 + $0x24] sm:$0xf]
      %v209 = vld [vmem:[%s192 + $0x28] sm:$0xf]
      %v210 = vld [vmem:[%s192 + $0x2c] sm:$0xf]
      %v211 = vld [vmem:[%s192 + $0x30] sm:$0xf]
      %v212 = vld [vmem:[%s192 + $0x34] sm:$0xf]
      %v213 = vld [vmem:[%s192 + $0x38] sm:$0xf]
      %v214 = vld [vmem:[%s192 + $0x3c] sm:$0xf]
      %v215 = vld [vmem:[%s192 + $0x40] sm:$0xf]
      %v216 = vld [vmem:[%s192 + $0x44] sm:$0xf]
      %v217 = vld [vmem:[%s192 + $0x48] sm:$0xf]
      %v218 = vld [vmem:[%s192 + $0x4c] sm:$0xf]
      %v219 = vld [vmem:[%s192 + $0x50] sm:$0xf]
      %v220 = vld [vmem:[%s192 + $0x54] sm:$0xf]
      %v221 = vld [vmem:[%s192 + $0x58] sm:$0xf]
      %v222 = vld [vmem:[%s192 + $0x5c] sm:$0xf]
      %v223 = vld [vmem:[%s192 + $0x60] sm:$0xf]
      %v224 = vld [vmem:[%s192 + $0x64] sm:$0xf]
      %v225 = vld [vmem:[%s192 + $0x68] sm:$0xf]
      %v226 = vld [vmem:[%s192 + $0x6c] sm:$0xf]
      %v227 = vld [vmem:[%s192 + $0x70] sm:$0xf]
      %v228 = vld [vmem:[%s192 + $0x74] sm:$0xf]
      %v229 = vld [vmem:[%s192 + $0x78] sm:$0xf]
      %v230 = vld [vmem:[%s192 + $0x7c] sm:$0xf]
      %v231 = vld [vmem:[%s192 + $0x80] sm:$0xf]
      %v232 = vld [vmem:[%s192 + $0x84] sm:$0xf]
      %v233 = vld [vmem:[%s192 + $0x88] sm:$0xf]
      %v234 = vld [vmem:[%s192 + $0x8c] sm:$0xf]
      %v271 = vunpack.c.l.b16 %v199
      %v272 = vunpack.c.l.b16 %v200
      %v273 = vunpack.c.l.b16 %v201
      %v274 = vunpack.c.l.b16 %v202
      %v275 = vunpack.c.l.b16 %v203
      %v276 = vunpack.c.l.b16 %v204
      %v277 = vunpack.c.l.b16 %v205
      %v278 = vunpack.c.l.b16 %v206
      %v279 = vunpack.c.l.b16 %v207
      %v280 = vunpack.c.l.b16 %v208
      %v281 = vunpack.c.l.b16 %v209
      %v282 = vunpack.c.l.b16 %v210
      %v283 = vunpack.c.l.b16 %v211
      %v284 = vunpack.c.l.b16 %v212
      %v285 = vunpack.c.l.b16 %v213
      %v286 = vunpack.c.l.b16 %v214
      %v287 = vunpack.c.l.b16 %v215
      %v288 = vunpack.c.l.b16 %v216
      %v289 = vunpack.c.l.b16 %v217
      %v290 = vunpack.c.l.b16 %v218
      %v291 = vunpack.c.l.b16 %v219
      %v292 = vunpack.c.l.b16 %v220
      %v293 = vunpack.c.l.b16 %v221
      %v294 = vunpack.c.l.b16 %v222
      %v295 = vunpack.c.l.b16 %v223
      %v296 = vunpack.c.l.b16 %v224
      %v297 = vunpack.c.l.b16 %v225
      %v298 = vunpack.c.l.b16 %v226
      %v299 = vunpack.c.l.b16 %v227
      %v300 = vunpack.c.l.b16 %v228
      %v301 = vunpack.c.l.b16 %v229
      %v302 = vunpack.c.l.b16 %v230
      %v303 = vunpack.c.l.b16 %v231
      %v304 = vunpack.c.l.b16 %v232
      %v305 = vunpack.c.l.b16 %v233
      %v306 = vunpack.c.l.b16 %v234
      %v307 = vpack.c.b16 %v272, %v271
      %v308 = vpack.c.b16 %v274, %v273
      %v309 = vpack.c.b16 %v276, %v275
      %v310 = vpack.c.b16 %v278, %v277
      %v311 = vpack.c.b16 %v280, %v279
      %v312 = vpack.c.b16 %v282, %v281
      %v313 = vpack.c.b16 %v284, %v283
      %v314 = vpack.c.b16 %v286, %v285
      %v315 = vpack.c.b16 %v288, %v287
      %v316 = vpack.c.b16 %v290, %v289
      %v317 = vpack.c.b16 %v292, %v291
      %v318 = vpack.c.b16 %v294, %v293
      %v319 = vpack.c.b16 %v296, %v295
      %v320 = vpack.c.b16 %v298, %v297
      %v321 = vpack.c.b16 %v300, %v299
      %v322 = vpack.c.b16 %v302, %v301
      %v323 = vpack.c.b16 %v304, %v303
      %v324 = vpack.c.b16 %v306, %v305
      %343 = vst [vmem:[#allocation2] sm:$0xff] %v307
      %344 = vst [vmem:[#allocation2 + $0x48] sm:$0xff] %v308
      %345 = vst [vmem:[#allocation2 + $0x90] sm:$0xff] %v309
      %346 = vst [vmem:[#allocation2 + $0xd8] sm:$0xff] %v310
      %347 = vst [vmem:[#allocation2 + $0x120] sm:$0xff] %v311
      %348 = vst [vmem:[#allocation2 + $0x168] sm:$0xff] %v312
      %349 = vst [vmem:[#allocation2 + $0x1b0] sm:$0xff] %v313
      %350 = vst [vmem:[#allocation2 + $0x1f8] sm:$0xff] %v314
      %351 = vst [vmem:[#allocation2 + $0x240] sm:$0xff] %v315
      %352 = vst [vmem:[#allocation2 + $0x288] sm:$0xff] %v316
      %353 = vst [vmem:[#allocation2 + $0x2d0] sm:$0xff] %v317
      %354 = vst [vmem:[#allocation2 + $0x318] sm:$0xff] %v318
      %355 = vst [vmem:[#allocation2 + $0x360] sm:$0xff] %v319
      %356 = vst [vmem:[#allocation2 + $0x3a8] sm:$0xff] %v320
      %357 = vst [vmem:[#allocation2 + $0x3f0] sm:$0xff] %v321
      %358 = vst [vmem:[#allocation2 + $0x438] sm:$0xff] %v322
      %359 = vst [vmem:[#allocation2 + $0x480] sm:$0xff] %v323
      %360 = vst [vmem:[#allocation2 + $0x4c8] sm:$0xff] %v324
      %v361 = vld [vmem:[%s192] sm:$0xf]
      %v362 = vld [vmem:[%s192 + $0x4] sm:$0xf]
      %v363 = vld [vmem:[%s192 + $0x8] sm:$0xf]
      %v364 = vld [vmem:[%s192 + $0xc] sm:$0xf]
      %v365 = vld [vmem:[%s192 + $0x10] sm:$0xf]
      %v366 = vld [vmem:[%s192 + $0x14] sm:$0xf]
      %v367 = vld [vmem:[%s192 + $0x18] sm:$0xf]
      %v368 = vld [vmem:[%s192 + $0x1c] sm:$0xf]
      %v369 = vld [vmem:[%s192 + $0x20] sm:$0xf]
      %v370 = vld [vmem:[%s192 + $0x24] sm:$0xf]
      %v371 = vld [vmem:[%s192 + $0x28] sm:$0xf]
      %v372 = vld [vmem:[%s192 + $0x2c] sm:$0xf]
      %v373 = vld [vmem:[%s192 + $0x30] sm:$0xf]
      %v374 = vld [vmem:[%s192 + $0x34] sm:$0xf]
      %v375 = vld [vmem:[%s192 + $0x38] sm:$0xf]
      %v376 = vld [vmem:[%s192 + $0x3c] sm:$0xf]
      %v377 = vld [vmem:[%s192 + $0x40] sm:$0xf]
      %v378 = vld [vmem:[%s192 + $0x44] sm:$0xf]
      %v379 = vld [vmem:[%s192 + $0x48] sm:$0xf]
      %v380 = vld [vmem:[%s192 + $0x4c] sm:$0xf]
      %v381 = vld [vmem:[%s192 + $0x50] sm:$0xf]
      %v382 = vld [vmem:[%s192 + $0x54] sm:$0xf]
      %v383 = vld [vmem:[%s192 + $0x58] sm:$0xf]
      %v384 = vld [vmem:[%s192 + $0x5c] sm:$0xf]
      %v385 = vld [vmem:[%s192 + $0x60] sm:$0xf]
      %v386 = vld [vmem:[%s192 + $0x64] sm:$0xf]
      %v387 = vld [vmem:[%s192 + $0x68] sm:$0xf]
      %v388 = vld [vmem:[%s192 + $0x6c] sm:$0xf]
      %v389 = vld [vmem:[%s192 + $0x70] sm:$0xf]
      %v390 = vld [vmem:[%s192 + $0x74] sm:$0xf]
      %v391 = vld [vmem:[%s192 + $0x78] sm:$0xf]
      %v392 = vld [vmem:[%s192 + $0x7c] sm:$0xf]
      %v393 = vld [vmem:[%s192 + $0x80] sm:$0xf]
      %v394 = vld [vmem:[%s192 + $0x84] sm:$0xf]
      %v395 = vld [vmem:[%s192 + $0x88] sm:$0xf]
      %v396 = vld [vmem:[%s192 + $0x8c] sm:$0xf]
      %v397 = vld [vmem:[%s192 + $0x90] sm:$0x1]
      %v435 = vunpack.c.l.b16 %v361
      %v436 = vunpack.c.l.b16 %v362
      %v437 = vunpack.c.l.b16 %v363
      %v438 = vunpack.c.l.b16 %v364
      %v439 = vunpack.c.l.b16 %v365
      %v440 = vunpack.c.l.b16 %v366
      %v441 = vunpack.c.l.b16 %v367
      %v442 = vunpack.c.l.b16 %v368
      %v443 = vunpack.c.l.b16 %v369
      %v444 = vunpack.c.l.b16 %v370
      %v445 = vunpack.c.l.b16 %v371
      %v446 = vunpack.c.l.b16 %v372
      %v447 = vunpack.c.l.b16 %v373
      %v448 = vunpack.c.l.b16 %v374
      %v449 = vunpack.c.l.b16 %v375
      %v450 = vunpack.c.l.b16 %v376
      %v451 = vunpack.c.l.b16 %v377
      %v452 = vunpack.c.l.b16 %v378
      %v453 = vunpack.c.l.b16 %v379
      %v454 = vunpack.c.l.b16 %v380
      %v455 = vunpack.c.l.b16 %v381
      %v456 = vunpack.c.l.b16 %v382
      %v457 = vunpack.c.l.b16 %v383
      %v458 = vunpack.c.l.b16 %v384
      %v459 = vunpack.c.l.b16 %v385
      %v460 = vunpack.c.l.b16 %v386
      %v461 = vunpack.c.l.b16 %v387
      %v462 = vunpack.c.l.b16 %v388
      %v463 = vunpack.c.l.b16 %v389
      %v464 = vunpack.c.l.b16 %v390
      %v465 = vunpack.c.l.b16 %v391
      %v466 = vunpack.c.l.b16 %v392
      %v467 = vunpack.c.l.b16 %v393
      %v468 = vunpack.c.l.b16 %v394
      %v469 = vunpack.c.l.b16 %v395
      %v470 = vunpack.c.l.b16 %v396
      %v471 = vunpack.c.l.b16 %v397
      %v472 = vpack.c.b16 %v436, %v435
      %v473 = vpack.c.b16 %v438, %v437
      %v474 = vpack.c.b16 %v440, %v439
      %v475 = vpack.c.b16 %v442, %v441
      %v476 = vpack.c.b16 %v444, %v443
      %v477 = vpack.c.b16 %v446, %v445
      %v478 = vpack.c.b16 %v448, %v447
      %v479 = vpack.c.b16 %v450, %v449
      %v480 = vpack.c.b16 %v452, %v451
      %v481 = vpack.c.b16 %v454, %v453
      %v482 = vpack.c.b16 %v456, %v455
      %v483 = vpack.c.b16 %v458, %v457
      %v484 = vpack.c.b16 %v460, %v459
      %v485 = vpack.c.b16 %v462, %v461
      %v486 = vpack.c.b16 %v464, %v463
      %v487 = vpack.c.b16 %v466, %v465
      %v488 = vpack.c.b16 %v468, %v467
      %v489 = vpack.c.b16 %v470, %v469
      %v490 = vpack.c.b16 %v471, %v471
      %vm491 = vsmask.f32 7424
      %v493 = vshrl.u32 %v472, 16
      %v495 = vshll.u32 %v472, 16
      %v497 = vrot.slane %v495, 1
      %v498 = vor.u32 %v493, %v497
      %v500 = vshll.u32 %v473, 16
      %v502 = vrot.slane %v500, 1
      %v503 = vsel %vm491, %v498, %v502
      %v504 = vshrl.u32 %v473, 16
      %v506 = vor.u32 %v504, %v502
      %v508 = vshll.u32 %v474, 16
      %v510 = vrot.slane %v508, 1
      %v511 = vsel %vm491, %v506, %v510
      %v512 = vshrl.u32 %v474, 16
      %v514 = vor.u32 %v512, %v510
      %v516 = vshll.u32 %v475, 16
      %v518 = vrot.slane %v516, 1
      %v519 = vsel %vm491, %v514, %v518
      %v520 = vshrl.u32 %v475, 16
      %v522 = vor.u32 %v520, %v518
      %v524 = vshll.u32 %v476, 16
      %v526 = vrot.slane %v524, 1
      %v527 = vsel %vm491, %v522, %v526
      %v528 = vshrl.u32 %v476, 16
      %v530 = vor.u32 %v528, %v526
      %v532 = vshll.u32 %v477, 16
      %v534 = vrot.slane %v532, 1
      %v535 = vsel %vm491, %v530, %v534
      %v536 = vshrl.u32 %v477, 16
      %v538 = vor.u32 %v536, %v534
      %v540 = vshll.u32 %v478, 16
      %v542 = vrot.slane %v540, 1
      %v543 = vsel %vm491, %v538, %v542
      %v544 = vshrl.u32 %v478, 16
      %v546 = vor.u32 %v544, %v542
      %v548 = vshll.u32 %v479, 16
      %v550 = vrot.slane %v548, 1
      %v551 = vsel %vm491, %v546, %v550
      %v552 = vshrl.u32 %v479, 16
      %v554 = vor.u32 %v552, %v550
      %v556 = vshll.u32 %v480, 16
      %v558 = vrot.slane %v556, 1
      %v559 = vsel %vm491, %v554, %v558
      %v560 = vshrl.u32 %v480, 16
      %v562 = vor.u32 %v560, %v558
      %v564 = vshll.u32 %v481, 16
      %v566 = vrot.slane %v564, 1
      %v567 = vsel %vm491, %v562, %v566
      %v568 = vshrl.u32 %v481, 16
      %v570 = vor.u32 %v568, %v566
      %v572 = vshll.u32 %v482, 16
      %v574 = vrot.slane %v572, 1
      %v575 = vsel %vm491, %v570, %v574
      %v576 = vshrl.u32 %v482, 16
      %v578 = vor.u32 %v576, %v574
      %v580 = vshll.u32 %v483, 16
      %v582 = vrot.slane %v580, 1
      %v583 = vsel %vm491, %v578, %v582
      %v584 = vshrl.u32 %v483, 16
      %v586 = vor.u32 %v584, %v582
      %v588 = vshll.u32 %v484, 16
      %v590 = vrot.slane %v588, 1
      %v591 = vsel %vm491, %v586, %v590
      %v592 = vshrl.u32 %v484, 16
      %v594 = vor.u32 %v592, %v590
      %v596 = vshll.u32 %v485, 16
      %v598 = vrot.slane %v596, 1
      %v599 = vsel %vm491, %v594, %v598
      %v600 = vshrl.u32 %v485, 16
      %v602 = vor.u32 %v600, %v598
      %v604 = vshll.u32 %v486, 16
      %v606 = vrot.slane %v604, 1
      %v607 = vsel %vm491, %v602, %v606
      %v608 = vshrl.u32 %v486, 16
      %v610 = vor.u32 %v608, %v606
      %v612 = vshll.u32 %v487, 16
      %v614 = vrot.slane %v612, 1
      %v615 = vsel %vm491, %v610, %v614
      %v616 = vshrl.u32 %v487, 16
      %v618 = vor.u32 %v616, %v614
      %v620 = vshll.u32 %v488, 16
      %v622 = vrot.slane %v620, 1
      %v623 = vsel %vm491, %v618, %v622
      %v624 = vshrl.u32 %v488, 16
      %v626 = vor.u32 %v624, %v622
      %v628 = vshll.u32 %v489, 16
      %v630 = vrot.slane %v628, 1
      %v631 = vsel %vm491, %v626, %v630
      %v632 = vshrl.u32 %v489, 16
      %v634 = vor.u32 %v632, %v630
      %v636 = vshll.u32 %v490, 16
      %v638 = vrot.slane %v636, 1
      %v639 = vsel %vm491, %v634, %v638
      %658 = vst [vmem:[#allocation2 + $0x8] sm:$0xff] %v503
      %659 = vst [vmem:[#allocation2 + $0x50] sm:$0xff] %v511
      %660 = vst [vmem:[#allocation2 + $0x98] sm:$0xff] %v519
      %661 = vst [vmem:[#allocation2 + $0xe0] sm:$0xff] %v527
      %662 = vst [vmem:[#allocation2 + $0x128] sm:$0xff] %v535
      %663 = vst [vmem:[#allocation2 + $0x170] sm:$0xff] %v543
      %664 = vst [vmem:[#allocation2 + $0x1b8] sm:$0xff] %v551
      %665 = vst [vmem:[#allocation2 + $0x200] sm:$0xff] %v559
      %666 = vst [vmem:[#allocation2 + $0x248] sm:$0xff] %v567
      %667 = vst [vmem:[#allocation2 + $0x290] sm:$0xff] %v575
      %668 = vst [vmem:[#allocation2 + $0x2d8] sm:$0xff] %v583
      %669 = vst [vmem:[#allocation2 + $0x320] sm:$0xff] %v591
      %670 = vst [vmem:[#allocation2 + $0x368] sm:$0xff] %v599
      %671 = vst [vmem:[#allocation2 + $0x3b0] sm:$0xff] %v607
      %672 = vst [vmem:[#allocation2 + $0x3f8] sm:$0xff] %v615
      %673 = vst [vmem:[#allocation2 + $0x440] sm:$0xff] %v623
      %674 = vst [vmem:[#allocation2 + $0x488] sm:$0xff] %v631
      %675 = vst [vmem:[#allocation2 + $0x4d0] sm:$0xff] %v639
      %v676 = vld [vmem:[%s192] sm:$0xe]
      %v677 = vld [vmem:[%s192 + $0x4] sm:$0xf]
      %v678 = vld [vmem:[%s192 + $0x8] sm:$0xf]
      %v679 = vld [vmem:[%s192 + $0xc] sm:$0xf]
      %v680 = vld [vmem:[%s192 + $0x10] sm:$0xf]
      %v681 = vld [vmem:[%s192 + $0x14] sm:$0xf]
      %v682 = vld [vmem:[%s192 + $0x18] sm:$0xf]
      %v683 = vld [vmem:[%s192 + $0x1c] sm:$0xf]
      %v684 = vld [vmem:[%s192 + $0x20] sm:$0xf]
      %v685 = vld [vmem:[%s192 + $0x24] sm:$0xf]
      %v686 = vld [vmem:[%s192 + $0x28] sm:$0xf]
      %v687 = vld [vmem:[%s192 + $0x2c] sm:$0xf]
      %v688 = vld [vmem:[%s192 + $0x30] sm:$0xf]
      %v689 = vld [vmem:[%s192 + $0x34] sm:$0xf]
      %v690 = vld [vmem:[%s192 + $0x38] sm:$0xf]
      %v691 = vld [vmem:[%s192 + $0x3c] sm:$0xf]
      %v692 = vld [vmem:[%s192 + $0x40] sm:$0xf]
      %v693 = vld [vmem:[%s192 + $0x44] sm:$0xf]
      %v694 = vld [vmem:[%s192 + $0x48] sm:$0xf]
      %v695 = vld [vmem:[%s192 + $0x4c] sm:$0xf]
      %v696 = vld [vmem:[%s192 + $0x50] sm:$0xf]
      %v697 = vld [vmem:[%s192 + $0x54] sm:$0xf]
      %v698 = vld [vmem:[%s192 + $0x58] sm:$0xf]
      %v699 = vld [vmem:[%s192 + $0x5c] sm:$0xf]
      %v700 = vld [vmem:[%s192 + $0x60] sm:$0xf]
      %v701 = vld [vmem:[%s192 + $0x64] sm:$0xf]
      %v702 = vld [vmem:[%s192 + $0x68] sm:$0xf]
      %v703 = vld [vmem:[%s192 + $0x6c] sm:$0xf]
      %v704 = vld [vmem:[%s192 + $0x70] sm:$0xf]
      %v705 = vld [vmem:[%s192 + $0x74] sm:$0xf]
      %v706 = vld [vmem:[%s192 + $0x78] sm:$0xf]
      %v707 = vld [vmem:[%s192 + $0x7c] sm:$0xf]
      %v708 = vld [vmem:[%s192 + $0x80] sm:$0xf]
      %v709 = vld [vmem:[%s192 + $0x84] sm:$0xf]
      %v710 = vld [vmem:[%s192 + $0x88] sm:$0xf]
      %v711 = vld [vmem:[%s192 + $0x8c] sm:$0xf]
      %v712 = vld [vmem:[%s192 + $0x90] sm:$0x1]
      %v750 = vunpack.c.l.b16 %v676
      %v751 = vunpack.c.l.b16 %v677
      %v752 = vunpack.c.l.b16 %v678
      %v753 = vunpack.c.l.b16 %v679
      %v754 = vunpack.c.l.b16 %v680
      %v755 = vunpack.c.l.b16 %v681
      %v756 = vunpack.c.l.b16 %v682
      %v757 = vunpack.c.l.b16 %v683
      %v758 = vunpack.c.l.b16 %v684
      %v759 = vunpack.c.l.b16 %v685
      %v760 = vunpack.c.l.b16 %v686
      %v761 = vunpack.c.l.b16 %v687
      %v762 = vunpack.c.l.b16 %v688
      %v763 = vunpack.c.l.b16 %v689
      %v764 = vunpack.c.l.b16 %v690
      %v765 = vunpack.c.l.b16 %v691
      %v766 = vunpack.c.l.b16 %v692
      %v767 = vunpack.c.l.b16 %v693
      %v768 = vunpack.c.l.b16 %v694
      %v769 = vunpack.c.l.b16 %v695
      %v770 = vunpack.c.l.b16 %v696
      %v771 = vunpack.c.l.b16 %v697
      %v772 = vunpack.c.l.b16 %v698
      %v773 = vunpack.c.l.b16 %v699
      %v774 = vunpack.c.l.b16 %v700
      %v775 = vunpack.c.l.b16 %v701
      %v776 = vunpack.c.l.b16 %v702
      %v777 = vunpack.c.l.b16 %v703
      %v778 = vunpack.c.l.b16 %v704
      %v779 = vunpack.c.l.b16 %v705
      %v780 = vunpack.c.l.b16 %v706
      %v781 = vunpack.c.l.b16 %v707
      %v782 = vunpack.c.l.b16 %v708
      %v783 = vunpack.c.l.b16 %v709
      %v784 = vunpack.c.l.b16 %v710
      %v785 = vunpack.c.l.b16 %v711
      %v786 = vunpack.c.l.b16 %v712
      %v787 = vpack.c.b16 %v751, %v750
      %v788 = vpack.c.b16 %v753, %v752
      %v789 = vpack.c.b16 %v755, %v754
      %v790 = vpack.c.b16 %v757, %v756
      %v791 = vpack.c.b16 %v759, %v758
      %v792 = vpack.c.b16 %v761, %v760
      %v793 = vpack.c.b16 %v763, %v762
      %v794 = vpack.c.b16 %v765, %v764
      %v795 = vpack.c.b16 %v767, %v766
      %v796 = vpack.c.b16 %v769, %v768
      %v797 = vpack.c.b16 %v771, %v770
      %v798 = vpack.c.b16 %v773, %v772
      %v799 = vpack.c.b16 %v775, %v774
      %v800 = vpack.c.b16 %v777, %v776
      %v801 = vpack.c.b16 %v779, %v778
      %v802 = vpack.c.b16 %v781, %v780
      %v803 = vpack.c.b16 %v783, %v782
      %v804 = vpack.c.b16 %v785, %v784
      %v805 = vpack.c.b16 %v786, %v786
      %vm806 = vcmask 1046528
      %v807 = vrot.slane %v787, 1
      %v808 = vrot.slane %v788, 1
      %v809 = vsel %vm806, %v807, %v808
      %v810 = vrot.slane %v789, 1
      %v811 = vsel %vm806, %v808, %v810
      %v812 = vrot.slane %v790, 1
      %v813 = vsel %vm806, %v810, %v812
      %v814 = vrot.slane %v791, 1
      %v815 = vsel %vm806, %v812, %v814
      %v816 = vrot.slane %v792, 1
      %v817 = vsel %vm806, %v814, %v816
      %v818 = vrot.slane %v793, 1
      %v819 = vsel %vm806, %v816, %v818
      %v820 = vrot.slane %v794, 1
      %v821 = vsel %vm806, %v818, %v820
      %v822 = vrot.slane %v795, 1
      %v823 = vsel %vm806, %v820, %v822
      %v824 = vrot.slane %v796, 1
      %v825 = vsel %vm806, %v822, %v824
      %v826 = vrot.slane %v797, 1
      %v827 = vsel %vm806, %v824, %v826
      %v828 = vrot.slane %v798, 1
      %v829 = vsel %vm806, %v826, %v828
      %v830 = vrot.slane %v799, 1
      %v831 = vsel %vm806, %v828, %v830
      %v832 = vrot.slane %v800, 1
      %v833 = vsel %vm806, %v830, %v832
      %v834 = vrot.slane %v801, 1
      %v835 = vsel %vm806, %v832, %v834
      %v836 = vrot.slane %v802, 1
      %v837 = vsel %vm806, %v834, %v836
      %v838 = vrot.slane %v803, 1
      %v839 = vsel %vm806, %v836, %v838
      %v840 = vrot.slane %v804, 1
      %v841 = vsel %vm806, %v838, %v840
      %v842 = vrot.slane %v805, 1
      %v843 = vsel %vm806, %v840, %v842
      %862 = vst [vmem:[#allocation2 + $0x10] sm:$0xff] %v809
      %863 = vst [vmem:[#allocation2 + $0x58] sm:$0xff] %v811
      %864 = vst [vmem:[#allocation2 + $0xa0] sm:$0xff] %v813
      %865 = vst [vmem:[#allocation2 + $0xe8] sm:$0xff] %v815
      %866 = vst [vmem:[#allocation2 + $0x130] sm:$0xff] %v817
      %867 = vst [vmem:[#allocation2 + $0x178] sm:$0xff] %v819
      %868 = vst [vmem:[#allocation2 + $0x1c0] sm:$0xff] %v821
      %869 = vst [vmem:[#allocation2 + $0x208] sm:$0xff] %v823
      %870 = vst [vmem:[#allocation2 + $0x250] sm:$0xff] %v825
      %871 = vst [vmem:[#allocation2 + $0x298] sm:$0xff] %v827
      %872 = vst [vmem:[#allocation2 + $0x2e0] sm:$0xff] %v829
      %873 = vst [vmem:[#allocation2 + $0x328] sm:$0xff] %v831
      %874 = vst [vmem:[#allocation2 + $0x370] sm:$0xff] %v833
      %875 = vst [vmem:[#allocation2 + $0x3b8] sm:$0xff] %v835
      %876 = vst [vmem:[#allocation2 + $0x400] sm:$0xff] %v837
      %877 = vst [vmem:[#allocation2 + $0x448] sm:$0xff] %v839
      %878 = vst [vmem:[#allocation2 + $0x490] sm:$0xff] %v841
      %879 = vst [vmem:[#allocation2 + $0x4d8] sm:$0xff] %v843
      %v880 = vld [vmem:[%s192 + $0x8] sm:$0xe]
      %v881 = vld [vmem:[%s192 + $0xc] sm:$0xf]
      %v882 = vld [vmem:[%s192 + $0x10] sm:$0xf]
      %v883 = vld [vmem:[%s192 + $0x14] sm:$0xf]
      %v884 = vld [vmem:[%s192 + $0x18] sm:$0xf]
      %v885 = vld [vmem:[%s192 + $0x1c] sm:$0xf]
      %v886 = vld [vmem:[%s192 + $0x20] sm:$0xf]
      %v887 = vld [vmem:[%s192 + $0x24] sm:$0xf]
      %v888 = vld [vmem:[%s192 + $0x28] sm:$0xf]
      %v889 = vld [vmem:[%s192 + $0x2c] sm:$0xf]
      %v890 = vld [vmem:[%s192 + $0x30] sm:$0xf]
      %v891 = vld [vmem:[%s192 + $0x34] sm:$0xf]
      %v892 = vld [vmem:[%s192 + $0x38] sm:$0xf]
      %v893 = vld [vmem:[%s192 + $0x3c] sm:$0xf]
      %v894 = vld [vmem:[%s192 + $0x40] sm:$0xf]
      %v895 = vld [vmem:[%s192 + $0x44] sm:$0xf]
      %v896 = vld [vmem:[%s192 + $0x48] sm:$0xf]
      %v897 = vld [vmem:[%s192 + $0x4c] sm:$0xf]
      %v898 = vld [vmem:[%s192 + $0x50] sm:$0xf]
      %v899 = vld [vmem:[%s192 + $0x54] sm:$0xf]
      %v900 = vld [vmem:[%s192 + $0x58] sm:$0xf]
      %v901 = vld [vmem:[%s192 + $0x5c] sm:$0xf]
      %v902 = vld [vmem:[%s192 + $0x60] sm:$0xf]
      %v903 = vld [vmem:[%s192 + $0x64] sm:$0xf]
      %v904 = vld [vmem:[%s192 + $0x68] sm:$0xf]
      %v905 = vld [vmem:[%s192 + $0x6c] sm:$0xf]
      %v906 = vld [vmem:[%s192 + $0x70] sm:$0xf]
      %v907 = vld [vmem:[%s192 + $0x74] sm:$0xf]
      %v908 = vld [vmem:[%s192 + $0x78] sm:$0xf]
      %v909 = vld [vmem:[%s192 + $0x7c] sm:$0xf]
      %v910 = vld [vmem:[%s192 + $0x80] sm:$0xf]
      %v911 = vld [vmem:[%s192 + $0x84] sm:$0xf]
      %v912 = vld [vmem:[%s192 + $0x88] sm:$0xf]
      %v913 = vld [vmem:[%s192 + $0x8c] sm:$0xf]
      %v914 = vld [vmem:[%s192 + $0x90] sm:$0xf]
      %v915 = vld [vmem:[%s192 + $0x94] sm:$0xf]
      %v916 = vld [vmem:[%s192 + $0x98] sm:$0x1]
      %v954 = vunpack.c.l.b16 %v880
      %v955 = vunpack.c.l.b16 %v881
      %v956 = vunpack.c.l.b16 %v882
      %v957 = vunpack.c.l.b16 %v883
      %v958 = vunpack.c.l.b16 %v884
      %v959 = vunpack.c.l.b16 %v885
      %v960 = vunpack.c.l.b16 %v886
      %v961 = vunpack.c.l.b16 %v887
      %v962 = vunpack.c.l.b16 %v888
      %v963 = vunpack.c.l.b16 %v889
      %v964 = vunpack.c.l.b16 %v890
      %v965 = vunpack.c.l.b16 %v891
      %v966 = vunpack.c.l.b16 %v892
      %v967 = vunpack.c.l.b16 %v893
      %v968 = vunpack.c.l.b16 %v894
      %v969 = vunpack.c.l.b16 %v895
      %v970 = vunpack.c.l.b16 %v896
      %v971 = vunpack.c.l.b16 %v897
      %v972 = vunpack.c.l.b16 %v898
      %v973 = vunpack.c.l.b16 %v899
      %v974 = vunpack.c.l.b16 %v900
      %v975 = vunpack.c.l.b16 %v901
      %v976 = vunpack.c.l.b16 %v902
      %v977 = vunpack.c.l.b16 %v903
      %v978 = vunpack.c.l.b16 %v904
      %v979 = vunpack.c.l.b16 %v905
      %v980 = vunpack.c.l.b16 %v906
      %v981 = vunpack.c.l.b16 %v907
      %v982 = vunpack.c.l.b16 %v908
      %v983 = vunpack.c.l.b16 %v909
      %v984 = vunpack.c.l.b16 %v910
      %v985 = vunpack.c.l.b16 %v911
      %v986 = vunpack.c.l.b16 %v912
      %v987 = vunpack.c.l.b16 %v913
      %v988 = vunpack.c.l.b16 %v914
      %v989 = vunpack.c.l.b16 %v915
      %v990 = vunpack.c.l.b16 %v916
      %v991 = vpack.c.b16 %v955, %v954
      %v992 = vpack.c.b16 %v957, %v956
      %v993 = vpack.c.b16 %v959, %v958
      %v994 = vpack.c.b16 %v961, %v960
      %v995 = vpack.c.b16 %v963, %v962
      %v996 = vpack.c.b16 %v965, %v964
      %v997 = vpack.c.b16 %v967, %v966
      %v998 = vpack.c.b16 %v969, %v968
      %v999 = vpack.c.b16 %v971, %v970
      %v1000 = vpack.c.b16 %v973, %v972
      %v1001 = vpack.c.b16 %v975, %v974
      %v1002 = vpack.c.b16 %v977, %v976
      %v1003 = vpack.c.b16 %v979, %v978
      %v1004 = vpack.c.b16 %v981, %v980
      %v1005 = vpack.c.b16 %v983, %v982
      %v1006 = vpack.c.b16 %v985, %v984
      %v1007 = vpack.c.b16 %v987, %v986
      %v1008 = vpack.c.b16 %v989, %v988
      %v1009 = vpack.c.b16 %v990, %v990
      %v1010 = vrot.slane %v991, 1
      %v1011 = vrot.slane %v992, 1
      %v1012 = vsel %vm806, %v1010, %v1011
      %v1013 = vrot.slane %v993, 1
      %v1014 = vsel %vm806, %v1011, %v1013
      %v1015 = vrot.slane %v994, 1
      %v1016 = vsel %vm806, %v1013, %v1015
      %v1017 = vrot.slane %v995, 1
      %v1018 = vsel %vm806, %v1015, %v1017
      %v1019 = vrot.slane %v996, 1
      %v1020 = vsel %vm806, %v1017, %v1019
      %v1021 = vrot.slane %v997, 1
      %v1022 = vsel %vm806, %v1019, %v1021
      %v1023 = vrot.slane %v998, 1
      %v1024 = vsel %vm806, %v1021, %v1023
      %v1025 = vrot.slane %v999, 1
      %v1026 = vsel %vm806, %v1023, %v1025
      %v1027 = vrot.slane %v1000, 1
      %v1028 = vsel %vm806, %v1025, %v1027
      %v1029 = vrot.slane %v1001, 1
      %v1030 = vsel %vm806, %v1027, %v1029
      %v1031 = vrot.slane %v1002, 1
      %v1032 = vsel %vm806, %v1029, %v1031
      %v1033 = vrot.slane %v1003, 1
      %v1034 = vsel %vm806, %v1031, %v1033
      %v1035 = vrot.slane %v1004, 1
      %v1036 = vsel %vm806, %v1033, %v1035
      %v1037 = vrot.slane %v1005, 1
      %v1038 = vsel %vm806, %v1035, %v1037
      %v1039 = vrot.slane %v1006, 1
      %v1040 = vsel %vm806, %v1037, %v1039
      %v1041 = vrot.slane %v1007, 1
      %v1042 = vsel %vm806, %v1039, %v1041
      %v1043 = vrot.slane %v1008, 1
      %v1044 = vsel %vm806, %v1041, %v1043
      %v1045 = vrot.slane %v1009, 1
      %v1046 = vsel %vm806, %v1043, %v1045
      %1065 = vst [vmem:[#allocation2 + $0x18] sm:$0xff] %v1012
      %1066 = vst [vmem:[#allocation2 + $0x60] sm:$0xff] %v1014
      %1067 = vst [vmem:[#allocation2 + $0xa8] sm:$0xff] %v1016
      %1068 = vst [vmem:[#allocation2 + $0xf0] sm:$0xff] %v1018
      %1069 = vst [vmem:[#allocation2 + $0x138] sm:$0xff] %v1020
      %1070 = vst [vmem:[#allocation2 + $0x180] sm:$0xff] %v1022
      %1071 = vst [vmem:[#allocation2 + $0x1c8] sm:$0xff] %v1024
      %1072 = vst [vmem:[#allocation2 + $0x210] sm:$0xff] %v1026
      %1073 = vst [vmem:[#allocation2 + $0x258] sm:$0xff] %v1028
      %1074 = vst [vmem:[#allocation2 + $0x2a0] sm:$0xff] %v1030
      %1075 = vst [vmem:[#allocation2 + $0x2e8] sm:$0xff] %v1032
      %1076 = vst [vmem:[#allocation2 + $0x330] sm:$0xff] %v1034
      %1077 = vst [vmem:[#allocation2 + $0x378] sm:$0xff] %v1036
      %1078 = vst [vmem:[#allocation2 + $0x3c0] sm:$0xff] %v1038
      %1079 = vst [vmem:[#allocation2 + $0x408] sm:$0xff] %v1040
      %1080 = vst [vmem:[#allocation2 + $0x450] sm:$0xff] %v1042
      %1081 = vst [vmem:[#allocation2 + $0x498] sm:$0xff] %v1044
      %1082 = vst [vmem:[#allocation2 + $0x4e0] sm:$0xff] %v1046
      %v1083 = vld [vmem:[%s192 + $0x8] sm:$0xe]
      %v1084 = vld [vmem:[%s192 + $0xc] sm:$0xf]
      %v1085 = vld [vmem:[%s192 + $0x10] sm:$0xf]
      %v1086 = vld [vmem:[%s192 + $0x14] sm:$0xf]
      %v1087 = vld [vmem:[%s192 + $0x18] sm:$0xf]
      %v1088 = vld [vmem:[%s192 + $0x1c] sm:$0xf]
      %v1089 = vld [vmem:[%s192 + $0x20] sm:$0xf]
      %v1090 = vld [vmem:[%s192 + $0x24] sm:$0xf]
      %v1091 = vld [vmem:[%s192 + $0x28] sm:$0xf]
      %v1092 = vld [vmem:[%s192 + $0x2c] sm:$0xf]
      %v1093 = vld [vmem:[%s192 + $0x30] sm:$0xf]
      %v1094 = vld [vmem:[%s192 + $0x34] sm:$0xf]
      %v1095 = vld [vmem:[%s192 + $0x38] sm:$0xf]
      %v1096 = vld [vmem:[%s192 + $0x3c] sm:$0xf]
      %v1097 = vld [vmem:[%s192 + $0x40] sm:$0xf]
      %v1098 = vld [vmem:[%s192 + $0x44] sm:$0xf]
      %v1099 = vld [vmem:[%s192 + $0x48] sm:$0xf]
      %v1100 = vld [vmem:[%s192 + $0x4c] sm:$0xf]
      %v1101 = vld [vmem:[%s192 + $0x50] sm:$0xf]
      %v1102 = vld [vmem:[%s192 + $0x54] sm:$0xf]
      %v1103 = vld [vmem:[%s192 + $0x58] sm:$0xf]
      %v1104 = vld [vmem:[%s192 + $0x5c] sm:$0xf]
      %v1105 = vld [vmem:[%s192 + $0x60] sm:$0xf]
      %v1106 = vld [vmem:[%s192 + $0x64] sm:$0xf]
      %v1107 = vld [vmem:[%s192 + $0x68] sm:$0xf]
      %v1108 = vld [vmem:[%s192 + $0x6c] sm:$0xf]
      %v1109 = vld [vmem:[%s192 + $0x70] sm:$0xf]
      %v1110 = vld [vmem:[%s192 + $0x74] sm:$0xf]
      %v1111 = vld [vmem:[%s192 + $0x78] sm:$0xf]
      %v1112 = vld [vmem:[%s192 + $0x7c] sm:$0xf]
      %v1113 = vld [vmem:[%s192 + $0x80] sm:$0xf]
      %v1114 = vld [vmem:[%s192 + $0x84] sm:$0xf]
      %v1115 = vld [vmem:[%s192 + $0x88] sm:$0xf]
      %v1116 = vld [vmem:[%s192 + $0x8c] sm:$0xf]
      %v1117 = vld [vmem:[%s192 + $0x90] sm:$0xf]
      %v1118 = vld [vmem:[%s192 + $0x94] sm:$0xf]
      %v1119 = vld [vmem:[%s192 + $0x98] sm:$0x3]
      %v1157 = vunpack.c.l.b16 %v1083
      %v1158 = vunpack.c.l.b16 %v1084
      %v1159 = vunpack.c.l.b16 %v1085
      %v1160 = vunpack.c.l.b16 %v1086
      %v1161 = vunpack.c.l.b16 %v1087
      %v1162 = vunpack.c.l.b16 %v1088
      %v1163 = vunpack.c.l.b16 %v1089
      %v1164 = vunpack.c.l.b16 %v1090
      %v1165 = vunpack.c.l.b16 %v1091
      %v1166 = vunpack.c.l.b16 %v1092
      %v1167 = vunpack.c.l.b16 %v1093
      %v1168 = vunpack.c.l.b16 %v1094
      %v1169 = vunpack.c.l.b16 %v1095
      %v1170 = vunpack.c.l.b16 %v1096
      %v1171 = vunpack.c.l.b16 %v1097
      %v1172 = vunpack.c.l.b16 %v1098
      %v1173 = vunpack.c.l.b16 %v1099
      %v1174 = vunpack.c.l.b16 %v1100
      %v1175 = vunpack.c.l.b16 %v1101
      %v1176 = vunpack.c.l.b16 %v1102
      %v1177 = vunpack.c.l.b16 %v1103
      %v1178 = vunpack.c.l.b16 %v1104
      %v1179 = vunpack.c.l.b16 %v1105
      %v1180 = vunpack.c.l.b16 %v1106
      %v1181 = vunpack.c.l.b16 %v1107
      %v1182 = vunpack.c.l.b16 %v1108
      %v1183 = vunpack.c.l.b16 %v1109
      %v1184 = vunpack.c.l.b16 %v1110
      %v1185 = vunpack.c.l.b16 %v1111
      %v1186 = vunpack.c.l.b16 %v1112
      %v1187 = vunpack.c.l.b16 %v1113
      %v1188 = vunpack.c.l.b16 %v1114
      %v1189 = vunpack.c.l.b16 %v1115
      %v1190 = vunpack.c.l.b16 %v1116
      %v1191 = vunpack.c.l.b16 %v1117
      %v1192 = vunpack.c.l.b16 %v1118
      %v1193 = vunpack.c.l.b16 %v1119
      %v1194 = vpack.c.b16 %v1158, %v1157
      %v1195 = vpack.c.b16 %v1160, %v1159
      %v1196 = vpack.c.b16 %v1162, %v1161
      %v1197 = vpack.c.b16 %v1164, %v1163
      %v1198 = vpack.c.b16 %v1166, %v1165
      %v1199 = vpack.c.b16 %v1168, %v1167
      %v1200 = vpack.c.b16 %v1170, %v1169
      %v1201 = vpack.c.b16 %v1172, %v1171
      %v1202 = vpack.c.b16 %v1174, %v1173
      %v1203 = vpack.c.b16 %v1176, %v1175
      %v1204 = vpack.c.b16 %v1178, %v1177
      %v1205 = vpack.c.b16 %v1180, %v1179
      %v1206 = vpack.c.b16 %v1182, %v1181
      %v1207 = vpack.c.b16 %v1184, %v1183
      %v1208 = vpack.c.b16 %v1186, %v1185
      %v1209 = vpack.c.b16 %v1188, %v1187
      %v1210 = vpack.c.b16 %v1190, %v1189
      %v1211 = vpack.c.b16 %v1192, %v1191
      %v1212 = vpack.c.b16 %v1193, %v1193
      %vm1213 = vsmask.f32 6400
      %v1215 = vshrl.u32 %v1194, 16
      %v1217 = vrot.slane %v1215, 1
      %v1218 = vshll.u32 %v1194, 16
      %v1220 = vrot.slane %v1218, 2
      %v1221 = vor.u32 %v1217, %v1220
      %v1223 = vshrl.u32 %v1195, 16
      %v1225 = vrot.slane %v1223, 1
      %v1226 = vshll.u32 %v1195, 16
      %v1228 = vrot.slane %v1226, 2
      %v1229 = vor.u32 %v1225, %v1228
      %v1230 = vsel %vm1213, %v1221, %v1229
      %v1232 = vshrl.u32 %v1196, 16
      %v1234 = vrot.slane %v1232, 1
      %v1235 = vshll.u32 %v1196, 16
      %v1237 = vrot.slane %v1235, 2
      %v1238 = vor.u32 %v1234, %v1237
      %v1239 = vsel %vm1213, %v1229, %v1238
      %v1241 = vshrl.u32 %v1197, 16
      %v1243 = vrot.slane %v1241, 1
      %v1244 = vshll.u32 %v1197, 16
      %v1246 = vrot.slane %v1244, 2
      %v1247 = vor.u32 %v1243, %v1246
      %v1248 = vsel %vm1213, %v1238, %v1247
      %v1250 = vshrl.u32 %v1198, 16
      %v1252 = vrot.slane %v1250, 1
      %v1253 = vshll.u32 %v1198, 16
      %v1255 = vrot.slane %v1253, 2
      %v1256 = vor.u32 %v1252, %v1255
      %v1257 = vsel %vm1213, %v1247, %v1256
      %v1259 = vshrl.u32 %v1199, 16
      %v1261 = vrot.slane %v1259, 1
      %v1262 = vshll.u32 %v1199, 16
      %v1264 = vrot.slane %v1262, 2
      %v1265 = vor.u32 %v1261, %v1264
      %v1266 = vsel %vm1213, %v1256, %v1265
      %v1268 = vshrl.u32 %v1200, 16
      %v1270 = vrot.slane %v1268, 1
      %v1271 = vshll.u32 %v1200, 16
      %v1273 = vrot.slane %v1271, 2
      %v1274 = vor.u32 %v1270, %v1273
      %v1275 = vsel %vm1213, %v1265, %v1274
      %v1277 = vshrl.u32 %v1201, 16
      %v1279 = vrot.slane %v1277, 1
      %v1280 = vshll.u32 %v1201, 16
      %v1282 = vrot.slane %v1280, 2
      %v1283 = vor.u32 %v1279, %v1282
      %v1284 = vsel %vm1213, %v1274, %v1283
      %v1286 = vshrl.u32 %v1202, 16
      %v1288 = vrot.slane %v1286, 1
      %v1289 = vshll.u32 %v1202, 16
      %v1291 = vrot.slane %v1289, 2
      %v1292 = vor.u32 %v1288, %v1291
      %v1293 = vsel %vm1213, %v1283, %v1292
      %v1295 = vshrl.u32 %v1203, 16
      %v1297 = vrot.slane %v1295, 1
      %v1298 = vshll.u32 %v1203, 16
      %v1300 = vrot.slane %v1298, 2
      %v1301 = vor.u32 %v1297, %v1300
      %v1302 = vsel %vm1213, %v1292, %v1301
      %v1304 = vshrl.u32 %v1204, 16
      %v1306 = vrot.slane %v1304, 1
      %v1307 = vshll.u32 %v1204, 16
      %v1309 = vrot.slane %v1307, 2
      %v1310 = vor.u32 %v1306, %v1309
      %v1311 = vsel %vm1213, %v1301, %v1310
      %v1313 = vshrl.u32 %v1205, 16
      %v1315 = vrot.slane %v1313, 1
      %v1316 = vshll.u32 %v1205, 16
      %v1318 = vrot.slane %v1316, 2
      %v1319 = vor.u32 %v1315, %v1318
      %v1320 = vsel %vm1213, %v1310, %v1319
      %v1322 = vshrl.u32 %v1206, 16
      %v1324 = vrot.slane %v1322, 1
      %v1325 = vshll.u32 %v1206, 16
      %v1327 = vrot.slane %v1325, 2
      %v1328 = vor.u32 %v1324, %v1327
      %v1329 = vsel %vm1213, %v1319, %v1328
      %v1331 = vshrl.u32 %v1207, 16
      %v1333 = vrot.slane %v1331, 1
      %v1334 = vshll.u32 %v1207, 16
      %v1336 = vrot.slane %v1334, 2
      %v1337 = vor.u32 %v1333, %v1336
      %v1338 = vsel %vm1213, %v1328, %v1337
      %v1340 = vshrl.u32 %v1208, 16
      %v1342 = vrot.slane %v1340, 1
      %v1343 = vshll.u32 %v1208, 16
      %v1345 = vrot.slane %v1343, 2
      %v1346 = vor.u32 %v1342, %v1345
      %v1347 = vsel %vm1213, %v1337, %v1346
      %v1349 = vshrl.u32 %v1209, 16
      %v1351 = vrot.slane %v1349, 1
      %v1352 = vshll.u32 %v1209, 16
      %v1354 = vrot.slane %v1352, 2
      %v1355 = vor.u32 %v1351, %v1354
      %v1356 = vsel %vm1213, %v1346, %v1355
      %v1358 = vshrl.u32 %v1210, 16
      %v1360 = vrot.slane %v1358, 1
      %v1361 = vshll.u32 %v1210, 16
      %v1363 = vrot.slane %v1361, 2
      %v1364 = vor.u32 %v1360, %v1363
      %v1365 = vsel %vm1213, %v1355, %v1364
      %v1367 = vshrl.u32 %v1211, 16
      %v1369 = vrot.slane %v1367, 1
      %v1370 = vshll.u32 %v1211, 16
      %v1372 = vrot.slane %v1370, 2
      %v1373 = vor.u32 %v1369, %v1372
      %v1374 = vsel %vm1213, %v1364, %v1373
      %v1376 = vshrl.u32 %v1212, 16
      %v1378 = vrot.slane %v1376, 1
      %v1379 = vshll.u32 %v1212, 16
      %v1381 = vrot.slane %v1379, 2
      %v1382 = vor.u32 %v1378, %v1381
      %v1383 = vsel %vm1213, %v1373, %v1382
      %1402 = vst [vmem:[#allocation2 + $0x20] sm:$0xff] %v1230
      %1403 = vst [vmem:[#allocation2 + $0x68] sm:$0xff] %v1239
      %1404 = vst [vmem:[#allocation2 + $0xb0] sm:$0xff] %v1248
      %1405 = vst [vmem:[#allocation2 + $0xf8] sm:$0xff] %v1257
      %1406 = vst [vmem:[#allocation2 + $0x140] sm:$0xff] %v1266
      %1407 = vst [vmem:[#allocation2 + $0x188] sm:$0xff] %v1275
      %1408 = vst [vmem:[#allocation2 + $0x1d0] sm:$0xff] %v1284
      %1409 = vst [vmem:[#allocation2 + $0x218] sm:$0xff] %v1293
      %1410 = vst [vmem:[#allocation2 + $0x260] sm:$0xff] %v1302
      %1411 = vst [vmem:[#allocation2 + $0x2a8] sm:$0xff] %v1311
      %1412 = vst [vmem:[#allocation2 + $0x2f0] sm:$0xff] %v1320
      %1413 = vst [vmem:[#allocation2 + $0x338] sm:$0xff] %v1329
      %1414 = vst [vmem:[#allocation2 + $0x380] sm:$0xff] %v1338
      %1415 = vst [vmem:[#allocation2 + $0x3c8] sm:$0xff] %v1347
      %1416 = vst [vmem:[#allocation2 + $0x410] sm:$0xff] %v1356
      %1417 = vst [vmem:[#allocation2 + $0x458] sm:$0xff] %v1365
      %1418 = vst [vmem:[#allocation2 + $0x4a0] sm:$0xff] %v1374
      %1419 = vst [vmem:[#allocation2 + $0x4e8] sm:$0xff] %v1383
      %v1420 = vld [vmem:[%s192 + $0x8] sm:$0xc]
      %v1421 = vld [vmem:[%s192 + $0xc] sm:$0xf]
      %v1422 = vld [vmem:[%s192 + $0x10] sm:$0xf]
      %v1423 = vld [vmem:[%s192 + $0x14] sm:$0xf]
      %v1424 = vld [vmem:[%s192 + $0x18] sm:$0xf]
      %v1425 = vld [vmem:[%s192 + $0x1c] sm:$0xf]
      %v1426 = vld [vmem:[%s192 + $0x20] sm:$0xf]
      %v1427 = vld [vmem:[%s192 + $0x24] sm:$0xf]
      %v1428 = vld [vmem:[%s192 + $0x28] sm:$0xf]
      %v1429 = vld [vmem:[%s192 + $0x2c] sm:$0xf]
      %v1430 = vld [vmem:[%s192 + $0x30] sm:$0xf]
      %v1431 = vld [vmem:[%s192 + $0x34] sm:$0xf]
      %v1432 = vld [vmem:[%s192 + $0x38] sm:$0xf]
      %v1433 = vld [vmem:[%s192 + $0x3c] sm:$0xf]
      %v1434 = vld [vmem:[%s192 + $0x40] sm:$0xf]
      %v1435 = vld [vmem:[%s192 + $0x44] sm:$0xf]
      %v1436 = vld [vmem:[%s192 + $0x48] sm:$0xf]
      %v1437 = vld [vmem:[%s192 + $0x4c] sm:$0xf]
      %v1438 = vld [vmem:[%s192 + $0x50] sm:$0xf]
      %v1439 = vld [vmem:[%s192 + $0x54] sm:$0xf]
      %v1440 = vld [vmem:[%s192 + $0x58] sm:$0xf]
      %v1441 = vld [vmem:[%s192 + $0x5c] sm:$0xf]
      %v1442 = vld [vmem:[%s192 + $0x60] sm:$0xf]
      %v1443 = vld [vmem:[%s192 + $0x64] sm:$0xf]
      %v1444 = vld [vmem:[%s192 + $0x68] sm:$0xf]
      %v1445 = vld [vmem:[%s192 + $0x6c] sm:$0xf]
      %v1446 = vld [vmem:[%s192 + $0x70] sm:$0xf]
      %v1447 = vld [vmem:[%s192 + $0x74] sm:$0xf]
      %v1448 = vld [vmem:[%s192 + $0x78] sm:$0xf]
      %v1449 = vld [vmem:[%s192 + $0x7c] sm:$0xf]
      %v1450 = vld [vmem:[%s192 + $0x80] sm:$0xf]
      %v1451 = vld [vmem:[%s192 + $0x84] sm:$0xf]
      %v1452 = vld [vmem:[%s192 + $0x88] sm:$0xf]
      %v1453 = vld [vmem:[%s192 + $0x8c] sm:$0xf]
      %v1454 = vld [vmem:[%s192 + $0x90] sm:$0xf]
      %v1455 = vld [vmem:[%s192 + $0x94] sm:$0xf]
      %v1456 = vld [vmem:[%s192 + $0x98] sm:$0x3]
      %v1494 = vunpack.c.l.b16 %v1420
      %v1495 = vunpack.c.l.b16 %v1421
      %v1496 = vunpack.c.l.b16 %v1422
      %v1497 = vunpack.c.l.b16 %v1423
      %v1498 = vunpack.c.l.b16 %v1424
      %v1499 = vunpack.c.l.b16 %v1425
      %v1500 = vunpack.c.l.b16 %v1426
      %v1501 = vunpack.c.l.b16 %v1427
      %v1502 = vunpack.c.l.b16 %v1428
      %v1503 = vunpack.c.l.b16 %v1429
      %v1504 = vunpack.c.l.b16 %v1430
      %v1505 = vunpack.c.l.b16 %v1431
      %v1506 = vunpack.c.l.b16 %v1432
      %v1507 = vunpack.c.l.b16 %v1433
      %v1508 = vunpack.c.l.b16 %v1434
      %v1509 = vunpack.c.l.b16 %v1435
      %v1510 = vunpack.c.l.b16 %v1436
      %v1511 = vunpack.c.l.b16 %v1437
      %v1512 = vunpack.c.l.b16 %v1438
      %v1513 = vunpack.c.l.b16 %v1439
      %v1514 = vunpack.c.l.b16 %v1440
      %v1515 = vunpack.c.l.b16 %v1441
      %v1516 = vunpack.c.l.b16 %v1442
      %v1517 = vunpack.c.l.b16 %v1443
      %v1518 = vunpack.c.l.b16 %v1444
      %v1519 = vunpack.c.l.b16 %v1445
      %v1520 = vunpack.c.l.b16 %v1446
      %v1521 = vunpack.c.l.b16 %v1447
      %v1522 = vunpack.c.l.b16 %v1448
      %v1523 = vunpack.c.l.b16 %v1449
      %v1524 = vunpack.c.l.b16 %v1450
      %v1525 = vunpack.c.l.b16 %v1451
      %v1526 = vunpack.c.l.b16 %v1452
      %v1527 = vunpack.c.l.b16 %v1453
      %v1528 = vunpack.c.l.b16 %v1454
      %v1529 = vunpack.c.l.b16 %v1455
      %v1530 = vunpack.c.l.b16 %v1456
      %v1531 = vpack.c.b16 %v1495, %v1494
      %v1532 = vpack.c.b16 %v1497, %v1496
      %v1533 = vpack.c.b16 %v1499, %v1498
      %v1534 = vpack.c.b16 %v1501, %v1500
      %v1535 = vpack.c.b16 %v1503, %v1502
      %v1536 = vpack.c.b16 %v1505, %v1504
      %v1537 = vpack.c.b16 %v1507, %v1506
      %v1538 = vpack.c.b16 %v1509, %v1508
      %v1539 = vpack.c.b16 %v1511, %v1510
      %v1540 = vpack.c.b16 %v1513, %v1512
      %v1541 = vpack.c.b16 %v1515, %v1514
      %v1542 = vpack.c.b16 %v1517, %v1516
      %v1543 = vpack.c.b16 %v1519, %v1518
      %v1544 = vpack.c.b16 %v1521, %v1520
      %v1545 = vpack.c.b16 %v1523, %v1522
      %v1546 = vpack.c.b16 %v1525, %v1524
      %v1547 = vpack.c.b16 %v1527, %v1526
      %v1548 = vpack.c.b16 %v1529, %v1528
      %v1549 = vpack.c.b16 %v1530, %v1530
      %vm1550 = vcmask 1045504
      %v1551 = vrot.slane %v1531, 2
      %v1552 = vrot.slane %v1532, 2
      %v1553 = vsel %vm1550, %v1551, %v1552
      %v1554 = vrot.slane %v1533, 2
      %v1555 = vsel %vm1550, %v1552, %v1554
      %v1556 = vrot.slane %v1534, 2
      %v1557 = vsel %vm1550, %v1554, %v1556
      %v1558 = vrot.slane %v1535, 2
      %v1559 = vsel %vm1550, %v1556, %v1558
      %v1560 = vrot.slane %v1536, 2
      %v1561 = vsel %vm1550, %v1558, %v1560
      %v1562 = vrot.slane %v1537, 2
      %v1563 = vsel %vm1550, %v1560, %v1562
      %v1564 = vrot.slane %v1538, 2
      %v1565 = vsel %vm1550, %v1562, %v1564
      %v1566 = vrot.slane %v1539, 2
      %v1567 = vsel %vm1550, %v1564, %v1566
      %v1568 = vrot.slane %v1540, 2
      %v1569 = vsel %vm1550, %v1566, %v1568
      %v1570 = vrot.slane %v1541, 2
      %v1571 = vsel %vm1550, %v1568, %v1570
      %v1572 = vrot.slane %v1542, 2
      %v1573 = vsel %vm1550, %v1570, %v1572
      %v1574 = vrot.slane %v1543, 2
      %v1575 = vsel %vm1550, %v1572, %v1574
      %v1576 = vrot.slane %v1544, 2
      %v1577 = vsel %vm1550, %v1574, %v1576
      %v1578 = vrot.slane %v1545, 2
      %v1579 = vsel %vm1550, %v1576, %v1578
      %v1580 = vrot.slane %v1546, 2
      %v1581 = vsel %vm1550, %v1578, %v1580
      %v1582 = vrot.slane %v1547, 2
      %v1583 = vsel %vm1550, %v1580, %v1582
      %v1584 = vrot.slane %v1548, 2
      %v1585 = vsel %vm1550, %v1582, %v1584
      %v1586 = vrot.slane %v1549, 2
      %v1587 = vsel %vm1550, %v1584, %v1586
      %1606 = vst [vmem:[#allocation2 + $0x28] sm:$0xff] %v1553
      %1607 = vst [vmem:[#allocation2 + $0x70] sm:$0xff] %v1555
      %1608 = vst [vmem:[#allocation2 + $0xb8] sm:$0xff] %v1557
      %1609 = vst [vmem:[#allocation2 + $0x100] sm:$0xff] %v1559
      %1610 = vst [vmem:[#allocation2 + $0x148] sm:$0xff] %v1561
      %1611 = vst [vmem:[#allocation2 + $0x190] sm:$0xff] %v1563
      %1612 = vst [vmem:[#allocation2 + $0x1d8] sm:$0xff] %v1565
      %1613 = vst [vmem:[#allocation2 + $0x220] sm:$0xff] %v1567
      %1614 = vst [vmem:[#allocation2 + $0x268] sm:$0xff] %v1569
      %1615 = vst [vmem:[#allocation2 + $0x2b0] sm:$0xff] %v1571
      %1616 = vst [vmem:[#allocation2 + $0x2f8] sm:$0xff] %v1573
      %1617 = vst [vmem:[#allocation2 + $0x340] sm:$0xff] %v1575
      %1618 = vst [vmem:[#allocation2 + $0x388] sm:$0xff] %v1577
      %1619 = vst [vmem:[#allocation2 + $0x3d0] sm:$0xff] %v1579
      %1620 = vst [vmem:[#allocation2 + $0x418] sm:$0xff] %v1581
      %1621 = vst [vmem:[#allocation2 + $0x460] sm:$0xff] %v1583
      %1622 = vst [vmem:[#allocation2 + $0x4a8] sm:$0xff] %v1585
      %1623 = vst [vmem:[#allocation2 + $0x4f0] sm:$0xff] %v1587
      %v1624 = vld [vmem:[%s192 + $0x10] sm:$0xc]
      %v1625 = vld [vmem:[%s192 + $0x14] sm:$0xf]
      %v1626 = vld [vmem:[%s192 + $0x18] sm:$0xf]
      %v1627 = vld [vmem:[%s192 + $0x1c] sm:$0xf]
      %v1628 = vld [vmem:[%s192 + $0x20] sm:$0xf]
      %v1629 = vld [vmem:[%s192 + $0x24] sm:$0xf]
      %v1630 = vld [vmem:[%s192 + $0x28] sm:$0xf]
      %v1631 = vld [vmem:[%s192 + $0x2c] sm:$0xf]
      %v1632 = vld [vmem:[%s192 + $0x30] sm:$0xf]
      %v1633 = vld [vmem:[%s192 + $0x34] sm:$0xf]
      %v1634 = vld [vmem:[%s192 + $0x38] sm:$0xf]
      %v1635 = vld [vmem:[%s192 + $0x3c] sm:$0xf]
      %v1636 = vld [vmem:[%s192 + $0x40] sm:$0xf]
      %v1637 = vld [vmem:[%s192 + $0x44] sm:$0xf]
      %v1638 = vld [vmem:[%s192 + $0x48] sm:$0xf]
      %v1639 = vld [vmem:[%s192 + $0x4c] sm:$0xf]
      %v1640 = vld [vmem:[%s192 + $0x50] sm:$0xf]
      %v1641 = vld [vmem:[%s192 + $0x54] sm:$0xf]
      %v1642 = vld [vmem:[%s192 + $0x58] sm:$0xf]
      %v1643 = vld [vmem:[%s192 + $0x5c] sm:$0xf]
      %v1644 = vld [vmem:[%s192 + $0x60] sm:$0xf]
      %v1645 = vld [vmem:[%s192 + $0x64] sm:$0xf]
      %v1646 = vld [vmem:[%s192 + $0x68] sm:$0xf]
      %v1647 = vld [vmem:[%s192 + $0x6c] sm:$0xf]
      %v1648 = vld [vmem:[%s192 + $0x70] sm:$0xf]
      %v1649 = vld [vmem:[%s192 + $0x74] sm:$0xf]
      %v1650 = vld [vmem:[%s192 + $0x78] sm:$0xf]
      %v1651 = vld [vmem:[%s192 + $0x7c] sm:$0xf]
      %v1652 = vld [vmem:[%s192 + $0x80] sm:$0xf]
      %v1653 = vld [vmem:[%s192 + $0x84] sm:$0xf]
      %v1654 = vld [vmem:[%s192 + $0x88] sm:$0xf]
      %v1655 = vld [vmem:[%s192 + $0x8c] sm:$0xf]
      %v1656 = vld [vmem:[%s192 + $0x90] sm:$0xf]
      %v1657 = vld [vmem:[%s192 + $0x94] sm:$0xf]
      %v1658 = vld [vmem:[%s192 + $0x98] sm:$0xf]
      %v1659 = vld [vmem:[%s192 + $0x9c] sm:$0xf]
      %v1660 = vld [vmem:[%s192 + $0xa0] sm:$0x3]
      %v1698 = vunpack.c.l.b16 %v1624
      %v1699 = vunpack.c.l.b16 %v1625
      %v1700 = vunpack.c.l.b16 %v1626
      %v1701 = vunpack.c.l.b16 %v1627
      %v1702 = vunpack.c.l.b16 %v1628
      %v1703 = vunpack.c.l.b16 %v1629
      %v1704 = vunpack.c.l.b16 %v1630
      %v1705 = vunpack.c.l.b16 %v1631
      %v1706 = vunpack.c.l.b16 %v1632
      %v1707 = vunpack.c.l.b16 %v1633
      %v1708 = vunpack.c.l.b16 %v1634
      %v1709 = vunpack.c.l.b16 %v1635
      %v1710 = vunpack.c.l.b16 %v1636
      %v1711 = vunpack.c.l.b16 %v1637
      %v1712 = vunpack.c.l.b16 %v1638
      %v1713 = vunpack.c.l.b16 %v1639
      %v1714 = vunpack.c.l.b16 %v1640
      %v1715 = vunpack.c.l.b16 %v1641
      %v1716 = vunpack.c.l.b16 %v1642
      %v1717 = vunpack.c.l.b16 %v1643
      %v1718 = vunpack.c.l.b16 %v1644
      %v1719 = vunpack.c.l.b16 %v1645
      %v1720 = vunpack.c.l.b16 %v1646
      %v1721 = vunpack.c.l.b16 %v1647
      %v1722 = vunpack.c.l.b16 %v1648
      %v1723 = vunpack.c.l.b16 %v1649
      %v1724 = vunpack.c.l.b16 %v1650
      %v1725 = vunpack.c.l.b16 %v1651
      %v1726 = vunpack.c.l.b16 %v1652
      %v1727 = vunpack.c.l.b16 %v1653
      %v1728 = vunpack.c.l.b16 %v1654
      %v1729 = vunpack.c.l.b16 %v1655
      %v1730 = vunpack.c.l.b16 %v1656
      %v1731 = vunpack.c.l.b16 %v1657
      %v1732 = vunpack.c.l.b16 %v1658
      %v1733 = vunpack.c.l.b16 %v1659
      %v1734 = vunpack.c.l.b16 %v1660
      %v1735 = vpack.c.b16 %v1699, %v1698
      %v1736 = vpack.c.b16 %v1701, %v1700
      %v1737 = vpack.c.b16 %v1703, %v1702
      %v1738 = vpack.c.b16 %v1705, %v1704
      %v1739 = vpack.c.b16 %v1707, %v1706
      %v1740 = vpack.c.b16 %v1709, %v1708
      %v1741 = vpack.c.b16 %v1711, %v1710
      %v1742 = vpack.c.b16 %v1713, %v1712
      %v1743 = vpack.c.b16 %v1715, %v1714
      %v1744 = vpack.c.b16 %v1717, %v1716
      %v1745 = vpack.c.b16 %v1719, %v1718
      %v1746 = vpack.c.b16 %v1721, %v1720
      %v1747 = vpack.c.b16 %v1723, %v1722
      %v1748 = vpack.c.b16 %v1725, %v1724
      %v1749 = vpack.c.b16 %v1727, %v1726
      %v1750 = vpack.c.b16 %v1729, %v1728
      %v1751 = vpack.c.b16 %v1731, %v1730
      %v1752 = vpack.c.b16 %v1733, %v1732
      %v1753 = vpack.c.b16 %v1734, %v1734
      %v1754 = vrot.slane %v1735, 2
      %v1755 = vrot.slane %v1736, 2
      %v1756 = vsel %vm1550, %v1754, %v1755
      %v1757 = vrot.slane %v1737, 2
      %v1758 = vsel %vm1550, %v1755, %v1757
      %v1759 = vrot.slane %v1738, 2
      %v1760 = vsel %vm1550, %v1757, %v1759
      %v1761 = vrot.slane %v1739, 2
      %v1762 = vsel %vm1550, %v1759, %v1761
      %v1763 = vrot.slane %v1740, 2
      %v1764 = vsel %vm1550, %v1761, %v1763
      %v1765 = vrot.slane %v1741, 2
      %v1766 = vsel %vm1550, %v1763, %v1765
      %v1767 = vrot.slane %v1742, 2
      %v1768 = vsel %vm1550, %v1765, %v1767
      %v1769 = vrot.slane %v1743, 2
      %v1770 = vsel %vm1550, %v1767, %v1769
      %v1771 = vrot.slane %v1744, 2
      %v1772 = vsel %vm1550, %v1769, %v1771
      %v1773 = vrot.slane %v1745, 2
      %v1774 = vsel %vm1550, %v1771, %v1773
      %v1775 = vrot.slane %v1746, 2
      %v1776 = vsel %vm1550, %v1773, %v1775
      %v1777 = vrot.slane %v1747, 2
      %v1778 = vsel %vm1550, %v1775, %v1777
      %v1779 = vrot.slane %v1748, 2
      %v1780 = vsel %vm1550, %v1777, %v1779
      %v1781 = vrot.slane %v1749, 2
      %v1782 = vsel %vm1550, %v1779, %v1781
      %v1783 = vrot.slane %v1750, 2
      %v1784 = vsel %vm1550, %v1781, %v1783
      %v1785 = vrot.slane %v1751, 2
      %v1786 = vsel %vm1550, %v1783, %v1785
      %v1787 = vrot.slane %v1752, 2
      %v1788 = vsel %vm1550, %v1785, %v1787
      %v1789 = vrot.slane %v1753, 2
      %v1790 = vsel %vm1550, %v1787, %v1789
      %1809 = vst [vmem:[#allocation2 + $0x30] sm:$0xff] %v1756
      %1810 = vst [vmem:[#allocation2 + $0x78] sm:$0xff] %v1758
      %1811 = vst [vmem:[#allocation2 + $0xc0] sm:$0xff] %v1760
      %1812 = vst [vmem:[#allocation2 + $0x108] sm:$0xff] %v1762
      %1813 = vst [vmem:[#allocation2 + $0x150] sm:$0xff] %v1764
      %1814 = vst [vmem:[#allocation2 + $0x198] sm:$0xff] %v1766
      %1815 = vst [vmem:[#allocation2 + $0x1e0] sm:$0xff] %v1768
      %1816 = vst [vmem:[#allocation2 + $0x228] sm:$0xff] %v1770
      %1817 = vst [vmem:[#allocation2 + $0x270] sm:$0xff] %v1772
      %1818 = vst [vmem:[#allocation2 + $0x2b8] sm:$0xff] %v1774
      %1819 = vst [vmem:[#allocation2 + $0x300] sm:$0xff] %v1776
      %1820 = vst [vmem:[#allocation2 + $0x348] sm:$0xff] %v1778
      %1821 = vst [vmem:[#allocation2 + $0x390] sm:$0xff] %v1780
      %1822 = vst [vmem:[#allocation2 + $0x3d8] sm:$0xff] %v1782
      %1823 = vst [vmem:[#allocation2 + $0x420] sm:$0xff] %v1784
      %1824 = vst [vmem:[#allocation2 + $0x468] sm:$0xff] %v1786
      %1825 = vst [vmem:[#allocation2 + $0x4b0] sm:$0xff] %v1788
      %1826 = vst [vmem:[#allocation2 + $0x4f8] sm:$0xff] %v1790
      %v1827 = vld [vmem:[%s192 + $0x10] sm:$0xc]
      %v1828 = vld [vmem:[%s192 + $0x14] sm:$0xf]
      %v1829 = vld [vmem:[%s192 + $0x18] sm:$0xf]
      %v1830 = vld [vmem:[%s192 + $0x1c] sm:$0xf]
      %v1831 = vld [vmem:[%s192 + $0x20] sm:$0xf]
      %v1832 = vld [vmem:[%s192 + $0x24] sm:$0xf]
      %v1833 = vld [vmem:[%s192 + $0x28] sm:$0xf]
      %v1834 = vld [vmem:[%s192 + $0x2c] sm:$0xf]
      %v1835 = vld [vmem:[%s192 + $0x30] sm:$0xf]
      %v1836 = vld [vmem:[%s192 + $0x34] sm:$0xf]
      %v1837 = vld [vmem:[%s192 + $0x38] sm:$0xf]
      %v1838 = vld [vmem:[%s192 + $0x3c] sm:$0xf]
      %v1839 = vld [vmem:[%s192 + $0x40] sm:$0xf]
      %v1840 = vld [vmem:[%s192 + $0x44] sm:$0xf]
      %v1841 = vld [vmem:[%s192 + $0x48] sm:$0xf]
      %v1842 = vld [vmem:[%s192 + $0x4c] sm:$0xf]
      %v1843 = vld [vmem:[%s192 + $0x50] sm:$0xf]
      %v1844 = vld [vmem:[%s192 + $0x54] sm:$0xf]
      %v1845 = vld [vmem:[%s192 + $0x58] sm:$0xf]
      %v1846 = vld [vmem:[%s192 + $0x5c] sm:$0xf]
      %v1847 = vld [vmem:[%s192 + $0x60] sm:$0xf]
      %v1848 = vld [vmem:[%s192 + $0x64] sm:$0xf]
      %v1849 = vld [vmem:[%s192 + $0x68] sm:$0xf]
      %v1850 = vld [vmem:[%s192 + $0x6c] sm:$0xf]
      %v1851 = vld [vmem:[%s192 + $0x70] sm:$0xf]
      %v1852 = vld [vmem:[%s192 + $0x74] sm:$0xf]
      %v1853 = vld [vmem:[%s192 + $0x78] sm:$0xf]
      %v1854 = vld [vmem:[%s192 + $0x7c] sm:$0xf]
      %v1855 = vld [vmem:[%s192 + $0x80] sm:$0xf]
      %v1856 = vld [vmem:[%s192 + $0x84] sm:$0xf]
      %v1857 = vld [vmem:[%s192 + $0x88] sm:$0xf]
      %v1858 = vld [vmem:[%s192 + $0x8c] sm:$0xf]
      %v1859 = vld [vmem:[%s192 + $0x90] sm:$0xf]
      %v1860 = vld [vmem:[%s192 + $0x94] sm:$0xf]
      %v1861 = vld [vmem:[%s192 + $0x98] sm:$0xf]
      %v1862 = vld [vmem:[%s192 + $0x9c] sm:$0xf]
      %v1863 = vld [vmem:[%s192 + $0xa0] sm:$0x7]
      %v1901 = vunpack.c.l.b16 %v1827
      %v1902 = vunpack.c.l.b16 %v1828
      %v1903 = vunpack.c.l.b16 %v1829
      %v1904 = vunpack.c.l.b16 %v1830
      %v1905 = vunpack.c.l.b16 %v1831
      %v1906 = vunpack.c.l.b16 %v1832
      %v1907 = vunpack.c.l.b16 %v1833
      %v1908 = vunpack.c.l.b16 %v1834
      %v1909 = vunpack.c.l.b16 %v1835
      %v1910 = vunpack.c.l.b16 %v1836
      %v1911 = vunpack.c.l.b16 %v1837
      %v1912 = vunpack.c.l.b16 %v1838
      %v1913 = vunpack.c.l.b16 %v1839
      %v1914 = vunpack.c.l.b16 %v1840
      %v1915 = vunpack.c.l.b16 %v1841
      %v1916 = vunpack.c.l.b16 %v1842
      %v1917 = vunpack.c.l.b16 %v1843
      %v1918 = vunpack.c.l.b16 %v1844
      %v1919 = vunpack.c.l.b16 %v1845
      %v1920 = vunpack.c.l.b16 %v1846
      %v1921 = vunpack.c.l.b16 %v1847
      %v1922 = vunpack.c.l.b16 %v1848
      %v1923 = vunpack.c.l.b16 %v1849
      %v1924 = vunpack.c.l.b16 %v1850
      %v1925 = vunpack.c.l.b16 %v1851
      %v1926 = vunpack.c.l.b16 %v1852
      %v1927 = vunpack.c.l.b16 %v1853
      %v1928 = vunpack.c.l.b16 %v1854
      %v1929 = vunpack.c.l.b16 %v1855
      %v1930 = vunpack.c.l.b16 %v1856
      %v1931 = vunpack.c.l.b16 %v1857
      %v1932 = vunpack.c.l.b16 %v1858
      %v1933 = vunpack.c.l.b16 %v1859
      %v1934 = vunpack.c.l.b16 %v1860
      %v1935 = vunpack.c.l.b16 %v1861
      %v1936 = vunpack.c.l.b16 %v1862
      %v1937 = vunpack.c.l.b16 %v1863
      %v1938 = vpack.c.b16 %v1902, %v1901
      %v1939 = vpack.c.b16 %v1904, %v1903
      %v1940 = vpack.c.b16 %v1906, %v1905
      %v1941 = vpack.c.b16 %v1908, %v1907
      %v1942 = vpack.c.b16 %v1910, %v1909
      %v1943 = vpack.c.b16 %v1912, %v1911
      %v1944 = vpack.c.b16 %v1914, %v1913
      %v1945 = vpack.c.b16 %v1916, %v1915
      %v1946 = vpack.c.b16 %v1918, %v1917
      %v1947 = vpack.c.b16 %v1920, %v1919
      %v1948 = vpack.c.b16 %v1922, %v1921
      %v1949 = vpack.c.b16 %v1924, %v1923
      %v1950 = vpack.c.b16 %v1926, %v1925
      %v1951 = vpack.c.b16 %v1928, %v1927
      %v1952 = vpack.c.b16 %v1930, %v1929
      %v1953 = vpack.c.b16 %v1932, %v1931
      %v1954 = vpack.c.b16 %v1934, %v1933
      %v1955 = vpack.c.b16 %v1936, %v1935
      %v1956 = vpack.c.b16 %v1937, %v1937
      %vm1957 = vsmask.f32 5376
      %v1959 = vshrl.u32 %v1938, 16
      %v1961 = vrot.slane %v1959, 2
      %v1962 = vshll.u32 %v1938, 16
      %v1964 = vrot.slane %v1962, 3
      %v1965 = vor.u32 %v1961, %v1964
      %v1967 = vshrl.u32 %v1939, 16
      %v1969 = vrot.slane %v1967, 2
      %v1970 = vshll.u32 %v1939, 16
      %v1972 = vrot.slane %v1970, 3
      %v1973 = vor.u32 %v1969, %v1972
      %v1974 = vsel %vm1957, %v1965, %v1973
      %v1976 = vshrl.u32 %v1940, 16
      %v1978 = vrot.slane %v1976, 2
      %v1979 = vshll.u32 %v1940, 16
      %v1981 = vrot.slane %v1979, 3
      %v1982 = vor.u32 %v1978, %v1981
      %v1983 = vsel %vm1957, %v1973, %v1982
      %v1985 = vshrl.u32 %v1941, 16
      %v1987 = vrot.slane %v1985, 2
      %v1988 = vshll.u32 %v1941, 16
      %v1990 = vrot.slane %v1988, 3
      %v1991 = vor.u32 %v1987, %v1990
      %v1992 = vsel %vm1957, %v1982, %v1991
      %v1994 = vshrl.u32 %v1942, 16
      %v1996 = vrot.slane %v1994, 2
      %v1997 = vshll.u32 %v1942, 16
      %v1999 = vrot.slane %v1997, 3
      %v2000 = vor.u32 %v1996, %v1999
      %v2001 = vsel %vm1957, %v1991, %v2000
      %v2003 = vshrl.u32 %v1943, 16
      %v2005 = vrot.slane %v2003, 2
      %v2006 = vshll.u32 %v1943, 16
      %v2008 = vrot.slane %v2006, 3
      %v2009 = vor.u32 %v2005, %v2008
      %v2010 = vsel %vm1957, %v2000, %v2009
      %v2012 = vshrl.u32 %v1944, 16
      %v2014 = vrot.slane %v2012, 2
      %v2015 = vshll.u32 %v1944, 16
      %v2017 = vrot.slane %v2015, 3
      %v2018 = vor.u32 %v2014, %v2017
      %v2019 = vsel %vm1957, %v2009, %v2018
      %v2021 = vshrl.u32 %v1945, 16
      %v2023 = vrot.slane %v2021, 2
      %v2024 = vshll.u32 %v1945, 16
      %v2026 = vrot.slane %v2024, 3
      %v2027 = vor.u32 %v2023, %v2026
      %v2028 = vsel %vm1957, %v2018, %v2027
      %v2030 = vshrl.u32 %v1946, 16
      %v2032 = vrot.slane %v2030, 2
      %v2033 = vshll.u32 %v1946, 16
      %v2035 = vrot.slane %v2033, 3
      %v2036 = vor.u32 %v2032, %v2035
      %v2037 = vsel %vm1957, %v2027, %v2036
      %v2039 = vshrl.u32 %v1947, 16
      %v2041 = vrot.slane %v2039, 2
      %v2042 = vshll.u32 %v1947, 16
      %v2044 = vrot.slane %v2042, 3
      %v2045 = vor.u32 %v2041, %v2044
      %v2046 = vsel %vm1957, %v2036, %v2045
      %v2048 = vshrl.u32 %v1948, 16
      %v2050 = vrot.slane %v2048, 2
      %v2051 = vshll.u32 %v1948, 16
      %v2053 = vrot.slane %v2051, 3
      %v2054 = vor.u32 %v2050, %v2053
      %v2055 = vsel %vm1957, %v2045, %v2054
      %v2057 = vshrl.u32 %v1949, 16
      %v2059 = vrot.slane %v2057, 2
      %v2060 = vshll.u32 %v1949, 16
      %v2062 = vrot.slane %v2060, 3
      %v2063 = vor.u32 %v2059, %v2062
      %v2064 = vsel %vm1957, %v2054, %v2063
      %v2066 = vshrl.u32 %v1950, 16
      %v2068 = vrot.slane %v2066, 2
      %v2069 = vshll.u32 %v1950, 16
      %v2071 = vrot.slane %v2069, 3
      %v2072 = vor.u32 %v2068, %v2071
      %v2073 = vsel %vm1957, %v2063, %v2072
      %v2075 = vshrl.u32 %v1951, 16
      %v2077 = vrot.slane %v2075, 2
      %v2078 = vshll.u32 %v1951, 16
      %v2080 = vrot.slane %v2078, 3
      %v2081 = vor.u32 %v2077, %v2080
      %v2082 = vsel %vm1957, %v2072, %v2081
      %v2084 = vshrl.u32 %v1952, 16
      %v2086 = vrot.slane %v2084, 2
      %v2087 = vshll.u32 %v1952, 16
      %v2089 = vrot.slane %v2087, 3
      %v2090 = vor.u32 %v2086, %v2089
      %v2091 = vsel %vm1957, %v2081, %v2090
      %v2093 = vshrl.u32 %v1953, 16
      %v2095 = vrot.slane %v2093, 2
      %v2096 = vshll.u32 %v1953, 16
      %v2098 = vrot.slane %v2096, 3
      %v2099 = vor.u32 %v2095, %v2098
      %v2100 = vsel %vm1957, %v2090, %v2099
      %v2102 = vshrl.u32 %v1954, 16
      %v2104 = vrot.slane %v2102, 2
      %v2105 = vshll.u32 %v1954, 16
      %v2107 = vrot.slane %v2105, 3
      %v2108 = vor.u32 %v2104, %v2107
      %v2109 = vsel %vm1957, %v2099, %v2108
      %v2111 = vshrl.u32 %v1955, 16
      %v2113 = vrot.slane %v2111, 2
      %v2114 = vshll.u32 %v1955, 16
      %v2116 = vrot.slane %v2114, 3
      %v2117 = vor.u32 %v2113, %v2116
      %v2118 = vsel %vm1957, %v2108, %v2117
      %v2120 = vshrl.u32 %v1956, 16
      %v2122 = vrot.slane %v2120, 2
      %v2123 = vshll.u32 %v1956, 16
      %v2125 = vrot.slane %v2123, 3
      %v2126 = vor.u32 %v2122, %v2125
      %v2127 = vsel %vm1957, %v2117, %v2126
      %2146 = vst [vmem:[#allocation2 + $0x38] sm:$0xff] %v1974
      %2147 = vst [vmem:[#allocation2 + $0x80] sm:$0xff] %v1983
      %2148 = vst [vmem:[#allocation2 + $0xc8] sm:$0xff] %v1992
      %2149 = vst [vmem:[#allocation2 + $0x110] sm:$0xff] %v2001
      %2150 = vst [vmem:[#allocation2 + $0x158] sm:$0xff] %v2010
      %2151 = vst [vmem:[#allocation2 + $0x1a0] sm:$0xff] %v2019
      %2152 = vst [vmem:[#allocation2 + $0x1e8] sm:$0xff] %v2028
      %2153 = vst [vmem:[#allocation2 + $0x230] sm:$0xff] %v2037
      %2154 = vst [vmem:[#allocation2 + $0x278] sm:$0xff] %v2046
      %2155 = vst [vmem:[#allocation2 + $0x2c0] sm:$0xff] %v2055
      %2156 = vst [vmem:[#allocation2 + $0x308] sm:$0xff] %v2064
      %2157 = vst [vmem:[#allocation2 + $0x350] sm:$0xff] %v2073
      %2158 = vst [vmem:[#allocation2 + $0x398] sm:$0xff] %v2082
      %2159 = vst [vmem:[#allocation2 + $0x3e0] sm:$0xff] %v2091
      %2160 = vst [vmem:[#allocation2 + $0x428] sm:$0xff] %v2100
      %2161 = vst [vmem:[#allocation2 + $0x470] sm:$0xff] %v2109
      %2162 = vst [vmem:[#allocation2 + $0x4b8] sm:$0xff] %v2118
      %2163 = vst [vmem:[#allocation2 + $0x500] sm:$0xff] %v2127
      %v2164 = vld [vmem:[%s192 + $0x10] sm:$0x8]
      %v2165 = vld [vmem:[%s192 + $0x14] sm:$0xf]
      %v2166 = vld [vmem:[%s192 + $0x18] sm:$0xf]
      %v2167 = vld [vmem:[%s192 + $0x1c] sm:$0xf]
      %v2168 = vld [vmem:[%s192 + $0x20] sm:$0xf]
      %v2169 = vld [vmem:[%s192 + $0x24] sm:$0xf]
      %v2170 = vld [vmem:[%s192 + $0x28] sm:$0xf]
      %v2171 = vld [vmem:[%s192 + $0x2c] sm:$0xf]
      %v2172 = vld [vmem:[%s192 + $0x30] sm:$0xf]
      %v2173 = vld [vmem:[%s192 + $0x34] sm:$0xf]
      %v2174 = vld [vmem:[%s192 + $0x38] sm:$0xf]
      %v2175 = vld [vmem:[%s192 + $0x3c] sm:$0xf]
      %v2176 = vld [vmem:[%s192 + $0x40] sm:$0xf]
      %v2177 = vld [vmem:[%s192 + $0x44] sm:$0xf]
      %v2178 = vld [vmem:[%s192 + $0x48] sm:$0xf]
      %v2179 = vld [vmem:[%s192 + $0x4c] sm:$0xf]
      %v2180 = vld [vmem:[%s192 + $0x50] sm:$0xf]
      %v2181 = vld [vmem:[%s192 + $0x54] sm:$0xf]
      %v2182 = vld [vmem:[%s192 + $0x58] sm:$0xf]
      %v2183 = vld [vmem:[%s192 + $0x5c] sm:$0xf]
      %v2184 = vld [vmem:[%s192 + $0x60] sm:$0xf]
      %v2185 = vld [vmem:[%s192 + $0x64] sm:$0xf]
      %v2186 = vld [vmem:[%s192 + $0x68] sm:$0xf]
      %v2187 = vld [vmem:[%s192 + $0x6c] sm:$0xf]
      %v2188 = vld [vmem:[%s192 + $0x70] sm:$0xf]
      %v2189 = vld [vmem:[%s192 + $0x74] sm:$0xf]
      %v2190 = vld [vmem:[%s192 + $0x78] sm:$0xf]
      %v2191 = vld [vmem:[%s192 + $0x7c] sm:$0xf]
      %v2192 = vld [vmem:[%s192 + $0x80] sm:$0xf]
      %v2193 = vld [vmem:[%s192 + $0x84] sm:$0xf]
      %v2194 = vld [vmem:[%s192 + $0x88] sm:$0xf]
      %v2195 = vld [vmem:[%s192 + $0x8c] sm:$0xf]
      %v2196 = vld [vmem:[%s192 + $0x90] sm:$0xf]
      %v2197 = vld [vmem:[%s192 + $0x94] sm:$0xf]
      %v2198 = vld [vmem:[%s192 + $0x98] sm:$0xf]
      %v2199 = vld [vmem:[%s192 + $0x9c] sm:$0xf]
      %v2200 = vld [vmem:[%s192 + $0xa0] sm:$0x7]
      %v2238 = vunpack.c.l.b16 %v2164
      %v2239 = vunpack.c.l.b16 %v2165
      %v2240 = vunpack.c.l.b16 %v2166
      %v2241 = vunpack.c.l.b16 %v2167
      %v2242 = vunpack.c.l.b16 %v2168
      %v2243 = vunpack.c.l.b16 %v2169
      %v2244 = vunpack.c.l.b16 %v2170
      %v2245 = vunpack.c.l.b16 %v2171
      %v2246 = vunpack.c.l.b16 %v2172
      %v2247 = vunpack.c.l.b16 %v2173
      %v2248 = vunpack.c.l.b16 %v2174
      %v2249 = vunpack.c.l.b16 %v2175
      %v2250 = vunpack.c.l.b16 %v2176
      %v2251 = vunpack.c.l.b16 %v2177
      %v2252 = vunpack.c.l.b16 %v2178
      %v2253 = vunpack.c.l.b16 %v2179
      %v2254 = vunpack.c.l.b16 %v2180
      %v2255 = vunpack.c.l.b16 %v2181
      %v2256 = vunpack.c.l.b16 %v2182
      %v2257 = vunpack.c.l.b16 %v2183
      %v2258 = vunpack.c.l.b16 %v2184
      %v2259 = vunpack.c.l.b16 %v2185
      %v2260 = vunpack.c.l.b16 %v2186
      %v2261 = vunpack.c.l.b16 %v2187
      %v2262 = vunpack.c.l.b16 %v2188
      %v2263 = vunpack.c.l.b16 %v2189
      %v2264 = vunpack.c.l.b16 %v2190
      %v2265 = vunpack.c.l.b16 %v2191
      %v2266 = vunpack.c.l.b16 %v2192
      %v2267 = vunpack.c.l.b16 %v2193
      %v2268 = vunpack.c.l.b16 %v2194
      %v2269 = vunpack.c.l.b16 %v2195
      %v2270 = vunpack.c.l.b16 %v2196
      %v2271 = vunpack.c.l.b16 %v2197
      %v2272 = vunpack.c.l.b16 %v2198
      %v2273 = vunpack.c.l.b16 %v2199
      %v2274 = vunpack.c.l.b16 %v2200
      %v2275 = vpack.c.b16 %v2239, %v2238
      %v2276 = vpack.c.b16 %v2241, %v2240
      %v2277 = vpack.c.b16 %v2243, %v2242
      %v2278 = vpack.c.b16 %v2245, %v2244
      %v2279 = vpack.c.b16 %v2247, %v2246
      %v2280 = vpack.c.b16 %v2249, %v2248
      %v2281 = vpack.c.b16 %v2251, %v2250
      %v2282 = vpack.c.b16 %v2253, %v2252
      %v2283 = vpack.c.b16 %v2255, %v2254
      %v2284 = vpack.c.b16 %v2257, %v2256
      %v2285 = vpack.c.b16 %v2259, %v2258
      %v2286 = vpack.c.b16 %v2261, %v2260
      %v2287 = vpack.c.b16 %v2263, %v2262
      %v2288 = vpack.c.b16 %v2265, %v2264
      %v2289 = vpack.c.b16 %v2267, %v2266
      %v2290 = vpack.c.b16 %v2269, %v2268
      %v2291 = vpack.c.b16 %v2271, %v2270
      %v2292 = vpack.c.b16 %v2273, %v2272
      %v2293 = vpack.c.b16 %v2274, %v2274
      %vm2294 = vcmask 1044480
      %v2295 = vrot.slane %v2275, 3
      %v2296 = vrot.slane %v2276, 3
      %v2297 = vsel %vm2294, %v2295, %v2296
      %v2298 = vrot.slane %v2277, 3
      %v2299 = vsel %vm2294, %v2296, %v2298
      %v2300 = vrot.slane %v2278, 3
      %v2301 = vsel %vm2294, %v2298, %v2300
      %v2302 = vrot.slane %v2279, 3
      %v2303 = vsel %vm2294, %v2300, %v2302
      %v2304 = vrot.slane %v2280, 3
      %v2305 = vsel %vm2294, %v2302, %v2304
      %v2306 = vrot.slane %v2281, 3
      %v2307 = vsel %vm2294, %v2304, %v2306
      %v2308 = vrot.slane %v2282, 3
      %v2309 = vsel %vm2294, %v2306, %v2308
      %v2310 = vrot.slane %v2283, 3
      %v2311 = vsel %vm2294, %v2308, %v2310
      %v2312 = vrot.slane %v2284, 3
      %v2313 = vsel %vm2294, %v2310, %v2312
      %v2314 = vrot.slane %v2285, 3
      %v2315 = vsel %vm2294, %v2312, %v2314
      %v2316 = vrot.slane %v2286, 3
      %v2317 = vsel %vm2294, %v2314, %v2316
      %v2318 = vrot.slane %v2287, 3
      %v2319 = vsel %vm2294, %v2316, %v2318
      %v2320 = vrot.slane %v2288, 3
      %v2321 = vsel %vm2294, %v2318, %v2320
      %v2322 = vrot.slane %v2289, 3
      %v2323 = vsel %vm2294, %v2320, %v2322
      %v2324 = vrot.slane %v2290, 3
      %v2325 = vsel %vm2294, %v2322, %v2324
      %v2326 = vrot.slane %v2291, 3
      %v2327 = vsel %vm2294, %v2324, %v2326
      %v2328 = vrot.slane %v2292, 3
      %v2329 = vsel %vm2294, %v2326, %v2328
      %v2330 = vrot.slane %v2293, 3
      %v2331 = vsel %vm2294, %v2328, %v2330
      %2350 = vst [vmem:[#allocation2 + $0x40] sm:$0xff] %v2297
      %2351 = vst [vmem:[#allocation2 + $0x88] sm:$0xff] %v2299
      %2352 = vst [vmem:[#allocation2 + $0xd0] sm:$0xff] %v2301
      %2353 = vst [vmem:[#allocation2 + $0x118] sm:$0xff] %v2303
      %2354 = vst [vmem:[#allocation2 + $0x160] sm:$0xff] %v2305
      %2355 = vst [vmem:[#allocation2 + $0x1a8] sm:$0xff] %v2307
      %2356 = vst [vmem:[#allocation2 + $0x1f0] sm:$0xff] %v2309
      %2357 = vst [vmem:[#allocation2 + $0x238] sm:$0xff] %v2311
      %2358 = vst [vmem:[#allocation2 + $0x280] sm:$0xff] %v2313
      %2359 = vst [vmem:[#allocation2 + $0x2c8] sm:$0xff] %v2315
      %2360 = vst [vmem:[#allocation2 + $0x310] sm:$0xff] %v2317
      %2361 = vst [vmem:[#allocation2 + $0x358] sm:$0xff] %v2319
      %2362 = vst [vmem:[#allocation2 + $0x3a0] sm:$0xff] %v2321
      %2363 = vst [vmem:[#allocation2 + $0x3e8] sm:$0xff] %v2323
      %2364 = vst [vmem:[#allocation2 + $0x430] sm:$0xff] %v2325
      %2365 = vst [vmem:[#allocation2 + $0x478] sm:$0xff] %v2327
      %2366 = vst [vmem:[#allocation2 + $0x4c0] sm:$0xff] %v2329
      %2367 = vst [vmem:[#allocation2 + $0x508] sm:$0xff] %v2331
      %v2368 = vld [vmem:[#allocation2] sm:$0xff]
      %v2369 = vld [vmem:[#allocation2 + $0x8] sm:$0xff]
      %v2370 = vld [vmem:[#allocation2 + $0x10] sm:$0xff]
      %v2371 = vld [vmem:[#allocation2 + $0x18] sm:$0xff]
      %v2372 = vld [vmem:[#allocation2 + $0x20] sm:$0xff]
      %v2373 = vld [vmem:[#allocation2 + $0x28] sm:$0xff]
      %v2374 = vld [vmem:[#allocation2 + $0x30] sm:$0xff]
      %v2375 = vld [vmem:[#allocation2 + $0x38] sm:$0xff]
      %v2376 = vld [vmem:[#allocation2 + $0x40] sm:$0xff]
      %v2377 = vld [vmem:[#allocation2 + $0x48] sm:$0xff]
      %v2378 = vld [vmem:[#allocation2 + $0x50] sm:$0xff]
      %v2379 = vld [vmem:[#allocation2 + $0x58] sm:$0xff]
      %v2380 = vld [vmem:[#allocation2 + $0x60] sm:$0xff]
      %v2381 = vld [vmem:[#allocation2 + $0x68] sm:$0xff]
      %v2382 = vld [vmem:[#allocation2 + $0x70] sm:$0xff]
      %v2383 = vld [vmem:[#allocation2 + $0x78] sm:$0xff]
      %v2384 = vld [vmem:[#allocation2 + $0x80] sm:$0xff]
      %v2385 = vld [vmem:[#allocation2 + $0x88] sm:$0xff]
      %v2386 = vld [vmem:[#allocation2 + $0x90] sm:$0xff]
      %v2387 = vld [vmem:[#allocation2 + $0x98] sm:$0xff]
      %v2388 = vld [vmem:[#allocation2 + $0xa0] sm:$0xff]
      %v2389 = vld [vmem:[#allocation2 + $0xa8] sm:$0xff]
      %v2390 = vld [vmem:[#allocation2 + $0xb0] sm:$0xff]
      %v2391 = vld [vmem:[#allocation2 + $0xb8] sm:$0xff]
      %v2392 = vld [vmem:[#allocation2 + $0xc0] sm:$0xff]
      %v2393 = vld [vmem:[#allocation2 + $0xc8] sm:$0xff]
      %v2394 = vld [vmem:[#allocation2 + $0xd0] sm:$0xff]
      %v2395 = vld [vmem:[#allocation2 + $0xd8] sm:$0xff]
      %v2396 = vld [vmem:[#allocation2 + $0xe0] sm:$0xff]
      %v2397 = vld [vmem:[#allocation2 + $0xe8] sm:$0xff]
      %v2398 = vld [vmem:[#allocation2 + $0xf0] sm:$0xff]
      %v2399 = vld [vmem:[#allocation2 + $0xf8] sm:$0xff]
      %v2400 = vld [vmem:[#allocation2 + $0x100] sm:$0xff]
      %v2401 = vld [vmem:[#allocation2 + $0x108] sm:$0xff]
      %v2402 = vld [vmem:[#allocation2 + $0x110] sm:$0xff]
      %v2403 = vld [vmem:[#allocation2 + $0x118] sm:$0xff]
      %v2404 = vld [vmem:[#allocation2 + $0x120] sm:$0xff]
      %v2405 = vld [vmem:[#allocation2 + $0x128] sm:$0xff]
      %v2406 = vld [vmem:[#allocation2 + $0x130] sm:$0xff]
      %v2407 = vld [vmem:[#allocation2 + $0x138] sm:$0xff]
      %v2408 = vld [vmem:[#allocation2 + $0x140] sm:$0xff]
      %v2409 = vld [vmem:[#allocation2 + $0x148] sm:$0xff]
      %v2410 = vld [vmem:[#allocation2 + $0x150] sm:$0xff]
      %v2411 = vld [vmem:[#allocation2 + $0x158] sm:$0xff]
      %v2412 = vld [vmem:[#allocation2 + $0x160] sm:$0xff]
      %v2413 = vld [vmem:[#allocation2 + $0x168] sm:$0xff]
      %v2414 = vld [vmem:[#allocation2 + $0x170] sm:$0xff]
      %v2415 = vld [vmem:[#allocation2 + $0x178] sm:$0xff]
      %v2416 = vld [vmem:[#allocation2 + $0x180] sm:$0xff]
      %v2417 = vld [vmem:[#allocation2 + $0x188] sm:$0xff]
      %v2418 = vld [vmem:[#allocation2 + $0x190] sm:$0xff]
      %v2419 = vld [vmem:[#allocation2 + $0x198] sm:$0xff]
      %v2420 = vld [vmem:[#allocation2 + $0x1a0] sm:$0xff]
      %v2421 = vld [vmem:[#allocation2 + $0x1a8] sm:$0xff]
      %v2422 = vld [vmem:[#allocation2 + $0x1b0] sm:$0xff]
      %v2423 = vld [vmem:[#allocation2 + $0x1b8] sm:$0xff]
      %v2424 = vld [vmem:[#allocation2 + $0x1c0] sm:$0xff]
      %v2425 = vld [vmem:[#allocation2 + $0x1c8] sm:$0xff]
      %v2426 = vld [vmem:[#allocation2 + $0x1d0] sm:$0xff]
      %v2427 = vld [vmem:[#allocation2 + $0x1d8] sm:$0xff]
      %v2428 = vld [vmem:[#allocation2 + $0x1e0] sm:$0xff]
      %v2429 = vld [vmem:[#allocation2 + $0x1e8] sm:$0xff]
      %v2430 = vld [vmem:[#allocation2 + $0x1f0] sm:$0xff]
      %v2431 = vld [vmem:[#allocation2 + $0x1f8] sm:$0xff]
      %v2432 = vld [vmem:[#allocation2 + $0x200] sm:$0xff]
      %v2433 = vld [vmem:[#allocation2 + $0x208] sm:$0xff]
      %v2434 = vld [vmem:[#allocation2 + $0x210] sm:$0xff]
      %v2435 = vld [vmem:[#allocation2 + $0x218] sm:$0xff]
      %v2436 = vld [vmem:[#allocation2 + $0x220] sm:$0xff]
      %v2437 = vld [vmem:[#allocation2 + $0x228] sm:$0xff]
      %v2438 = vld [vmem:[#allocation2 + $0x230] sm:$0xff]
      %v2439 = vld [vmem:[#allocation2 + $0x238] sm:$0xff]
      %v2440 = vld [vmem:[#allocation2 + $0x240] sm:$0xff]
      %v2441 = vld [vmem:[#allocation2 + $0x248] sm:$0xff]
      %v2442 = vld [vmem:[#allocation2 + $0x250] sm:$0xff]
      %v2443 = vld [vmem:[#allocation2 + $0x258] sm:$0xff]
      %v2444 = vld [vmem:[#allocation2 + $0x260] sm:$0xff]
      %v2445 = vld [vmem:[#allocation2 + $0x268] sm:$0xff]
      %v2446 = vld [vmem:[#allocation2 + $0x270] sm:$0xff]
      %v2447 = vld [vmem:[#allocation2 + $0x278] sm:$0xff]
      %v2448 = vld [vmem:[#allocation2 + $0x280] sm:$0xff]
      %v2449 = vld [vmem:[#allocation2 + $0x288] sm:$0xff]
      %v2450 = vld [vmem:[#allocation2 + $0x290] sm:$0xff]
      %v2451 = vld [vmem:[#allocation2 + $0x298] sm:$0xff]
      %v2452 = vld [vmem:[#allocation2 + $0x2a0] sm:$0xff]
      %v2453 = vld [vmem:[#allocation2 + $0x2a8] sm:$0xff]
      %v2454 = vld [vmem:[#allocation2 + $0x2b0] sm:$0xff]
      %v2455 = vld [vmem:[#allocation2 + $0x2b8] sm:$0xff]
      %v2456 = vld [vmem:[#allocation2 + $0x2c0] sm:$0xff]
      %v2457 = vld [vmem:[#allocation2 + $0x2c8] sm:$0xff]
      %v2458 = vld [vmem:[#allocation2 + $0x2d0] sm:$0xff]
      %v2459 = vld [vmem:[#allocation2 + $0x2d8] sm:$0xff]
      %v2460 = vld [vmem:[#allocation2 + $0x2e0] sm:$0xff]
      %v2461 = vld [vmem:[#allocation2 + $0x2e8] sm:$0xff]
      %v2462 = vld [vmem:[#allocation2 + $0x2f0] sm:$0xff]
      %v2463 = vld [vmem:[#allocation2 + $0x2f8] sm:$0xff]
      %v2464 = vld [vmem:[#allocation2 + $0x300] sm:$0xff]
      %v2465 = vld [vmem:[#allocation2 + $0x308] sm:$0xff]
      %v2466 = vld [vmem:[#allocation2 + $0x310] sm:$0xff]
      %v2467 = vld [vmem:[#allocation2 + $0x318] sm:$0xff]
      %v2468 = vld [vmem:[#allocation2 + $0x320] sm:$0xff]
      %v2469 = vld [vmem:[#allocation2 + $0x328] sm:$0xff]
      %v2470 = vld [vmem:[#allocation2 + $0x330] sm:$0xff]
      %v2471 = vld [vmem:[#allocation2 + $0x338] sm:$0xff]
      %v2472 = vld [vmem:[#allocation2 + $0x340] sm:$0xff]
      %v2473 = vld [vmem:[#allocation2 + $0x348] sm:$0xff]
      %v2474 = vld [vmem:[#allocation2 + $0x350] sm:$0xff]
      %v2475 = vld [vmem:[#allocation2 + $0x358] sm:$0xff]
      %v2476 = vld [vmem:[#allocation2 + $0x360] sm:$0xff]
      %v2477 = vld [vmem:[#allocation2 + $0x368] sm:$0xff]
      %v2478 = vld [vmem:[#allocation2 + $0x370] sm:$0xff]
      %v2479 = vld [vmem:[#allocation2 + $0x378] sm:$0xff]
      %v2480 = vld [vmem:[#allocation2 + $0x380] sm:$0xff]
      %v2481 = vld [vmem:[#allocation2 + $0x388] sm:$0xff]
      %v2482 = vld [vmem:[#allocation2 + $0x390] sm:$0xff]
      %v2483 = vld [vmem:[#allocation2 + $0x398] sm:$0xff]
      %v2484 = vld [vmem:[#allocation2 + $0x3a0] sm:$0xff]
      %v2485 = vld [vmem:[#allocation2 + $0x3a8] sm:$0xff]
      %v2486 = vld [vmem:[#allocation2 + $0x3b0] sm:$0xff]
      %v2487 = vld [vmem:[#allocation2 + $0x3b8] sm:$0xff]
      %v2488 = vld [vmem:[#allocation2 + $0x3c0] sm:$0xff]
      %v2489 = vld [vmem:[#allocation2 + $0x3c8] sm:$0xff]
      %v2490 = vld [vmem:[#allocation2 + $0x3d0] sm:$0xff]
      %v2491 = vld [vmem:[#allocation2 + $0x3d8] sm:$0xff]
      %v2492 = vld [vmem:[#allocation2 + $0x3e0] sm:$0xff]
      %v2493 = vld [vmem:[#allocation2 + $0x3e8] sm:$0xff]
      %v2494 = vld [vmem:[#allocation2 + $0x3f0] sm:$0xff]
      %v2495 = vld [vmem:[#allocation2 + $0x3f8] sm:$0xff]
      %v2496 = vld [vmem:[#allocation2 + $0x400] sm:$0xff]
      %v2497 = vld [vmem:[#allocation2 + $0x408] sm:$0xff]
      %v2498 = vld [vmem:[#allocation2 + $0x410] sm:$0xff]
      %v2499 = vld [vmem:[#allocation2 + $0x418] sm:$0xff]
      %v2500 = vld [vmem:[#allocation2 + $0x420] sm:$0xff]
      %v2501 = vld [vmem:[#allocation2 + $0x428] sm:$0xff]
      %v2502 = vld [vmem:[#allocation2 + $0x430] sm:$0xff]
      %v2503 = vld [vmem:[#allocation2 + $0x438] sm:$0xff]
      %v2504 = vld [vmem:[#allocation2 + $0x440] sm:$0xff]
      %v2505 = vld [vmem:[#allocation2 + $0x448] sm:$0xff]
      %v2506 = vld [vmem:[#allocation2 + $0x450] sm:$0xff]
      %v2507 = vld [vmem:[#allocation2 + $0x458] sm:$0xff]
      %v2508 = vld [vmem:[#allocation2 + $0x460] sm:$0xff]
      %v2509 = vld [vmem:[#allocation2 + $0x468] sm:$0xff]
      %v2510 = vld [vmem:[#allocation2 + $0x470] sm:$0xff]
      %v2511 = vld [vmem:[#allocation2 + $0x478] sm:$0xff]
      %v2512 = vld [vmem:[#allocation2 + $0x480] sm:$0xff]
      %v2513 = vld [vmem:[#allocation2 + $0x488] sm:$0xff]
      %v2514 = vld [vmem:[#allocation2 + $0x490] sm:$0xff]
      %v2515 = vld [vmem:[#allocation2 + $0x498] sm:$0xff]
      %v2516 = vld [vmem:[#allocation2 + $0x4a0] sm:$0xff]
      %v2517 = vld [vmem:[#allocation2 + $0x4a8] sm:$0xff]
      %v2518 = vld [vmem:[#allocation2 + $0x4b0] sm:$0xff]
      %v2519 = vld [vmem:[#allocation2 + $0x4b8] sm:$0xff]
      %v2520 = vld [vmem:[#allocation2 + $0x4c0] sm:$0xff]
      %v2521 = vld [vmem:[#allocation2 + $0x4c8] sm:$0xff]
      %v2522 = vld [vmem:[#allocation2 + $0x4d0] sm:$0xff]
      %v2523 = vld [vmem:[#allocation2 + $0x4d8] sm:$0xff]
      %v2524 = vld [vmem:[#allocation2 + $0x4e0] sm:$0xff]
      %v2525 = vld [vmem:[#allocation2 + $0x4e8] sm:$0xff]
      %v2526 = vld [vmem:[#allocation2 + $0x4f0] sm:$0xff]
      %v2527 = vld [vmem:[#allocation2 + $0x4f8] sm:$0xff]
      %v2528 = vld [vmem:[#allocation2 + $0x500] sm:$0xff]
      %v2529 = vld [vmem:[#allocation2 + $0x508] sm:$0xff]
      %v2530 = vld [vmem:[%s2] sm:$0xf]
      %v2531 = vld [vmem:[%s2 + $0x4] sm:$0xf]
      %v2532 = vld [vmem:[%s2 + $0x8] sm:$0xf]
      %v2533 = vld [vmem:[%s2 + $0xc] sm:$0xf]
      %v2534 = vld [vmem:[%s2 + $0x10] sm:$0xf]
      %v2535 = vld [vmem:[%s2 + $0x14] sm:$0xf]
      %v2536 = vld [vmem:[%s2 + $0x18] sm:$0xf]
      %v2537 = vld [vmem:[%s2 + $0x1c] sm:$0xf]
      %v2538 = vld [vmem:[%s2 + $0x20] sm:$0xf]
      %v2539 = vld [vmem:[%s2 + $0x24] sm:$0xf]
      %v2540 = vld [vmem:[%s2 + $0x28] sm:$0xf]
      %v2541 = vld [vmem:[%s2 + $0x2c] sm:$0xf]
      %v2542 = vld [vmem:[%s2 + $0x30] sm:$0xf]
      %v2543 = vld [vmem:[%s2 + $0x34] sm:$0xf]
      %v2544 = vld [vmem:[%s2 + $0x38] sm:$0xf]
      %v2545 = vld [vmem:[%s2 + $0x3c] sm:$0xf]
      %v2546 = vld [vmem:[%s2 + $0x40] sm:$0xf]
      %v2547 = vld [vmem:[%s2 + $0x44] sm:$0xf]
      %v2548 = vld [vmem:[%s2 + $0x48] sm:$0xf]
      %v2549 = vld [vmem:[%s2 + $0x4c] sm:$0xf]
      %v2550 = vld [vmem:[%s2 + $0x50] sm:$0xf]
      %v2551 = vld [vmem:[%s2 + $0x54] sm:$0xf]
      %v2552 = vld [vmem:[%s2 + $0x58] sm:$0xf]
      %v2553 = vld [vmem:[%s2 + $0x5c] sm:$0xf]
      %v2554 = vld [vmem:[%s2 + $0x60] sm:$0xf]
      %v2555 = vld [vmem:[%s2 + $0x64] sm:$0xf]
      %v2556 = vld [vmem:[%s2 + $0x68] sm:$0xf]
      %v2557 = vld [vmem:[%s2 + $0x6c] sm:$0xf]
      %v2558 = vld [vmem:[%s2 + $0x70] sm:$0xf]
      %v2559 = vld [vmem:[%s2 + $0x74] sm:$0xf]
      %v2560 = vld [vmem:[%s2 + $0x78] sm:$0xf]
      %v2561 = vld [vmem:[%s2 + $0x7c] sm:$0xf]
      %v2562 = vld [vmem:[%s2 + $0x80] sm:$0xf]
      %v2563 = vld [vmem:[%s2 + $0x84] sm:$0xf]
      %v2564 = vld [vmem:[%s2 + $0x88] sm:$0xf]
      %v2565 = vld [vmem:[%s2 + $0x8c] sm:$0xf]
      %v2566 = vld [vmem:[%s2 + $0x90] sm:$0xf]
      %v2567 = vld [vmem:[%s2 + $0x94] sm:$0xf]
      %v2568 = vld [vmem:[%s2 + $0x98] sm:$0xf]
      %v2569 = vld [vmem:[%s2 + $0x9c] sm:$0xf]
      %v2570 = vld [vmem:[%s2 + $0xa0] sm:$0xf]
      %v2571 = vld [vmem:[%s2 + $0xa4] sm:$0xf]
      %v2572 = vld [vmem:[%s2 + $0xa8] sm:$0xf]
      %v2573 = vld [vmem:[%s2 + $0xac] sm:$0xf]
      %v2574 = vld [vmem:[%s2 + $0xb0] sm:$0xf]
      %v2575 = vld [vmem:[%s2 + $0xb4] sm:$0xf]
      %v2576 = vld [vmem:[%s2 + $0xb8] sm:$0xf]
      %v2577 = vld [vmem:[%s2 + $0xbc] sm:$0xf]
      %v2578 = vld [vmem:[%s2 + $0xc0] sm:$0xf]
      %v2579 = vld [vmem:[%s2 + $0xc4] sm:$0xf]
      %v2580 = vld [vmem:[%s2 + $0xc8] sm:$0xf]
      %v2581 = vld [vmem:[%s2 + $0xcc] sm:$0xf]
      %v2582 = vld [vmem:[%s2 + $0xd0] sm:$0xf]
      %v2583 = vld [vmem:[%s2 + $0xd4] sm:$0xf]
      %v2584 = vld [vmem:[%s2 + $0xd8] sm:$0xf]
      %v2585 = vld [vmem:[%s2 + $0xdc] sm:$0xf]
      %v2586 = vld [vmem:[%s2 + $0xe0] sm:$0xf]
      %v2587 = vld [vmem:[%s2 + $0xe4] sm:$0xf]
      %v2588 = vld [vmem:[%s2 + $0xe8] sm:$0xf]
      %v2589 = vld [vmem:[%s2 + $0xec] sm:$0xf]
      %v2590 = vld [vmem:[%s2 + $0xf0] sm:$0xf]
      %v2591 = vld [vmem:[%s2 + $0xf4] sm:$0xf]
      %v2592 = vld [vmem:[%s2 + $0xf8] sm:$0xf]
      %v2593 = vld [vmem:[%s2 + $0xfc] sm:$0xf]
      %v2594 = vld [vmem:[%s2 + $0x100] sm:$0xf]
      %v2595 = vld [vmem:[%s2 + $0x104] sm:$0xf]
      %v2596 = vld [vmem:[%s2 + $0x108] sm:$0xf]
      %v2597 = vld [vmem:[%s2 + $0x10c] sm:$0xf]
      %v2598 = vld [vmem:[%s2 + $0x110] sm:$0xf]
      %v2599 = vld [vmem:[%s2 + $0x114] sm:$0xf]
      %v2600 = vld [vmem:[%s2 + $0x118] sm:$0xf]
      %v2601 = vld [vmem:[%s2 + $0x11c] sm:$0xf]
      %v2602 = vld [vmem:[%s2 + $0x120] sm:$0xf]
      %v2603 = vld [vmem:[%s2 + $0x124] sm:$0xf]
      %v2604 = vld [vmem:[%s2 + $0x128] sm:$0xf]
      %v2605 = vld [vmem:[%s2 + $0x12c] sm:$0xf]
      %v2606 = vld [vmem:[%s2 + $0x130] sm:$0xf]
      %v2607 = vld [vmem:[%s2 + $0x134] sm:$0xf]
      %v2608 = vld [vmem:[%s2 + $0x138] sm:$0xf]
      %v2609 = vld [vmem:[%s2 + $0x13c] sm:$0xf]
      %v2610 = vld [vmem:[%s2 + $0x140] sm:$0xf]
      %v2611 = vld [vmem:[%s2 + $0x144] sm:$0xf]
      %v2612 = vld [vmem:[%s2 + $0x148] sm:$0xf]
      %v2613 = vld [vmem:[%s2 + $0x14c] sm:$0xf]
      %v2614 = vld [vmem:[%s2 + $0x150] sm:$0xf]
      %v2615 = vld [vmem:[%s2 + $0x154] sm:$0xf]
      %v2616 = vld [vmem:[%s2 + $0x158] sm:$0xf]
      %v2617 = vld [vmem:[%s2 + $0x15c] sm:$0xf]
      %v2618 = vld [vmem:[%s2 + $0x160] sm:$0xf]
      %v2619 = vld [vmem:[%s2 + $0x164] sm:$0xf]
      %v2620 = vld [vmem:[%s2 + $0x168] sm:$0xf]
      %v2621 = vld [vmem:[%s2 + $0x16c] sm:$0xf]
      %v2622 = vld [vmem:[%s2 + $0x170] sm:$0xf]
      %v2623 = vld [vmem:[%s2 + $0x174] sm:$0xf]
      %v2624 = vld [vmem:[%s2 + $0x178] sm:$0xf]
      %v2625 = vld [vmem:[%s2 + $0x17c] sm:$0xf]
      %v2626 = vld [vmem:[%s2 + $0x180] sm:$0xf]
      %v2627 = vld [vmem:[%s2 + $0x184] sm:$0xf]
      %v2628 = vld [vmem:[%s2 + $0x188] sm:$0xf]
      %v2629 = vld [vmem:[%s2 + $0x18c] sm:$0xf]
      %v2630 = vld [vmem:[%s2 + $0x190] sm:$0xf]
      %v2631 = vld [vmem:[%s2 + $0x194] sm:$0xf]
      %v2632 = vld [vmem:[%s2 + $0x198] sm:$0xf]
      %v2633 = vld [vmem:[%s2 + $0x19c] sm:$0xf]
      %v2634 = vld [vmem:[%s2 + $0x1a0] sm:$0xf]
      %v2635 = vld [vmem:[%s2 + $0x1a4] sm:$0xf]
      %v2636 = vld [vmem:[%s2 + $0x1a8] sm:$0xf]
      %v2637 = vld [vmem:[%s2 + $0x1ac] sm:$0xf]
      %v2638 = vld [vmem:[%s2 + $0x1b0] sm:$0xf]
      %v2639 = vld [vmem:[%s2 + $0x1b4] sm:$0xf]
      %v2640 = vld [vmem:[%s2 + $0x1b8] sm:$0xf]
      %v2641 = vld [vmem:[%s2 + $0x1bc] sm:$0xf]
      %v2642 = vld [vmem:[%s2 + $0x1c0] sm:$0xf]
      %v2643 = vld [vmem:[%s2 + $0x1c4] sm:$0xf]
      %v2644 = vld [vmem:[%s2 + $0x1c8] sm:$0xf]
      %v2645 = vld [vmem:[%s2 + $0x1cc] sm:$0xf]
      %v2646 = vld [vmem:[%s2 + $0x1d0] sm:$0xf]
      %v2647 = vld [vmem:[%s2 + $0x1d4] sm:$0xf]
      %v2648 = vld [vmem:[%s2 + $0x1d8] sm:$0xf]
      %v2649 = vld [vmem:[%s2 + $0x1dc] sm:$0xf]
      %v2650 = vld [vmem:[%s2 + $0x1e0] sm:$0xf]
      %v2651 = vld [vmem:[%s2 + $0x1e4] sm:$0xf]
      %v2652 = vld [vmem:[%s2 + $0x1e8] sm:$0xf]
      %v2653 = vld [vmem:[%s2 + $0x1ec] sm:$0xf]
      %v2654 = vld [vmem:[%s2 + $0x1f0] sm:$0xf]
      %v2655 = vld [vmem:[%s2 + $0x1f4] sm:$0xf]
      %v2656 = vld [vmem:[%s2 + $0x1f8] sm:$0xf]
      %v2657 = vld [vmem:[%s2 + $0x1fc] sm:$0xf]
      %v2658 = vld [vmem:[%s2 + $0x200] sm:$0xf]
      %v2659 = vld [vmem:[%s2 + $0x204] sm:$0xf]
      %v2660 = vld [vmem:[%s2 + $0x208] sm:$0xf]
      %v2661 = vld [vmem:[%s2 + $0x20c] sm:$0xf]
      %v2662 = vld [vmem:[%s2 + $0x210] sm:$0xf]
      %v2663 = vld [vmem:[%s2 + $0x214] sm:$0xf]
      %v2664 = vld [vmem:[%s2 + $0x218] sm:$0xf]
      %v2665 = vld [vmem:[%s2 + $0x21c] sm:$0xf]
      %v2666 = vld [vmem:[%s2 + $0x220] sm:$0xf]
      %v2667 = vld [vmem:[%s2 + $0x224] sm:$0xf]
      %v2668 = vld [vmem:[%s2 + $0x228] sm:$0xf]
      %v2669 = vld [vmem:[%s2 + $0x22c] sm:$0xf]
      %v2670 = vld [vmem:[%s2 + $0x230] sm:$0xf]
      %v2671 = vld [vmem:[%s2 + $0x234] sm:$0xf]
      %v2672 = vld [vmem:[%s2 + $0x238] sm:$0xf]
      %v2673 = vld [vmem:[%s2 + $0x23c] sm:$0xf]
      %v2818 = vunpack.c.l.b16 %v2530
      %v2819 = vunpack.c.l.b16 %v2531
      %v2820 = vunpack.c.l.b16 %v2532
      %v2821 = vunpack.c.l.b16 %v2533
      %v2822 = vunpack.c.l.b16 %v2534
      %v2823 = vunpack.c.l.b16 %v2535
      %v2824 = vunpack.c.l.b16 %v2536
      %v2825 = vunpack.c.l.b16 %v2537
      %v2826 = vunpack.c.l.b16 %v2538
      %v2827 = vunpack.c.l.b16 %v2539
      %v2828 = vunpack.c.l.b16 %v2540
      %v2829 = vunpack.c.l.b16 %v2541
      %v2830 = vunpack.c.l.b16 %v2542
      %v2831 = vunpack.c.l.b16 %v2543
      %v2832 = vunpack.c.l.b16 %v2544
      %v2833 = vunpack.c.l.b16 %v2545
      %v2834 = vunpack.c.l.b16 %v2546
      %v2835 = vunpack.c.l.b16 %v2547
      %v2836 = vunpack.c.l.b16 %v2548
      %v2837 = vunpack.c.l.b16 %v2549
      %v2838 = vunpack.c.l.b16 %v2550
      %v2839 = vunpack.c.l.b16 %v2551
      %v2840 = vunpack.c.l.b16 %v2552
      %v2841 = vunpack.c.l.b16 %v2553
      %v2842 = vunpack.c.l.b16 %v2554
      %v2843 = vunpack.c.l.b16 %v2555
      %v2844 = vunpack.c.l.b16 %v2556
      %v2845 = vunpack.c.l.b16 %v2557
      %v2846 = vunpack.c.l.b16 %v2558
      %v2847 = vunpack.c.l.b16 %v2559
      %v2848 = vunpack.c.l.b16 %v2560
      %v2849 = vunpack.c.l.b16 %v2561
      %v2850 = vunpack.c.l.b16 %v2562
      %v2851 = vunpack.c.l.b16 %v2563
      %v2852 = vunpack.c.l.b16 %v2564
      %v2853 = vunpack.c.l.b16 %v2565
      %v2854 = vunpack.c.l.b16 %v2566
      %v2855 = vunpack.c.l.b16 %v2567
      %v2856 = vunpack.c.l.b16 %v2568
      %v2857 = vunpack.c.l.b16 %v2569
      %v2858 = vunpack.c.l.b16 %v2570
      %v2859 = vunpack.c.l.b16 %v2571
      %v2860 = vunpack.c.l.b16 %v2572
      %v2861 = vunpack.c.l.b16 %v2573
      %v2862 = vunpack.c.l.b16 %v2574
      %v2863 = vunpack.c.l.b16 %v2575
      %v2864 = vunpack.c.l.b16 %v2576
      %v2865 = vunpack.c.l.b16 %v2577
      %v2866 = vunpack.c.l.b16 %v2578
      %v2867 = vunpack.c.l.b16 %v2579
      %v2868 = vunpack.c.l.b16 %v2580
      %v2869 = vunpack.c.l.b16 %v2581
      %v2870 = vunpack.c.l.b16 %v2582
      %v2871 = vunpack.c.l.b16 %v2583
      %v2872 = vunpack.c.l.b16 %v2584
      %v2873 = vunpack.c.l.b16 %v2585
      %v2874 = vunpack.c.l.b16 %v2586
      %v2875 = vunpack.c.l.b16 %v2587
      %v2876 = vunpack.c.l.b16 %v2588
      %v2877 = vunpack.c.l.b16 %v2589
      %v2878 = vunpack.c.l.b16 %v2590
      %v2879 = vunpack.c.l.b16 %v2591
      %v2880 = vunpack.c.l.b16 %v2592
      %v2881 = vunpack.c.l.b16 %v2593
      %v2882 = vunpack.c.l.b16 %v2594
      %v2883 = vunpack.c.l.b16 %v2595
      %v2884 = vunpack.c.l.b16 %v2596
      %v2885 = vunpack.c.l.b16 %v2597
      %v2886 = vunpack.c.l.b16 %v2598
      %v2887 = vunpack.c.l.b16 %v2599
      %v2888 = vunpack.c.l.b16 %v2600
      %v2889 = vunpack.c.l.b16 %v2601
      %v2890 = vunpack.c.l.b16 %v2602
      %v2891 = vunpack.c.l.b16 %v2603
      %v2892 = vunpack.c.l.b16 %v2604
      %v2893 = vunpack.c.l.b16 %v2605
      %v2894 = vunpack.c.l.b16 %v2606
      %v2895 = vunpack.c.l.b16 %v2607
      %v2896 = vunpack.c.l.b16 %v2608
      %v2897 = vunpack.c.l.b16 %v2609
      %v2898 = vunpack.c.l.b16 %v2610
      %v2899 = vunpack.c.l.b16 %v2611
      %v2900 = vunpack.c.l.b16 %v2612
      %v2901 = vunpack.c.l.b16 %v2613
      %v2902 = vunpack.c.l.b16 %v2614
      %v2903 = vunpack.c.l.b16 %v2615
      %v2904 = vunpack.c.l.b16 %v2616
      %v2905 = vunpack.c.l.b16 %v2617
      %v2906 = vunpack.c.l.b16 %v2618
      %v2907 = vunpack.c.l.b16 %v2619
      %v2908 = vunpack.c.l.b16 %v2620
      %v2909 = vunpack.c.l.b16 %v2621
      %v2910 = vunpack.c.l.b16 %v2622
      %v2911 = vunpack.c.l.b16 %v2623
      %v2912 = vunpack.c.l.b16 %v2624
      %v2913 = vunpack.c.l.b16 %v2625
      %v2914 = vunpack.c.l.b16 %v2626
      %v2915 = vunpack.c.l.b16 %v2627
      %v2916 = vunpack.c.l.b16 %v2628
      %v2917 = vunpack.c.l.b16 %v2629
      %v2918 = vunpack.c.l.b16 %v2630
      %v2919 = vunpack.c.l.b16 %v2631
      %v2920 = vunpack.c.l.b16 %v2632
      %v2921 = vunpack.c.l.b16 %v2633
      %v2922 = vunpack.c.l.b16 %v2634
      %v2923 = vunpack.c.l.b16 %v2635
      %v2924 = vunpack.c.l.b16 %v2636
      %v2925 = vunpack.c.l.b16 %v2637
      %v2926 = vunpack.c.l.b16 %v2638
      %v2927 = vunpack.c.l.b16 %v2639
      %v2928 = vunpack.c.l.b16 %v2640
      %v2929 = vunpack.c.l.b16 %v2641
      %v2930 = vunpack.c.l.b16 %v2642
      %v2931 = vunpack.c.l.b16 %v2643
      %v2932 = vunpack.c.l.b16 %v2644
      %v2933 = vunpack.c.l.b16 %v2645
      %v2934 = vunpack.c.l.b16 %v2646
      %v2935 = vunpack.c.l.b16 %v2647
      %v2936 = vunpack.c.l.b16 %v2648
      %v2937 = vunpack.c.l.b16 %v2649
      %v2938 = vunpack.c.l.b16 %v2650
      %v2939 = vunpack.c.l.b16 %v2651
      %v2940 = vunpack.c.l.b16 %v2652
      %v2941 = vunpack.c.l.b16 %v2653
      %v2942 = vunpack.c.l.b16 %v2654
      %v2943 = vunpack.c.l.b16 %v2655
      %v2944 = vunpack.c.l.b16 %v2656
      %v2945 = vunpack.c.l.b16 %v2657
      %v2946 = vunpack.c.l.b16 %v2658
      %v2947 = vunpack.c.l.b16 %v2659
      %v2948 = vunpack.c.l.b16 %v2660
      %v2949 = vunpack.c.l.b16 %v2661
      %v2950 = vunpack.c.l.b16 %v2662
      %v2951 = vunpack.c.l.b16 %v2663
      %v2952 = vunpack.c.l.b16 %v2664
      %v2953 = vunpack.c.l.b16 %v2665
      %v2954 = vunpack.c.l.b16 %v2666
      %v2955 = vunpack.c.l.b16 %v2667
      %v2956 = vunpack.c.l.b16 %v2668
      %v2957 = vunpack.c.l.b16 %v2669
      %v2958 = vunpack.c.l.b16 %v2670
      %v2959 = vunpack.c.l.b16 %v2671
      %v2960 = vunpack.c.l.b16 %v2672
      %v2961 = vunpack.c.l.b16 %v2673
      %v2962 = vpack.c.b16 %v2819, %v2818
      %v2963 = vpack.c.b16 %v2821, %v2820
      %v2964 = vpack.c.b16 %v2823, %v2822
      %v2965 = vpack.c.b16 %v2825, %v2824
      %v2966 = vpack.c.b16 %v2827, %v2826
      %v2967 = vpack.c.b16 %v2829, %v2828
      %v2968 = vpack.c.b16 %v2831, %v2830
      %v2969 = vpack.c.b16 %v2833, %v2832
      %v2970 = vpack.c.b16 %v2835, %v2834
      %v2971 = vpack.c.b16 %v2837, %v2836
      %v2972 = vpack.c.b16 %v2839, %v2838
      %v2973 = vpack.c.b16 %v2841, %v2840
      %v2974 = vpack.c.b16 %v2843, %v2842
      %v2975 = vpack.c.b16 %v2845, %v2844
      %v2976 = vpack.c.b16 %v2847, %v2846
      %v2977 = vpack.c.b16 %v2849, %v2848
      %v2978 = vpack.c.b16 %v2851, %v2850
      %v2979 = vpack.c.b16 %v2853, %v2852
      %v2980 = vpack.c.b16 %v2855, %v2854
      %v2981 = vpack.c.b16 %v2857, %v2856
      %v2982 = vpack.c.b16 %v2859, %v2858
      %v2983 = vpack.c.b16 %v2861, %v2860
      %v2984 = vpack.c.b16 %v2863, %v2862
      %v2985 = vpack.c.b16 %v2865, %v2864
      %v2986 = vpack.c.b16 %v2867, %v2866
      %v2987 = vpack.c.b16 %v2869, %v2868
      %v2988 = vpack.c.b16 %v2871, %v2870
      %v2989 = vpack.c.b16 %v2873, %v2872
      %v2990 = vpack.c.b16 %v2875, %v2874
      %v2991 = vpack.c.b16 %v2877, %v2876
      %v2992 = vpack.c.b16 %v2879, %v2878
      %v2993 = vpack.c.b16 %v2881, %v2880
      %v2994 = vpack.c.b16 %v2883, %v2882
      %v2995 = vpack.c.b16 %v2885, %v2884
      %v2996 = vpack.c.b16 %v2887, %v2886
      %v2997 = vpack.c.b16 %v2889, %v2888
      %v2998 = vpack.c.b16 %v2891, %v2890
      %v2999 = vpack.c.b16 %v2893, %v2892
      %v3000 = vpack.c.b16 %v2895, %v2894
      %v3001 = vpack.c.b16 %v2897, %v2896
      %v3002 = vpack.c.b16 %v2899, %v2898
      %v3003 = vpack.c.b16 %v2901, %v2900
      %v3004 = vpack.c.b16 %v2903, %v2902
      %v3005 = vpack.c.b16 %v2905, %v2904
      %v3006 = vpack.c.b16 %v2907, %v2906
      %v3007 = vpack.c.b16 %v2909, %v2908
      %v3008 = vpack.c.b16 %v2911, %v2910
      %v3009 = vpack.c.b16 %v2913, %v2912
      %v3010 = vpack.c.b16 %v2915, %v2914
      %v3011 = vpack.c.b16 %v2917, %v2916
      %v3012 = vpack.c.b16 %v2919, %v2918
      %v3013 = vpack.c.b16 %v2921, %v2920
      %v3014 = vpack.c.b16 %v2923, %v2922
      %v3015 = vpack.c.b16 %v2925, %v2924
      %v3016 = vpack.c.b16 %v2927, %v2926
      %v3017 = vpack.c.b16 %v2929, %v2928
      %v3018 = vpack.c.b16 %v2931, %v2930
      %v3019 = vpack.c.b16 %v2933, %v2932
      %v3020 = vpack.c.b16 %v2935, %v2934
      %v3021 = vpack.c.b16 %v2937, %v2936
      %v3022 = vpack.c.b16 %v2939, %v2938
      %v3023 = vpack.c.b16 %v2941, %v2940
      %v3024 = vpack.c.b16 %v2943, %v2942
      %v3025 = vpack.c.b16 %v2945, %v2944
      %v3026 = vpack.c.b16 %v2947, %v2946
      %v3027 = vpack.c.b16 %v2949, %v2948
      %v3028 = vpack.c.b16 %v2951, %v2950
      %v3029 = vpack.c.b16 %v2953, %v2952
      %v3030 = vpack.c.b16 %v2955, %v2954
      %v3031 = vpack.c.b16 %v2957, %v2956
      %v3032 = vpack.c.b16 %v2959, %v2958
      %v3033 = vpack.c.b16 %v2961, %v2960
      %3106 = vmatprep.subr.bf16.mxu0 0
      %3107 = vmatpush1.bf16.msra.mxu0 %v2962
      %3108 = vmatprep.subr.bf16.mxu0 0
      %3109 = vmatpush1.bf16.msra.mxu0 %v2963
      %3110 = vmatprep.subr.bf16.mxu0 0
      %3111 = vmatpush1.bf16.msra.mxu0 %v2964
      %3112 = vmatprep.subr.bf16.mxu0 0
      %3113 = vmatpush1.bf16.msra.mxu0 %v2965
      %3114 = vmatprep.subr.bf16.mxu0 0
      %3115 = vmatpush1.bf16.msra.mxu0 %v2966
      %3116 = vmatprep.subr.bf16.mxu0 0
      %3117 = vmatpush1.bf16.msra.mxu0 %v2967
      %3118 = vmatprep.subr.bf16.mxu0 0
      %3119 = vmatpush1.bf16.msra.mxu0 %v2968
      %3120 = vmatprep.subr.bf16.mxu0 0
      %3121 = vmatpush1.bf16.msra.mxu0 %v2969
      %3122 = vmatprep.subr.bf16.mxu0 0
      %3123 = vmatpush1.bf16.msra.mxu0 %v2970
      %3124 = vmatprep.subr.bf16.mxu0 0
      %3125 = vmatpush1.bf16.msra.mxu0 %v2971
      %3126 = vmatprep.subr.bf16.mxu0 0
      %3127 = vmatpush1.bf16.msra.mxu0 %v2972
      %3128 = vmatprep.subr.bf16.mxu0 0
      %3129 = vmatpush1.bf16.msra.mxu0 %v2973
      %3130 = vmatprep.subr.bf16.mxu0 0
      %3131 = vmatpush1.bf16.msra.mxu0 %v2974
      %3132 = vmatprep.subr.bf16.mxu0 0
      %3133 = vmatpush1.bf16.msra.mxu0 %v2975
      %3134 = vmatprep.subr.bf16.mxu0 0
      %3135 = vmatpush1.bf16.msra.mxu0 %v2976
      %3136 = vmatprep.subr.bf16.mxu0 0
      %3137 = vmatpush1.bf16.msra.mxu0 %v2977
      %3138 = vmatprep.mubr.bf16.mxu0 %v2369
      %3139 = vmatmul.mubr.bf16.gmra.mrb[0].mxu0 %v2368
      %v3140 = vpop.f32.mrb[0].mxu0
      %v3141 = vadd.f32 0.0, %v3140
      %v3142 = vpop.f32.mrb[0].mxu0
      %v3143 = vpop.f32.mrb[0].mxu0
      %v3144 = vadd.f32 0.0, %v3143
      %v3145 = vpop.f32.mrb[0].mxu0
      %3146 = vmatprep.mubr.bf16.mxu0 %v2378
      %3147 = vmatmul.mubr.bf16.gmra.mrb[0].mxu0 %v2377
      %v3148 = vpop.f32.mrb[0].mxu0
      %v3149 = vadd.f32 0.0, %v3148
      %v3150 = vpop.f32.mrb[0].mxu0
      %v3151 = vpop.f32.mrb[0].mxu0
      %v3152 = vadd.f32 0.0, %v3151
      %v3153 = vpop.f32.mrb[0].mxu0
      %3154 = vmatprep.mubr.bf16.mxu0 %v2387
      %3155 = vmatmul.mubr.bf16.gmra.mrb[0].mxu0 %v2386
      %v3156 = vpop.f32.mrb[0].mxu0
      %v3157 = vadd.f32 0.0, %v3156
      %v3158 = vpop.f32.mrb[0].mxu0
      %v3159 = vpop.f32.mrb[0].mxu0
      %v3160 = vadd.f32 0.0, %v3159
      %v3161 = vpop.f32.mrb[0].mxu0
      %3162 = vmatprep.mubr.bf16.mxu0 %v2396
      %3163 = vmatmul.mubr.bf16.gmra.mrb[0].mxu0 %v2395
      %v3164 = vpop.f32.mrb[0].mxu0
      %v3165 = vadd.f32 0.0, %v3164
      %v3166 = vpop.f32.mrb[0].mxu0
      %v3167 = vpop.f32.mrb[0].mxu0
      %v3168 = vadd.f32 0.0, %v3167
      %v3169 = vpop.f32.mrb[0].mxu0
      %3170 = vmatprep.mubr.bf16.mxu0 %v2405
      %3171 = vmatmul.mubr.bf16.gmra.mrb[0].mxu0 %v2404
      %v3172 = vpop.f32.mrb[0].mxu0
      %v3173 = vadd.f32 0.0, %v3172
      %v3174 = vpop.f32.mrb[0].mxu0
      %v3175 = vpop.f32.mrb[0].mxu0
      %v3176 = vadd.f32 0.0, %v3175
      %v3177 = vpop.f32.mrb[0].mxu0
      %3178 = vmatprep.mubr.bf16.mxu0 %v2414
      %3179 = vmatmul.mubr.bf16.gmra.mrb[0].mxu0 %v2413
      %v3180 = vpop.f32.mrb[0].mxu0
      %v3181 = vadd.f32 0.0, %v3180
      %v3182 = vpop.f32.mrb[0].mxu0
      %v3183 = vpop.f32.mrb[0].mxu0
      %v3184 = vadd.f32 0.0, %v3183
      %v3185 = vpop.f32.mrb[0].mxu0
      %3186 = vmatprep.mubr.bf16.mxu0 %v2423
      %3187 = vmatmul.mubr.bf16.gmra.mrb[0].mxu0 %v2422
      %v3188 = vpop.f32.mrb[0].mxu0
      %v3189 = vadd.f32 0.0, %v3188
      %v3190 = vpop.f32.mrb[0].mxu0
      %v3191 = vpop.f32.mrb[0].mxu0
      %v3192 = vadd.f32 0.0, %v3191
      %v3193 = vpop.f32.mrb[0].mxu0
      %3194 = vmatprep.mubr.bf16.mxu0 %v2432
      %3195 = vmatmul.mubr.bf16.gmra.mrb[0].mxu0 %v2431
      %v3196 = vpop.f32.mrb[0].mxu0
      %v3197 = vadd.f32 0.0, %v3196
      %v3198 = vpop.f32.mrb[0].mxu0
      %v3199 = vpop.f32.mrb[0].mxu0
      %v3200 = vadd.f32 0.0, %v3199
      %v3201 = vpop.f32.mrb[0].mxu0
      %3202 = vmatprep.mubr.bf16.mxu0 %v2441
      %3203 = vmatmul.mubr.bf16.gmra.mrb[0].mxu0 %v2440
      %v3204 = vpop.f32.mrb[0].mxu0
      %v3205 = vadd.f32 0.0, %v3204
      %v3206 = vpop.f32.mrb[0].mxu0
      %v3207 = vpop.f32.mrb[0].mxu0
      %v3208 = vadd.f32 0.0, %v3207
      %v3209 = vpop.f32.mrb[0].mxu0
      %3210 = vmatprep.mubr.bf16.mxu0 %v2450
      %3211 = vmatmul.mubr.bf16.gmra.mrb[0].mxu0 %v2449
      %v3212 = vpop.f32.mrb[0].mxu0
      %v3213 = vadd.f32 0.0, %v3212
      %v3214 = vpop.f32.mrb[0].mxu0
      %v3215 = vpop.f32.mrb[0].mxu0
      %v3216 = vadd.f32 0.0, %v3215
      %v3217 = vpop.f32.mrb[0].mxu0
      %3218 = vmatprep.mubr.bf16.mxu0 %v2459
      %3219 = vmatmul.mubr.bf16.gmra.mrb[0].mxu0 %v2458
      %v3220 = vpop.f32.mrb[0].mxu0
      %v3221 = vadd.f32 0.0, %v3220
      %v3222 = vpop.f32.mrb[0].mxu0
      %v3223 = vpop.f32.mrb[0].mxu0
      %v3224 = vadd.f32 0.0, %v3223
      %v3225 = vpop.f32.mrb[0].mxu0
      %3226 = vmatprep.mubr.bf16.mxu0 %v2468
      %3227 = vmatmul.mubr.bf16.gmra.mrb[0].mxu0 %v2467
      %v3228 = vpop.f32.mrb[0].mxu0
      %v3229 = vadd.f32 0.0, %v3228
      %v3230 = vpop.f32.mrb[0].mxu0
      %v3231 = vpop.f32.mrb[0].mxu0
      %v3232 = vadd.f32 0.0, %v3231
      %v3233 = vpop.f32.mrb[0].mxu0
      %3234 = vmatprep.mubr.bf16.mxu0 %v2477
      %3235 = vmatmul.mubr.bf16.gmra.mrb[0].mxu0 %v2476
      %v3236 = vpop.f32.mrb[0].mxu0
      %v3237 = vadd.f32 0.0, %v3236
      %v3238 = vpop.f32.mrb[0].mxu0
      %v3239 = vpop.f32.mrb[0].mxu0
      %v3240 = vadd.f32 0.0, %v3239
      %v3241 = vpop.f32.mrb[0].mxu0
      %3242 = vmatprep.mubr.bf16.mxu0 %v2486
      %3243 = vmatmul.mubr.bf16.gmra.mrb[0].mxu0 %v2485
      %v3244 = vpop.f32.mrb[0].mxu0
      %v3245 = vadd.f32 0.0, %v3244
      %v3246 = vpop.f32.mrb[0].mxu0
      %v3247 = vpop.f32.mrb[0].mxu0
      %v3248 = vadd.f32 0.0, %v3247
      %v3249 = vpop.f32.mrb[0].mxu0
      %3250 = vmatprep.mubr.bf16.mxu0 %v2495
      %3251 = vmatmul.mubr.bf16.gmra.mrb[0].mxu0 %v2494
      %v3252 = vpop.f32.mrb[0].mxu0
      %v3253 = vadd.f32 0.0, %v3252
      %v3254 = vpop.f32.mrb[0].mxu0
      %v3255 = vpop.f32.mrb[0].mxu0
      %v3256 = vadd.f32 0.0, %v3255
      %v3257 = vpop.f32.mrb[0].mxu0
      %3258 = vmatprep.mubr.bf16.mxu0 %v2504
      %3259 = vmatmul.mubr.bf16.gmra.mrb[0].mxu0 %v2503
      %v3260 = vpop.f32.mrb[0].mxu0
      %v3261 = vadd.f32 0.0, %v3260
      %v3262 = vpop.f32.mrb[0].mxu0
      %v3263 = vpop.f32.mrb[0].mxu0
      %v3264 = vadd.f32 0.0, %v3263
      %v3265 = vpop.f32.mrb[0].mxu0
      %3266 = vmatprep.mubr.bf16.mxu0 %v2513
      %3267 = vmatmul.mubr.bf16.gmra.mrb[0].mxu0 %v2512
      %v3268 = vpop.f32.mrb[0].mxu0
      %v3269 = vadd.f32 0.0, %v3268
      %v3270 = vpop.f32.mrb[0].mxu0
      %v3271 = vpop.f32.mrb[0].mxu0
      %v3272 = vadd.f32 0.0, %v3271
      %v3273 = vpop.f32.mrb[0].mxu0
      %3274 = vmatprep.mubr.bf16.mxu0 %v2522
      %3275 = vmatmul.mubr.bf16.gmra.mrb[0].mxu0 %v2521
      %v3276 = vpop.f32.mrb[0].mxu0
      %v3277 = vadd.f32 0.0, %v3276
      %v3278 = vpop.f32.mrb[0].mxu0
      %v3279 = vpop.f32.mrb[0].mxu0
      %v3280 = vadd.f32 0.0, %v3279
      %v3281 = vpop.f32.mrb[0].mxu0
      %3282 = vdwg.mxu0
      %3283 = vmatprep.subr.bf16.mxu0 0
      %3284 = vmatpush1.bf16.msra.mxu0 %v2978
      %3285 = vmatprep.subr.bf16.mxu0 0
      %3286 = vmatpush1.bf16.msra.mxu0 %v2979
      %3287 = vmatprep.subr.bf16.mxu0 0
      %3288 = vmatpush1.bf16.msra.mxu0 %v2980
      %3289 = vmatprep.subr.bf16.mxu0 0
      %3290 = vmatpush1.bf16.msra.mxu0 %v2981
      %3291 = vmatprep.subr.bf16.mxu0 0
      %3292 = vmatpush1.bf16.msra.mxu0 %v2982
      %3293 = vmatprep.subr.bf16.mxu0 0
      %3294 = vmatpush1.bf16.msra.mxu0 %v2983
      %3295 = vmatprep.subr.bf16.mxu0 0
      %3296 = vmatpush1.bf16.msra.mxu0 %v2984
      %3297 = vmatprep.subr.bf16.mxu0 0
      %3298 = vmatpush1.bf16.msra.mxu0 %v2985
      %3299 = vmatprep.subr.bf16.mxu0 0
      %3300 = vmatpush1.bf16.msra.mxu0 %v2986
      %3301 = vmatprep.subr.bf16.mxu0 0
      %3302 = vmatpush1.bf16.msra.mxu0 %v2987
      %3303 = vmatprep.subr.bf16.mxu0 0
      %3304 = vmatpush1.bf16.msra.mxu0 %v2988
      %3305 = vmatprep.subr.bf16.mxu0 0
      %3306 = vmatpush1.bf16.msra.mxu0 %v2989
      %3307 = vmatprep.subr.bf16.mxu0 0
      %3308 = vmatpush1.bf16.msra.mxu0 %v2990
      %3309 = vmatprep.subr.bf16.mxu0 0
      %3310 = vmatpush1.bf16.msra.mxu0 %v2991
      %3311 = vmatprep.subr.bf16.mxu0 0
      %3312 = vmatpush1.bf16.msra.mxu0 %v2992
      %3313 = vmatprep.subr.bf16.mxu0 0
      %3314 = vmatpush1.bf16.msra.mxu0 %v2993
      %3315 = vmatprep.mubr.bf16.mxu0 %v2371
      %3316 = vmatmul.mubr.bf16.gmra.mrb[0].mxu0 %v2370
      %v3317 = vpop.f32.mrb[0].mxu0
      %v3318 = vadd.f32 %v3141, %v3317
      %v3319 = vpop.f32.mrb[0].mxu0
      %v3320 = vpop.f32.mrb[0].mxu0
      %v3321 = vadd.f32 %v3144, %v3320
      %v3322 = vpop.f32.mrb[0].mxu0
      %3323 = vmatprep.mubr.bf16.mxu0 %v2380
      %3324 = vmatmul.mubr.bf16.gmra.mrb[0].mxu0 %v2379
      %v3325 = vpop.f32.mrb[0].mxu0
      %v3326 = vadd.f32 %v3149, %v3325
      %v3327 = vpop.f32.mrb[0].mxu0
      %v3328 = vpop.f32.mrb[0].mxu0
      %v3329 = vadd.f32 %v3152, %v3328
      %v3330 = vpop.f32.mrb[0].mxu0
      %3331 = vmatprep.mubr.bf16.mxu0 %v2389
      %3332 = vmatmul.mubr.bf16.gmra.mrb[0].mxu0 %v2388
      %v3333 = vpop.f32.mrb[0].mxu0
      %v3334 = vadd.f32 %v3157, %v3333
      %v3335 = vpop.f32.mrb[0].mxu0
      %v3336 = vpop.f32.mrb[0].mxu0
      %v3337 = vadd.f32 %v3160, %v3336
      %v3338 = vpop.f32.mrb[0].mxu0
      %3339 = vmatprep.mubr.bf16.mxu0 %v2398
      %3340 = vmatmul.mubr.bf16.gmra.mrb[0].mxu0 %v2397
      %v3341 = vpop.f32.mrb[0].mxu0
      %v3342 = vadd.f32 %v3165, %v3341
      %v3343 = vpop.f32.mrb[0].mxu0
      %v3344 = vpop.f32.mrb[0].mxu0
      %v3345 = vadd.f32 %v3168, %v3344
      %v3346 = vpop.f32.mrb[0].mxu0
      %3347 = vmatprep.mubr.bf16.mxu0 %v2407
      %3348 = vmatmul.mubr.bf16.gmra.mrb[0].mxu0 %v2406
      %v3349 = vpop.f32.mrb[0].mxu0
      %v3350 = vadd.f32 %v3173, %v3349
      %v3351 = vpop.f32.mrb[0].mxu0
      %v3352 = vpop.f32.mrb[0].mxu0
      %v3353 = vadd.f32 %v3176, %v3352
      %v3354 = vpop.f32.mrb[0].mxu0
      %3355 = vmatprep.mubr.bf16.mxu0 %v2416
      %3356 = vmatmul.mubr.bf16.gmra.mrb[0].mxu0 %v2415
      %v3357 = vpop.f32.mrb[0].mxu0
      %v3358 = vadd.f32 %v3181, %v3357
      %v3359 = vpop.f32.mrb[0].mxu0
      %v3360 = vpop.f32.mrb[0].mxu0
      %v3361 = vadd.f32 %v3184, %v3360
      %v3362 = vpop.f32.mrb[0].mxu0
      %3363 = vmatprep.mubr.bf16.mxu0 %v2425
      %3364 = vmatmul.mubr.bf16.gmra.mrb[0].mxu0 %v2424
      %v3365 = vpop.f32.mrb[0].mxu0
      %v3366 = vadd.f32 %v3189, %v3365
      %v3367 = vpop.f32.mrb[0].mxu0
      %v3368 = vpop.f32.mrb[0].mxu0
      %v3369 = vadd.f32 %v3192, %v3368
      %v3370 = vpop.f32.mrb[0].mxu0
      %3371 = vmatprep.mubr.bf16.mxu0 %v2434
      %3372 = vmatmul.mubr.bf16.gmra.mrb[0].mxu0 %v2433
      %v3373 = vpop.f32.mrb[0].mxu0
      %v3374 = vadd.f32 %v3197, %v3373
      %v3375 = vpop.f32.mrb[0].mxu0
      %v3376 = vpop.f32.mrb[0].mxu0
      %v3377 = vadd.f32 %v3200, %v3376
      %v3378 = vpop.f32.mrb[0].mxu0
      %3379 = vmatprep.mubr.bf16.mxu0 %v2443
      %3380 = vmatmul.mubr.bf16.gmra.mrb[0].mxu0 %v2442
      %v3381 = vpop.f32.mrb[0].mxu0
      %v3382 = vadd.f32 %v3205, %v3381
      %v3383 = vpop.f32.mrb[0].mxu0
      %v3384 = vpop.f32.mrb[0].mxu0
      %v3385 = vadd.f32 %v3208, %v3384
      %v3386 = vpop.f32.mrb[0].mxu0
      %3387 = vmatprep.mubr.bf16.mxu0 %v2452
      %3388 = vmatmul.mubr.bf16.gmra.mrb[0].mxu0 %v2451
      %v3389 = vpop.f32.mrb[0].mxu0
      %v3390 = vadd.f32 %v3213, %v3389
      %v3391 = vpop.f32.mrb[0].mxu0
      %v3392 = vpop.f32.mrb[0].mxu0
      %v3393 = vadd.f32 %v3216, %v3392
      %v3394 = vpop.f32.mrb[0].mxu0
      %3395 = vmatprep.mubr.bf16.mxu0 %v2461
      %3396 = vmatmul.mubr.bf16.gmra.mrb[0].mxu0 %v2460
      %v3397 = vpop.f32.mrb[0].mxu0
      %v3398 = vadd.f32 %v3221, %v3397
      %v3399 = vpop.f32.mrb[0].mxu0
      %v3400 = vpop.f32.mrb[0].mxu0
      %v3401 = vadd.f32 %v3224, %v3400
      %v3402 = vpop.f32.mrb[0].mxu0
      %3403 = vmatprep.mubr.bf16.mxu0 %v2470
      %3404 = vmatmul.mubr.bf16.gmra.mrb[0].mxu0 %v2469
      %v3405 = vpop.f32.mrb[0].mxu0
      %v3406 = vadd.f32 %v3229, %v3405
      %v3407 = vpop.f32.mrb[0].mxu0
      %v3408 = vpop.f32.mrb[0].mxu0
      %v3409 = vadd.f32 %v3232, %v3408
      %v3410 = vpop.f32.mrb[0].mxu0
      %3411 = vmatprep.mubr.bf16.mxu0 %v2479
      %3412 = vmatmul.mubr.bf16.gmra.mrb[0].mxu0 %v2478
      %v3413 = vpop.f32.mrb[0].mxu0
      %v3414 = vadd.f32 %v3237, %v3413
      %v3415 = vpop.f32.mrb[0].mxu0
      %v3416 = vpop.f32.mrb[0].mxu0
      %v3417 = vadd.f32 %v3240, %v3416
      %v3418 = vpop.f32.mrb[0].mxu0
      %3419 = vmatprep.mubr.bf16.mxu0 %v2488
      %3420 = vmatmul.mubr.bf16.gmra.mrb[0].mxu0 %v2487
      %v3421 = vpop.f32.mrb[0].mxu0
      %v3422 = vadd.f32 %v3245, %v3421
      %v3423 = vpop.f32.mrb[0].mxu0
      %v3424 = vpop.f32.mrb[0].mxu0
      %v3425 = vadd.f32 %v3248, %v3424
      %v3426 = vpop.f32.mrb[0].mxu0
      %3427 = vmatprep.mubr.bf16.mxu0 %v2497
      %3428 = vmatmul.mubr.bf16.gmra.mrb[0].mxu0 %v2496
      %v3429 = vpop.f32.mrb[0].mxu0
      %v3430 = vadd.f32 %v3253, %v3429
      %v3431 = vpop.f32.mrb[0].mxu0
      %v3432 = vpop.f32.mrb[0].mxu0
      %v3433 = vadd.f32 %v3256, %v3432
      %v3434 = vpop.f32.mrb[0].mxu0
      %3435 = vmatprep.mubr.bf16.mxu0 %v2506
      %3436 = vmatmul.mubr.bf16.gmra.mrb[0].mxu0 %v2505
      %v3437 = vpop.f32.mrb[0].mxu0
      %v3438 = vadd.f32 %v3261, %v3437
      %v3439 = vpop.f32.mrb[0].mxu0
      %v3440 = vpop.f32.mrb[0].mxu0
      %v3441 = vadd.f32 %v3264, %v3440
      %v3442 = vpop.f32.mrb[0].mxu0
      %3443 = vmatprep.mubr.bf16.mxu0 %v2515
      %3444 = vmatmul.mubr.bf16.gmra.mrb[0].mxu0 %v2514
      %v3445 = vpop.f32.mrb[0].mxu0
      %v3446 = vadd.f32 %v3269, %v3445
      %v3447 = vpop.f32.mrb[0].mxu0
      %v3448 = vpop.f32.mrb[0].mxu0
      %v3449 = vadd.f32 %v3272, %v3448
      %v3450 = vpop.f32.mrb[0].mxu0
      %3451 = vmatprep.mubr.bf16.mxu0 %v2524
      %3452 = vmatmul.mubr.bf16.gmra.mrb[0].mxu0 %v2523
      %v3453 = vpop.f32.mrb[0].mxu0
      %v3454 = vadd.f32 %v3277, %v3453
      %v3455 = vpop.f32.mrb[0].mxu0
      %v3456 = vpop.f32.mrb[0].mxu0
      %v3457 = vadd.f32 %v3280, %v3456
      %v3458 = vpop.f32.mrb[0].mxu0
      %3459 = vdwg.mxu0
      %3460 = vmatprep.subr.bf16.mxu0 0
      %3461 = vmatpush1.bf16.msra.mxu0 %v2994
      %3462 = vmatprep.subr.bf16.mxu0 0
      %3463 = vmatpush1.bf16.msra.mxu0 %v2995
      %3464 = vmatprep.subr.bf16.mxu0 0
      %3465 = vmatpush1.bf16.msra.mxu0 %v2996
      %3466 = vmatprep.subr.bf16.mxu0 0
      %3467 = vmatpush1.bf16.msra.mxu0 %v2997
      %3468 = vmatprep.subr.bf16.mxu0 0
      %3469 = vmatpush1.bf16.msra.mxu0 %v2998
      %3470 = vmatprep.subr.bf16.mxu0 0
      %3471 = vmatpush1.bf16.msra.mxu0 %v2999
      %3472 = vmatprep.subr.bf16.mxu0 0
      %3473 = vmatpush1.bf16.msra.mxu0 %v3000
      %3474 = vmatprep.subr.bf16.mxu0 0
      %3475 = vmatpush1.bf16.msra.mxu0 %v3001
      %3476 = vmatprep.subr.bf16.mxu0 0
      %3477 = vmatpush1.bf16.msra.mxu0 %v3002
      %3478 = vmatprep.subr.bf16.mxu0 0
      %3479 = vmatpush1.bf16.msra.mxu0 %v3003
      %3480 = vmatprep.subr.bf16.mxu0 0
      %3481 = vmatpush1.bf16.msra.mxu0 %v3004
      %3482 = vmatprep.subr.bf16.mxu0 0
      %3483 = vmatpush1.bf16.msra.mxu0 %v3005
      %3484 = vmatprep.subr.bf16.mxu0 0
      %3485 = vmatpush1.bf16.msra.mxu0 %v3006
      %3486 = vmatprep.subr.bf16.mxu0 0
      %3487 = vmatpush1.bf16.msra.mxu0 %v3007
      %3488 = vmatprep.subr.bf16.mxu0 0
      %3489 = vmatpush1.bf16.msra.mxu0 %v3008
      %3490 = vmatprep.subr.bf16.mxu0 0
      %3491 = vmatpush1.bf16.msra.mxu0 %v3009
      %3492 = vmatprep.mubr.bf16.mxu0 %v2373
      %3493 = vmatmul.mubr.bf16.gmra.mrb[0].mxu0 %v2372
      %v3494 = vpop.f32.mrb[0].mxu0
      %v3495 = vadd.f32 %v3318, %v3494
      %v3496 = vpop.f32.mrb[0].mxu0
      %v3497 = vpop.f32.mrb[0].mxu0
      %v3498 = vadd.f32 %v3321, %v3497
      %v3499 = vpop.f32.mrb[0].mxu0
      %3500 = vmatprep.mubr.bf16.mxu0 %v2382
      %3501 = vmatmul.mubr.bf16.gmra.mrb[0].mxu0 %v2381
      %v3502 = vpop.f32.mrb[0].mxu0
      %v3503 = vadd.f32 %v3326, %v3502
      %v3504 = vpop.f32.mrb[0].mxu0
      %v3505 = vpop.f32.mrb[0].mxu0
      %v3506 = vadd.f32 %v3329, %v3505
      %v3507 = vpop.f32.mrb[0].mxu0
      %3508 = vmatprep.mubr.bf16.mxu0 %v2391
      %3509 = vmatmul.mubr.bf16.gmra.mrb[0].mxu0 %v2390
      %v3510 = vpop.f32.mrb[0].mxu0
      %v3511 = vadd.f32 %v3334, %v3510
      %v3512 = vpop.f32.mrb[0].mxu0
      %v3513 = vpop.f32.mrb[0].mxu0
      %v3514 = vadd.f32 %v3337, %v3513
      %v3515 = vpop.f32.mrb[0].mxu0
      %3516 = vmatprep.mubr.bf16.mxu0 %v2400
      %3517 = vmatmul.mubr.bf16.gmra.mrb[0].mxu0 %v2399
      %v3518 = vpop.f32.mrb[0].mxu0
      %v3519 = vadd.f32 %v3342, %v3518
      %v3520 = vpop.f32.mrb[0].mxu0
      %v3521 = vpop.f32.mrb[0].mxu0
      %v3522 = vadd.f32 %v3345, %v3521
      %v3523 = vpop.f32.mrb[0].mxu0
      %3524 = vmatprep.mubr.bf16.mxu0 %v2409
      %3525 = vmatmul.mubr.bf16.gmra.mrb[0].mxu0 %v2408
      %v3526 = vpop.f32.mrb[0].mxu0
      %v3527 = vadd.f32 %v3350, %v3526
      %v3528 = vpop.f32.mrb[0].mxu0
      %v3529 = vpop.f32.mrb[0].mxu0
      %v3530 = vadd.f32 %v3353, %v3529
      %v3531 = vpop.f32.mrb[0].mxu0
      %3532 = vmatprep.mubr.bf16.mxu0 %v2418
      %3533 = vmatmul.mubr.bf16.gmra.mrb[0].mxu0 %v2417
      %v3534 = vpop.f32.mrb[0].mxu0
      %v3535 = vadd.f32 %v3358, %v3534
      %v3536 = vpop.f32.mrb[0].mxu0
      %v3537 = vpop.f32.mrb[0].mxu0
      %v3538 = vadd.f32 %v3361, %v3537
      %v3539 = vpop.f32.mrb[0].mxu0
      %3540 = vmatprep.mubr.bf16.mxu0 %v2427
      %3541 = vmatmul.mubr.bf16.gmra.mrb[0].mxu0 %v2426
      %v3542 = vpop.f32.mrb[0].mxu0
      %v3543 = vadd.f32 %v3366, %v3542
      %v3544 = vpop.f32.mrb[0].mxu0
      %v3545 = vpop.f32.mrb[0].mxu0
      %v3546 = vadd.f32 %v3369, %v3545
      %v3547 = vpop.f32.mrb[0].mxu0
      %3548 = vmatprep.mubr.bf16.mxu0 %v2436
      %3549 = vmatmul.mubr.bf16.gmra.mrb[0].mxu0 %v2435
      %v3550 = vpop.f32.mrb[0].mxu0
      %v3551 = vadd.f32 %v3374, %v3550
      %v3552 = vpop.f32.mrb[0].mxu0
      %v3553 = vpop.f32.mrb[0].mxu0
      %v3554 = vadd.f32 %v3377, %v3553
      %v3555 = vpop.f32.mrb[0].mxu0
      %3556 = vmatprep.mubr.bf16.mxu0 %v2445
      %3557 = vmatmul.mubr.bf16.gmra.mrb[0].mxu0 %v2444
      %v3558 = vpop.f32.mrb[0].mxu0
      %v3559 = vadd.f32 %v3382, %v3558
      %v3560 = vpop.f32.mrb[0].mxu0
      %v3561 = vpop.f32.mrb[0].mxu0
      %v3562 = vadd.f32 %v3385, %v3561
      %v3563 = vpop.f32.mrb[0].mxu0
      %3564 = vmatprep.mubr.bf16.mxu0 %v2454
      %3565 = vmatmul.mubr.bf16.gmra.mrb[0].mxu0 %v2453
      %v3566 = vpop.f32.mrb[0].mxu0
      %v3567 = vadd.f32 %v3390, %v3566
      %v3568 = vpop.f32.mrb[0].mxu0
      %v3569 = vpop.f32.mrb[0].mxu0
      %v3570 = vadd.f32 %v3393, %v3569
      %v3571 = vpop.f32.mrb[0].mxu0
      %3572 = vmatprep.mubr.bf16.mxu0 %v2463
      %3573 = vmatmul.mubr.bf16.gmra.mrb[0].mxu0 %v2462
      %v3574 = vpop.f32.mrb[0].mxu0
      %v3575 = vadd.f32 %v3398, %v3574
      %v3576 = vpop.f32.mrb[0].mxu0
      %v3577 = vpop.f32.mrb[0].mxu0
      %v3578 = vadd.f32 %v3401, %v3577
      %v3579 = vpop.f32.mrb[0].mxu0
      %3580 = vmatprep.mubr.bf16.mxu0 %v2472
      %3581 = vmatmul.mubr.bf16.gmra.mrb[0].mxu0 %v2471
      %v3582 = vpop.f32.mrb[0].mxu0
      %v3583 = vadd.f32 %v3406, %v3582
      %v3584 = vpop.f32.mrb[0].mxu0
      %v3585 = vpop.f32.mrb[0].mxu0
      %v3586 = vadd.f32 %v3409, %v3585
      %v3587 = vpop.f32.mrb[0].mxu0
      %3588 = vmatprep.mubr.bf16.mxu0 %v2481
      %3589 = vmatmul.mubr.bf16.gmra.mrb[0].mxu0 %v2480
      %v3590 = vpop.f32.mrb[0].mxu0
      %v3591 = vadd.f32 %v3414, %v3590
      %v3592 = vpop.f32.mrb[0].mxu0
      %v3593 = vpop.f32.mrb[0].mxu0
      %v3594 = vadd.f32 %v3417, %v3593
      %v3595 = vpop.f32.mrb[0].mxu0
      %3596 = vmatprep.mubr.bf16.mxu0 %v2490
      %3597 = vmatmul.mubr.bf16.gmra.mrb[0].mxu0 %v2489
      %v3598 = vpop.f32.mrb[0].mxu0
      %v3599 = vadd.f32 %v3422, %v3598
      %v3600 = vpop.f32.mrb[0].mxu0
      %v3601 = vpop.f32.mrb[0].mxu0
      %v3602 = vadd.f32 %v3425, %v3601
      %v3603 = vpop.f32.mrb[0].mxu0
      %3604 = vmatprep.mubr.bf16.mxu0 %v2499
      %3605 = vmatmul.mubr.bf16.gmra.mrb[0].mxu0 %v2498
      %v3606 = vpop.f32.mrb[0].mxu0
      %v3607 = vadd.f32 %v3430, %v3606
      %v3608 = vpop.f32.mrb[0].mxu0
      %v3609 = vpop.f32.mrb[0].mxu0
      %v3610 = vadd.f32 %v3433, %v3609
      %v3611 = vpop.f32.mrb[0].mxu0
      %3612 = vmatprep.mubr.bf16.mxu0 %v2508
      %3613 = vmatmul.mubr.bf16.gmra.mrb[0].mxu0 %v2507
      %v3614 = vpop.f32.mrb[0].mxu0
      %v3615 = vadd.f32 %v3438, %v3614
      %v3616 = vpop.f32.mrb[0].mxu0
      %v3617 = vpop.f32.mrb[0].mxu0
      %v3618 = vadd.f32 %v3441, %v3617
      %v3619 = vpop.f32.mrb[0].mxu0
      %3620 = vmatprep.mubr.bf16.mxu0 %v2517
      %3621 = vmatmul.mubr.bf16.gmra.mrb[0].mxu0 %v2516
      %v3622 = vpop.f32.mrb[0].mxu0
      %v3623 = vadd.f32 %v3446, %v3622
      %v3624 = vpop.f32.mrb[0].mxu0
      %v3625 = vpop.f32.mrb[0].mxu0
      %v3626 = vadd.f32 %v3449, %v3625
      %v3627 = vpop.f32.mrb[0].mxu0
      %3628 = vmatprep.mubr.bf16.mxu0 %v2526
      %3629 = vmatmul.mubr.bf16.gmra.mrb[0].mxu0 %v2525
      %v3630 = vpop.f32.mrb[0].mxu0
      %v3631 = vadd.f32 %v3454, %v3630
      %v3632 = vpop.f32.mrb[0].mxu0
      %v3633 = vpop.f32.mrb[0].mxu0
      %v3634 = vadd.f32 %v3457, %v3633
      %v3635 = vpop.f32.mrb[0].mxu0
      %3636 = vdwg.mxu0
      %3637 = vmatprep.subr.bf16.mxu0 0
      %3638 = vmatpush1.bf16.msra.mxu0 %v3010
      %3639 = vmatprep.subr.bf16.mxu0 0
      %3640 = vmatpush1.bf16.msra.mxu0 %v3011
      %3641 = vmatprep.subr.bf16.mxu0 0
      %3642 = vmatpush1.bf16.msra.mxu0 %v3012
      %3643 = vmatprep.subr.bf16.mxu0 0
      %3644 = vmatpush1.bf16.msra.mxu0 %v3013
      %3645 = vmatprep.subr.bf16.mxu0 0
      %3646 = vmatpush1.bf16.msra.mxu0 %v3014
      %3647 = vmatprep.subr.bf16.mxu0 0
      %3648 = vmatpush1.bf16.msra.mxu0 %v3015
      %3649 = vmatprep.subr.bf16.mxu0 0
      %3650 = vmatpush1.bf16.msra.mxu0 %v3016
      %3651 = vmatprep.subr.bf16.mxu0 0
      %3652 = vmatpush1.bf16.msra.mxu0 %v3017
      %3653 = vmatprep.subr.bf16.mxu0 0
      %3654 = vmatpush1.bf16.msra.mxu0 %v3018
      %3655 = vmatprep.subr.bf16.mxu0 0
      %3656 = vmatpush1.bf16.msra.mxu0 %v3019
      %3657 = vmatprep.subr.bf16.mxu0 0
      %3658 = vmatpush1.bf16.msra.mxu0 %v3020
      %3659 = vmatprep.subr.bf16.mxu0 0
      %3660 = vmatpush1.bf16.msra.mxu0 %v3021
      %3661 = vmatprep.subr.bf16.mxu0 0
      %3662 = vmatpush1.bf16.msra.mxu0 %v3022
      %3663 = vmatprep.subr.bf16.mxu0 0
      %3664 = vmatpush1.bf16.msra.mxu0 %v3023
      %3665 = vmatprep.subr.bf16.mxu0 0
      %3666 = vmatpush1.bf16.msra.mxu0 %v3024
      %3667 = vmatprep.subr.bf16.mxu0 0
      %3668 = vmatpush1.bf16.msra.mxu0 %v3025
      %3669 = vmatprep.mubr.bf16.mxu0 %v2375
      %3670 = vmatmul.mubr.bf16.gmra.mrb[0].mxu0 %v2374
      %v3671 = vpop.f32.mrb[0].mxu0
      %v3672 = vadd.f32 %v3495, %v3671
      %v3673 = vpop.f32.mrb[0].mxu0
      %v3674 = vpop.f32.mrb[0].mxu0
      %v3675 = vadd.f32 %v3498, %v3674
      %v3676 = vpop.f32.mrb[0].mxu0
      %3677 = vmatprep.mubr.bf16.mxu0 %v2384
      %3678 = vmatmul.mubr.bf16.gmra.mrb[0].mxu0 %v2383
      %v3679 = vpop.f32.mrb[0].mxu0
      %v3680 = vadd.f32 %v3503, %v3679
      %v3681 = vpop.f32.mrb[0].mxu0
      %v3682 = vpop.f32.mrb[0].mxu0
      %v3683 = vadd.f32 %v3506, %v3682
      %v3684 = vpop.f32.mrb[0].mxu0
      %3685 = vmatprep.mubr.bf16.mxu0 %v2393
      %3686 = vmatmul.mubr.bf16.gmra.mrb[0].mxu0 %v2392
      %v3687 = vpop.f32.mrb[0].mxu0
      %v3688 = vadd.f32 %v3511, %v3687
      %v3689 = vpop.f32.mrb[0].mxu0
      %v3690 = vpop.f32.mrb[0].mxu0
      %v3691 = vadd.f32 %v3514, %v3690
      %v3692 = vpop.f32.mrb[0].mxu0
      %3693 = vmatprep.mubr.bf16.mxu0 %v2402
      %3694 = vmatmul.mubr.bf16.gmra.mrb[0].mxu0 %v2401
      %v3695 = vpop.f32.mrb[0].mxu0
      %v3696 = vadd.f32 %v3519, %v3695
      %v3697 = vpop.f32.mrb[0].mxu0
      %v3698 = vpop.f32.mrb[0].mxu0
      %v3699 = vadd.f32 %v3522, %v3698
      %v3700 = vpop.f32.mrb[0].mxu0
      %3701 = vmatprep.mubr.bf16.mxu0 %v2411
      %3702 = vmatmul.mubr.bf16.gmra.mrb[0].mxu0 %v2410
      %v3703 = vpop.f32.mrb[0].mxu0
      %v3704 = vadd.f32 %v3527, %v3703
      %v3705 = vpop.f32.mrb[0].mxu0
      %v3706 = vpop.f32.mrb[0].mxu0
      %v3707 = vadd.f32 %v3530, %v3706
      %v3708 = vpop.f32.mrb[0].mxu0
      %3709 = vmatprep.mubr.bf16.mxu0 %v2420
      %3710 = vmatmul.mubr.bf16.gmra.mrb[0].mxu0 %v2419
      %v3711 = vpop.f32.mrb[0].mxu0
      %v3712 = vadd.f32 %v3535, %v3711
      %v3713 = vpop.f32.mrb[0].mxu0
      %v3714 = vpop.f32.mrb[0].mxu0
      %v3715 = vadd.f32 %v3538, %v3714
      %v3716 = vpop.f32.mrb[0].mxu0
      %3717 = vmatprep.mubr.bf16.mxu0 %v2429
      %3718 = vmatmul.mubr.bf16.gmra.mrb[0].mxu0 %v2428
      %v3719 = vpop.f32.mrb[0].mxu0
      %v3720 = vadd.f32 %v3543, %v3719
      %v3721 = vpop.f32.mrb[0].mxu0
      %v3722 = vpop.f32.mrb[0].mxu0
      %v3723 = vadd.f32 %v3546, %v3722
      %v3724 = vpop.f32.mrb[0].mxu0
      %3725 = vmatprep.mubr.bf16.mxu0 %v2438
      %3726 = vmatmul.mubr.bf16.gmra.mrb[0].mxu0 %v2437
      %v3727 = vpop.f32.mrb[0].mxu0
      %v3728 = vadd.f32 %v3551, %v3727
      %v3729 = vpop.f32.mrb[0].mxu0
      %v3730 = vpop.f32.mrb[0].mxu0
      %v3731 = vadd.f32 %v3554, %v3730
      %v3732 = vpop.f32.mrb[0].mxu0
      %3733 = vmatprep.mubr.bf16.mxu0 %v2447
      %3734 = vmatmul.mubr.bf16.gmra.mrb[0].mxu0 %v2446
      %v3735 = vpop.f32.mrb[0].mxu0
      %v3736 = vadd.f32 %v3559, %v3735
      %v3737 = vpop.f32.mrb[0].mxu0
      %v3738 = vpop.f32.mrb[0].mxu0
      %v3739 = vadd.f32 %v3562, %v3738
      %v3740 = vpop.f32.mrb[0].mxu0
      %3741 = vmatprep.mubr.bf16.mxu0 %v2456
      %3742 = vmatmul.mubr.bf16.gmra.mrb[0].mxu0 %v2455
      %v3743 = vpop.f32.mrb[0].mxu0
      %v3744 = vadd.f32 %v3567, %v3743
      %v3745 = vpop.f32.mrb[0].mxu0
      %v3746 = vpop.f32.mrb[0].mxu0
      %v3747 = vadd.f32 %v3570, %v3746
      %v3748 = vpop.f32.mrb[0].mxu0
      %3749 = vmatprep.mubr.bf16.mxu0 %v2465
      %3750 = vmatmul.mubr.bf16.gmra.mrb[0].mxu0 %v2464
      %v3751 = vpop.f32.mrb[0].mxu0
      %v3752 = vadd.f32 %v3575, %v3751
      %v3753 = vpop.f32.mrb[0].mxu0
      %v3754 = vpop.f32.mrb[0].mxu0
      %v3755 = vadd.f32 %v3578, %v3754
      %v3756 = vpop.f32.mrb[0].mxu0
      %3757 = vmatprep.mubr.bf16.mxu0 %v2474
      %3758 = vmatmul.mubr.bf16.gmra.mrb[0].mxu0 %v2473
      %v3759 = vpop.f32.mrb[0].mxu0
      %v3760 = vadd.f32 %v3583, %v3759
      %v3761 = vpop.f32.mrb[0].mxu0
      %v3762 = vpop.f32.mrb[0].mxu0
      %v3763 = vadd.f32 %v3586, %v3762
      %v3764 = vpop.f32.mrb[0].mxu0
      %3765 = vmatprep.mubr.bf16.mxu0 %v2483
      %3766 = vmatmul.mubr.bf16.gmra.mrb[0].mxu0 %v2482
      %v3767 = vpop.f32.mrb[0].mxu0
      %v3768 = vadd.f32 %v3591, %v3767
      %v3769 = vpop.f32.mrb[0].mxu0
      %v3770 = vpop.f32.mrb[0].mxu0
      %v3771 = vadd.f32 %v3594, %v3770
      %v3772 = vpop.f32.mrb[0].mxu0
      %3773 = vmatprep.mubr.bf16.mxu0 %v2492
      %3774 = vmatmul.mubr.bf16.gmra.mrb[0].mxu0 %v2491
      %v3775 = vpop.f32.mrb[0].mxu0
      %v3776 = vadd.f32 %v3599, %v3775
      %v3777 = vpop.f32.mrb[0].mxu0
      %v3778 = vpop.f32.mrb[0].mxu0
      %v3779 = vadd.f32 %v3602, %v3778
      %v3780 = vpop.f32.mrb[0].mxu0
      %3781 = vmatprep.mubr.bf16.mxu0 %v2501
      %3782 = vmatmul.mubr.bf16.gmra.mrb[0].mxu0 %v2500
      %v3783 = vpop.f32.mrb[0].mxu0
      %v3784 = vadd.f32 %v3607, %v3783
      %v3785 = vpop.f32.mrb[0].mxu0
      %v3786 = vpop.f32.mrb[0].mxu0
      %v3787 = vadd.f32 %v3610, %v3786
      %v3788 = vpop.f32.mrb[0].mxu0
      %3789 = vmatprep.mubr.bf16.mxu0 %v2510
      %3790 = vmatmul.mubr.bf16.gmra.mrb[0].mxu0 %v2509
      %v3791 = vpop.f32.mrb[0].mxu0
      %v3792 = vadd.f32 %v3615, %v3791
      %v3793 = vpop.f32.mrb[0].mxu0
      %v3794 = vpop.f32.mrb[0].mxu0
      %v3795 = vadd.f32 %v3618, %v3794
      %v3796 = vpop.f32.mrb[0].mxu0
      %3797 = vmatprep.mubr.bf16.mxu0 %v2519
      %3798 = vmatmul.mubr.bf16.gmra.mrb[0].mxu0 %v2518
      %v3799 = vpop.f32.mrb[0].mxu0
      %v3800 = vadd.f32 %v3623, %v3799
      %v3801 = vpop.f32.mrb[0].mxu0
      %v3802 = vpop.f32.mrb[0].mxu0
      %v3803 = vadd.f32 %v3626, %v3802
      %v3804 = vpop.f32.mrb[0].mxu0
      %3805 = vmatprep.mubr.bf16.mxu0 %v2528
      %3806 = vmatmul.mubr.bf16.gmra.mrb[0].mxu0 %v2527
      %v3807 = vpop.f32.mrb[0].mxu0
      %v3808 = vadd.f32 %v3631, %v3807
      %v3809 = vpop.f32.mrb[0].mxu0
      %v3810 = vpop.f32.mrb[0].mxu0
      %v3811 = vadd.f32 %v3634, %v3810
      %v3812 = vpop.f32.mrb[0].mxu0
      %3813 = vdwg.mxu0
      %3814 = vmatprep.subr.bf16.mxu0 0
      %3815 = vmatpush1.bf16.msra.mxu0 %v3026
      %3816 = vmatprep.subr.bf16.mxu0 0
      %3817 = vmatpush1.bf16.msra.mxu0 %v3027
      %3818 = vmatprep.subr.bf16.mxu0 0
      %3819 = vmatpush1.bf16.msra.mxu0 %v3028
      %3820 = vmatprep.subr.bf16.mxu0 0
      %3821 = vmatpush1.bf16.msra.mxu0 %v3029
      %3822 = vmatprep.subr.bf16.mxu0 0
      %3823 = vmatpush1.bf16.msra.mxu0 %v3030
      %3824 = vmatprep.subr.bf16.mxu0 0
      %3825 = vmatpush1.bf16.msra.mxu0 %v3031
      %3826 = vmatprep.subr.bf16.mxu0 0
      %3827 = vmatpush1.bf16.msra.mxu0 %v3032
      %3828 = vmatprep.subr.bf16.mxu0 0
      %3829 = vmatpush1.bf16.msra.mxu0 %v3033
      %3830 = vmatprep.subr.bf16.mxu0 0
      %3831 = vmatpush1.bf16.msra.mxu0 0
      %3832 = vmatprep.subr.bf16.mxu0 0
      %3833 = vmatpush1.bf16.msra.mxu0 0
      %3834 = vmatprep.subr.bf16.mxu0 0
      %3835 = vmatpush1.bf16.msra.mxu0 0
      %3836 = vmatprep.subr.bf16.mxu0 0
      %3837 = vmatpush1.bf16.msra.mxu0 0
      %3838 = vmatprep.subr.bf16.mxu0 0
      %3839 = vmatpush1.bf16.msra.mxu0 0
      %3840 = vmatprep.subr.bf16.mxu0 0
      %3841 = vmatpush1.bf16.msra.mxu0 0
      %3842 = vmatprep.subr.bf16.mxu0 0
      %3843 = vmatpush1.bf16.msra.mxu0 0
      %3844 = vmatprep.subr.bf16.mxu0 0
      %3845 = vmatpush1.bf16.msra.mxu0 0
      %3846 = vmatprep.mubr.bf16.mxu0 0
      %3847 = vmatmul.mubr.bf16.gmra.mrb[0].mxu0 %v2376
      %v3848 = vpop.f32.mrb[0].mxu0
      %v3849 = vadd.f32 %v3672, %v3848
      %v3850 = vpop.f32.mrb[0].mxu0
      %v3851 = vpop.f32.mrb[0].mxu0
      %v3852 = vadd.f32 %v3675, %v3851
      %v3853 = vpop.f32.mrb[0].mxu0
      %3854 = vmatprep.mubr.bf16.mxu0 0
      %3855 = vmatmul.mubr.bf16.gmra.mrb[0].mxu0 %v2385
      %v3856 = vpop.f32.mrb[0].mxu0
      %v3857 = vadd.f32 %v3680, %v3856
      %v3858 = vpop.f32.mrb[0].mxu0
      %v3859 = vpop.f32.mrb[0].mxu0
      %v3860 = vadd.f32 %v3683, %v3859
      %v3861 = vpop.f32.mrb[0].mxu0
      %3862 = vmatprep.mubr.bf16.mxu0 0
      %3863 = vmatmul.mubr.bf16.gmra.mrb[0].mxu0 %v2394
      %v3864 = vpop.f32.mrb[0].mxu0
      %v3865 = vadd.f32 %v3688, %v3864
      %v3866 = vpop.f32.mrb[0].mxu0
      %v3867 = vpop.f32.mrb[0].mxu0
      %v3868 = vadd.f32 %v3691, %v3867
      %v3869 = vpop.f32.mrb[0].mxu0
      %3870 = vmatprep.mubr.bf16.mxu0 0
      %3871 = vmatmul.mubr.bf16.gmra.mrb[0].mxu0 %v2403
      %v3872 = vpop.f32.mrb[0].mxu0
      %v3873 = vadd.f32 %v3696, %v3872
      %v3874 = vpop.f32.mrb[0].mxu0
      %v3875 = vpop.f32.mrb[0].mxu0
      %v3876 = vadd.f32 %v3699, %v3875
      %v3877 = vpop.f32.mrb[0].mxu0
      %3878 = vmatprep.mubr.bf16.mxu0 0
      %3879 = vmatmul.mubr.bf16.gmra.mrb[0].mxu0 %v2412
      %v3880 = vpop.f32.mrb[0].mxu0
      %v3881 = vadd.f32 %v3704, %v3880
      %v3882 = vpop.f32.mrb[0].mxu0
      %v3883 = vpop.f32.mrb[0].mxu0
      %v3884 = vadd.f32 %v3707, %v3883
      %v3885 = vpop.f32.mrb[0].mxu0
      %3886 = vmatprep.mubr.bf16.mxu0 0
      %3887 = vmatmul.mubr.bf16.gmra.mrb[0].mxu0 %v2421
      %v3888 = vpop.f32.mrb[0].mxu0
      %v3889 = vadd.f32 %v3712, %v3888
      %v3890 = vpop.f32.mrb[0].mxu0
      %v3891 = vpop.f32.mrb[0].mxu0
      %v3892 = vadd.f32 %v3715, %v3891
      %v3893 = vpop.f32.mrb[0].mxu0
      %3894 = vmatprep.mubr.bf16.mxu0 0
      %3895 = vmatmul.mubr.bf16.gmra.mrb[0].mxu0 %v2430
      %v3896 = vpop.f32.mrb[0].mxu0
      %v3897 = vadd.f32 %v3720, %v3896
      %v3898 = vpop.f32.mrb[0].mxu0
      %v3899 = vpop.f32.mrb[0].mxu0
      %v3900 = vadd.f32 %v3723, %v3899
      %v3901 = vpop.f32.mrb[0].mxu0
      %3902 = vmatprep.mubr.bf16.mxu0 0
      %3903 = vmatmul.mubr.bf16.gmra.mrb[0].mxu0 %v2439
      %v3904 = vpop.f32.mrb[0].mxu0
      %v3905 = vadd.f32 %v3728, %v3904
      %v3906 = vpop.f32.mrb[0].mxu0
      %v3907 = vpop.f32.mrb[0].mxu0
      %v3908 = vadd.f32 %v3731, %v3907
      %v3909 = vpop.f32.mrb[0].mxu0
      %3910 = vmatprep.mubr.bf16.mxu0 0
      %3911 = vmatmul.mubr.bf16.gmra.mrb[0].mxu0 %v2448
      %v3912 = vpop.f32.mrb[0].mxu0
      %v3913 = vadd.f32 %v3736, %v3912
      %v3914 = vpop.f32.mrb[0].mxu0
      %v3915 = vpop.f32.mrb[0].mxu0
      %v3916 = vadd.f32 %v3739, %v3915
      %v3917 = vpop.f32.mrb[0].mxu0
      %3918 = vmatprep.mubr.bf16.mxu0 0
      %3919 = vmatmul.mubr.bf16.gmra.mrb[0].mxu0 %v2457
      %v3920 = vpop.f32.mrb[0].mxu0
      %v3921 = vadd.f32 %v3744, %v3920
      %v3922 = vpop.f32.mrb[0].mxu0
      %v3923 = vpop.f32.mrb[0].mxu0
      %v3924 = vadd.f32 %v3747, %v3923
      %v3925 = vpop.f32.mrb[0].mxu0
      %3926 = vmatprep.mubr.bf16.mxu0 0
      %3927 = vmatmul.mubr.bf16.gmra.mrb[0].mxu0 %v2466
      %v3928 = vpop.f32.mrb[0].mxu0
      %v3929 = vadd.f32 %v3752, %v3928
      %v3930 = vpop.f32.mrb[0].mxu0
      %v3931 = vpop.f32.mrb[0].mxu0
      %v3932 = vadd.f32 %v3755, %v3931
      %v3933 = vpop.f32.mrb[0].mxu0
      %3934 = vmatprep.mubr.bf16.mxu0 0
      %3935 = vmatmul.mubr.bf16.gmra.mrb[0].mxu0 %v2475
      %v3936 = vpop.f32.mrb[0].mxu0
      %v3937 = vadd.f32 %v3760, %v3936
      %v3938 = vpop.f32.mrb[0].mxu0
      %v3939 = vpop.f32.mrb[0].mxu0
      %v3940 = vadd.f32 %v3763, %v3939
      %v3941 = vpop.f32.mrb[0].mxu0
      %3942 = vmatprep.mubr.bf16.mxu0 0
      %3943 = vmatmul.mubr.bf16.gmra.mrb[0].mxu0 %v2484
      %v3944 = vpop.f32.mrb[0].mxu0
      %v3945 = vadd.f32 %v3768, %v3944
      %v3946 = vpop.f32.mrb[0].mxu0
      %v3947 = vpop.f32.mrb[0].mxu0
      %v3948 = vadd.f32 %v3771, %v3947
      %v3949 = vpop.f32.mrb[0].mxu0
      %3950 = vmatprep.mubr.bf16.mxu0 0
      %3951 = vmatmul.mubr.bf16.gmra.mrb[0].mxu0 %v2493
      %v3952 = vpop.f32.mrb[0].mxu0
      %v3953 = vadd.f32 %v3776, %v3952
      %v3954 = vpop.f32.mrb[0].mxu0
      %v3955 = vpop.f32.mrb[0].mxu0
      %v3956 = vadd.f32 %v3779, %v3955
      %v3957 = vpop.f32.mrb[0].mxu0
      %3958 = vmatprep.mubr.bf16.mxu0 0
      %3959 = vmatmul.mubr.bf16.gmra.mrb[0].mxu0 %v2502
      %v3960 = vpop.f32.mrb[0].mxu0
      %v3961 = vadd.f32 %v3784, %v3960
      %v3962 = vpop.f32.mrb[0].mxu0
      %v3963 = vpop.f32.mrb[0].mxu0
      %v3964 = vadd.f32 %v3787, %v3963
      %v3965 = vpop.f32.mrb[0].mxu0
      %3966 = vmatprep.mubr.bf16.mxu0 0
      %3967 = vmatmul.mubr.bf16.gmra.mrb[0].mxu0 %v2511
      %v3968 = vpop.f32.mrb[0].mxu0
      %v3969 = vadd.f32 %v3792, %v3968
      %v3970 = vpop.f32.mrb[0].mxu0
      %v3971 = vpop.f32.mrb[0].mxu0
      %v3972 = vadd.f32 %v3795, %v3971
      %v3973 = vpop.f32.mrb[0].mxu0
      %3974 = vmatprep.mubr.bf16.mxu0 0
      %3975 = vmatmul.mubr.bf16.gmra.mrb[0].mxu0 %v2520
      %v3976 = vpop.f32.mrb[0].mxu0
      %v3977 = vadd.f32 %v3800, %v3976
      %v3978 = vpop.f32.mrb[0].mxu0
      %v3979 = vpop.f32.mrb[0].mxu0
      %v3980 = vadd.f32 %v3803, %v3979
      %v3981 = vpop.f32.mrb[0].mxu0
      %3982 = vmatprep.mubr.bf16.mxu0 0
      %3983 = vmatmul.mubr.bf16.gmra.mrb[0].mxu0 %v2529
      %v3984 = vpop.f32.mrb[0].mxu0
      %v3985 = vadd.f32 %v3808, %v3984
      %v3986 = vpop.f32.mrb[0].mxu0
      %v3987 = vpop.f32.mrb[0].mxu0
      %v3988 = vadd.f32 %v3811, %v3987
      %v3989 = vpop.f32.mrb[0].mxu0
      %3990 = vdwg.mxu0
      %v3991 = vld [vmem:[#allocation2 + $0x20] sm:$0xff]
      %v3992 = vld [vmem:[#allocation2 + $0x68] sm:$0xff]
      %v3993 = vld [vmem:[#allocation2 + $0xb0] sm:$0xff]
      %v3994 = vld [vmem:[#allocation2 + $0xf8] sm:$0xff]
      %v3995 = vld [vmem:[#allocation2 + $0x140] sm:$0xff]
      %v3996 = vld [vmem:[#allocation2 + $0x188] sm:$0xff]
      %v3997 = vld [vmem:[#allocation2 + $0x1d0] sm:$0xff]
      %v3998 = vld [vmem:[#allocation2 + $0x218] sm:$0xff]
      %v3999 = vld [vmem:[#allocation2 + $0x260] sm:$0xff]
      %v4000 = vld [vmem:[#allocation2 + $0x2a8] sm:$0xff]
      %v4001 = vld [vmem:[#allocation2 + $0x2f0] sm:$0xff]
      %v4002 = vld [vmem:[#allocation2 + $0x338] sm:$0xff]
      %v4003 = vld [vmem:[#allocation2 + $0x380] sm:$0xff]
      %v4004 = vld [vmem:[#allocation2 + $0x3c8] sm:$0xff]
      %v4005 = vld [vmem:[#allocation2 + $0x410] sm:$0xff]
      %v4006 = vld [vmem:[#allocation2 + $0x458] sm:$0xff]
      %v4007 = vld [vmem:[#allocation2 + $0x4a0] sm:$0xff]
      %v4008 = vld [vmem:[#allocation2 + $0x4e8] sm:$0xff]
      %v4009 = vld [vmem:[%s1] sm:$0xf]
      %v4010 = vld [vmem:[%s1 + $0x4] sm:$0xf]
      %v4011 = vld [vmem:[%s1 + $0x8] sm:$0xf]
      %v4012 = vld [vmem:[%s1 + $0xc] sm:$0xf]
      %v4013 = vld [vmem:[%s1 + $0x10] sm:$0xf]
      %v4014 = vld [vmem:[%s1 + $0x14] sm:$0xf]
      %v4015 = vld [vmem:[%s1 + $0x18] sm:$0xf]
      %v4016 = vld [vmem:[%s1 + $0x1c] sm:$0xf]
      %v4017 = vld [vmem:[%s1 + $0x20] sm:$0xf]
      %v4018 = vld [vmem:[%s1 + $0x24] sm:$0xf]
      %v4019 = vld [vmem:[%s1 + $0x28] sm:$0xf]
      %v4020 = vld [vmem:[%s1 + $0x2c] sm:$0xf]
      %v4021 = vld [vmem:[%s1 + $0x30] sm:$0xf]
      %v4022 = vld [vmem:[%s1 + $0x34] sm:$0xf]
      %v4023 = vld [vmem:[%s1 + $0x38] sm:$0xf]
      %v4024 = vld [vmem:[%s1 + $0x3c] sm:$0xf]
      %v4041 = vunpack.c.l.b16 %v4009
      %v4042 = vunpack.c.l.b16 %v4010
      %v4043 = vunpack.c.l.b16 %v4011
      %v4044 = vunpack.c.l.b16 %v4012
      %v4045 = vunpack.c.l.b16 %v4013
      %v4046 = vunpack.c.l.b16 %v4014
      %v4047 = vunpack.c.l.b16 %v4015
      %v4048 = vunpack.c.l.b16 %v4016
      %v4049 = vunpack.c.l.b16 %v4017
      %v4050 = vunpack.c.l.b16 %v4018
      %v4051 = vunpack.c.l.b16 %v4019
      %v4052 = vunpack.c.l.b16 %v4020
      %v4053 = vunpack.c.l.b16 %v4021
      %v4054 = vunpack.c.l.b16 %v4022
      %v4055 = vunpack.c.l.b16 %v4023
      %v4056 = vunpack.c.l.b16 %v4024
      %v4057 = vpack.c.b16 %v4042, %v4041
      %v4058 = vpack.c.b16 %v4044, %v4043
      %v4059 = vpack.c.b16 %v4046, %v4045
      %v4060 = vpack.c.b16 %v4048, %v4047
      %v4061 = vpack.c.b16 %v4050, %v4049
      %v4062 = vpack.c.b16 %v4052, %v4051
      %v4063 = vpack.c.b16 %v4054, %v4053
      %v4064 = vpack.c.b16 %v4056, %v4055
      %4073 = vmatprep.subr.bf16.mxu0 0
      %4074 = vmatpush1.bf16.msra.mxu0 %v4057
      %4075 = vmatprep.subr.bf16.mxu0 0
      %4076 = vmatpush1.bf16.msra.mxu0 %v4058
      %4077 = vmatprep.subr.bf16.mxu0 0
      %4078 = vmatpush1.bf16.msra.mxu0 %v4059
      %4079 = vmatprep.subr.bf16.mxu0 0
      %4080 = vmatpush1.bf16.msra.mxu0 %v4060
      %4081 = vmatprep.subr.bf16.mxu0 0
      %4082 = vmatpush1.bf16.msra.mxu0 %v4061
      %4083 = vmatprep.subr.bf16.mxu0 0
      %4084 = vmatpush1.bf16.msra.mxu0 %v4062
      %4085 = vmatprep.subr.bf16.mxu0 0
      %4086 = vmatpush1.bf16.msra.mxu0 %v4063
      %4087 = vmatprep.subr.bf16.mxu0 0
      %4088 = vmatpush1.bf16.msra.mxu0 %v4064
      %4089 = vmatprep.subr.bf16.mxu0 0
      %4090 = vmatpush1.bf16.msra.mxu0 0
      %4091 = vmatprep.subr.bf16.mxu0 0
      %4092 = vmatpush1.bf16.msra.mxu0 0
      %4093 = vmatprep.subr.bf16.mxu0 0
      %4094 = vmatpush1.bf16.msra.mxu0 0
      %4095 = vmatprep.subr.bf16.mxu0 0
      %4096 = vmatpush1.bf16.msra.mxu0 0
      %4097 = vmatprep.subr.bf16.mxu0 0
      %4098 = vmatpush1.bf16.msra.mxu0 0
      %4099 = vmatprep.subr.bf16.mxu0 0
      %4100 = vmatpush1.bf16.msra.mxu0 0
      %4101 = vmatprep.subr.bf16.mxu0 0
      %4102 = vmatpush1.bf16.msra.mxu0 0
      %4103 = vmatprep.subr.bf16.mxu0 0
      %4104 = vmatpush1.bf16.msra.mxu0 0
      %4105 = vmatprep.mubr.bf16.mxu0 0
      %4106 = vmatmul.mubr.bf16.gmra.mrb[0].mxu0 %v3991
      %v4107 = vpop.f32.mrb[0].mxu0
      %v4108 = vadd.f32 0.0, %v4107
      %v4109 = vpop.f32.mrb[0].mxu0
      %v4110 = vpop.f32.mrb[0].mxu0
      %v4111 = vadd.f32 0.0, %v4110
      %v4112 = vpop.f32.mrb[0].mxu0
      %4113 = vmatprep.mubr.bf16.mxu0 0
      %4114 = vmatmul.mubr.bf16.gmra.mrb[0].mxu0 %v3992
      %v4115 = vpop.f32.mrb[0].mxu0
      %v4116 = vadd.f32 0.0, %v4115
      %v4117 = vpop.f32.mrb[0].mxu0
      %v4118 = vpop.f32.mrb[0].mxu0
      %v4119 = vadd.f32 0.0, %v4118
      %v4120 = vpop.f32.mrb[0].mxu0
      %4121 = vmatprep.mubr.bf16.mxu0 0
      %4122 = vmatmul.mubr.bf16.gmra.mrb[0].mxu0 %v3993
      %v4123 = vpop.f32.mrb[0].mxu0
      %v4124 = vadd.f32 0.0, %v4123
      %v4125 = vpop.f32.mrb[0].mxu0
      %v4126 = vpop.f32.mrb[0].mxu0
      %v4127 = vadd.f32 0.0, %v4126
      %v4128 = vpop.f32.mrb[0].mxu0
      %4129 = vmatprep.mubr.bf16.mxu0 0
      %4130 = vmatmul.mubr.bf16.gmra.mrb[0].mxu0 %v3994
      %v4131 = vpop.f32.mrb[0].mxu0
      %v4132 = vadd.f32 0.0, %v4131
      %v4133 = vpop.f32.mrb[0].mxu0
      %v4134 = vpop.f32.mrb[0].mxu0
      %v4135 = vadd.f32 0.0, %v4134
      %v4136 = vpop.f32.mrb[0].mxu0
      %4137 = vmatprep.mubr.bf16.mxu0 0
      %4138 = vmatmul.mubr.bf16.gmra.mrb[0].mxu0 %v3995
      %v4139 = vpop.f32.mrb[0].mxu0
      %v4140 = vadd.f32 0.0, %v4139
      %v4141 = vpop.f32.mrb[0].mxu0
      %v4142 = vpop.f32.mrb[0].mxu0
      %v4143 = vadd.f32 0.0, %v4142
      %v4144 = vpop.f32.mrb[0].mxu0
      %4145 = vmatprep.mubr.bf16.mxu0 0
      %4146 = vmatmul.mubr.bf16.gmra.mrb[0].mxu0 %v3996
      %v4147 = vpop.f32.mrb[0].mxu0
      %v4148 = vadd.f32 0.0, %v4147
      %v4149 = vpop.f32.mrb[0].mxu0
      %v4150 = vpop.f32.mrb[0].mxu0
      %v4151 = vadd.f32 0.0, %v4150
      %v4152 = vpop.f32.mrb[0].mxu0
      %4153 = vmatprep.mubr.bf16.mxu0 0
      %4154 = vmatmul.mubr.bf16.gmra.mrb[0].mxu0 %v3997
      %v4155 = vpop.f32.mrb[0].mxu0
      %v4156 = vadd.f32 0.0, %v4155
      %v4157 = vpop.f32.mrb[0].mxu0
      %v4158 = vpop.f32.mrb[0].mxu0
      %v4159 = vadd.f32 0.0, %v4158
      %v4160 = vpop.f32.mrb[0].mxu0
      %4161 = vmatprep.mubr.bf16.mxu0 0
      %4162 = vmatmul.mubr.bf16.gmra.mrb[0].mxu0 %v3998
      %v4163 = vpop.f32.mrb[0].mxu0
      %v4164 = vadd.f32 0.0, %v4163
      %v4165 = vpop.f32.mrb[0].mxu0
      %v4166 = vpop.f32.mrb[0].mxu0
      %v4167 = vadd.f32 0.0, %v4166
      %v4168 = vpop.f32.mrb[0].mxu0
      %4169 = vmatprep.mubr.bf16.mxu0 0
      %4170 = vmatmul.mubr.bf16.gmra.mrb[0].mxu0 %v3999
      %v4171 = vpop.f32.mrb[0].mxu0
      %v4172 = vadd.f32 0.0, %v4171
      %v4173 = vpop.f32.mrb[0].mxu0
      %v4174 = vpop.f32.mrb[0].mxu0
      %v4175 = vadd.f32 0.0, %v4174
      %v4176 = vpop.f32.mrb[0].mxu0
      %4177 = vmatprep.mubr.bf16.mxu0 0
      %4178 = vmatmul.mubr.bf16.gmra.mrb[0].mxu0 %v4000
      %v4179 = vpop.f32.mrb[0].mxu0
      %v4180 = vadd.f32 0.0, %v4179
      %v4181 = vpop.f32.mrb[0].mxu0
      %v4182 = vpop.f32.mrb[0].mxu0
      %v4183 = vadd.f32 0.0, %v4182
      %v4184 = vpop.f32.mrb[0].mxu0
      %4185 = vmatprep.mubr.bf16.mxu0 0
      %4186 = vmatmul.mubr.bf16.gmra.mrb[0].mxu0 %v4001
      %v4187 = vpop.f32.mrb[0].mxu0
      %v4188 = vadd.f32 0.0, %v4187
      %v4189 = vpop.f32.mrb[0].mxu0
      %v4190 = vpop.f32.mrb[0].mxu0
      %v4191 = vadd.f32 0.0, %v4190
      %v4192 = vpop.f32.mrb[0].mxu0
      %4193 = vmatprep.mubr.bf16.mxu0 0
      %4194 = vmatmul.mubr.bf16.gmra.mrb[0].mxu0 %v4002
      %v4195 = vpop.f32.mrb[0].mxu0
      %v4196 = vadd.f32 0.0, %v4195
      %v4197 = vpop.f32.mrb[0].mxu0
      %v4198 = vpop.f32.mrb[0].mxu0
      %v4199 = vadd.f32 0.0, %v4198
      %v4200 = vpop.f32.mrb[0].mxu0
      %4201 = vmatprep.mubr.bf16.mxu0 0
      %4202 = vmatmul.mubr.bf16.gmra.mrb[0].mxu0 %v4003
      %v4203 = vpop.f32.mrb[0].mxu0
      %v4204 = vadd.f32 0.0, %v4203
      %v4205 = vpop.f32.mrb[0].mxu0
      %v4206 = vpop.f32.mrb[0].mxu0
      %v4207 = vadd.f32 0.0, %v4206
      %v4208 = vpop.f32.mrb[0].mxu0
      %4209 = vmatprep.mubr.bf16.mxu0 0
      %4210 = vmatmul.mubr.bf16.gmra.mrb[0].mxu0 %v4004
      %v4211 = vpop.f32.mrb[0].mxu0
      %v4212 = vadd.f32 0.0, %v4211
      %v4213 = vpop.f32.mrb[0].mxu0
      %v4214 = vpop.f32.mrb[0].mxu0
      %v4215 = vadd.f32 0.0, %v4214
      %v4216 = vpop.f32.mrb[0].mxu0
      %4217 = vmatprep.mubr.bf16.mxu0 0
      %4218 = vmatmul.mubr.bf16.gmra.mrb[0].mxu0 %v4005
      %v4219 = vpop.f32.mrb[0].mxu0
      %v4220 = vadd.f32 0.0, %v4219
      %v4221 = vpop.f32.mrb[0].mxu0
      %v4222 = vpop.f32.mrb[0].mxu0
      %v4223 = vadd.f32 0.0, %v4222
      %v4224 = vpop.f32.mrb[0].mxu0
      %4225 = vmatprep.mubr.bf16.mxu0 0
      %4226 = vmatmul.mubr.bf16.gmra.mrb[0].mxu0 %v4006
      %v4227 = vpop.f32.mrb[0].mxu0
      %v4228 = vadd.f32 0.0, %v4227
      %v4229 = vpop.f32.mrb[0].mxu0
      %v4230 = vpop.f32.mrb[0].mxu0
      %v4231 = vadd.f32 0.0, %v4230
      %v4232 = vpop.f32.mrb[0].mxu0
      %4233 = vmatprep.mubr.bf16.mxu0 0
      %4234 = vmatmul.mubr.bf16.gmra.mrb[0].mxu0 %v4007
      %v4235 = vpop.f32.mrb[0].mxu0
      %v4236 = vadd.f32 0.0, %v4235
      %v4237 = vpop.f32.mrb[0].mxu0
      %v4238 = vpop.f32.mrb[0].mxu0
      %v4239 = vadd.f32 0.0, %v4238
      %v4240 = vpop.f32.mrb[0].mxu0
      %4241 = vmatprep.mubr.bf16.mxu0 0
      %4242 = vmatmul.mubr.bf16.gmra.mrb[0].mxu0 %v4008
      %v4243 = vpop.f32.mrb[0].mxu0
      %v4244 = vadd.f32 0.0, %v4243
      %v4245 = vpop.f32.mrb[0].mxu0
      %v4246 = vpop.f32.mrb[0].mxu0
      %v4247 = vadd.f32 0.0, %v4246
      %v4248 = vpop.f32.mrb[0].mxu0
      %4249 = vdwg.mxu0
      %v4250 = vld [vmem:[%s3] sm:$0xf]
      %v4251 = vlaneseq
      %v4252 = vshrl.u32 %v4251, 7
      %v4253 = vsub.s32 0, %v4252
      %v4254 = vrot.slane %v4250, %v4253
      %v4255 = vmul.f32 %v4108, %v4254
      %v4256 = vmul.f32 %v4111, %v4254
      %v4257 = vmul.f32 %v4116, %v4254
      %v4258 = vmul.f32 %v4119, %v4254
      %v4259 = vmul.f32 %v4124, %v4254
      %v4260 = vmul.f32 %v4127, %v4254
      %v4261 = vmul.f32 %v4132, %v4254
      %v4262 = vmul.f32 %v4135, %v4254
      %v4263 = vmul.f32 %v4140, %v4254
      %v4264 = vmul.f32 %v4143, %v4254
      %v4265 = vmul.f32 %v4148, %v4254
      %v4266 = vmul.f32 %v4151, %v4254
      %v4267 = vmul.f32 %v4156, %v4254
      %v4268 = vmul.f32 %v4159, %v4254
      %v4269 = vmul.f32 %v4164, %v4254
      %v4270 = vmul.f32 %v4167, %v4254
      %v4271 = vmul.f32 %v4172, %v4254
      %v4272 = vmul.f32 %v4175, %v4254
      %v4273 = vmul.f32 %v4180, %v4254
      %v4274 = vmul.f32 %v4183, %v4254
      %v4275 = vmul.f32 %v4188, %v4254
      %v4276 = vmul.f32 %v4191, %v4254
      %v4277 = vmul.f32 %v4196, %v4254
      %v4278 = vmul.f32 %v4199, %v4254
      %v4279 = vmul.f32 %v4204, %v4254
      %v4280 = vmul.f32 %v4207, %v4254
      %v4281 = vmul.f32 %v4212, %v4254
      %v4282 = vmul.f32 %v4215, %v4254
      %v4283 = vmul.f32 %v4220, %v4254
      %v4284 = vmul.f32 %v4223, %v4254
      %v4285 = vmul.f32 %v4228, %v4254
      %v4286 = vmul.f32 %v4231, %v4254
      %v4287 = vmul.f32 %v4236, %v4254
      %v4288 = vmul.f32 %v4239, %v4254
      %v4289 = vmul.f32 %v4244, %v4254
      %v4290 = vmul.f32 %v4247, %v4254
      %v4291 = vlaneseq
      %v4292 = vshrl.u32 %v4291, 7
      %v4293 = vsub.s32 1, %v4292
      %v4294 = vrot.slane %v4250, %v4293
      %v4295 = vadd.f32 %v4255, %v4294
      %v4296 = vadd.f32 %v4256, %v4294
      %v4297 = vadd.f32 %v4257, %v4294
      %v4298 = vadd.f32 %v4258, %v4294
      %v4299 = vadd.f32 %v4259, %v4294
      %v4300 = vadd.f32 %v4260, %v4294
      %v4301 = vadd.f32 %v4261, %v4294
      %v4302 = vadd.f32 %v4262, %v4294
      %v4303 = vadd.f32 %v4263, %v4294
      %v4304 = vadd.f32 %v4264, %v4294
      %v4305 = vadd.f32 %v4265, %v4294
      %v4306 = vadd.f32 %v4266, %v4294
      %v4307 = vadd.f32 %v4267, %v4294
      %v4308 = vadd.f32 %v4268, %v4294
      %v4309 = vadd.f32 %v4269, %v4294
      %v4310 = vadd.f32 %v4270, %v4294
      %v4311 = vadd.f32 %v4271, %v4294
      %v4312 = vadd.f32 %v4272, %v4294
      %v4313 = vadd.f32 %v4273, %v4294
      %v4314 = vadd.f32 %v4274, %v4294
      %v4315 = vadd.f32 %v4275, %v4294
      %v4316 = vadd.f32 %v4276, %v4294
      %v4317 = vadd.f32 %v4277, %v4294
      %v4318 = vadd.f32 %v4278, %v4294
      %v4319 = vadd.f32 %v4279, %v4294
      %v4320 = vadd.f32 %v4280, %v4294
      %v4321 = vadd.f32 %v4281, %v4294
      %v4322 = vadd.f32 %v4282, %v4294
      %v4323 = vadd.f32 %v4283, %v4294
      %v4324 = vadd.f32 %v4284, %v4294
      %v4325 = vadd.f32 %v4285, %v4294
      %v4326 = vadd.f32 %v4286, %v4294
      %v4327 = vadd.f32 %v4287, %v4294
      %v4328 = vadd.f32 %v4288, %v4294
      %v4329 = vadd.f32 %v4289, %v4294
      %v4330 = vadd.f32 %v4290, %v4294
      %v4331 = vlaneseq
      %v4332 = vshrl.u32 %v4331, 7
      %v4333 = vsub.s32 2, %v4332
      %v4334 = vrot.slane %v4250, %v4333
      %v4335 = vmul.f32 %v3849, %v4334
      %v4336 = vmul.f32 %v3852, %v4334
      %v4337 = vmul.f32 %v3857, %v4334
      %v4338 = vmul.f32 %v3860, %v4334
      %v4339 = vmul.f32 %v3865, %v4334
      %v4340 = vmul.f32 %v3868, %v4334
      %v4341 = vmul.f32 %v3873, %v4334
      %v4342 = vmul.f32 %v3876, %v4334
      %v4343 = vmul.f32 %v3881, %v4334
      %v4344 = vmul.f32 %v3884, %v4334
      %v4345 = vmul.f32 %v3889, %v4334
      %v4346 = vmul.f32 %v3892, %v4334
      %v4347 = vmul.f32 %v3897, %v4334
      %v4348 = vmul.f32 %v3900, %v4334
      %v4349 = vmul.f32 %v3905, %v4334
      %v4350 = vmul.f32 %v3908, %v4334
      %v4351 = vmul.f32 %v3913, %v4334
      %v4352 = vmul.f32 %v3916, %v4334
      %v4353 = vmul.f32 %v3921, %v4334
      %v4354 = vmul.f32 %v3924, %v4334
      %v4355 = vmul.f32 %v3929, %v4334
      %v4356 = vmul.f32 %v3932, %v4334
      %v4357 = vmul.f32 %v3937, %v4334
      %v4358 = vmul.f32 %v3940, %v4334
      %v4359 = vmul.f32 %v3945, %v4334
      %v4360 = vmul.f32 %v3948, %v4334
      %v4361 = vmul.f32 %v3953, %v4334
      %v4362 = vmul.f32 %v3956, %v4334
      %v4363 = vmul.f32 %v3961, %v4334
      %v4364 = vmul.f32 %v3964, %v4334
      %v4365 = vmul.f32 %v3969, %v4334
      %v4366 = vmul.f32 %v3972, %v4334
      %v4367 = vmul.f32 %v3977, %v4334
      %v4368 = vmul.f32 %v3980, %v4334
      %v4369 = vmul.f32 %v3985, %v4334
      %v4370 = vmul.f32 %v3988, %v4334
      %v4371 = vadd.f32 %v4295, %v4335
      %v4372 = vadd.f32 %v4296, %v4336
      %v4373 = vadd.f32 %v4297, %v4337
      %v4374 = vadd.f32 %v4298, %v4338
      %v4375 = vadd.f32 %v4299, %v4339
      %v4376 = vadd.f32 %v4300, %v4340
      %v4377 = vadd.f32 %v4301, %v4341
      %v4378 = vadd.f32 %v4302, %v4342
      %v4379 = vadd.f32 %v4303, %v4343
      %v4380 = vadd.f32 %v4304, %v4344
      %v4381 = vadd.f32 %v4305, %v4345
      %v4382 = vadd.f32 %v4306, %v4346
      %v4383 = vadd.f32 %v4307, %v4347
      %v4384 = vadd.f32 %v4308, %v4348
      %v4385 = vadd.f32 %v4309, %v4349
      %v4386 = vadd.f32 %v4310, %v4350
      %v4387 = vadd.f32 %v4311, %v4351
      %v4388 = vadd.f32 %v4312, %v4352
      %v4389 = vadd.f32 %v4313, %v4353
      %v4390 = vadd.f32 %v4314, %v4354
      %v4391 = vadd.f32 %v4315, %v4355
      %v4392 = vadd.f32 %v4316, %v4356
      %v4393 = vadd.f32 %v4317, %v4357
      %v4394 = vadd.f32 %v4318, %v4358
      %v4395 = vadd.f32 %v4319, %v4359
      %v4396 = vadd.f32 %v4320, %v4360
      %v4397 = vadd.f32 %v4321, %v4361
      %v4398 = vadd.f32 %v4322, %v4362
      %v4399 = vadd.f32 %v4323, %v4363
      %v4400 = vadd.f32 %v4324, %v4364
      %v4401 = vadd.f32 %v4325, %v4365
      %v4402 = vadd.f32 %v4326, %v4366
      %v4403 = vadd.f32 %v4327, %v4367
      %v4404 = vadd.f32 %v4328, %v4368
      %v4405 = vadd.f32 %v4329, %v4369
      %v4406 = vadd.f32 %v4330, %v4370
      %v4407 = vlaneseq
      %v4408 = vshrl.u32 %v4407, 7
      %v4409 = vsub.s32 3, %v4408
      %v4410 = vrot.slane %v4250, %v4409
      %v4411 = vadd.f32 %v4371, %v4410
      %v4412 = vadd.f32 %v4372, %v4410
      %v4413 = vadd.f32 %v4373, %v4410
      %v4414 = vadd.f32 %v4374, %v4410
      %v4415 = vadd.f32 %v4375, %v4410
      %v4416 = vadd.f32 %v4376, %v4410
      %v4417 = vadd.f32 %v4377, %v4410
      %v4418 = vadd.f32 %v4378, %v4410
      %v4419 = vadd.f32 %v4379, %v4410
      %v4420 = vadd.f32 %v4380, %v4410
      %v4421 = vadd.f32 %v4381, %v4410
      %v4422 = vadd.f32 %v4382, %v4410
      %v4423 = vadd.f32 %v4383, %v4410
      %v4424 = vadd.f32 %v4384, %v4410
      %v4425 = vadd.f32 %v4385, %v4410
      %v4426 = vadd.f32 %v4386, %v4410
      %v4427 = vadd.f32 %v4387, %v4410
      %v4428 = vadd.f32 %v4388, %v4410
      %v4429 = vadd.f32 %v4389, %v4410
      %v4430 = vadd.f32 %v4390, %v4410
      %v4431 = vadd.f32 %v4391, %v4410
      %v4432 = vadd.f32 %v4392, %v4410
      %v4433 = vadd.f32 %v4393, %v4410
      %v4434 = vadd.f32 %v4394, %v4410
      %v4435 = vadd.f32 %v4395, %v4410
      %v4436 = vadd.f32 %v4396, %v4410
      %v4437 = vadd.f32 %v4397, %v4410
      %v4438 = vadd.f32 %v4398, %v4410
      %v4439 = vadd.f32 %v4399, %v4410
      %v4440 = vadd.f32 %v4400, %v4410
      %v4441 = vadd.f32 %v4401, %v4410
      %v4442 = vadd.f32 %v4402, %v4410
      %v4443 = vadd.f32 %v4403, %v4410
      %v4444 = vadd.f32 %v4404, %v4410
      %v4445 = vadd.f32 %v4405, %v4410
      %v4446 = vadd.f32 %v4406, %v4410
      %v4447 = vmax.f32 %v4411, 0.0
      %v4448 = vmax.f32 %v4412, 0.0
      %v4449 = vmax.f32 %v4413, 0.0
      %v4450 = vmax.f32 %v4414, 0.0
      %v4451 = vmax.f32 %v4415, 0.0
      %v4452 = vmax.f32 %v4416, 0.0
      %v4453 = vmax.f32 %v4417, 0.0
      %v4454 = vmax.f32 %v4418, 0.0
      %v4455 = vmax.f32 %v4419, 0.0
      %v4456 = vmax.f32 %v4420, 0.0
      %v4457 = vmax.f32 %v4421, 0.0
      %v4458 = vmax.f32 %v4422, 0.0
      %v4459 = vmax.f32 %v4423, 0.0
      %v4460 = vmax.f32 %v4424, 0.0
      %v4461 = vmax.f32 %v4425, 0.0
      %v4462 = vmax.f32 %v4426, 0.0
      %v4463 = vmax.f32 %v4427, 0.0
      %v4464 = vmax.f32 %v4428, 0.0
      %v4465 = vmax.f32 %v4429, 0.0
      %v4466 = vmax.f32 %v4430, 0.0
      %v4467 = vmax.f32 %v4431, 0.0
      %v4468 = vmax.f32 %v4432, 0.0
      %v4469 = vmax.f32 %v4433, 0.0
      %v4470 = vmax.f32 %v4434, 0.0
      %v4471 = vmax.f32 %v4435, 0.0
      %v4472 = vmax.f32 %v4436, 0.0
      %v4473 = vmax.f32 %v4437, 0.0
      %v4474 = vmax.f32 %v4438, 0.0
      %v4475 = vmax.f32 %v4439, 0.0
      %v4476 = vmax.f32 %v4440, 0.0
      %v4477 = vmax.f32 %v4441, 0.0
      %v4478 = vmax.f32 %v4442, 0.0
      %v4479 = vmax.f32 %v4443, 0.0
      %v4480 = vmax.f32 %v4444, 0.0
      %v4481 = vmax.f32 %v4445, 0.0
      %v4482 = vmax.f32 %v4446, 0.0
      %v4483 = vpack.c.bf16 %v4448, %v4447
      %v4484 = vpack.c.bf16 %v4450, %v4449
      %v4485 = vpack.c.bf16 %v4452, %v4451
      %v4486 = vpack.c.bf16 %v4454, %v4453
      %v4487 = vpack.c.bf16 %v4456, %v4455
      %v4488 = vpack.c.bf16 %v4458, %v4457
      %v4489 = vpack.c.bf16 %v4460, %v4459
      %v4490 = vpack.c.bf16 %v4462, %v4461
      %v4491 = vpack.c.bf16 %v4464, %v4463
      %v4492 = vpack.c.bf16 %v4466, %v4465
      %v4493 = vpack.c.bf16 %v4468, %v4467
      %v4494 = vpack.c.bf16 %v4470, %v4469
      %v4495 = vpack.c.bf16 %v4472, %v4471
      %v4496 = vpack.c.bf16 %v4474, %v4473
      %v4497 = vpack.c.bf16 %v4476, %v4475
      %v4498 = vpack.c.bf16 %v4478, %v4477
      %v4499 = vpack.c.bf16 %v4480, %v4479
      %v4500 = vpack.c.bf16 %v4482, %v4481
      %v4519 = vunpack.c.l.b16 %v4483
      %v4520 = vunpack.c.h.b16 %v4483
      %v4521 = vunpack.c.l.b16 %v4484
      %v4522 = vunpack.c.h.b16 %v4484
      %v4523 = vunpack.c.l.b16 %v4485
      %v4524 = vunpack.c.h.b16 %v4485
      %v4525 = vunpack.c.l.b16 %v4486
      %v4526 = vunpack.c.h.b16 %v4486
      %v4527 = vunpack.c.l.b16 %v4487
      %v4528 = vunpack.c.h.b16 %v4487
      %v4529 = vunpack.c.l.b16 %v4488
      %v4530 = vunpack.c.h.b16 %v4488
      %v4531 = vunpack.c.l.b16 %v4489
      %v4532 = vunpack.c.h.b16 %v4489
      %v4533 = vunpack.c.l.b16 %v4490
      %v4534 = vunpack.c.h.b16 %v4490
      %v4535 = vunpack.c.l.b16 %v4491
      %v4536 = vunpack.c.h.b16 %v4491
      %v4537 = vunpack.c.l.b16 %v4492
      %v4538 = vunpack.c.h.b16 %v4492
      %v4539 = vunpack.c.l.b16 %v4493
      %v4540 = vunpack.c.h.b16 %v4493
      %v4541 = vunpack.c.l.b16 %v4494
      %v4542 = vunpack.c.h.b16 %v4494
      %v4543 = vunpack.c.l.b16 %v4495
      %v4544 = vunpack.c.h.b16 %v4495
      %v4545 = vunpack.c.l.b16 %v4496
      %v4546 = vunpack.c.h.b16 %v4496
      %v4547 = vunpack.c.l.b16 %v4497
      %v4548 = vunpack.c.h.b16 %v4497
      %v4549 = vunpack.c.l.b16 %v4498
      %v4550 = vunpack.c.h.b16 %v4498
      %v4551 = vunpack.c.l.b16 %v4499
      %v4552 = vunpack.c.h.b16 %v4499
      %v4553 = vunpack.c.l.b16 %v4500
      %v4554 = vunpack.c.h.b16 %v4500
      %v4555 = vpack.c.b16 %v4519, %v4519
      %v4556 = vpack.c.b16 %v4520, %v4520
      %v4557 = vpack.c.b16 %v4521, %v4521
      %v4558 = vpack.c.b16 %v4522, %v4522
      %v4559 = vpack.c.b16 %v4523, %v4523
      %v4560 = vpack.c.b16 %v4524, %v4524
      %v4561 = vpack.c.b16 %v4525, %v4525
      %v4562 = vpack.c.b16 %v4526, %v4526
      %v4563 = vpack.c.b16 %v4527, %v4527
      %v4564 = vpack.c.b16 %v4528, %v4528
      %v4565 = vpack.c.b16 %v4529, %v4529
      %v4566 = vpack.c.b16 %v4530, %v4530
      %v4567 = vpack.c.b16 %v4531, %v4531
      %v4568 = vpack.c.b16 %v4532, %v4532
      %v4569 = vpack.c.b16 %v4533, %v4533
      %v4570 = vpack.c.b16 %v4534, %v4534
      %v4571 = vpack.c.b16 %v4535, %v4535
      %v4572 = vpack.c.b16 %v4536, %v4536
      %v4573 = vpack.c.b16 %v4537, %v4537
      %v4574 = vpack.c.b16 %v4538, %v4538
      %v4575 = vpack.c.b16 %v4539, %v4539
      %v4576 = vpack.c.b16 %v4540, %v4540
      %v4577 = vpack.c.b16 %v4541, %v4541
      %v4578 = vpack.c.b16 %v4542, %v4542
      %v4579 = vpack.c.b16 %v4543, %v4543
      %v4580 = vpack.c.b16 %v4544, %v4544
      %v4581 = vpack.c.b16 %v4545, %v4545
      %v4582 = vpack.c.b16 %v4546, %v4546
      %v4583 = vpack.c.b16 %v4547, %v4547
      %v4584 = vpack.c.b16 %v4548, %v4548
      %v4585 = vpack.c.b16 %v4549, %v4549
      %v4586 = vpack.c.b16 %v4550, %v4550
      %v4587 = vpack.c.b16 %v4551, %v4551
      %v4588 = vpack.c.b16 %v4552, %v4552
      %v4589 = vpack.c.b16 %v4553, %v4553
      %v4590 = vpack.c.b16 %v4554, %v4554
      %4627 = vst [vmem:[%s197] sm:$0xf] %v4555
      %4628 = vst [vmem:[%s197 + $0x4] sm:$0xf] %v4556
      %4629 = vst [vmem:[%s197 + $0x8] sm:$0xf] %v4557
      %4630 = vst [vmem:[%s197 + $0xc] sm:$0xf] %v4558
      %4631 = vst [vmem:[%s197 + $0x10] sm:$0xf] %v4559
      %4632 = vst [vmem:[%s197 + $0x14] sm:$0xf] %v4560
      %4633 = vst [vmem:[%s197 + $0x18] sm:$0xf] %v4561
      %4634 = vst [vmem:[%s197 + $0x1c] sm:$0xf] %v4562
      %4635 = vst [vmem:[%s197 + $0x20] sm:$0xf] %v4563
      %4636 = vst [vmem:[%s197 + $0x24] sm:$0xf] %v4564
      %4637 = vst [vmem:[%s197 + $0x28] sm:$0xf] %v4565
      %4638 = vst [vmem:[%s197 + $0x2c] sm:$0xf] %v4566
      %4639 = vst [vmem:[%s197 + $0x30] sm:$0xf] %v4567
      %4640 = vst [vmem:[%s197 + $0x34] sm:$0xf] %v4568
      %4641 = vst [vmem:[%s197 + $0x38] sm:$0xf] %v4569
      %4642 = vst [vmem:[%s197 + $0x3c] sm:$0xf] %v4570
      %4643 = vst [vmem:[%s197 + $0x40] sm:$0xf] %v4571
      %4644 = vst [vmem:[%s197 + $0x44] sm:$0xf] %v4572
      %4645 = vst [vmem:[%s197 + $0x48] sm:$0xf] %v4573
      %4646 = vst [vmem:[%s197 + $0x4c] sm:$0xf] %v4574
      %4647 = vst [vmem:[%s197 + $0x50] sm:$0xf] %v4575
      %4648 = vst [vmem:[%s197 + $0x54] sm:$0xf] %v4576
      %4649 = vst [vmem:[%s197 + $0x58] sm:$0xf] %v4577
      %4650 = vst [vmem:[%s197 + $0x5c] sm:$0xf] %v4578
      %4651 = vst [vmem:[%s197 + $0x60] sm:$0xf] %v4579
      %4652 = vst [vmem:[%s197 + $0x64] sm:$0xf] %v4580
      %4653 = vst [vmem:[%s197 + $0x68] sm:$0xf] %v4581
      %4654 = vst [vmem:[%s197 + $0x6c] sm:$0xf] %v4582
      %4655 = vst [vmem:[%s197 + $0x70] sm:$0xf] %v4583
      %4656 = vst [vmem:[%s197 + $0x74] sm:$0xf] %v4584
      %4657 = vst [vmem:[%s197 + $0x78] sm:$0xf] %v4585
      %4658 = vst [vmem:[%s197 + $0x7c] sm:$0xf] %v4586
      %4659 = vst [vmem:[%s197 + $0x80] sm:$0xf] %v4587
      %4660 = vst [vmem:[%s197 + $0x84] sm:$0xf] %v4588
      %4661 = vst [vmem:[%s197 + $0x88] sm:$0xf] %v4589
      %4662 = vst [vmem:[%s197 + $0x8c] sm:$0xf] %v4590
      %p4663 = scmp.lt.s32.totalorder %s15, 1
      %s4664 = scalar_select %p4663, %s15, 1
      %s4665 = smul.addr %s4664, 36
      %s4666 = smul.addr %s4665, 4
      %s4667 = scalar_lea.vmem %s4, %s4666
      // Predicated region
      $region37: #{rb_forward.3} parent=35 // pred_check
        %p4668 = pneg %p122
      $region38: #{rb_forward.3} parent=35 // pred_check_branch
        %4670 = sbr.rel (%p4668) target = $region40
      $region39: #{rb_forward.3} parent=35 // pred_region
        _
      $region40: #{rb_forward.3} parent=35 // pred_fallthru
        _
    $region36: #{rb_forward.3} parent=5 // pred_fallthru
      _
    %p4671 = scmp.le.s32.totalorder 2, %s10
    // Predicated region
    $region41: #{rb_forward.3} parent=5 // pred_check
      %p4672 = pneg %p4671
    $region42: #{rb_forward.3} parent=5 // pred_check_branch
      %4674 = sbr.rel (%p4672) target = $region44
    $region43: #{rb_forward.3} parent=5 // pred_region
      %s4675 = ssub.s32 %s10, 2
      // Predicated region
      $region45: #{rb_forward.3} parent=43 // pred_check
        %p4676 = pneg %p128
      $region46: #{rb_forward.3} parent=43 // pred_check_branch
        %4678 = sbr.rel (%p4676) target = $region48
      $region47: #{rb_forward.3} parent=43 // pred_region
        %p4679 = scmp.lt.s32.totalorder %s16, 1
        %s4680 = scalar_select %p4679, %s16, 1
        %s4681 = smul.addr %s4680, 36
        %s4682 = smul.addr %s4681, 4
        %s4683 = scalar_lea.vmem %s4, %s4682
      $region48: #{rb_forward.3} parent=43 // pred_fallthru
        _
    $region44: #{rb_forward.3} parent=5 // pred_fallthru
      _
  $region6: #{rb_forward.3} parent=0 // loop_footer
    %s14 = sadd.s32 1, %s10
  $region7: #{rb_forward.3} parent=0 // loop_footer_branch
    %9 = sbr.rel target = $region3
  $region8: #{rb_forward.3} parent=0 // loop_exit
    _

// kernel: rb_forward.2
$region0: #{rb_forward.2}
  #allocation0 [shape = 'u32[]', space=smem, size = 0x4, offset = 0x4, fixed_abs, tag = 'smem constant byte address 0x4 - core index']
  #allocation1 [shape = 'u32[144,128]{1,0:T(1,128)}', space=vmem, size = 0x12000, scoped, tag = 'internal scratch']
  #allocation2 [shape = 'bf16[288,1152]{1,0:T(16,128)(2,1)}', space=vmem, size = 0xa2000, scoped, tag = 'scratch operand']
  %s0 = inlined_call_operand.vmem [shape: bf16[2,342,128], index: 0, kind: input, shape index: {}]
  %s1 = inlined_call_operand.vmem [shape: bf16[128,128], index: 1, kind: input, shape index: {}]
  %s2 = inlined_call_operand.vmem [shape: bf16[1152,128], index: 2, kind: input, shape index: {}]
  %s3 = inlined_call_operand.vmem [shape: f32[2,4,128], index: 3, kind: output, shape index: {}]
  %s4 = sld [smem:[#allocation0]]
  $region45: #{rb_forward.2} parent=0
    _
  %s6 = ssub.s32 1, %s4
  %s7 = scalar_select 0, %s6, %s4
  loop: start=0, step=1, limit=4
  $region2: #{rb_forward.2} parent=0 // loop_pre_header
    _
  $region3: #{rb_forward.2} parent=0 // loop_header
    %s9 = sphi 0, %s13
    %p10 = scmp.ge.s32.totalorder %s9, 4
    %s19 = sphi 0, %s21
    %s22 = sphi 0, %s19
    %s23 = sphi 0, %s22
    %s39 = sphi 0, %s23
    %s43 = sphi 0, %s43
    %s45 = sphi 0, %s43
    %s46 = sphi 0, %s45
    %s60 = sphi 0, %s46
    %s64 = sphi 0, %s64
    %s66 = sphi 0, %s64
    %s67 = sphi 0, %s66
    %s81 = sphi 0, %s67
    %s87 = sphi 0, %s89
    %s90 = sphi 0, %s87
    %s91 = sphi 0, %s90
    %s107 = sphi 0, %s91
  $region4: #{rb_forward.2} parent=0 // loop_header_branch
    %12 = sbr.rel (%p10) target = $region8
  $region5: #{rb_forward.2} parent=0 // loop_body
    %s14 = ssub.s32 %s9, 1
    %s15 = ssub.s32 %s9, 2
    %s16 = sadd.s32 %s9, 1
    %s17 = ssub.s32 %s9, %s16
    %p18 = scmp.eq.s32.totalorder %s17, 0
    %s20 = sadd.s32 %s19, 1
    %s21 = scalar_select %p18, %s19, %s20
    %p24 = pneg %p18
    %p25 = scmp.eq.s32.totalorder %s9, 1
    %p26 = por %p24, %p25
    %p27 = scmp.ne.s32.totalorder %s19, %s22
    %p28 = scmp.eq.s32.totalorder %s9, 0
    %p29 = por %p27, %p28
    %p30 = scmp.ne.s32.totalorder %s19, %s22
    %p31 = scmp.eq.s32.totalorder %s14, 1
    %p32 = por %p30, %p31
    %p33 = scmp.ne.s32.totalorder %s22, %s23
    %p34 = scmp.eq.s32.totalorder %s14, 0
    %p35 = por %p33, %p34
    %p36 = scmp.ne.s32.totalorder %s22, %s23
    %p37 = scmp.eq.s32.totalorder %s15, 1
    %p38 = por %p36, %p37
    %p40 = scmp.ne.s32.totalorder %s23, %s39
    %p41 = scmp.eq.s32.totalorder %s15, 0
    %p42 = por %p40, %p41
    %s44 = sadd.s32 %s43, 1
    %p47 = scmp.eq.s32.totalorder %s9, 1
    %p48 = scmp.ne.s32.totalorder %s43, %s45
    %p49 = scmp.eq.s32.totalorder %s9, 0
    %p50 = por %p48, %p49
    %p51 = scmp.ne.s32.totalorder %s43, %s45
    %p52 = scmp.eq.s32.totalorder %s14, 1
    %p53 = por %p51, %p52
    %p54 = scmp.ne.s32.totalorder %s45, %s46
    %p55 = scmp.eq.s32.totalorder %s14, 0
    %p56 = por %p54, %p55
    %p57 = scmp.ne.s32.totalorder %s45, %s46
    %p58 = scmp.eq.s32.totalorder %s15, 1
    %p59 = por %p57, %p58
    %p61 = scmp.ne.s32.totalorder %s46, %s60
    %p62 = scmp.eq.s32.totalorder %s15, 0
    %p63 = por %p61, %p62
    %s65 = sadd.s32 %s64, 1
    %p68 = scmp.eq.s32.totalorder %s9, 1
    %p69 = scmp.ne.s32.totalorder %s64, %s66
    %p70 = scmp.eq.s32.totalorder %s9, 0
    %p71 = por %p69, %p70
    %p72 = scmp.ne.s32.totalorder %s64, %s66
    %p73 = scmp.eq.s32.totalorder %s14, 1
    %p74 = por %p72, %p73
    %p75 = scmp.ne.s32.totalorder %s66, %s67
    %p76 = scmp.eq.s32.totalorder %s14, 0
    %p77 = por %p75, %p76
    %p78 = scmp.ne.s32.totalorder %s66, %s67
    %p79 = scmp.eq.s32.totalorder %s15, 1
    %p80 = por %p78, %p79
    %p82 = scmp.ne.s32.totalorder %s67, %s81
    %p83 = scmp.eq.s32.totalorder %s15, 0
    %p84 = por %p82, %p83
    %s85 = ssub.s32 %s9, %s16
    %p86 = scmp.eq.s32.totalorder %s85, 0
    %s88 = sadd.s32 %s87, 1
    %s89 = scalar_select %p86, %s87, %s88
    %p92 = pneg %p86
    %p93 = scmp.eq.s32.totalorder %s9, 1
    %p94 = por %p92, %p93
    %p95 = scmp.ne.s32.totalorder %s87, %s90
    %p96 = scmp.eq.s32.totalorder %s9, 0
    %p97 = por %p95, %p96
    %p98 = scmp.ne.s32.totalorder %s87, %s90
    %p99 = scmp.eq.s32.totalorder %s14, 1
    %p100 = por %p98, %p99
    %p101 = scmp.ne.s32.totalorder %s90, %s91
    %p102 = scmp.eq.s32.totalorder %s14, 0
    %p103 = por %p101, %p102
    %p104 = scmp.ne.s32.totalorder %s90, %s91
    %p105 = scmp.eq.s32.totalorder %s15, 1
    %p106 = por %p104, %p105
    %p108 = scmp.ne.s32.totalorder %s91, %s107
    %p109 = scmp.eq.s32.totalorder %s15, 0
    %p110 = por %p108, %p109
    %p111 = scmp.le.s32.totalorder 1, %s9
    %p112 = scmp.lt.s32.totalorder %s9, 3
    %p113 = pnand %p111, %p112
    %p114 = pneg %p113
    // Predicated region
    $region9: #{rb_forward.2} parent=5 // pred_check
      _
    $region10: #{rb_forward.2} parent=5 // pred_check_branch
      %116 = sbr.rel (%p113) target = $region12
    $region11: #{rb_forward.2} parent=5 // pred_region
      %s117 = ssub.s32 %s9, 1
      // Predicated region
      $region13: #{rb_forward.2} parent=11 // pred_check
        %p118 = pneg %p56
      $region14: #{rb_forward.2} parent=11 // pred_check_branch
        %120 = sbr.rel (%p118) target = $region16
      $region15: #{rb_forward.2} parent=11 // pred_region
        _
      $region16: #{rb_forward.2} parent=11 // pred_fallthru
        _
      // Predicated region
      $region17: #{rb_forward.2} parent=11 // pred_check
        %p121 = pneg %p77
      $region18: #{rb_forward.2} parent=11 // pred_check_branch
        %123 = sbr.rel (%p121) target = $region20
      $region19: #{rb_forward.2} parent=11 // pred_region
        _
      $region20: #{rb_forward.2} parent=11 // pred_fallthru
        _
    $region12: #{rb_forward.2} parent=5 // pred_fallthru
      _
    %p124 = scmp.lt.s32.totalorder %s9, 2
    // Predicated region
    $region21: #{rb_forward.2} parent=5 // pred_check
      %p125 = pneg %p124
    $region22: #{rb_forward.2} parent=5 // pred_check_branch
      %127 = sbr.rel (%p125) target = $region24
    $region23: #{rb_forward.2} parent=5 // pred_region
      // Predicated region
      $region25: #{rb_forward.2} parent=23 // pred_check
        %p128 = pneg %p29
      $region26: #{rb_forward.2} parent=23 // pred_check_branch
        %130 = sbr.rel (%p128) target = $region28
      $region27: #{rb_forward.2} parent=23 // pred_region
        %p131 = scmp.lt.s32.totalorder %s9, 1
        %s132 = scalar_select %p131, %s9, 1
        %s133 = smul.addr %s132, 43
        %s134 = smul.addr %s133, 4
        %s135 = scalar_lea.vmem %s0, %s134
      $region28: #{rb_forward.2} parent=23 // pred_fallthru
        _
    $region24: #{rb_forward.2} parent=5 // pred_fallthru
      _
    %p136 = scmp.le.s32.totalorder 1, %s9
    %p137 = scmp.lt.s32.totalorder %s9, 3
    %p138 = pnand %p136, %p137
    %p139 = pneg %p138
    // Predicated region
    $region29: #{rb_forward.2} parent=5 // pred_check
      _
    $region30: #{rb_forward.2} parent=5 // pred_check_branch
      %141 = sbr.rel (%p138) target = $region32
    $region31: #{rb_forward.2} parent=5 // pred_region
      %s142 = ssub.s32 %s9, 1
      %p143 = scmp.lt.s32.totalorder %s14, 1
      %s144 = scalar_select %p143, %s14, 1
      %s145 = smul.addr %s144, 43
      %s146 = smul.addr %s145, 4
      %s147 = scalar_lea.vmem %s0, %s146
      %p148 = pneg %p35
      %p149 = pneg %p32
      %p150 = pneg %p56
      %p151 = pneg %p53
      %p152 = pneg %p77
      %p153 = pneg %p74
      %p154 = pneg %p103
      %p155 = pneg %p100
      %p156 = scmp.lt.s32.totalorder %s14, 1
      %s157 = scalar_select %p156, %s14, 1
      %s158 = smul.addr %s157, 4
      %s159 = scalar_lea.vmem %s3, %s158
      %p160 = scmp.lt.s32.totalorder %s14, 1
      %s161 = scalar_select %p160, %s14, 1
      %s162 = smul.addr %s161, 43
      %s163 = smul.addr %s162, 4
      %s164 = scalar_lea.vmem %s0, %s163
      %p165 = scmp.lt.s32.totalorder %s14, 1
      %s166 = scalar_select %p165, %s14, 1
      %s167 = smul.addr %s166, 4
      %s168 = scalar_lea.vmem %s3, %s167
      %v170 = vld [vmem:[%s164] sm:$0xf]
      %v171 = vld [vmem:[%s164 + $0x4] sm:$0xf]
      %v172 = vld [vmem:[%s164 + $0x8] sm:$0xf]
      %v173 = vld [vmem:[%s164 + $0xc] sm:$0xf]
      %v174 = vld [vmem:[%s164 + $0x10] sm:$0xf]
      %v175 = vld [vmem:[%s164 + $0x14] sm:$0xf]
      %v176 = vld [vmem:[%s164 + $0x18] sm:$0xf]
      %v177 = vld [vmem:[%s164 + $0x1c] sm:$0xf]
      %v178 = vld [vmem:[%s164 + $0x20] sm:$0xf]
      %v179 = vld [vmem:[%s164 + $0x24] sm:$0xf]
      %v180 = vld [vmem:[%s164 + $0x28] sm:$0xf]
      %v181 = vld [vmem:[%s164 + $0x2c] sm:$0xf]
      %v182 = vld [vmem:[%s164 + $0x30] sm:$0xf]
      %v183 = vld [vmem:[%s164 + $0x34] sm:$0xf]
      %v184 = vld [vmem:[%s164 + $0x38] sm:$0xf]
      %v185 = vld [vmem:[%s164 + $0x3c] sm:$0xf]
      %v186 = vld [vmem:[%s164 + $0x40] sm:$0xf]
      %v187 = vld [vmem:[%s164 + $0x44] sm:$0xf]
      %v188 = vld [vmem:[%s164 + $0x48] sm:$0xf]
      %v189 = vld [vmem:[%s164 + $0x4c] sm:$0xf]
      %v190 = vld [vmem:[%s164 + $0x50] sm:$0xf]
      %v191 = vld [vmem:[%s164 + $0x54] sm:$0xf]
      %v192 = vld [vmem:[%s164 + $0x58] sm:$0xf]
      %v193 = vld [vmem:[%s164 + $0x5c] sm:$0xf]
      %v194 = vld [vmem:[%s164 + $0x60] sm:$0xf]
      %v195 = vld [vmem:[%s164 + $0x64] sm:$0xf]
      %v196 = vld [vmem:[%s164 + $0x68] sm:$0xf]
      %v197 = vld [vmem:[%s164 + $0x6c] sm:$0xf]
      %v198 = vld [vmem:[%s164 + $0x70] sm:$0xf]
      %v199 = vld [vmem:[%s164 + $0x74] sm:$0xf]
      %v200 = vld [vmem:[%s164 + $0x78] sm:$0xf]
      %v201 = vld [vmem:[%s164 + $0x7c] sm:$0xf]
      %v202 = vld [vmem:[%s164 + $0x80] sm:$0xf]
      %v203 = vld [vmem:[%s164 + $0x84] sm:$0xf]
      %v204 = vld [vmem:[%s164 + $0x88] sm:$0xf]
      %v205 = vld [vmem:[%s164 + $0x8c] sm:$0xf]
      %v242 = vunpack.c.l.b16 %v170
      %v243 = vunpack.c.l.b16 %v171
      %v244 = vunpack.c.l.b16 %v172
      %v245 = vunpack.c.l.b16 %v173
      %v246 = vunpack.c.l.b16 %v174
      %v247 = vunpack.c.l.b16 %v175
      %v248 = vunpack.c.l.b16 %v176
      %v249 = vunpack.c.l.b16 %v177
      %v250 = vunpack.c.l.b16 %v178
      %v251 = vunpack.c.l.b16 %v179
      %v252 = vunpack.c.l.b16 %v180
      %v253 = vunpack.c.l.b16 %v181
      %v254 = vunpack.c.l.b16 %v182
      %v255 = vunpack.c.l.b16 %v183
      %v256 = vunpack.c.l.b16 %v184
      %v257 = vunpack.c.l.b16 %v185
      %v258 = vunpack.c.l.b16 %v186
      %v259 = vunpack.c.l.b16 %v187
      %v260 = vunpack.c.l.b16 %v188
      %v261 = vunpack.c.l.b16 %v189
      %v262 = vunpack.c.l.b16 %v190
      %v263 = vunpack.c.l.b16 %v191
      %v264 = vunpack.c.l.b16 %v192
      %v265 = vunpack.c.l.b16 %v193
      %v266 = vunpack.c.l.b16 %v194
      %v267 = vunpack.c.l.b16 %v195
      %v268 = vunpack.c.l.b16 %v196
      %v269 = vunpack.c.l.b16 %v197
      %v270 = vunpack.c.l.b16 %v198
      %v271 = vunpack.c.l.b16 %v199
      %v272 = vunpack.c.l.b16 %v200
      %v273 = vunpack.c.l.b16 %v201
      %v274 = vunpack.c.l.b16 %v202
      %v275 = vunpack.c.l.b16 %v203
      %v276 = vunpack.c.l.b16 %v204
      %v277 = vunpack.c.l.b16 %v205
      %v278 = vpack.c.b16 %v243, %v242
      %v279 = vpack.c.b16 %v245, %v244
      %v280 = vpack.c.b16 %v247, %v246
      %v281 = vpack.c.b16 %v249, %v248
      %v282 = vpack.c.b16 %v251, %v250
      %v283 = vpack.c.b16 %v253, %v252
      %v284 = vpack.c.b16 %v255, %v254
      %v285 = vpack.c.b16 %v257, %v256
      %v286 = vpack.c.b16 %v259, %v258
      %v287 = vpack.c.b16 %v261, %v260
      %v288 = vpack.c.b16 %v263, %v262
      %v289 = vpack.c.b16 %v265, %v264
      %v290 = vpack.c.b16 %v267, %v266
      %v291 = vpack.c.b16 %v269, %v268
      %v292 = vpack.c.b16 %v271, %v270
      %v293 = vpack.c.b16 %v273, %v272
      %v294 = vpack.c.b16 %v275, %v274
      %v295 = vpack.c.b16 %v277, %v276
      %314 = vst [vmem:[#allocation2] sm:$0xff] %v278
      %315 = vst [vmem:[#allocation2 + $0x48] sm:$0xff] %v279
      %316 = vst [vmem:[#allocation2 + $0x90] sm:$0xff] %v280
      %317 = vst [vmem:[#allocation2 + $0xd8] sm:$0xff] %v281
      %318 = vst [vmem:[#allocation2 + $0x120] sm:$0xff] %v282
      %319 = vst [vmem:[#allocation2 + $0x168] sm:$0xff] %v283
      %320 = vst [vmem:[#allocation2 + $0x1b0] sm:$0xff] %v284
      %321 = vst [vmem:[#allocation2 + $0x1f8] sm:$0xff] %v285
      %322 = vst [vmem:[#allocation2 + $0x240] sm:$0xff] %v286
      %323 = vst [vmem:[#allocation2 + $0x288] sm:$0xff] %v287
      %324 = vst [vmem:[#allocation2 + $0x2d0] sm:$0xff] %v288
      %325 = vst [vmem:[#allocation2 + $0x318] sm:$0xff] %v289
      %326 = vst [vmem:[#allocation2 + $0x360] sm:$0xff] %v290
      %327 = vst [vmem:[#allocation2 + $0x3a8] sm:$0xff] %v291
      %328 = vst [vmem:[#allocation2 + $0x3f0] sm:$0xff] %v292
      %329 = vst [vmem:[#allocation2 + $0x438] sm:$0xff] %v293
      %330 = vst [vmem:[#allocation2 + $0x480] sm:$0xff] %v294
      %331 = vst [vmem:[#allocation2 + $0x4c8] sm:$0xff] %v295
      %v332 = vld [vmem:[%s164] sm:$0xf]
      %v333 = vld [vmem:[%s164 + $0x4] sm:$0xf]
      %v334 = vld [vmem:[%s164 + $0x8] sm:$0xf]
      %v335 = vld [vmem:[%s164 + $0xc] sm:$0xf]
      %v336 = vld [vmem:[%s164 + $0x10] sm:$0xf]
      %v337 = vld [vmem:[%s164 + $0x14] sm:$0xf]
      %v338 = vld [vmem:[%s164 + $0x18] sm:$0xf]
      %v339 = vld [vmem:[%s164 + $0x1c] sm:$0xf]
      %v340 = vld [vmem:[%s164 + $0x20] sm:$0xf]
      %v341 = vld [vmem:[%s164 + $0x24] sm:$0xf]
      %v342 = vld [vmem:[%s164 + $0x28] sm:$0xf]
      %v343 = vld [vmem:[%s164 + $0x2c] sm:$0xf]
      %v344 = vld [vmem:[%s164 + $0x30] sm:$0xf]
      %v345 = vld [vmem:[%s164 + $0x34] sm:$0xf]
      %v346 = vld [vmem:[%s164 + $0x38] sm:$0xf]
      %v347 = vld [vmem:[%s164 + $0x3c] sm:$0xf]
      %v348 = vld [vmem:[%s164 + $0x40] sm:$0xf]
      %v349 = vld [vmem:[%s164 + $0x44] sm:$0xf]
      %v350 = vld [vmem:[%s164 + $0x48] sm:$0xf]
      %v351 = vld [vmem:[%s164 + $0x4c] sm:$0xf]
      %v352 = vld [vmem:[%s164 + $0x50] sm:$0xf]
      %v353 = vld [vmem:[%s164 + $0x54] sm:$0xf]
      %v354 = vld [vmem:[%s164 + $0x58] sm:$0xf]
      %v355 = vld [vmem:[%s164 + $0x5c] sm:$0xf]
      %v356 = vld [vmem:[%s164 + $0x60] sm:$0xf]
      %v357 = vld [vmem:[%s164 + $0x64] sm:$0xf]
      %v358 = vld [vmem:[%s164 + $0x68] sm:$0xf]
      %v359 = vld [vmem:[%s164 + $0x6c] sm:$0xf]
      %v360 = vld [vmem:[%s164 + $0x70] sm:$0xf]
      %v361 = vld [vmem:[%s164 + $0x74] sm:$0xf]
      %v362 = vld [vmem:[%s164 + $0x78] sm:$0xf]
      %v363 = vld [vmem:[%s164 + $0x7c] sm:$0xf]
      %v364 = vld [vmem:[%s164 + $0x80] sm:$0xf]
      %v365 = vld [vmem:[%s164 + $0x84] sm:$0xf]
      %v366 = vld [vmem:[%s164 + $0x88] sm:$0xf]
      %v367 = vld [vmem:[%s164 + $0x8c] sm:$0xf]
      %v368 = vld [vmem:[%s164 + $0x90] sm:$0x1]
      %v406 = vunpack.c.l.b16 %v332
      %v407 = vunpack.c.l.b16 %v333
      %v408 = vunpack.c.l.b16 %v334
      %v409 = vunpack.c.l.b16 %v335
      %v410 = vunpack.c.l.b16 %v336
      %v411 = vunpack.c.l.b16 %v337
      %v412 = vunpack.c.l.b16 %v338
      %v413 = vunpack.c.l.b16 %v339
      %v414 = vunpack.c.l.b16 %v340
      %v415 = vunpack.c.l.b16 %v341
      %v416 = vunpack.c.l.b16 %v342
      %v417 = vunpack.c.l.b16 %v343
      %v418 = vunpack.c.l.b16 %v344
      %v419 = vunpack.c.l.b16 %v345
      %v420 = vunpack.c.l.b16 %v346
      %v421 = vunpack.c.l.b16 %v347
      %v422 = vunpack.c.l.b16 %v348
      %v423 = vunpack.c.l.b16 %v349
      %v424 = vunpack.c.l.b16 %v350
      %v425 = vunpack.c.l.b16 %v351
      %v426 = vunpack.c.l.b16 %v352
      %v427 = vunpack.c.l.b16 %v353
      %v428 = vunpack.c.l.b16 %v354
      %v429 = vunpack.c.l.b16 %v355
      %v430 = vunpack.c.l.b16 %v356
      %v431 = vunpack.c.l.b16 %v357
      %v432 = vunpack.c.l.b16 %v358
      %v433 = vunpack.c.l.b16 %v359
      %v434 = vunpack.c.l.b16 %v360
      %v435 = vunpack.c.l.b16 %v361
      %v436 = vunpack.c.l.b16 %v362
      %v437 = vunpack.c.l.b16 %v363
      %v438 = vunpack.c.l.b16 %v364
      %v439 = vunpack.c.l.b16 %v365
      %v440 = vunpack.c.l.b16 %v366
      %v441 = vunpack.c.l.b16 %v367
      %v442 = vunpack.c.l.b16 %v368
      %v443 = vpack.c.b16 %v407, %v406
      %v444 = vpack.c.b16 %v409, %v408
      %v445 = vpack.c.b16 %v411, %v410
      %v446 = vpack.c.b16 %v413, %v412
      %v447 = vpack.c.b16 %v415, %v414
      %v448 = vpack.c.b16 %v417, %v416
      %v449 = vpack.c.b16 %v419, %v418
      %v450 = vpack.c.b16 %v421, %v420
      %v451 = vpack.c.b16 %v423, %v422
      %v452 = vpack.c.b16 %v425, %v424
      %v453 = vpack.c.b16 %v427, %v426
      %v454 = vpack.c.b16 %v429, %v428
      %v455 = vpack.c.b16 %v431, %v430
      %v456 = vpack.c.b16 %v433, %v432
      %v457 = vpack.c.b16 %v435, %v434
      %v458 = vpack.c.b16 %v437, %v436
      %v459 = vpack.c.b16 %v439, %v438
      %v460 = vpack.c.b16 %v441, %v440
      %v461 = vpack.c.b16 %v442, %v442
      %vm462 = vsmask.f32 7424
      %v464 = vshrl.u32 %v443, 16
      %v466 = vshll.u32 %v443, 16
      %v468 = vrot.slane %v466, 1
      %v469 = vor.u32 %v464, %v468
      %v471 = vshll.u32 %v444, 16
      %v473 = vrot.slane %v471, 1
      %v474 = vsel %vm462, %v469, %v473
      %v475 = vshrl.u32 %v444, 16
      %v477 = vor.u32 %v475, %v473
      %v479 = vshll.u32 %v445, 16
      %v481 = vrot.slane %v479, 1
      %v482 = vsel %vm462, %v477, %v481
      %v483 = vshrl.u32 %v445, 16
      %v485 = vor.u32 %v483, %v481
      %v487 = vshll.u32 %v446, 16
      %v489 = vrot.slane %v487, 1
      %v490 = vsel %vm462, %v485, %v489
      %v491 = vshrl.u32 %v446, 16
      %v493 = vor.u32 %v491, %v489
      %v495 = vshll.u32 %v447, 16
      %v497 = vrot.slane %v495, 1
      %v498 = vsel %vm462, %v493, %v497
      %v499 = vshrl.u32 %v447, 16
      %v501 = vor.u32 %v499, %v497
      %v503 = vshll.u32 %v448, 16
      %v505 = vrot.slane %v503, 1
      %v506 = vsel %vm462, %v501, %v505
      %v507 = vshrl.u32 %v448, 16
      %v509 = vor.u32 %v507, %v505
      %v511 = vshll.u32 %v449, 16
      %v513 = vrot.slane %v511, 1
      %v514 = vsel %vm462, %v509, %v513
      %v515 = vshrl.u32 %v449, 16
      %v517 = vor.u32 %v515, %v513
      %v519 = vshll.u32 %v450, 16
      %v521 = vrot.slane %v519, 1
      %v522 = vsel %vm462, %v517, %v521
      %v523 = vshrl.u32 %v450, 16
      %v525 = vor.u32 %v523, %v521
      %v527 = vshll.u32 %v451, 16
      %v529 = vrot.slane %v527, 1
      %v530 = vsel %vm462, %v525, %v529
      %v531 = vshrl.u32 %v451, 16
      %v533 = vor.u32 %v531, %v529
      %v535 = vshll.u32 %v452, 16
      %v537 = vrot.slane %v535, 1
      %v538 = vsel %vm462, %v533, %v537
      %v539 = vshrl.u32 %v452, 16
      %v541 = vor.u32 %v539, %v537
      %v543 = vshll.u32 %v453, 16
      %v545 = vrot.slane %v543, 1
      %v546 = vsel %vm462, %v541, %v545
      %v547 = vshrl.u32 %v453, 16
      %v549 = vor.u32 %v547, %v545
      %v551 = vshll.u32 %v454, 16
      %v553 = vrot.slane %v551, 1
      %v554 = vsel %vm462, %v549, %v553
      %v555 = vshrl.u32 %v454, 16
      %v557 = vor.u32 %v555, %v553
      %v559 = vshll.u32 %v455, 16
      %v561 = vrot.slane %v559, 1
      %v562 = vsel %vm462, %v557, %v561
      %v563 = vshrl.u32 %v455, 16
      %v565 = vor.u32 %v563, %v561
      %v567 = vshll.u32 %v456, 16
      %v569 = vrot.slane %v567, 1
      %v570 = vsel %vm462, %v565, %v569
      %v571 = vshrl.u32 %v456, 16
      %v573 = vor.u32 %v571, %v569
      %v575 = vshll.u32 %v457, 16
      %v577 = vrot.slane %v575, 1
      %v578 = vsel %vm462, %v573, %v577
      %v579 = vshrl.u32 %v457, 16
      %v581 = vor.u32 %v579, %v577
      %v583 = vshll.u32 %v458, 16
      %v585 = vrot.slane %v583, 1
      %v586 = vsel %vm462, %v581, %v585
      %v587 = vshrl.u32 %v458, 16
      %v589 = vor.u32 %v587, %v585
      %v591 = vshll.u32 %v459, 16
      %v593 = vrot.slane %v591, 1
      %v594 = vsel %vm462, %v589, %v593
      %v595 = vshrl.u32 %v459, 16
      %v597 = vor.u32 %v595, %v593
      %v599 = vshll.u32 %v460, 16
      %v601 = vrot.slane %v599, 1
      %v602 = vsel %vm462, %v597, %v601
      %v603 = vshrl.u32 %v460, 16
      %v605 = vor.u32 %v603, %v601
      %v607 = vshll.u32 %v461, 16
      %v609 = vrot.slane %v607, 1
      %v610 = vsel %vm462, %v605, %v609
      %629 = vst [vmem:[#allocation2 + $0x8] sm:$0xff] %v474
      %630 = vst [vmem:[#allocation2 + $0x50] sm:$0xff] %v482
      %631 = vst [vmem:[#allocation2 + $0x98] sm:$0xff] %v490
      %632 = vst [vmem:[#allocation2 + $0xe0] sm:$0xff] %v498
      %633 = vst [vmem:[#allocation2 + $0x128] sm:$0xff] %v506
      %634 = vst [vmem:[#allocation2 + $0x170] sm:$0xff] %v514
      %635 = vst [vmem:[#allocation2 + $0x1b8] sm:$0xff] %v522
      %636 = vst [vmem:[#allocation2 + $0x200] sm:$0xff] %v530
      %637 = vst [vmem:[#allocation2 + $0x248] sm:$0xff] %v538
      %638 = vst [vmem:[#allocation2 + $0x290] sm:$0xff] %v546
      %639 = vst [vmem:[#allocation2 + $0x2d8] sm:$0xff] %v554
      %640 = vst [vmem:[#allocation2 + $0x320] sm:$0xff] %v562
      %641 = vst [vmem:[#allocation2 + $0x368] sm:$0xff] %v570
      %642 = vst [vmem:[#allocation2 + $0x3b0] sm:$0xff] %v578
      %643 = vst [vmem:[#allocation2 + $0x3f8] sm:$0xff] %v586
      %644 = vst [vmem:[#allocation2 + $0x440] sm:$0xff] %v594
      %645 = vst [vmem:[#allocation2 + $0x488] sm:$0xff] %v602
      %646 = vst [vmem:[#allocation2 + $0x4d0] sm:$0xff] %v610
      %v647 = vld [vmem:[%s164] sm:$0xe]
      %v648 = vld [vmem:[%s164 + $0x4] sm:$0xf]
      %v649 = vld [vmem:[%s164 + $0x8] sm:$0xf]
      %v650 = vld [vmem:[%s164 + $0xc] sm:$0xf]
      %v651 = vld [vmem:[%s164 + $0x10] sm:$0xf]
      %v652 = vld [vmem:[%s164 + $0x14] sm:$0xf]
      %v653 = vld [vmem:[%s164 + $0x18] sm:$0xf]
      %v654 = vld [vmem:[%s164 + $0x1c] sm:$0xf]
      %v655 = vld [vmem:[%s164 + $0x20] sm:$0xf]
      %v656 = vld [vmem:[%s164 + $0x24] sm:$0xf]
      %v657 = vld [vmem:[%s164 + $0x28] sm:$0xf]
      %v658 = vld [vmem:[%s164 + $0x2c] sm:$0xf]
      %v659 = vld [vmem:[%s164 + $0x30] sm:$0xf]
      %v660 = vld [vmem:[%s164 + $0x34] sm:$0xf]
      %v661 = vld [vmem:[%s164 + $0x38] sm:$0xf]
      %v662 = vld [vmem:[%s164 + $0x3c] sm:$0xf]
      %v663 = vld [vmem:[%s164 + $0x40] sm:$0xf]
      %v664 = vld [vmem:[%s164 + $0x44] sm:$0xf]
      %v665 = vld [vmem:[%s164 + $0x48] sm:$0xf]
      %v666 = vld [vmem:[%s164 + $0x4c] sm:$0xf]
      %v667 = vld [vmem:[%s164 + $0x50] sm:$0xf]
      %v668 = vld [vmem:[%s164 + $0x54] sm:$0xf]
      %v669 = vld [vmem:[%s164 + $0x58] sm:$0xf]
      %v670 = vld [vmem:[%s164 + $0x5c] sm:$0xf]
      %v671 = vld [vmem:[%s164 + $0x60] sm:$0xf]
      %v672 = vld [vmem:[%s164 + $0x64] sm:$0xf]
      %v673 = vld [vmem:[%s164 + $0x68] sm:$0xf]
      %v674 = vld [vmem:[%s164 + $0x6c] sm:$0xf]
      %v675 = vld [vmem:[%s164 + $0x70] sm:$0xf]
      %v676 = vld [vmem:[%s164 + $0x74] sm:$0xf]
      %v677 = vld [vmem:[%s164 + $0x78] sm:$0xf]
      %v678 = vld [vmem:[%s164 + $0x7c] sm:$0xf]
      %v679 = vld [vmem:[%s164 + $0x80] sm:$0xf]
      %v680 = vld [vmem:[%s164 + $0x84] sm:$0xf]
      %v681 = vld [vmem:[%s164 + $0x88] sm:$0xf]
      %v682 = vld [vmem:[%s164 + $0x8c] sm:$0xf]
      %v683 = vld [vmem:[%s164 + $0x90] sm:$0x1]
      %v721 = vunpack.c.l.b16 %v647
      %v722 = vunpack.c.l.b16 %v648
      %v723 = vunpack.c.l.b16 %v649
      %v724 = vunpack.c.l.b16 %v650
      %v725 = vunpack.c.l.b16 %v651
      %v726 = vunpack.c.l.b16 %v652
      %v727 = vunpack.c.l.b16 %v653
      %v728 = vunpack.c.l.b16 %v654
      %v729 = vunpack.c.l.b16 %v655
      %v730 = vunpack.c.l.b16 %v656
      %v731 = vunpack.c.l.b16 %v657
      %v732 = vunpack.c.l.b16 %v658
      %v733 = vunpack.c.l.b16 %v659
      %v734 = vunpack.c.l.b16 %v660
      %v735 = vunpack.c.l.b16 %v661
      %v736 = vunpack.c.l.b16 %v662
      %v737 = vunpack.c.l.b16 %v663
      %v738 = vunpack.c.l.b16 %v664
      %v739 = vunpack.c.l.b16 %v665
      %v740 = vunpack.c.l.b16 %v666
      %v741 = vunpack.c.l.b16 %v667
      %v742 = vunpack.c.l.b16 %v668
      %v743 = vunpack.c.l.b16 %v669
      %v744 = vunpack.c.l.b16 %v670
      %v745 = vunpack.c.l.b16 %v671
      %v746 = vunpack.c.l.b16 %v672
      %v747 = vunpack.c.l.b16 %v673
      %v748 = vunpack.c.l.b16 %v674
      %v749 = vunpack.c.l.b16 %v675
      %v750 = vunpack.c.l.b16 %v676
      %v751 = vunpack.c.l.b16 %v677
      %v752 = vunpack.c.l.b16 %v678
      %v753 = vunpack.c.l.b16 %v679
      %v754 = vunpack.c.l.b16 %v680
      %v755 = vunpack.c.l.b16 %v681
      %v756 = vunpack.c.l.b16 %v682
      %v757 = vunpack.c.l.b16 %v683
      %v758 = vpack.c.b16 %v722, %v721
      %v759 = vpack.c.b16 %v724, %v723
      %v760 = vpack.c.b16 %v726, %v725
      %v761 = vpack.c.b16 %v728, %v727
      %v762 = vpack.c.b16 %v730, %v729
      %v763 = vpack.c.b16 %v732, %v731
      %v764 = vpack.c.b16 %v734, %v733
      %v765 = vpack.c.b16 %v736, %v735
      %v766 = vpack.c.b16 %v738, %v737
      %v767 = vpack.c.b16 %v740, %v739
      %v768 = vpack.c.b16 %v742, %v741
      %v769 = vpack.c.b16 %v744, %v743
      %v770 = vpack.c.b16 %v746, %v745
      %v771 = vpack.c.b16 %v748, %v747
      %v772 = vpack.c.b16 %v750, %v749
      %v773 = vpack.c.b16 %v752, %v751
      %v774 = vpack.c.b16 %v754, %v753
      %v775 = vpack.c.b16 %v756, %v755
      %v776 = vpack.c.b16 %v757, %v757
      %vm777 = vcmask 1046528
      %v778 = vrot.slane %v758, 1
      %v779 = vrot.slane %v759, 1
      %v780 = vsel %vm777, %v778, %v779
      %v781 = vrot.slane %v760, 1
      %v782 = vsel %vm777, %v779, %v781
      %v783 = vrot.slane %v761, 1
      %v784 = vsel %vm777, %v781, %v783
      %v785 = vrot.slane %v762, 1
      %v786 = vsel %vm777, %v783, %v785
      %v787 = vrot.slane %v763, 1
      %v788 = vsel %vm777, %v785, %v787
      %v789 = vrot.slane %v764, 1
      %v790 = vsel %vm777, %v787, %v789
      %v791 = vrot.slane %v765, 1
      %v792 = vsel %vm777, %v789, %v791
      %v793 = vrot.slane %v766, 1
      %v794 = vsel %vm777, %v791, %v793
      %v795 = vrot.slane %v767, 1
      %v796 = vsel %vm777, %v793, %v795
      %v797 = vrot.slane %v768, 1
      %v798 = vsel %vm777, %v795, %v797
      %v799 = vrot.slane %v769, 1
      %v800 = vsel %vm777, %v797, %v799
      %v801 = vrot.slane %v770, 1
      %v802 = vsel %vm777, %v799, %v801
      %v803 = vrot.slane %v771, 1
      %v804 = vsel %vm777, %v801, %v803
      %v805 = vrot.slane %v772, 1
      %v806 = vsel %vm777, %v803, %v805
      %v807 = vrot.slane %v773, 1
      %v808 = vsel %vm777, %v805, %v807
      %v809 = vrot.slane %v774, 1
      %v810 = vsel %vm777, %v807, %v809
      %v811 = vrot.slane %v775, 1
      %v812 = vsel %vm777, %v809, %v811
      %v813 = vrot.slane %v776, 1
      %v814 = vsel %vm777, %v811, %v813
      %833 = vst [vmem:[#allocation2 + $0x10] sm:$0xff] %v780
      %834 = vst [vmem:[#allocation2 + $0x58] sm:$0xff] %v782
      %835 = vst [vmem:[#allocation2 + $0xa0] sm:$0xff] %v784
      %836 = vst [vmem:[#allocation2 + $0xe8] sm:$0xff] %v786
      %837 = vst [vmem:[#allocation2 + $0x130] sm:$0xff] %v788
      %838 = vst [vmem:[#allocation2 + $0x178] sm:$0xff] %v790
      %839 = vst [vmem:[#allocation2 + $0x1c0] sm:$0xff] %v792
      %840 = vst [vmem:[#allocation2 + $0x208] sm:$0xff] %v794
      %841 = vst [vmem:[#allocation2 + $0x250] sm:$0xff] %v796
      %842 = vst [vmem:[#allocation2 + $0x298] sm:$0xff] %v798
      %843 = vst [vmem:[#allocation2 + $0x2e0] sm:$0xff] %v800
      %844 = vst [vmem:[#allocation2 + $0x328] sm:$0xff] %v802
      %845 = vst [vmem:[#allocation2 + $0x370] sm:$0xff] %v804
      %846 = vst [vmem:[#allocation2 + $0x3b8] sm:$0xff] %v806
      %847 = vst [vmem:[#allocation2 + $0x400] sm:$0xff] %v808
      %848 = vst [vmem:[#allocation2 + $0x448] sm:$0xff] %v810
      %849 = vst [vmem:[#allocation2 + $0x490] sm:$0xff] %v812
      %850 = vst [vmem:[#allocation2 + $0x4d8] sm:$0xff] %v814
      %v851 = vld [vmem:[%s164 + $0x8] sm:$0xe]
      %v852 = vld [vmem:[%s164 + $0xc] sm:$0xf]
      %v853 = vld [vmem:[%s164 + $0x10] sm:$0xf]
      %v854 = vld [vmem:[%s164 + $0x14] sm:$0xf]
      %v855 = vld [vmem:[%s164 + $0x18] sm:$0xf]
      %v856 = vld [vmem:[%s164 + $0x1c] sm:$0xf]
      %v857 = vld [vmem:[%s164 + $0x20] sm:$0xf]
      %v858 = vld [vmem:[%s164 + $0x24] sm:$0xf]
      %v859 = vld [vmem:[%s164 + $0x28] sm:$0xf]
      %v860 = vld [vmem:[%s164 + $0x2c] sm:$0xf]
      %v861 = vld [vmem:[%s164 + $0x30] sm:$0xf]
      %v862 = vld [vmem:[%s164 + $0x34] sm:$0xf]
      %v863 = vld [vmem:[%s164 + $0x38] sm:$0xf]
      %v864 = vld [vmem:[%s164 + $0x3c] sm:$0xf]
      %v865 = vld [vmem:[%s164 + $0x40] sm:$0xf]
      %v866 = vld [vmem:[%s164 + $0x44] sm:$0xf]
      %v867 = vld [vmem:[%s164 + $0x48] sm:$0xf]
      %v868 = vld [vmem:[%s164 + $0x4c] sm:$0xf]
      %v869 = vld [vmem:[%s164 + $0x50] sm:$0xf]
      %v870 = vld [vmem:[%s164 + $0x54] sm:$0xf]
      %v871 = vld [vmem:[%s164 + $0x58] sm:$0xf]
      %v872 = vld [vmem:[%s164 + $0x5c] sm:$0xf]
      %v873 = vld [vmem:[%s164 + $0x60] sm:$0xf]
      %v874 = vld [vmem:[%s164 + $0x64] sm:$0xf]
      %v875 = vld [vmem:[%s164 + $0x68] sm:$0xf]
      %v876 = vld [vmem:[%s164 + $0x6c] sm:$0xf]
      %v877 = vld [vmem:[%s164 + $0x70] sm:$0xf]
      %v878 = vld [vmem:[%s164 + $0x74] sm:$0xf]
      %v879 = vld [vmem:[%s164 + $0x78] sm:$0xf]
      %v880 = vld [vmem:[%s164 + $0x7c] sm:$0xf]
      %v881 = vld [vmem:[%s164 + $0x80] sm:$0xf]
      %v882 = vld [vmem:[%s164 + $0x84] sm:$0xf]
      %v883 = vld [vmem:[%s164 + $0x88] sm:$0xf]
      %v884 = vld [vmem:[%s164 + $0x8c] sm:$0xf]
      %v885 = vld [vmem:[%s164 + $0x90] sm:$0xf]
      %v886 = vld [vmem:[%s164 + $0x94] sm:$0xf]
      %v887 = vld [vmem:[%s164 + $0x98] sm:$0x1]
      %v925 = vunpack.c.l.b16 %v851
      %v926 = vunpack.c.l.b16 %v852
      %v927 = vunpack.c.l.b16 %v853
      %v928 = vunpack.c.l.b16 %v854
      %v929 = vunpack.c.l.b16 %v855
      %v930 = vunpack.c.l.b16 %v856
      %v931 = vunpack.c.l.b16 %v857
      %v932 = vunpack.c.l.b16 %v858
      %v933 = vunpack.c.l.b16 %v859
      %v934 = vunpack.c.l.b16 %v860
      %v935 = vunpack.c.l.b16 %v861
      %v936 = vunpack.c.l.b16 %v862
      %v937 = vunpack.c.l.b16 %v863
      %v938 = vunpack.c.l.b16 %v864
      %v939 = vunpack.c.l.b16 %v865
      %v940 = vunpack.c.l.b16 %v866
      %v941 = vunpack.c.l.b16 %v867
      %v942 = vunpack.c.l.b16 %v868
      %v943 = vunpack.c.l.b16 %v869
      %v944 = vunpack.c.l.b16 %v870
      %v945 = vunpack.c.l.b16 %v871
      %v946 = vunpack.c.l.b16 %v872
      %v947 = vunpack.c.l.b16 %v873
      %v948 = vunpack.c.l.b16 %v874
      %v949 = vunpack.c.l.b16 %v875
      %v950 = vunpack.c.l.b16 %v876
      %v951 = vunpack.c.l.b16 %v877
      %v952 = vunpack.c.l.b16 %v878
      %v953 = vunpack.c.l.b16 %v879
      %v954 = vunpack.c.l.b16 %v880
      %v955 = vunpack.c.l.b16 %v881
      %v956 = vunpack.c.l.b16 %v882
      %v957 = vunpack.c.l.b16 %v883
      %v958 = vunpack.c.l.b16 %v884
      %v959 = vunpack.c.l.b16 %v885
      %v960 = vunpack.c.l.b16 %v886
      %v961 = vunpack.c.l.b16 %v887
      %v962 = vpack.c.b16 %v926, %v925
      %v963 = vpack.c.b16 %v928, %v927
      %v964 = vpack.c.b16 %v930, %v929
      %v965 = vpack.c.b16 %v932, %v931
      %v966 = vpack.c.b16 %v934, %v933
      %v967 = vpack.c.b16 %v936, %v935
      %v968 = vpack.c.b16 %v938, %v937
      %v969 = vpack.c.b16 %v940, %v939
      %v970 = vpack.c.b16 %v942, %v941
      %v971 = vpack.c.b16 %v944, %v943
      %v972 = vpack.c.b16 %v946, %v945
      %v973 = vpack.c.b16 %v948, %v947
      %v974 = vpack.c.b16 %v950, %v949
      %v975 = vpack.c.b16 %v952, %v951
      %v976 = vpack.c.b16 %v954, %v953
      %v977 = vpack.c.b16 %v956, %v955
      %v978 = vpack.c.b16 %v958, %v957
      %v979 = vpack.c.b16 %v960, %v959
      %v980 = vpack.c.b16 %v961, %v961
      %v981 = vrot.slane %v962, 1
      %v982 = vrot.slane %v963, 1
      %v983 = vsel %vm777, %v981, %v982
      %v984 = vrot.slane %v964, 1
      %v985 = vsel %vm777, %v982, %v984
      %v986 = vrot.slane %v965, 1
      %v987 = vsel %vm777, %v984, %v986
      %v988 = vrot.slane %v966, 1
      %v989 = vsel %vm777, %v986, %v988
      %v990 = vrot.slane %v967, 1
      %v991 = vsel %vm777, %v988, %v990
      %v992 = vrot.slane %v968, 1
      %v993 = vsel %vm777, %v990, %v992
      %v994 = vrot.slane %v969, 1
      %v995 = vsel %vm777, %v992, %v994
      %v996 = vrot.slane %v970, 1
      %v997 = vsel %vm777, %v994, %v996
      %v998 = vrot.slane %v971, 1
      %v999 = vsel %vm777, %v996, %v998
      %v1000 = vrot.slane %v972, 1
      %v1001 = vsel %vm777, %v998, %v1000
      %v1002 = vrot.slane %v973, 1
      %v1003 = vsel %vm777, %v1000, %v1002
      %v1004 = vrot.slane %v974, 1
      %v1005 = vsel %vm777, %v1002, %v1004
      %v1006 = vrot.slane %v975, 1
      %v1007 = vsel %vm777, %v1004, %v1006
      %v1008 = vrot.slane %v976, 1
      %v1009 = vsel %vm777, %v1006, %v1008
      %v1010 = vrot.slane %v977, 1
      %v1011 = vsel %vm777, %v1008, %v1010
      %v1012 = vrot.slane %v978, 1
      %v1013 = vsel %vm777, %v1010, %v1012
      %v1014 = vrot.slane %v979, 1
      %v1015 = vsel %vm777, %v1012, %v1014
      %v1016 = vrot.slane %v980, 1
      %v1017 = vsel %vm777, %v1014, %v1016
      %1036 = vst [vmem:[#allocation2 + $0x18] sm:$0xff] %v983
      %1037 = vst [vmem:[#allocation2 + $0x60] sm:$0xff] %v985
      %1038 = vst [vmem:[#allocation2 + $0xa8] sm:$0xff] %v987
      %1039 = vst [vmem:[#allocation2 + $0xf0] sm:$0xff] %v989
      %1040 = vst [vmem:[#allocation2 + $0x138] sm:$0xff] %v991
      %1041 = vst [vmem:[#allocation2 + $0x180] sm:$0xff] %v993
      %1042 = vst [vmem:[#allocation2 + $0x1c8] sm:$0xff] %v995
      %1043 = vst [vmem:[#allocation2 + $0x210] sm:$0xff] %v997
      %1044 = vst [vmem:[#allocation2 + $0x258] sm:$0xff] %v999
      %1045 = vst [vmem:[#allocation2 + $0x2a0] sm:$0xff] %v1001
      %1046 = vst [vmem:[#allocation2 + $0x2e8] sm:$0xff] %v1003
      %1047 = vst [vmem:[#allocation2 + $0x330] sm:$0xff] %v1005
      %1048 = vst [vmem:[#allocation2 + $0x378] sm:$0xff] %v1007
      %1049 = vst [vmem:[#allocation2 + $0x3c0] sm:$0xff] %v1009
      %1050 = vst [vmem:[#allocation2 + $0x408] sm:$0xff] %v1011
      %1051 = vst [vmem:[#allocation2 + $0x450] sm:$0xff] %v1013
      %1052 = vst [vmem:[#allocation2 + $0x498] sm:$0xff] %v1015
      %1053 = vst [vmem:[#allocation2 + $0x4e0] sm:$0xff] %v1017
      %v1054 = vld [vmem:[%s164 + $0x8] sm:$0xe]
      %v1055 = vld [vmem:[%s164 + $0xc] sm:$0xf]
      %v1056 = vld [vmem:[%s164 + $0x10] sm:$0xf]
      %v1057 = vld [vmem:[%s164 + $0x14] sm:$0xf]
      %v1058 = vld [vmem:[%s164 + $0x18] sm:$0xf]
      %v1059 = vld [vmem:[%s164 + $0x1c] sm:$0xf]
      %v1060 = vld [vmem:[%s164 + $0x20] sm:$0xf]
      %v1061 = vld [vmem:[%s164 + $0x24] sm:$0xf]
      %v1062 = vld [vmem:[%s164 + $0x28] sm:$0xf]
      %v1063 = vld [vmem:[%s164 + $0x2c] sm:$0xf]
      %v1064 = vld [vmem:[%s164 + $0x30] sm:$0xf]
      %v1065 = vld [vmem:[%s164 + $0x34] sm:$0xf]
      %v1066 = vld [vmem:[%s164 + $0x38] sm:$0xf]
      %v1067 = vld [vmem:[%s164 + $0x3c] sm:$0xf]
      %v1068 = vld [vmem:[%s164 + $0x40] sm:$0xf]
      %v1069 = vld [vmem:[%s164 + $0x44] sm:$0xf]
      %v1070 = vld [vmem:[%s164 + $0x48] sm:$0xf]
      %v1071 = vld [vmem:[%s164 + $0x4c] sm:$0xf]
      %v1072 = vld [vmem:[%s164 + $0x50] sm:$0xf]
      %v1073 = vld [vmem:[%s164 + $0x54] sm:$0xf]
      %v1074 = vld [vmem:[%s164 + $0x58] sm:$0xf]
      %v1075 = vld [vmem:[%s164 + $0x5c] sm:$0xf]
      %v1076 = vld [vmem:[%s164 + $0x60] sm:$0xf]
      %v1077 = vld [vmem:[%s164 + $0x64] sm:$0xf]
      %v1078 = vld [vmem:[%s164 + $0x68] sm:$0xf]
      %v1079 = vld [vmem:[%s164 + $0x6c] sm:$0xf]
      %v1080 = vld [vmem:[%s164 + $0x70] sm:$0xf]
      %v1081 = vld [vmem:[%s164 + $0x74] sm:$0xf]
      %v1082 = vld [vmem:[%s164 + $0x78] sm:$0xf]
      %v1083 = vld [vmem:[%s164 + $0x7c] sm:$0xf]
      %v1084 = vld [vmem:[%s164 + $0x80] sm:$0xf]
      %v1085 = vld [vmem:[%s164 + $0x84] sm:$0xf]
      %v1086 = vld [vmem:[%s164 + $0x88] sm:$0xf]
      %v1087 = vld [vmem:[%s164 + $0x8c] sm:$0xf]
      %v1088 = vld [vmem:[%s164 + $0x90] sm:$0xf]
      %v1089 = vld [vmem:[%s164 + $0x94] sm:$0xf]
      %v1090 = vld [vmem:[%s164 + $0x98] sm:$0x3]
      %v1128 = vunpack.c.l.b16 %v1054
      %v1129 = vunpack.c.l.b16 %v1055
      %v1130 = vunpack.c.l.b16 %v1056
      %v1131 = vunpack.c.l.b16 %v1057
      %v1132 = vunpack.c.l.b16 %v1058
      %v1133 = vunpack.c.l.b16 %v1059
      %v1134 = vunpack.c.l.b16 %v1060
      %v1135 = vunpack.c.l.b16 %v1061
      %v1136 = vunpack.c.l.b16 %v1062
      %v1137 = vunpack.c.l.b16 %v1063
      %v1138 = vunpack.c.l.b16 %v1064
      %v1139 = vunpack.c.l.b16 %v1065
      %v1140 = vunpack.c.l.b16 %v1066
      %v1141 = vunpack.c.l.b16 %v1067
      %v1142 = vunpack.c.l.b16 %v1068
      %v1143 = vunpack.c.l.b16 %v1069
      %v1144 = vunpack.c.l.b16 %v1070
      %v1145 = vunpack.c.l.b16 %v1071
      %v1146 = vunpack.c.l.b16 %v1072
      %v1147 = vunpack.c.l.b16 %v1073
      %v1148 = vunpack.c.l.b16 %v1074
      %v1149 = vunpack.c.l.b16 %v1075
      %v1150 = vunpack.c.l.b16 %v1076
      %v1151 = vunpack.c.l.b16 %v1077
      %v1152 = vunpack.c.l.b16 %v1078
      %v1153 = vunpack.c.l.b16 %v1079
      %v1154 = vunpack.c.l.b16 %v1080
      %v1155 = vunpack.c.l.b16 %v1081
      %v1156 = vunpack.c.l.b16 %v1082
      %v1157 = vunpack.c.l.b16 %v1083
      %v1158 = vunpack.c.l.b16 %v1084
      %v1159 = vunpack.c.l.b16 %v1085
      %v1160 = vunpack.c.l.b16 %v1086
      %v1161 = vunpack.c.l.b16 %v1087
      %v1162 = vunpack.c.l.b16 %v1088
      %v1163 = vunpack.c.l.b16 %v1089
      %v1164 = vunpack.c.l.b16 %v1090
      %v1165 = vpack.c.b16 %v1129, %v1128
      %v1166 = vpack.c.b16 %v1131, %v1130
      %v1167 = vpack.c.b16 %v1133, %v1132
      %v1168 = vpack.c.b16 %v1135, %v1134
      %v1169 = vpack.c.b16 %v1137, %v1136
      %v1170 = vpack.c.b16 %v1139, %v1138
      %v1171 = vpack.c.b16 %v1141, %v1140
      %v1172 = vpack.c.b16 %v1143, %v1142
      %v1173 = vpack.c.b16 %v1145, %v1144
      %v1174 = vpack.c.b16 %v1147, %v1146
      %v1175 = vpack.c.b16 %v1149, %v1148
      %v1176 = vpack.c.b16 %v1151, %v1150
      %v1177 = vpack.c.b16 %v1153, %v1152
      %v1178 = vpack.c.b16 %v1155, %v1154
      %v1179 = vpack.c.b16 %v1157, %v1156
      %v1180 = vpack.c.b16 %v1159, %v1158
      %v1181 = vpack.c.b16 %v1161, %v1160
      %v1182 = vpack.c.b16 %v1163, %v1162
      %v1183 = vpack.c.b16 %v1164, %v1164
      %vm1184 = vsmask.f32 6400
      %v1186 = vshrl.u32 %v1165, 16
      %v1188 = vrot.slane %v1186, 1
      %v1189 = vshll.u32 %v1165, 16
      %v1191 = vrot.slane %v1189, 2
      %v1192 = vor.u32 %v1188, %v1191
      %v1194 = vshrl.u32 %v1166, 16
      %v1196 = vrot.slane %v1194, 1
      %v1197 = vshll.u32 %v1166, 16
      %v1199 = vrot.slane %v1197, 2
      %v1200 = vor.u32 %v1196, %v1199
      %v1201 = vsel %vm1184, %v1192, %v1200
      %v1203 = vshrl.u32 %v1167, 16
      %v1205 = vrot.slane %v1203, 1
      %v1206 = vshll.u32 %v1167, 16
      %v1208 = vrot.slane %v1206, 2
      %v1209 = vor.u32 %v1205, %v1208
      %v1210 = vsel %vm1184, %v1200, %v1209
      %v1212 = vshrl.u32 %v1168, 16
      %v1214 = vrot.slane %v1212, 1
      %v1215 = vshll.u32 %v1168, 16
      %v1217 = vrot.slane %v1215, 2
      %v1218 = vor.u32 %v1214, %v1217
      %v1219 = vsel %vm1184, %v1209, %v1218
      %v1221 = vshrl.u32 %v1169, 16
      %v1223 = vrot.slane %v1221, 1
      %v1224 = vshll.u32 %v1169, 16
      %v1226 = vrot.slane %v1224, 2
      %v1227 = vor.u32 %v1223, %v1226
      %v1228 = vsel %vm1184, %v1218, %v1227
      %v1230 = vshrl.u32 %v1170, 16
      %v1232 = vrot.slane %v1230, 1
      %v1233 = vshll.u32 %v1170, 16
      %v1235 = vrot.slane %v1233, 2
      %v1236 = vor.u32 %v1232, %v1235
      %v1237 = vsel %vm1184, %v1227, %v1236
      %v1239 = vshrl.u32 %v1171, 16
      %v1241 = vrot.slane %v1239, 1
      %v1242 = vshll.u32 %v1171, 16
      %v1244 = vrot.slane %v1242, 2
      %v1245 = vor.u32 %v1241, %v1244
      %v1246 = vsel %vm1184, %v1236, %v1245
      %v1248 = vshrl.u32 %v1172, 16
      %v1250 = vrot.slane %v1248, 1
      %v1251 = vshll.u32 %v1172, 16
      %v1253 = vrot.slane %v1251, 2
      %v1254 = vor.u32 %v1250, %v1253
      %v1255 = vsel %vm1184, %v1245, %v1254
      %v1257 = vshrl.u32 %v1173, 16
      %v1259 = vrot.slane %v1257, 1
      %v1260 = vshll.u32 %v1173, 16
      %v1262 = vrot.slane %v1260, 2
      %v1263 = vor.u32 %v1259, %v1262
      %v1264 = vsel %vm1184, %v1254, %v1263
      %v1266 = vshrl.u32 %v1174, 16
      %v1268 = vrot.slane %v1266, 1
      %v1269 = vshll.u32 %v1174, 16
      %v1271 = vrot.slane %v1269, 2
      %v1272 = vor.u32 %v1268, %v1271
      %v1273 = vsel %vm1184, %v1263, %v1272
      %v1275 = vshrl.u32 %v1175, 16
      %v1277 = vrot.slane %v1275, 1
      %v1278 = vshll.u32 %v1175, 16
      %v1280 = vrot.slane %v1278, 2
      %v1281 = vor.u32 %v1277, %v1280
      %v1282 = vsel %vm1184, %v1272, %v1281
      %v1284 = vshrl.u32 %v1176, 16
      %v1286 = vrot.slane %v1284, 1
      %v1287 = vshll.u32 %v1176, 16
      %v1289 = vrot.slane %v1287, 2
      %v1290 = vor.u32 %v1286, %v1289
      %v1291 = vsel %vm1184, %v1281, %v1290
      %v1293 = vshrl.u32 %v1177, 16
      %v1295 = vrot.slane %v1293, 1
      %v1296 = vshll.u32 %v1177, 16
      %v1298 = vrot.slane %v1296, 2
      %v1299 = vor.u32 %v1295, %v1298
      %v1300 = vsel %vm1184, %v1290, %v1299
      %v1302 = vshrl.u32 %v1178, 16
      %v1304 = vrot.slane %v1302, 1
      %v1305 = vshll.u32 %v1178, 16
      %v1307 = vrot.slane %v1305, 2
      %v1308 = vor.u32 %v1304, %v1307
      %v1309 = vsel %vm1184, %v1299, %v1308
      %v1311 = vshrl.u32 %v1179, 16
      %v1313 = vrot.slane %v1311, 1
      %v1314 = vshll.u32 %v1179, 16
      %v1316 = vrot.slane %v1314, 2
      %v1317 = vor.u32 %v1313, %v1316
      %v1318 = vsel %vm1184, %v1308, %v1317
      %v1320 = vshrl.u32 %v1180, 16
      %v1322 = vrot.slane %v1320, 1
      %v1323 = vshll.u32 %v1180, 16
      %v1325 = vrot.slane %v1323, 2
      %v1326 = vor.u32 %v1322, %v1325
      %v1327 = vsel %vm1184, %v1317, %v1326
      %v1329 = vshrl.u32 %v1181, 16
      %v1331 = vrot.slane %v1329, 1
      %v1332 = vshll.u32 %v1181, 16
      %v1334 = vrot.slane %v1332, 2
      %v1335 = vor.u32 %v1331, %v1334
      %v1336 = vsel %vm1184, %v1326, %v1335
      %v1338 = vshrl.u32 %v1182, 16
      %v1340 = vrot.slane %v1338, 1
      %v1341 = vshll.u32 %v1182, 16
      %v1343 = vrot.slane %v1341, 2
      %v1344 = vor.u32 %v1340, %v1343
      %v1345 = vsel %vm1184, %v1335, %v1344
      %v1347 = vshrl.u32 %v1183, 16
      %v1349 = vrot.slane %v1347, 1
      %v1350 = vshll.u32 %v1183, 16
      %v1352 = vrot.slane %v1350, 2
      %v1353 = vor.u32 %v1349, %v1352
      %v1354 = vsel %vm1184, %v1344, %v1353
      %1373 = vst [vmem:[#allocation2 + $0x20] sm:$0xff] %v1201
      %1374 = vst [vmem:[#allocation2 + $0x68] sm:$0xff] %v1210
      %1375 = vst [vmem:[#allocation2 + $0xb0] sm:$0xff] %v1219
      %1376 = vst [vmem:[#allocation2 + $0xf8] sm:$0xff] %v1228
      %1377 = vst [vmem:[#allocation2 + $0x140] sm:$0xff] %v1237
      %1378 = vst [vmem:[#allocation2 + $0x188] sm:$0xff] %v1246
      %1379 = vst [vmem:[#allocation2 + $0x1d0] sm:$0xff] %v1255
      %1380 = vst [vmem:[#allocation2 + $0x218] sm:$0xff] %v1264
      %1381 = vst [vmem:[#allocation2 + $0x260] sm:$0xff] %v1273
      %1382 = vst [vmem:[#allocation2 + $0x2a8] sm:$0xff] %v1282
      %1383 = vst [vmem:[#allocation2 + $0x2f0] sm:$0xff] %v1291
      %1384 = vst [vmem:[#allocation2 + $0x338] sm:$0xff] %v1300
      %1385 = vst [vmem:[#allocation2 + $0x380] sm:$0xff] %v1309
      %1386 = vst [vmem:[#allocation2 + $0x3c8] sm:$0xff] %v1318
      %1387 = vst [vmem:[#allocation2 + $0x410] sm:$0xff] %v1327
      %1388 = vst [vmem:[#allocation2 + $0x458] sm:$0xff] %v1336
      %1389 = vst [vmem:[#allocation2 + $0x4a0] sm:$0xff] %v1345
      %1390 = vst [vmem:[#allocation2 + $0x4e8] sm:$0xff] %v1354
      %v1391 = vld [vmem:[%s164 + $0x8] sm:$0xc]
      %v1392 = vld [vmem:[%s164 + $0xc] sm:$0xf]
      %v1393 = vld [vmem:[%s164 + $0x10] sm:$0xf]
      %v1394 = vld [vmem:[%s164 + $0x14] sm:$0xf]
      %v1395 = vld [vmem:[%s164 + $0x18] sm:$0xf]
      %v1396 = vld [vmem:[%s164 + $0x1c] sm:$0xf]
      %v1397 = vld [vmem:[%s164 + $0x20] sm:$0xf]
      %v1398 = vld [vmem:[%s164 + $0x24] sm:$0xf]
      %v1399 = vld [vmem:[%s164 + $0x28] sm:$0xf]
      %v1400 = vld [vmem:[%s164 + $0x2c] sm:$0xf]
      %v1401 = vld [vmem:[%s164 + $0x30] sm:$0xf]
      %v1402 = vld [vmem:[%s164 + $0x34] sm:$0xf]
      %v1403 = vld [vmem:[%s164 + $0x38] sm:$0xf]
      %v1404 = vld [vmem:[%s164 + $0x3c] sm:$0xf]
      %v1405 = vld [vmem:[%s164 + $0x40] sm:$0xf]
      %v1406 = vld [vmem:[%s164 + $0x44] sm:$0xf]
      %v1407 = vld [vmem:[%s164 + $0x48] sm:$0xf]
      %v1408 = vld [vmem:[%s164 + $0x4c] sm:$0xf]
      %v1409 = vld [vmem:[%s164 + $0x50] sm:$0xf]
      %v1410 = vld [vmem:[%s164 + $0x54] sm:$0xf]
      %v1411 = vld [vmem:[%s164 + $0x58] sm:$0xf]
      %v1412 = vld [vmem:[%s164 + $0x5c] sm:$0xf]
      %v1413 = vld [vmem:[%s164 + $0x60] sm:$0xf]
      %v1414 = vld [vmem:[%s164 + $0x64] sm:$0xf]
      %v1415 = vld [vmem:[%s164 + $0x68] sm:$0xf]
      %v1416 = vld [vmem:[%s164 + $0x6c] sm:$0xf]
      %v1417 = vld [vmem:[%s164 + $0x70] sm:$0xf]
      %v1418 = vld [vmem:[%s164 + $0x74] sm:$0xf]
      %v1419 = vld [vmem:[%s164 + $0x78] sm:$0xf]
      %v1420 = vld [vmem:[%s164 + $0x7c] sm:$0xf]
      %v1421 = vld [vmem:[%s164 + $0x80] sm:$0xf]
      %v1422 = vld [vmem:[%s164 + $0x84] sm:$0xf]
      %v1423 = vld [vmem:[%s164 + $0x88] sm:$0xf]
      %v1424 = vld [vmem:[%s164 + $0x8c] sm:$0xf]
      %v1425 = vld [vmem:[%s164 + $0x90] sm:$0xf]
      %v1426 = vld [vmem:[%s164 + $0x94] sm:$0xf]
      %v1427 = vld [vmem:[%s164 + $0x98] sm:$0x3]
      %v1465 = vunpack.c.l.b16 %v1391
      %v1466 = vunpack.c.l.b16 %v1392
      %v1467 = vunpack.c.l.b16 %v1393
      %v1468 = vunpack.c.l.b16 %v1394
      %v1469 = vunpack.c.l.b16 %v1395
      %v1470 = vunpack.c.l.b16 %v1396
      %v1471 = vunpack.c.l.b16 %v1397
      %v1472 = vunpack.c.l.b16 %v1398
      %v1473 = vunpack.c.l.b16 %v1399
      %v1474 = vunpack.c.l.b16 %v1400
      %v1475 = vunpack.c.l.b16 %v1401
      %v1476 = vunpack.c.l.b16 %v1402
      %v1477 = vunpack.c.l.b16 %v1403
      %v1478 = vunpack.c.l.b16 %v1404
      %v1479 = vunpack.c.l.b16 %v1405
      %v1480 = vunpack.c.l.b16 %v1406
      %v1481 = vunpack.c.l.b16 %v1407
      %v1482 = vunpack.c.l.b16 %v1408
      %v1483 = vunpack.c.l.b16 %v1409
      %v1484 = vunpack.c.l.b16 %v1410
      %v1485 = vunpack.c.l.b16 %v1411
      %v1486 = vunpack.c.l.b16 %v1412
      %v1487 = vunpack.c.l.b16 %v1413
      %v1488 = vunpack.c.l.b16 %v1414
      %v1489 = vunpack.c.l.b16 %v1415
      %v1490 = vunpack.c.l.b16 %v1416
      %v1491 = vunpack.c.l.b16 %v1417
      %v1492 = vunpack.c.l.b16 %v1418
      %v1493 = vunpack.c.l.b16 %v1419
      %v1494 = vunpack.c.l.b16 %v1420
      %v1495 = vunpack.c.l.b16 %v1421
      %v1496 = vunpack.c.l.b16 %v1422
      %v1497 = vunpack.c.l.b16 %v1423
      %v1498 = vunpack.c.l.b16 %v1424
      %v1499 = vunpack.c.l.b16 %v1425
      %v1500 = vunpack.c.l.b16 %v1426
      %v1501 = vunpack.c.l.b16 %v1427
      %v1502 = vpack.c.b16 %v1466, %v1465
      %v1503 = vpack.c.b16 %v1468, %v1467
      %v1504 = vpack.c.b16 %v1470, %v1469
      %v1505 = vpack.c.b16 %v1472, %v1471
      %v1506 = vpack.c.b16 %v1474, %v1473
      %v1507 = vpack.c.b16 %v1476, %v1475
      %v1508 = vpack.c.b16 %v1478, %v1477
      %v1509 = vpack.c.b16 %v1480, %v1479
      %v1510 = vpack.c.b16 %v1482, %v1481
      %v1511 = vpack.c.b16 %v1484, %v1483
      %v1512 = vpack.c.b16 %v1486, %v1485
      %v1513 = vpack.c.b16 %v1488, %v1487
      %v1514 = vpack.c.b16 %v1490, %v1489
      %v1515 = vpack.c.b16 %v1492, %v1491
      %v1516 = vpack.c.b16 %v1494, %v1493
      %v1517 = vpack.c.b16 %v1496, %v1495
      %v1518 = vpack.c.b16 %v1498, %v1497
      %v1519 = vpack.c.b16 %v1500, %v1499
      %v1520 = vpack.c.b16 %v1501, %v1501
      %vm1521 = vcmask 1045504
      %v1522 = vrot.slane %v1502, 2
      %v1523 = vrot.slane %v1503, 2
      %v1524 = vsel %vm1521, %v1522, %v1523
      %v1525 = vrot.slane %v1504, 2
      %v1526 = vsel %vm1521, %v1523, %v1525
      %v1527 = vrot.slane %v1505, 2
      %v1528 = vsel %vm1521, %v1525, %v1527
      %v1529 = vrot.slane %v1506, 2
      %v1530 = vsel %vm1521, %v1527, %v1529
      %v1531 = vrot.slane %v1507, 2
      %v1532 = vsel %vm1521, %v1529, %v1531
      %v1533 = vrot.slane %v1508, 2
      %v1534 = vsel %vm1521, %v1531, %v1533
      %v1535 = vrot.slane %v1509, 2
      %v1536 = vsel %vm1521, %v1533, %v1535
      %v1537 = vrot.slane %v1510, 2
      %v1538 = vsel %vm1521, %v1535, %v1537
      %v1539 = vrot.slane %v1511, 2
      %v1540 = vsel %vm1521, %v1537, %v1539
      %v1541 = vrot.slane %v1512, 2
      %v1542 = vsel %vm1521, %v1539, %v1541
      %v1543 = vrot.slane %v1513, 2
      %v1544 = vsel %vm1521, %v1541, %v1543
      %v1545 = vrot.slane %v1514, 2
      %v1546 = vsel %vm1521, %v1543, %v1545
      %v1547 = vrot.slane %v1515, 2
      %v1548 = vsel %vm1521, %v1545, %v1547
      %v1549 = vrot.slane %v1516, 2
      %v1550 = vsel %vm1521, %v1547, %v1549
      %v1551 = vrot.slane %v1517, 2
      %v1552 = vsel %vm1521, %v1549, %v1551
      %v1553 = vrot.slane %v1518, 2
      %v1554 = vsel %vm1521, %v1551, %v1553
      %v1555 = vrot.slane %v1519, 2
      %v1556 = vsel %vm1521, %v1553, %v1555
      %v1557 = vrot.slane %v1520, 2
      %v1558 = vsel %vm1521, %v1555, %v1557
      %1577 = vst [vmem:[#allocation2 + $0x28] sm:$0xff] %v1524
      %1578 = vst [vmem:[#allocation2 + $0x70] sm:$0xff] %v1526
      %1579 = vst [vmem:[#allocation2 + $0xb8] sm:$0xff] %v1528
      %1580 = vst [vmem:[#allocation2 + $0x100] sm:$0xff] %v1530
      %1581 = vst [vmem:[#allocation2 + $0x148] sm:$0xff] %v1532
      %1582 = vst [vmem:[#allocation2 + $0x190] sm:$0xff] %v1534
      %1583 = vst [vmem:[#allocation2 + $0x1d8] sm:$0xff] %v1536
      %1584 = vst [vmem:[#allocation2 + $0x220] sm:$0xff] %v1538
      %1585 = vst [vmem:[#allocation2 + $0x268] sm:$0xff] %v1540
      %1586 = vst [vmem:[#allocation2 + $0x2b0] sm:$0xff] %v1542
      %1587 = vst [vmem:[#allocation2 + $0x2f8] sm:$0xff] %v1544
      %1588 = vst [vmem:[#allocation2 + $0x340] sm:$0xff] %v1546
      %1589 = vst [vmem:[#allocation2 + $0x388] sm:$0xff] %v1548
      %1590 = vst [vmem:[#allocation2 + $0x3d0] sm:$0xff] %v1550
      %1591 = vst [vmem:[#allocation2 + $0x418] sm:$0xff] %v1552
      %1592 = vst [vmem:[#allocation2 + $0x460] sm:$0xff] %v1554
      %1593 = vst [vmem:[#allocation2 + $0x4a8] sm:$0xff] %v1556
      %1594 = vst [vmem:[#allocation2 + $0x4f0] sm:$0xff] %v1558
      %v1595 = vld [vmem:[%s164 + $0x10] sm:$0xc]
      %v1596 = vld [vmem:[%s164 + $0x14] sm:$0xf]
      %v1597 = vld [vmem:[%s164 + $0x18] sm:$0xf]
      %v1598 = vld [vmem:[%s164 + $0x1c] sm:$0xf]
      %v1599 = vld [vmem:[%s164 + $0x20] sm:$0xf]
      %v1600 = vld [vmem:[%s164 + $0x24] sm:$0xf]
      %v1601 = vld [vmem:[%s164 + $0x28] sm:$0xf]
      %v1602 = vld [vmem:[%s164 + $0x2c] sm:$0xf]
      %v1603 = vld [vmem:[%s164 + $0x30] sm:$0xf]
      %v1604 = vld [vmem:[%s164 + $0x34] sm:$0xf]
      %v1605 = vld [vmem:[%s164 + $0x38] sm:$0xf]
      %v1606 = vld [vmem:[%s164 + $0x3c] sm:$0xf]
      %v1607 = vld [vmem:[%s164 + $0x40] sm:$0xf]
      %v1608 = vld [vmem:[%s164 + $0x44] sm:$0xf]
      %v1609 = vld [vmem:[%s164 + $0x48] sm:$0xf]
      %v1610 = vld [vmem:[%s164 + $0x4c] sm:$0xf]
      %v1611 = vld [vmem:[%s164 + $0x50] sm:$0xf]
      %v1612 = vld [vmem:[%s164 + $0x54] sm:$0xf]
      %v1613 = vld [vmem:[%s164 + $0x58] sm:$0xf]
      %v1614 = vld [vmem:[%s164 + $0x5c] sm:$0xf]
      %v1615 = vld [vmem:[%s164 + $0x60] sm:$0xf]
      %v1616 = vld [vmem:[%s164 + $0x64] sm:$0xf]
      %v1617 = vld [vmem:[%s164 + $0x68] sm:$0xf]
      %v1618 = vld [vmem:[%s164 + $0x6c] sm:$0xf]
      %v1619 = vld [vmem:[%s164 + $0x70] sm:$0xf]
      %v1620 = vld [vmem:[%s164 + $0x74] sm:$0xf]
      %v1621 = vld [vmem:[%s164 + $0x78] sm:$0xf]
      %v1622 = vld [vmem:[%s164 + $0x7c] sm:$0xf]
      %v1623 = vld [vmem:[%s164 + $0x80] sm:$0xf]
      %v1624 = vld [vmem:[%s164 + $0x84] sm:$0xf]
      %v1625 = vld [vmem:[%s164 + $0x88] sm:$0xf]
      %v1626 = vld [vmem:[%s164 + $0x8c] sm:$0xf]
      %v1627 = vld [vmem:[%s164 + $0x90] sm:$0xf]
      %v1628 = vld [vmem:[%s164 + $0x94] sm:$0xf]
      %v1629 = vld [vmem:[%s164 + $0x98] sm:$0xf]
      %v1630 = vld [vmem:[%s164 + $0x9c] sm:$0xf]
      %v1631 = vld [vmem:[%s164 + $0xa0] sm:$0x3]
      %v1669 = vunpack.c.l.b16 %v1595
      %v1670 = vunpack.c.l.b16 %v1596
      %v1671 = vunpack.c.l.b16 %v1597
      %v1672 = vunpack.c.l.b16 %v1598
      %v1673 = vunpack.c.l.b16 %v1599
      %v1674 = vunpack.c.l.b16 %v1600
      %v1675 = vunpack.c.l.b16 %v1601
      %v1676 = vunpack.c.l.b16 %v1602
      %v1677 = vunpack.c.l.b16 %v1603
      %v1678 = vunpack.c.l.b16 %v1604
      %v1679 = vunpack.c.l.b16 %v1605
      %v1680 = vunpack.c.l.b16 %v1606
      %v1681 = vunpack.c.l.b16 %v1607
      %v1682 = vunpack.c.l.b16 %v1608
      %v1683 = vunpack.c.l.b16 %v1609
      %v1684 = vunpack.c.l.b16 %v1610
      %v1685 = vunpack.c.l.b16 %v1611
      %v1686 = vunpack.c.l.b16 %v1612
      %v1687 = vunpack.c.l.b16 %v1613
      %v1688 = vunpack.c.l.b16 %v1614
      %v1689 = vunpack.c.l.b16 %v1615
      %v1690 = vunpack.c.l.b16 %v1616
      %v1691 = vunpack.c.l.b16 %v1617
      %v1692 = vunpack.c.l.b16 %v1618
      %v1693 = vunpack.c.l.b16 %v1619
      %v1694 = vunpack.c.l.b16 %v1620
      %v1695 = vunpack.c.l.b16 %v1621
      %v1696 = vunpack.c.l.b16 %v1622
      %v1697 = vunpack.c.l.b16 %v1623
      %v1698 = vunpack.c.l.b16 %v1624
      %v1699 = vunpack.c.l.b16 %v1625
      %v1700 = vunpack.c.l.b16 %v1626
      %v1701 = vunpack.c.l.b16 %v1627
      %v1702 = vunpack.c.l.b16 %v1628
      %v1703 = vunpack.c.l.b16 %v1629
      %v1704 = vunpack.c.l.b16 %v1630
      %v1705 = vunpack.c.l.b16 %v1631
      %v1706 = vpack.c.b16 %v1670, %v1669
      %v1707 = vpack.c.b16 %v1672, %v1671
      %v1708 = vpack.c.b16 %v1674, %v1673
      %v1709 = vpack.c.b16 %v1676, %v1675
      %v1710 = vpack.c.b16 %v1678, %v1677
      %v1711 = vpack.c.b16 %v1680, %v1679
      %v1712 = vpack.c.b16 %v1682, %v1681
      %v1713 = vpack.c.b16 %v1684, %v1683
      %v1714 = vpack.c.b16 %v1686, %v1685
      %v1715 = vpack.c.b16 %v1688, %v1687
      %v1716 = vpack.c.b16 %v1690, %v1689
      %v1717 = vpack.c.b16 %v1692, %v1691
      %v1718 = vpack.c.b16 %v1694, %v1693
      %v1719 = vpack.c.b16 %v1696, %v1695
      %v1720 = vpack.c.b16 %v1698, %v1697
      %v1721 = vpack.c.b16 %v1700, %v1699
      %v1722 = vpack.c.b16 %v1702, %v1701
      %v1723 = vpack.c.b16 %v1704, %v1703
      %v1724 = vpack.c.b16 %v1705, %v1705
      %v1725 = vrot.slane %v1706, 2
      %v1726 = vrot.slane %v1707, 2
      %v1727 = vsel %vm1521, %v1725, %v1726
      %v1728 = vrot.slane %v1708, 2
      %v1729 = vsel %vm1521, %v1726, %v1728
      %v1730 = vrot.slane %v1709, 2
      %v1731 = vsel %vm1521, %v1728, %v1730
      %v1732 = vrot.slane %v1710, 2
      %v1733 = vsel %vm1521, %v1730, %v1732
      %v1734 = vrot.slane %v1711, 2
      %v1735 = vsel %vm1521, %v1732, %v1734
      %v1736 = vrot.slane %v1712, 2
      %v1737 = vsel %vm1521, %v1734, %v1736
      %v1738 = vrot.slane %v1713, 2
      %v1739 = vsel %vm1521, %v1736, %v1738
      %v1740 = vrot.slane %v1714, 2
      %v1741 = vsel %vm1521, %v1738, %v1740
      %v1742 = vrot.slane %v1715, 2
      %v1743 = vsel %vm1521, %v1740, %v1742
      %v1744 = vrot.slane %v1716, 2
      %v1745 = vsel %vm1521, %v1742, %v1744
      %v1746 = vrot.slane %v1717, 2
      %v1747 = vsel %vm1521, %v1744, %v1746
      %v1748 = vrot.slane %v1718, 2
      %v1749 = vsel %vm1521, %v1746, %v1748
      %v1750 = vrot.slane %v1719, 2
      %v1751 = vsel %vm1521, %v1748, %v1750
      %v1752 = vrot.slane %v1720, 2
      %v1753 = vsel %vm1521, %v1750, %v1752
      %v1754 = vrot.slane %v1721, 2
      %v1755 = vsel %vm1521, %v1752, %v1754
      %v1756 = vrot.slane %v1722, 2
      %v1757 = vsel %vm1521, %v1754, %v1756
      %v1758 = vrot.slane %v1723, 2
      %v1759 = vsel %vm1521, %v1756, %v1758
      %v1760 = vrot.slane %v1724, 2
      %v1761 = vsel %vm1521, %v1758, %v1760
      %1780 = vst [vmem:[#allocation2 + $0x30] sm:$0xff] %v1727
      %1781 = vst [vmem:[#allocation2 + $0x78] sm:$0xff] %v1729
      %1782 = vst [vmem:[#allocation2 + $0xc0] sm:$0xff] %v1731
      %1783 = vst [vmem:[#allocation2 + $0x108] sm:$0xff] %v1733
      %1784 = vst [vmem:[#allocation2 + $0x150] sm:$0xff] %v1735
      %1785 = vst [vmem:[#allocation2 + $0x198] sm:$0xff] %v1737
      %1786 = vst [vmem:[#allocation2 + $0x1e0] sm:$0xff] %v1739
      %1787 = vst [vmem:[#allocation2 + $0x228] sm:$0xff] %v1741
      %1788 = vst [vmem:[#allocation2 + $0x270] sm:$0xff] %v1743
      %1789 = vst [vmem:[#allocation2 + $0x2b8] sm:$0xff] %v1745
      %1790 = vst [vmem:[#allocation2 + $0x300] sm:$0xff] %v1747
      %1791 = vst [vmem:[#allocation2 + $0x348] sm:$0xff] %v1749
      %1792 = vst [vmem:[#allocation2 + $0x390] sm:$0xff] %v1751
      %1793 = vst [vmem:[#allocation2 + $0x3d8] sm:$0xff] %v1753
      %1794 = vst [vmem:[#allocation2 + $0x420] sm:$0xff] %v1755
      %1795 = vst [vmem:[#allocation2 + $0x468] sm:$0xff] %v1757
      %1796 = vst [vmem:[#allocation2 + $0x4b0] sm:$0xff] %v1759
      %1797 = vst [vmem:[#allocation2 + $0x4f8] sm:$0xff] %v1761
      %v1798 = vld [vmem:[%s164 + $0x10] sm:$0xc]
      %v1799 = vld [vmem:[%s164 + $0x14] sm:$0xf]
      %v1800 = vld [vmem:[%s164 + $0x18] sm:$0xf]
      %v1801 = vld [vmem:[%s164 + $0x1c] sm:$0xf]
      %v1802 = vld [vmem:[%s164 + $0x20] sm:$0xf]
      %v1803 = vld [vmem:[%s164 + $0x24] sm:$0xf]
      %v1804 = vld [vmem:[%s164 + $0x28] sm:$0xf]
      %v1805 = vld [vmem:[%s164 + $0x2c] sm:$0xf]
      %v1806 = vld [vmem:[%s164 + $0x30] sm:$0xf]
      %v1807 = vld [vmem:[%s164 + $0x34] sm:$0xf]
      %v1808 = vld [vmem:[%s164 + $0x38] sm:$0xf]
      %v1809 = vld [vmem:[%s164 + $0x3c] sm:$0xf]
      %v1810 = vld [vmem:[%s164 + $0x40] sm:$0xf]
      %v1811 = vld [vmem:[%s164 + $0x44] sm:$0xf]
      %v1812 = vld [vmem:[%s164 + $0x48] sm:$0xf]
      %v1813 = vld [vmem:[%s164 + $0x4c] sm:$0xf]
      %v1814 = vld [vmem:[%s164 + $0x50] sm:$0xf]
      %v1815 = vld [vmem:[%s164 + $0x54] sm:$0xf]
      %v1816 = vld [vmem:[%s164 + $0x58] sm:$0xf]
      %v1817 = vld [vmem:[%s164 + $0x5c] sm:$0xf]
      %v1818 = vld [vmem:[%s164 + $0x60] sm:$0xf]
      %v1819 = vld [vmem:[%s164 + $0x64] sm:$0xf]
      %v1820 = vld [vmem:[%s164 + $0x68] sm:$0xf]
      %v1821 = vld [vmem:[%s164 + $0x6c] sm:$0xf]
      %v1822 = vld [vmem:[%s164 + $0x70] sm:$0xf]
      %v1823 = vld [vmem:[%s164 + $0x74] sm:$0xf]
      %v1824 = vld [vmem:[%s164 + $0x78] sm:$0xf]
      %v1825 = vld [vmem:[%s164 + $0x7c] sm:$0xf]
      %v1826 = vld [vmem:[%s164 + $0x80] sm:$0xf]
      %v1827 = vld [vmem:[%s164 + $0x84] sm:$0xf]
      %v1828 = vld [vmem:[%s164 + $0x88] sm:$0xf]
      %v1829 = vld [vmem:[%s164 + $0x8c] sm:$0xf]
      %v1830 = vld [vmem:[%s164 + $0x90] sm:$0xf]
      %v1831 = vld [vmem:[%s164 + $0x94] sm:$0xf]
      %v1832 = vld [vmem:[%s164 + $0x98] sm:$0xf]
      %v1833 = vld [vmem:[%s164 + $0x9c] sm:$0xf]
      %v1834 = vld [vmem:[%s164 + $0xa0] sm:$0x7]
      %v1872 = vunpack.c.l.b16 %v1798
      %v1873 = vunpack.c.l.b16 %v1799
      %v1874 = vunpack.c.l.b16 %v1800
      %v1875 = vunpack.c.l.b16 %v1801
      %v1876 = vunpack.c.l.b16 %v1802
      %v1877 = vunpack.c.l.b16 %v1803
      %v1878 = vunpack.c.l.b16 %v1804
      %v1879 = vunpack.c.l.b16 %v1805
      %v1880 = vunpack.c.l.b16 %v1806
      %v1881 = vunpack.c.l.b16 %v1807
      %v1882 = vunpack.c.l.b16 %v1808
      %v1883 = vunpack.c.l.b16 %v1809
      %v1884 = vunpack.c.l.b16 %v1810
      %v1885 = vunpack.c.l.b16 %v1811
      %v1886 = vunpack.c.l.b16 %v1812
      %v1887 = vunpack.c.l.b16 %v1813
      %v1888 = vunpack.c.l.b16 %v1814
      %v1889 = vunpack.c.l.b16 %v1815
      %v1890 = vunpack.c.l.b16 %v1816
      %v1891 = vunpack.c.l.b16 %v1817
      %v1892 = vunpack.c.l.b16 %v1818
      %v1893 = vunpack.c.l.b16 %v1819
      %v1894 = vunpack.c.l.b16 %v1820
      %v1895 = vunpack.c.l.b16 %v1821
      %v1896 = vunpack.c.l.b16 %v1822
      %v1897 = vunpack.c.l.b16 %v1823
      %v1898 = vunpack.c.l.b16 %v1824
      %v1899 = vunpack.c.l.b16 %v1825
      %v1900 = vunpack.c.l.b16 %v1826
      %v1901 = vunpack.c.l.b16 %v1827
      %v1902 = vunpack.c.l.b16 %v1828
      %v1903 = vunpack.c.l.b16 %v1829
      %v1904 = vunpack.c.l.b16 %v1830
      %v1905 = vunpack.c.l.b16 %v1831
      %v1906 = vunpack.c.l.b16 %v1832
      %v1907 = vunpack.c.l.b16 %v1833
      %v1908 = vunpack.c.l.b16 %v1834
      %v1909 = vpack.c.b16 %v1873, %v1872
      %v1910 = vpack.c.b16 %v1875, %v1874
      %v1911 = vpack.c.b16 %v1877, %v1876
      %v1912 = vpack.c.b16 %v1879, %v1878
      %v1913 = vpack.c.b16 %v1881, %v1880
      %v1914 = vpack.c.b16 %v1883, %v1882
      %v1915 = vpack.c.b16 %v1885, %v1884
      %v1916 = vpack.c.b16 %v1887, %v1886
      %v1917 = vpack.c.b16 %v1889, %v1888
      %v1918 = vpack.c.b16 %v1891, %v1890
      %v1919 = vpack.c.b16 %v1893, %v1892
      %v1920 = vpack.c.b16 %v1895, %v1894
      %v1921 = vpack.c.b16 %v1897, %v1896
      %v1922 = vpack.c.b16 %v1899, %v1898
      %v1923 = vpack.c.b16 %v1901, %v1900
      %v1924 = vpack.c.b16 %v1903, %v1902
      %v1925 = vpack.c.b16 %v1905, %v1904
      %v1926 = vpack.c.b16 %v1907, %v1906
      %v1927 = vpack.c.b16 %v1908, %v1908
      %vm1928 = vsmask.f32 5376
      %v1930 = vshrl.u32 %v1909, 16
      %v1932 = vrot.slane %v1930, 2
      %v1933 = vshll.u32 %v1909, 16
      %v1935 = vrot.slane %v1933, 3
      %v1936 = vor.u32 %v1932, %v1935
      %v1938 = vshrl.u32 %v1910, 16
      %v1940 = vrot.slane %v1938, 2
      %v1941 = vshll.u32 %v1910, 16
      %v1943 = vrot.slane %v1941, 3
      %v1944 = vor.u32 %v1940, %v1943
      %v1945 = vsel %vm1928, %v1936, %v1944
      %v1947 = vshrl.u32 %v1911, 16
      %v1949 = vrot.slane %v1947, 2
      %v1950 = vshll.u32 %v1911, 16
      %v1952 = vrot.slane %v1950, 3
      %v1953 = vor.u32 %v1949, %v1952
      %v1954 = vsel %vm1928, %v1944, %v1953
      %v1956 = vshrl.u32 %v1912, 16
      %v1958 = vrot.slane %v1956, 2
      %v1959 = vshll.u32 %v1912, 16
      %v1961 = vrot.slane %v1959, 3
      %v1962 = vor.u32 %v1958, %v1961
      %v1963 = vsel %vm1928, %v1953, %v1962
      %v1965 = vshrl.u32 %v1913, 16
      %v1967 = vrot.slane %v1965, 2
      %v1968 = vshll.u32 %v1913, 16
      %v1970 = vrot.slane %v1968, 3
      %v1971 = vor.u32 %v1967, %v1970
      %v1972 = vsel %vm1928, %v1962, %v1971
      %v1974 = vshrl.u32 %v1914, 16
      %v1976 = vrot.slane %v1974, 2
      %v1977 = vshll.u32 %v1914, 16
      %v1979 = vrot.slane %v1977, 3
      %v1980 = vor.u32 %v1976, %v1979
      %v1981 = vsel %vm1928, %v1971, %v1980
      %v1983 = vshrl.u32 %v1915, 16
      %v1985 = vrot.slane %v1983, 2
      %v1986 = vshll.u32 %v1915, 16
      %v1988 = vrot.slane %v1986, 3
      %v1989 = vor.u32 %v1985, %v1988
      %v1990 = vsel %vm1928, %v1980, %v1989
      %v1992 = vshrl.u32 %v1916, 16
      %v1994 = vrot.slane %v1992, 2
      %v1995 = vshll.u32 %v1916, 16
      %v1997 = vrot.slane %v1995, 3
      %v1998 = vor.u32 %v1994, %v1997
      %v1999 = vsel %vm1928, %v1989, %v1998
      %v2001 = vshrl.u32 %v1917, 16
      %v2003 = vrot.slane %v2001, 2
      %v2004 = vshll.u32 %v1917, 16
      %v2006 = vrot.slane %v2004, 3
      %v2007 = vor.u32 %v2003, %v2006
      %v2008 = vsel %vm1928, %v1998, %v2007
      %v2010 = vshrl.u32 %v1918, 16
      %v2012 = vrot.slane %v2010, 2
      %v2013 = vshll.u32 %v1918, 16
      %v2015 = vrot.slane %v2013, 3
      %v2016 = vor.u32 %v2012, %v2015
      %v2017 = vsel %vm1928, %v2007, %v2016
      %v2019 = vshrl.u32 %v1919, 16
      %v2021 = vrot.slane %v2019, 2
      %v2022 = vshll.u32 %v1919, 16
      %v2024 = vrot.slane %v2022, 3
      %v2025 = vor.u32 %v2021, %v2024
      %v2026 = vsel %vm1928, %v2016, %v2025
      %v2028 = vshrl.u32 %v1920, 16
      %v2030 = vrot.slane %v2028, 2
      %v2031 = vshll.u32 %v1920, 16
      %v2033 = vrot.slane %v2031, 3
      %v2034 = vor.u32 %v2030, %v2033
      %v2035 = vsel %vm1928, %v2025, %v2034
      %v2037 = vshrl.u32 %v1921, 16
      %v2039 = vrot.slane %v2037, 2
      %v2040 = vshll.u32 %v1921, 16
      %v2042 = vrot.slane %v2040, 3
      %v2043 = vor.u32 %v2039, %v2042
      %v2044 = vsel %vm1928, %v2034, %v2043
      %v2046 = vshrl.u32 %v1922, 16
      %v2048 = vrot.slane %v2046, 2
      %v2049 = vshll.u32 %v1922, 16
      %v2051 = vrot.slane %v2049, 3
      %v2052 = vor.u32 %v2048, %v2051
      %v2053 = vsel %vm1928, %v2043, %v2052
      %v2055 = vshrl.u32 %v1923, 16
      %v2057 = vrot.slane %v2055, 2
      %v2058 = vshll.u32 %v1923, 16
      %v2060 = vrot.slane %v2058, 3
      %v2061 = vor.u32 %v2057, %v2060
      %v2062 = vsel %vm1928, %v2052, %v2061
      %v2064 = vshrl.u32 %v1924, 16
      %v2066 = vrot.slane %v2064, 2
      %v2067 = vshll.u32 %v1924, 16
      %v2069 = vrot.slane %v2067, 3
      %v2070 = vor.u32 %v2066, %v2069
      %v2071 = vsel %vm1928, %v2061, %v2070
      %v2073 = vshrl.u32 %v1925, 16
      %v2075 = vrot.slane %v2073, 2
      %v2076 = vshll.u32 %v1925, 16
      %v2078 = vrot.slane %v2076, 3
      %v2079 = vor.u32 %v2075, %v2078
      %v2080 = vsel %vm1928, %v2070, %v2079
      %v2082 = vshrl.u32 %v1926, 16
      %v2084 = vrot.slane %v2082, 2
      %v2085 = vshll.u32 %v1926, 16
      %v2087 = vrot.slane %v2085, 3
      %v2088 = vor.u32 %v2084, %v2087
      %v2089 = vsel %vm1928, %v2079, %v2088
      %v2091 = vshrl.u32 %v1927, 16
      %v2093 = vrot.slane %v2091, 2
      %v2094 = vshll.u32 %v1927, 16
      %v2096 = vrot.slane %v2094, 3
      %v2097 = vor.u32 %v2093, %v2096
      %v2098 = vsel %vm1928, %v2088, %v2097
      %2117 = vst [vmem:[#allocation2 + $0x38] sm:$0xff] %v1945
      %2118 = vst [vmem:[#allocation2 + $0x80] sm:$0xff] %v1954
      %2119 = vst [vmem:[#allocation2 + $0xc8] sm:$0xff] %v1963
      %2120 = vst [vmem:[#allocation2 + $0x110] sm:$0xff] %v1972
      %2121 = vst [vmem:[#allocation2 + $0x158] sm:$0xff] %v1981
      %2122 = vst [vmem:[#allocation2 + $0x1a0] sm:$0xff] %v1990
      %2123 = vst [vmem:[#allocation2 + $0x1e8] sm:$0xff] %v1999
      %2124 = vst [vmem:[#allocation2 + $0x230] sm:$0xff] %v2008
      %2125 = vst [vmem:[#allocation2 + $0x278] sm:$0xff] %v2017
      %2126 = vst [vmem:[#allocation2 + $0x2c0] sm:$0xff] %v2026
      %2127 = vst [vmem:[#allocation2 + $0x308] sm:$0xff] %v2035
      %2128 = vst [vmem:[#allocation2 + $0x350] sm:$0xff] %v2044
      %2129 = vst [vmem:[#allocation2 + $0x398] sm:$0xff] %v2053
      %2130 = vst [vmem:[#allocation2 + $0x3e0] sm:$0xff] %v2062
      %2131 = vst [vmem:[#allocation2 + $0x428] sm:$0xff] %v2071
      %2132 = vst [vmem:[#allocation2 + $0x470] sm:$0xff] %v2080
      %2133 = vst [vmem:[#allocation2 + $0x4b8] sm:$0xff] %v2089
      %2134 = vst [vmem:[#allocation2 + $0x500] sm:$0xff] %v2098
      %v2135 = vld [vmem:[%s164 + $0x10] sm:$0x8]
      %v2136 = vld [vmem:[%s164 + $0x14] sm:$0xf]
      %v2137 = vld [vmem:[%s164 + $0x18] sm:$0xf]
      %v2138 = vld [vmem:[%s164 + $0x1c] sm:$0xf]
      %v2139 = vld [vmem:[%s164 + $0x20] sm:$0xf]
      %v2140 = vld [vmem:[%s164 + $0x24] sm:$0xf]
      %v2141 = vld [vmem:[%s164 + $0x28] sm:$0xf]
      %v2142 = vld [vmem:[%s164 + $0x2c] sm:$0xf]
      %v2143 = vld [vmem:[%s164 + $0x30] sm:$0xf]
      %v2144 = vld [vmem:[%s164 + $0x34] sm:$0xf]
      %v2145 = vld [vmem:[%s164 + $0x38] sm:$0xf]
      %v2146 = vld [vmem:[%s164 + $0x3c] sm:$0xf]
      %v2147 = vld [vmem:[%s164 + $0x40] sm:$0xf]
      %v2148 = vld [vmem:[%s164 + $0x44] sm:$0xf]
      %v2149 = vld [vmem:[%s164 + $0x48] sm:$0xf]
      %v2150 = vld [vmem:[%s164 + $0x4c] sm:$0xf]
      %v2151 = vld [vmem:[%s164 + $0x50] sm:$0xf]
      %v2152 = vld [vmem:[%s164 + $0x54] sm:$0xf]
      %v2153 = vld [vmem:[%s164 + $0x58] sm:$0xf]
      %v2154 = vld [vmem:[%s164 + $0x5c] sm:$0xf]
      %v2155 = vld [vmem:[%s164 + $0x60] sm:$0xf]
      %v2156 = vld [vmem:[%s164 + $0x64] sm:$0xf]
      %v2157 = vld [vmem:[%s164 + $0x68] sm:$0xf]
      %v2158 = vld [vmem:[%s164 + $0x6c] sm:$0xf]
      %v2159 = vld [vmem:[%s164 + $0x70] sm:$0xf]
      %v2160 = vld [vmem:[%s164 + $0x74] sm:$0xf]
      %v2161 = vld [vmem:[%s164 + $0x78] sm:$0xf]
      %v2162 = vld [vmem:[%s164 + $0x7c] sm:$0xf]
      %v2163 = vld [vmem:[%s164 + $0x80] sm:$0xf]
      %v2164 = vld [vmem:[%s164 + $0x84] sm:$0xf]
      %v2165 = vld [vmem:[%s164 + $0x88] sm:$0xf]
      %v2166 = vld [vmem:[%s164 + $0x8c] sm:$0xf]
      %v2167 = vld [vmem:[%s164 + $0x90] sm:$0xf]
      %v2168 = vld [vmem:[%s164 + $0x94] sm:$0xf]
      %v2169 = vld [vmem:[%s164 + $0x98] sm:$0xf]
      %v2170 = vld [vmem:[%s164 + $0x9c] sm:$0xf]
      %v2171 = vld [vmem:[%s164 + $0xa0] sm:$0x7]
      %v2209 = vunpack.c.l.b16 %v2135
      %v2210 = vunpack.c.l.b16 %v2136
      %v2211 = vunpack.c.l.b16 %v2137
      %v2212 = vunpack.c.l.b16 %v2138
      %v2213 = vunpack.c.l.b16 %v2139
      %v2214 = vunpack.c.l.b16 %v2140
      %v2215 = vunpack.c.l.b16 %v2141
      %v2216 = vunpack.c.l.b16 %v2142
      %v2217 = vunpack.c.l.b16 %v2143
      %v2218 = vunpack.c.l.b16 %v2144
      %v2219 = vunpack.c.l.b16 %v2145
      %v2220 = vunpack.c.l.b16 %v2146
      %v2221 = vunpack.c.l.b16 %v2147
      %v2222 = vunpack.c.l.b16 %v2148
      %v2223 = vunpack.c.l.b16 %v2149
      %v2224 = vunpack.c.l.b16 %v2150
      %v2225 = vunpack.c.l.b16 %v2151
      %v2226 = vunpack.c.l.b16 %v2152
      %v2227 = vunpack.c.l.b16 %v2153
      %v2228 = vunpack.c.l.b16 %v2154
      %v2229 = vunpack.c.l.b16 %v2155
      %v2230 = vunpack.c.l.b16 %v2156
      %v2231 = vunpack.c.l.b16 %v2157
      %v2232 = vunpack.c.l.b16 %v2158
      %v2233 = vunpack.c.l.b16 %v2159
      %v2234 = vunpack.c.l.b16 %v2160
      %v2235 = vunpack.c.l.b16 %v2161
      %v2236 = vunpack.c.l.b16 %v2162
      %v2237 = vunpack.c.l.b16 %v2163
      %v2238 = vunpack.c.l.b16 %v2164
      %v2239 = vunpack.c.l.b16 %v2165
      %v2240 = vunpack.c.l.b16 %v2166
      %v2241 = vunpack.c.l.b16 %v2167
      %v2242 = vunpack.c.l.b16 %v2168
      %v2243 = vunpack.c.l.b16 %v2169
      %v2244 = vunpack.c.l.b16 %v2170
      %v2245 = vunpack.c.l.b16 %v2171
      %v2246 = vpack.c.b16 %v2210, %v2209
      %v2247 = vpack.c.b16 %v2212, %v2211
      %v2248 = vpack.c.b16 %v2214, %v2213
      %v2249 = vpack.c.b16 %v2216, %v2215
      %v2250 = vpack.c.b16 %v2218, %v2217
      %v2251 = vpack.c.b16 %v2220, %v2219
      %v2252 = vpack.c.b16 %v2222, %v2221
      %v2253 = vpack.c.b16 %v2224, %v2223
      %v2254 = vpack.c.b16 %v2226, %v2225
      %v2255 = vpack.c.b16 %v2228, %v2227
      %v2256 = vpack.c.b16 %v2230, %v2229
      %v2257 = vpack.c.b16 %v2232, %v2231
      %v2258 = vpack.c.b16 %v2234, %v2233
      %v2259 = vpack.c.b16 %v2236, %v2235
      %v2260 = vpack.c.b16 %v2238, %v2237
      %v2261 = vpack.c.b16 %v2240, %v2239
      %v2262 = vpack.c.b16 %v2242, %v2241
      %v2263 = vpack.c.b16 %v2244, %v2243
      %v2264 = vpack.c.b16 %v2245, %v2245
      %vm2265 = vcmask 1044480
      %v2266 = vrot.slane %v2246, 3
      %v2267 = vrot.slane %v2247, 3
      %v2268 = vsel %vm2265, %v2266, %v2267
      %v2269 = vrot.slane %v2248, 3
      %v2270 = vsel %vm2265, %v2267, %v2269
      %v2271 = vrot.slane %v2249, 3
      %v2272 = vsel %vm2265, %v2269, %v2271
      %v2273 = vrot.slane %v2250, 3
      %v2274 = vsel %vm2265, %v2271, %v2273
      %v2275 = vrot.slane %v2251, 3
      %v2276 = vsel %vm2265, %v2273, %v2275
      %v2277 = vrot.slane %v2252, 3
      %v2278 = vsel %vm2265, %v2275, %v2277
      %v2279 = vrot.slane %v2253, 3
      %v2280 = vsel %vm2265, %v2277, %v2279
      %v2281 = vrot.slane %v2254, 3
      %v2282 = vsel %vm2265, %v2279, %v2281
      %v2283 = vrot.slane %v2255, 3
      %v2284 = vsel %vm2265, %v2281, %v2283
      %v2285 = vrot.slane %v2256, 3
      %v2286 = vsel %vm2265, %v2283, %v2285
      %v2287 = vrot.slane %v2257, 3
      %v2288 = vsel %vm2265, %v2285, %v2287
      %v2289 = vrot.slane %v2258, 3
      %v2290 = vsel %vm2265, %v2287, %v2289
      %v2291 = vrot.slane %v2259, 3
      %v2292 = vsel %vm2265, %v2289, %v2291
      %v2293 = vrot.slane %v2260, 3
      %v2294 = vsel %vm2265, %v2291, %v2293
      %v2295 = vrot.slane %v2261, 3
      %v2296 = vsel %vm2265, %v2293, %v2295
      %v2297 = vrot.slane %v2262, 3
      %v2298 = vsel %vm2265, %v2295, %v2297
      %v2299 = vrot.slane %v2263, 3
      %v2300 = vsel %vm2265, %v2297, %v2299
      %v2301 = vrot.slane %v2264, 3
      %v2302 = vsel %vm2265, %v2299, %v2301
      %2321 = vst [vmem:[#allocation2 + $0x40] sm:$0xff] %v2268
      %2322 = vst [vmem:[#allocation2 + $0x88] sm:$0xff] %v2270
      %2323 = vst [vmem:[#allocation2 + $0xd0] sm:$0xff] %v2272
      %2324 = vst [vmem:[#allocation2 + $0x118] sm:$0xff] %v2274
      %2325 = vst [vmem:[#allocation2 + $0x160] sm:$0xff] %v2276
      %2326 = vst [vmem:[#allocation2 + $0x1a8] sm:$0xff] %v2278
      %2327 = vst [vmem:[#allocation2 + $0x1f0] sm:$0xff] %v2280
      %2328 = vst [vmem:[#allocation2 + $0x238] sm:$0xff] %v2282
      %2329 = vst [vmem:[#allocation2 + $0x280] sm:$0xff] %v2284
      %2330 = vst [vmem:[#allocation2 + $0x2c8] sm:$0xff] %v2286
      %2331 = vst [vmem:[#allocation2 + $0x310] sm:$0xff] %v2288
      %2332 = vst [vmem:[#allocation2 + $0x358] sm:$0xff] %v2290
      %2333 = vst [vmem:[#allocation2 + $0x3a0] sm:$0xff] %v2292
      %2334 = vst [vmem:[#allocation2 + $0x3e8] sm:$0xff] %v2294
      %2335 = vst [vmem:[#allocation2 + $0x430] sm:$0xff] %v2296
      %2336 = vst [vmem:[#allocation2 + $0x478] sm:$0xff] %v2298
      %2337 = vst [vmem:[#allocation2 + $0x4c0] sm:$0xff] %v2300
      %2338 = vst [vmem:[#allocation2 + $0x508] sm:$0xff] %v2302
      %v2339 = vld [vmem:[#allocation2] sm:$0xff]
      %v2340 = vld [vmem:[#allocation2 + $0x8] sm:$0xff]
      %v2341 = vld [vmem:[#allocation2 + $0x10] sm:$0xff]
      %v2342 = vld [vmem:[#allocation2 + $0x18] sm:$0xff]
      %v2343 = vld [vmem:[#allocation2 + $0x20] sm:$0xff]
      %v2344 = vld [vmem:[#allocation2 + $0x28] sm:$0xff]
      %v2345 = vld [vmem:[#allocation2 + $0x30] sm:$0xff]
      %v2346 = vld [vmem:[#allocation2 + $0x38] sm:$0xff]
      %v2347 = vld [vmem:[#allocation2 + $0x40] sm:$0xff]
      %v2348 = vld [vmem:[#allocation2 + $0x48] sm:$0xff]
      %v2349 = vld [vmem:[#allocation2 + $0x50] sm:$0xff]
      %v2350 = vld [vmem:[#allocation2 + $0x58] sm:$0xff]
      %v2351 = vld [vmem:[#allocation2 + $0x60] sm:$0xff]
      %v2352 = vld [vmem:[#allocation2 + $0x68] sm:$0xff]
      %v2353 = vld [vmem:[#allocation2 + $0x70] sm:$0xff]
      %v2354 = vld [vmem:[#allocation2 + $0x78] sm:$0xff]
      %v2355 = vld [vmem:[#allocation2 + $0x80] sm:$0xff]
      %v2356 = vld [vmem:[#allocation2 + $0x88] sm:$0xff]
      %v2357 = vld [vmem:[#allocation2 + $0x90] sm:$0xff]
      %v2358 = vld [vmem:[#allocation2 + $0x98] sm:$0xff]
      %v2359 = vld [vmem:[#allocation2 + $0xa0] sm:$0xff]
      %v2360 = vld [vmem:[#allocation2 + $0xa8] sm:$0xff]
      %v2361 = vld [vmem:[#allocation2 + $0xb0] sm:$0xff]
      %v2362 = vld [vmem:[#allocation2 + $0xb8] sm:$0xff]
      %v2363 = vld [vmem:[#allocation2 + $0xc0] sm:$0xff]
      %v2364 = vld [vmem:[#allocation2 + $0xc8] sm:$0xff]
      %v2365 = vld [vmem:[#allocation2 + $0xd0] sm:$0xff]
      %v2366 = vld [vmem:[#allocation2 + $0xd8] sm:$0xff]
      %v2367 = vld [vmem:[#allocation2 + $0xe0] sm:$0xff]
      %v2368 = vld [vmem:[#allocation2 + $0xe8] sm:$0xff]
      %v2369 = vld [vmem:[#allocation2 + $0xf0] sm:$0xff]
      %v2370 = vld [vmem:[#allocation2 + $0xf8] sm:$0xff]
      %v2371 = vld [vmem:[#allocation2 + $0x100] sm:$0xff]
      %v2372 = vld [vmem:[#allocation2 + $0x108] sm:$0xff]
      %v2373 = vld [vmem:[#allocation2 + $0x110] sm:$0xff]
      %v2374 = vld [vmem:[#allocation2 + $0x118] sm:$0xff]
      %v2375 = vld [vmem:[#allocation2 + $0x120] sm:$0xff]
      %v2376 = vld [vmem:[#allocation2 + $0x128] sm:$0xff]
      %v2377 = vld [vmem:[#allocation2 + $0x130] sm:$0xff]
      %v2378 = vld [vmem:[#allocation2 + $0x138] sm:$0xff]
      %v2379 = vld [vmem:[#allocation2 + $0x140] sm:$0xff]
      %v2380 = vld [vmem:[#allocation2 + $0x148] sm:$0xff]
      %v2381 = vld [vmem:[#allocation2 + $0x150] sm:$0xff]
      %v2382 = vld [vmem:[#allocation2 + $0x158] sm:$0xff]
      %v2383 = vld [vmem:[#allocation2 + $0x160] sm:$0xff]
      %v2384 = vld [vmem:[#allocation2 + $0x168] sm:$0xff]
      %v2385 = vld [vmem:[#allocation2 + $0x170] sm:$0xff]
      %v2386 = vld [vmem:[#allocation2 + $0x178] sm:$0xff]
      %v2387 = vld [vmem:[#allocation2 + $0x180] sm:$0xff]
      %v2388 = vld [vmem:[#allocation2 + $0x188] sm:$0xff]
      %v2389 = vld [vmem:[#allocation2 + $0x190] sm:$0xff]
      %v2390 = vld [vmem:[#allocation2 + $0x198] sm:$0xff]
      %v2391 = vld [vmem:[#allocation2 + $0x1a0] sm:$0xff]
      %v2392 = vld [vmem:[#allocation2 + $0x1a8] sm:$0xff]
      %v2393 = vld [vmem:[#allocation2 + $0x1b0] sm:$0xff]
      %v2394 = vld [vmem:[#allocation2 + $0x1b8] sm:$0xff]
      %v2395 = vld [vmem:[#allocation2 + $0x1c0] sm:$0xff]
      %v2396 = vld [vmem:[#allocation2 + $0x1c8] sm:$0xff]
      %v2397 = vld [vmem:[#allocation2 + $0x1d0] sm:$0xff]
      %v2398 = vld [vmem:[#allocation2 + $0x1d8] sm:$0xff]
      %v2399 = vld [vmem:[#allocation2 + $0x1e0] sm:$0xff]
      %v2400 = vld [vmem:[#allocation2 + $0x1e8] sm:$0xff]
      %v2401 = vld [vmem:[#allocation2 + $0x1f0] sm:$0xff]
      %v2402 = vld [vmem:[#allocation2 + $0x1f8] sm:$0xff]
      %v2403 = vld [vmem:[#allocation2 + $0x200] sm:$0xff]
      %v2404 = vld [vmem:[#allocation2 + $0x208] sm:$0xff]
      %v2405 = vld [vmem:[#allocation2 + $0x210] sm:$0xff]
      %v2406 = vld [vmem:[#allocation2 + $0x218] sm:$0xff]
      %v2407 = vld [vmem:[#allocation2 + $0x220] sm:$0xff]
      %v2408 = vld [vmem:[#allocation2 + $0x228] sm:$0xff]
      %v2409 = vld [vmem:[#allocation2 + $0x230] sm:$0xff]
      %v2410 = vld [vmem:[#allocation2 + $0x238] sm:$0xff]
      %v2411 = vld [vmem:[#allocation2 + $0x240] sm:$0xff]
      %v2412 = vld [vmem:[#allocation2 + $0x248] sm:$0xff]
      %v2413 = vld [vmem:[#allocation2 + $0x250] sm:$0xff]
      %v2414 = vld [vmem:[#allocation2 + $0x258] sm:$0xff]
      %v2415 = vld [vmem:[#allocation2 + $0x260] sm:$0xff]
      %v2416 = vld [vmem:[#allocation2 + $0x268] sm:$0xff]
      %v2417 = vld [vmem:[#allocation2 + $0x270] sm:$0xff]
      %v2418 = vld [vmem:[#allocation2 + $0x278] sm:$0xff]
      %v2419 = vld [vmem:[#allocation2 + $0x280] sm:$0xff]
      %v2420 = vld [vmem:[#allocation2 + $0x288] sm:$0xff]
      %v2421 = vld [vmem:[#allocation2 + $0x290] sm:$0xff]
      %v2422 = vld [vmem:[#allocation2 + $0x298] sm:$0xff]
      %v2423 = vld [vmem:[#allocation2 + $0x2a0] sm:$0xff]
      %v2424 = vld [vmem:[#allocation2 + $0x2a8] sm:$0xff]
      %v2425 = vld [vmem:[#allocation2 + $0x2b0] sm:$0xff]
      %v2426 = vld [vmem:[#allocation2 + $0x2b8] sm:$0xff]
      %v2427 = vld [vmem:[#allocation2 + $0x2c0] sm:$0xff]
      %v2428 = vld [vmem:[#allocation2 + $0x2c8] sm:$0xff]
      %v2429 = vld [vmem:[#allocation2 + $0x2d0] sm:$0xff]
      %v2430 = vld [vmem:[#allocation2 + $0x2d8] sm:$0xff]
      %v2431 = vld [vmem:[#allocation2 + $0x2e0] sm:$0xff]
      %v2432 = vld [vmem:[#allocation2 + $0x2e8] sm:$0xff]
      %v2433 = vld [vmem:[#allocation2 + $0x2f0] sm:$0xff]
      %v2434 = vld [vmem:[#allocation2 + $0x2f8] sm:$0xff]
      %v2435 = vld [vmem:[#allocation2 + $0x300] sm:$0xff]
      %v2436 = vld [vmem:[#allocation2 + $0x308] sm:$0xff]
      %v2437 = vld [vmem:[#allocation2 + $0x310] sm:$0xff]
      %v2438 = vld [vmem:[#allocation2 + $0x318] sm:$0xff]
      %v2439 = vld [vmem:[#allocation2 + $0x320] sm:$0xff]
      %v2440 = vld [vmem:[#allocation2 + $0x328] sm:$0xff]
      %v2441 = vld [vmem:[#allocation2 + $0x330] sm:$0xff]
      %v2442 = vld [vmem:[#allocation2 + $0x338] sm:$0xff]
      %v2443 = vld [vmem:[#allocation2 + $0x340] sm:$0xff]
      %v2444 = vld [vmem:[#allocation2 + $0x348] sm:$0xff]
      %v2445 = vld [vmem:[#allocation2 + $0x350] sm:$0xff]
      %v2446 = vld [vmem:[#allocation2 + $0x358] sm:$0xff]
      %v2447 = vld [vmem:[#allocation2 + $0x360] sm:$0xff]
      %v2448 = vld [vmem:[#allocation2 + $0x368] sm:$0xff]
      %v2449 = vld [vmem:[#allocation2 + $0x370] sm:$0xff]
      %v2450 = vld [vmem:[#allocation2 + $0x378] sm:$0xff]
      %v2451 = vld [vmem:[#allocation2 + $0x380] sm:$0xff]
      %v2452 = vld [vmem:[#allocation2 + $0x388] sm:$0xff]
      %v2453 = vld [vmem:[#allocation2 + $0x390] sm:$0xff]
      %v2454 = vld [vmem:[#allocation2 + $0x398] sm:$0xff]
      %v2455 = vld [vmem:[#allocation2 + $0x3a0] sm:$0xff]
      %v2456 = vld [vmem:[#allocation2 + $0x3a8] sm:$0xff]
      %v2457 = vld [vmem:[#allocation2 + $0x3b0] sm:$0xff]
      %v2458 = vld [vmem:[#allocation2 + $0x3b8] sm:$0xff]
      %v2459 = vld [vmem:[#allocation2 + $0x3c0] sm:$0xff]
      %v2460 = vld [vmem:[#allocation2 + $0x3c8] sm:$0xff]
      %v2461 = vld [vmem:[#allocation2 + $0x3d0] sm:$0xff]
      %v2462 = vld [vmem:[#allocation2 + $0x3d8] sm:$0xff]
      %v2463 = vld [vmem:[#allocation2 + $0x3e0] sm:$0xff]
      %v2464 = vld [vmem:[#allocation2 + $0x3e8] sm:$0xff]
      %v2465 = vld [vmem:[#allocation2 + $0x3f0] sm:$0xff]
      %v2466 = vld [vmem:[#allocation2 + $0x3f8] sm:$0xff]
      %v2467 = vld [vmem:[#allocation2 + $0x400] sm:$0xff]
      %v2468 = vld [vmem:[#allocation2 + $0x408] sm:$0xff]
      %v2469 = vld [vmem:[#allocation2 + $0x410] sm:$0xff]
      %v2470 = vld [vmem:[#allocation2 + $0x418] sm:$0xff]
      %v2471 = vld [vmem:[#allocation2 + $0x420] sm:$0xff]
      %v2472 = vld [vmem:[#allocation2 + $0x428] sm:$0xff]
      %v2473 = vld [vmem:[#allocation2 + $0x430] sm:$0xff]
      %v2474 = vld [vmem:[#allocation2 + $0x438] sm:$0xff]
      %v2475 = vld [vmem:[#allocation2 + $0x440] sm:$0xff]
      %v2476 = vld [vmem:[#allocation2 + $0x448] sm:$0xff]
      %v2477 = vld [vmem:[#allocation2 + $0x450] sm:$0xff]
      %v2478 = vld [vmem:[#allocation2 + $0x458] sm:$0xff]
      %v2479 = vld [vmem:[#allocation2 + $0x460] sm:$0xff]
      %v2480 = vld [vmem:[#allocation2 + $0x468] sm:$0xff]
      %v2481 = vld [vmem:[#allocation2 + $0x470] sm:$0xff]
      %v2482 = vld [vmem:[#allocation2 + $0x478] sm:$0xff]
      %v2483 = vld [vmem:[#allocation2 + $0x480] sm:$0xff]
      %v2484 = vld [vmem:[#allocation2 + $0x488] sm:$0xff]
      %v2485 = vld [vmem:[#allocation2 + $0x490] sm:$0xff]
      %v2486 = vld [vmem:[#allocation2 + $0x498] sm:$0xff]
      %v2487 = vld [vmem:[#allocation2 + $0x4a0] sm:$0xff]
      %v2488 = vld [vmem:[#allocation2 + $0x4a8] sm:$0xff]
      %v2489 = vld [vmem:[#allocation2 + $0x4b0] sm:$0xff]
      %v2490 = vld [vmem:[#allocation2 + $0x4b8] sm:$0xff]
      %v2491 = vld [vmem:[#allocation2 + $0x4c0] sm:$0xff]
      %v2492 = vld [vmem:[#allocation2 + $0x4c8] sm:$0xff]
      %v2493 = vld [vmem:[#allocation2 + $0x4d0] sm:$0xff]
      %v2494 = vld [vmem:[#allocation2 + $0x4d8] sm:$0xff]
      %v2495 = vld [vmem:[#allocation2 + $0x4e0] sm:$0xff]
      %v2496 = vld [vmem:[#allocation2 + $0x4e8] sm:$0xff]
      %v2497 = vld [vmem:[#allocation2 + $0x4f0] sm:$0xff]
      %v2498 = vld [vmem:[#allocation2 + $0x4f8] sm:$0xff]
      %v2499 = vld [vmem:[#allocation2 + $0x500] sm:$0xff]
      %v2500 = vld [vmem:[#allocation2 + $0x508] sm:$0xff]
      %v2501 = vld [vmem:[%s2] sm:$0xf]
      %v2502 = vld [vmem:[%s2 + $0x4] sm:$0xf]
      %v2503 = vld [vmem:[%s2 + $0x8] sm:$0xf]
      %v2504 = vld [vmem:[%s2 + $0xc] sm:$0xf]
      %v2505 = vld [vmem:[%s2 + $0x10] sm:$0xf]
      %v2506 = vld [vmem:[%s2 + $0x14] sm:$0xf]
      %v2507 = vld [vmem:[%s2 + $0x18] sm:$0xf]
      %v2508 = vld [vmem:[%s2 + $0x1c] sm:$0xf]
      %v2509 = vld [vmem:[%s2 + $0x20] sm:$0xf]
      %v2510 = vld [vmem:[%s2 + $0x24] sm:$0xf]
      %v2511 = vld [vmem:[%s2 + $0x28] sm:$0xf]
      %v2512 = vld [vmem:[%s2 + $0x2c] sm:$0xf]
      %v2513 = vld [vmem:[%s2 + $0x30] sm:$0xf]
      %v2514 = vld [vmem:[%s2 + $0x34] sm:$0xf]
      %v2515 = vld [vmem:[%s2 + $0x38] sm:$0xf]
      %v2516 = vld [vmem:[%s2 + $0x3c] sm:$0xf]
      %v2517 = vld [vmem:[%s2 + $0x40] sm:$0xf]
      %v2518 = vld [vmem:[%s2 + $0x44] sm:$0xf]
      %v2519 = vld [vmem:[%s2 + $0x48] sm:$0xf]
      %v2520 = vld [vmem:[%s2 + $0x4c] sm:$0xf]
      %v2521 = vld [vmem:[%s2 + $0x50] sm:$0xf]
      %v2522 = vld [vmem:[%s2 + $0x54] sm:$0xf]
      %v2523 = vld [vmem:[%s2 + $0x58] sm:$0xf]
      %v2524 = vld [vmem:[%s2 + $0x5c] sm:$0xf]
      %v2525 = vld [vmem:[%s2 + $0x60] sm:$0xf]
      %v2526 = vld [vmem:[%s2 + $0x64] sm:$0xf]
      %v2527 = vld [vmem:[%s2 + $0x68] sm:$0xf]
      %v2528 = vld [vmem:[%s2 + $0x6c] sm:$0xf]
      %v2529 = vld [vmem:[%s2 + $0x70] sm:$0xf]
      %v2530 = vld [vmem:[%s2 + $0x74] sm:$0xf]
      %v2531 = vld [vmem:[%s2 + $0x78] sm:$0xf]
      %v2532 = vld [vmem:[%s2 + $0x7c] sm:$0xf]
      %v2533 = vld [vmem:[%s2 + $0x80] sm:$0xf]
      %v2534 = vld [vmem:[%s2 + $0x84] sm:$0xf]
      %v2535 = vld [vmem:[%s2 + $0x88] sm:$0xf]
      %v2536 = vld [vmem:[%s2 + $0x8c] sm:$0xf]
      %v2537 = vld [vmem:[%s2 + $0x90] sm:$0xf]
      %v2538 = vld [vmem:[%s2 + $0x94] sm:$0xf]
      %v2539 = vld [vmem:[%s2 + $0x98] sm:$0xf]
      %v2540 = vld [vmem:[%s2 + $0x9c] sm:$0xf]
      %v2541 = vld [vmem:[%s2 + $0xa0] sm:$0xf]
      %v2542 = vld [vmem:[%s2 + $0xa4] sm:$0xf]
      %v2543 = vld [vmem:[%s2 + $0xa8] sm:$0xf]
      %v2544 = vld [vmem:[%s2 + $0xac] sm:$0xf]
      %v2545 = vld [vmem:[%s2 + $0xb0] sm:$0xf]
      %v2546 = vld [vmem:[%s2 + $0xb4] sm:$0xf]
      %v2547 = vld [vmem:[%s2 + $0xb8] sm:$0xf]
      %v2548 = vld [vmem:[%s2 + $0xbc] sm:$0xf]
      %v2549 = vld [vmem:[%s2 + $0xc0] sm:$0xf]
      %v2550 = vld [vmem:[%s2 + $0xc4] sm:$0xf]
      %v2551 = vld [vmem:[%s2 + $0xc8] sm:$0xf]
      %v2552 = vld [vmem:[%s2 + $0xcc] sm:$0xf]
      %v2553 = vld [vmem:[%s2 + $0xd0] sm:$0xf]
      %v2554 = vld [vmem:[%s2 + $0xd4] sm:$0xf]
      %v2555 = vld [vmem:[%s2 + $0xd8] sm:$0xf]
      %v2556 = vld [vmem:[%s2 + $0xdc] sm:$0xf]
      %v2557 = vld [vmem:[%s2 + $0xe0] sm:$0xf]
      %v2558 = vld [vmem:[%s2 + $0xe4] sm:$0xf]
      %v2559 = vld [vmem:[%s2 + $0xe8] sm:$0xf]
      %v2560 = vld [vmem:[%s2 + $0xec] sm:$0xf]
      %v2561 = vld [vmem:[%s2 + $0xf0] sm:$0xf]
      %v2562 = vld [vmem:[%s2 + $0xf4] sm:$0xf]
      %v2563 = vld [vmem:[%s2 + $0xf8] sm:$0xf]
      %v2564 = vld [vmem:[%s2 + $0xfc] sm:$0xf]
      %v2565 = vld [vmem:[%s2 + $0x100] sm:$0xf]
      %v2566 = vld [vmem:[%s2 + $0x104] sm:$0xf]
      %v2567 = vld [vmem:[%s2 + $0x108] sm:$0xf]
      %v2568 = vld [vmem:[%s2 + $0x10c] sm:$0xf]
      %v2569 = vld [vmem:[%s2 + $0x110] sm:$0xf]
      %v2570 = vld [vmem:[%s2 + $0x114] sm:$0xf]
      %v2571 = vld [vmem:[%s2 + $0x118] sm:$0xf]
      %v2572 = vld [vmem:[%s2 + $0x11c] sm:$0xf]
      %v2573 = vld [vmem:[%s2 + $0x120] sm:$0xf]
      %v2574 = vld [vmem:[%s2 + $0x124] sm:$0xf]
      %v2575 = vld [vmem:[%s2 + $0x128] sm:$0xf]
      %v2576 = vld [vmem:[%s2 + $0x12c] sm:$0xf]
      %v2577 = vld [vmem:[%s2 + $0x130] sm:$0xf]
      %v2578 = vld [vmem:[%s2 + $0x134] sm:$0xf]
      %v2579 = vld [vmem:[%s2 + $0x138] sm:$0xf]
      %v2580 = vld [vmem:[%s2 + $0x13c] sm:$0xf]
      %v2581 = vld [vmem:[%s2 + $0x140] sm:$0xf]
      %v2582 = vld [vmem:[%s2 + $0x144] sm:$0xf]
      %v2583 = vld [vmem:[%s2 + $0x148] sm:$0xf]
      %v2584 = vld [vmem:[%s2 + $0x14c] sm:$0xf]
      %v2585 = vld [vmem:[%s2 + $0x150] sm:$0xf]
      %v2586 = vld [vmem:[%s2 + $0x154] sm:$0xf]
      %v2587 = vld [vmem:[%s2 + $0x158] sm:$0xf]
      %v2588 = vld [vmem:[%s2 + $0x15c] sm:$0xf]
      %v2589 = vld [vmem:[%s2 + $0x160] sm:$0xf]
      %v2590 = vld [vmem:[%s2 + $0x164] sm:$0xf]
      %v2591 = vld [vmem:[%s2 + $0x168] sm:$0xf]
      %v2592 = vld [vmem:[%s2 + $0x16c] sm:$0xf]
      %v2593 = vld [vmem:[%s2 + $0x170] sm:$0xf]
      %v2594 = vld [vmem:[%s2 + $0x174] sm:$0xf]
      %v2595 = vld [vmem:[%s2 + $0x178] sm:$0xf]
      %v2596 = vld [vmem:[%s2 + $0x17c] sm:$0xf]
      %v2597 = vld [vmem:[%s2 + $0x180] sm:$0xf]
      %v2598 = vld [vmem:[%s2 + $0x184] sm:$0xf]
      %v2599 = vld [vmem:[%s2 + $0x188] sm:$0xf]
      %v2600 = vld [vmem:[%s2 + $0x18c] sm:$0xf]
      %v2601 = vld [vmem:[%s2 + $0x190] sm:$0xf]
      %v2602 = vld [vmem:[%s2 + $0x194] sm:$0xf]
      %v2603 = vld [vmem:[%s2 + $0x198] sm:$0xf]
      %v2604 = vld [vmem:[%s2 + $0x19c] sm:$0xf]
      %v2605 = vld [vmem:[%s2 + $0x1a0] sm:$0xf]
      %v2606 = vld [vmem:[%s2 + $0x1a4] sm:$0xf]
      %v2607 = vld [vmem:[%s2 + $0x1a8] sm:$0xf]
      %v2608 = vld [vmem:[%s2 + $0x1ac] sm:$0xf]
      %v2609 = vld [vmem:[%s2 + $0x1b0] sm:$0xf]
      %v2610 = vld [vmem:[%s2 + $0x1b4] sm:$0xf]
      %v2611 = vld [vmem:[%s2 + $0x1b8] sm:$0xf]
      %v2612 = vld [vmem:[%s2 + $0x1bc] sm:$0xf]
      %v2613 = vld [vmem:[%s2 + $0x1c0] sm:$0xf]
      %v2614 = vld [vmem:[%s2 + $0x1c4] sm:$0xf]
      %v2615 = vld [vmem:[%s2 + $0x1c8] sm:$0xf]
      %v2616 = vld [vmem:[%s2 + $0x1cc] sm:$0xf]
      %v2617 = vld [vmem:[%s2 + $0x1d0] sm:$0xf]
      %v2618 = vld [vmem:[%s2 + $0x1d4] sm:$0xf]
      %v2619 = vld [vmem:[%s2 + $0x1d8] sm:$0xf]
      %v2620 = vld [vmem:[%s2 + $0x1dc] sm:$0xf]
      %v2621 = vld [vmem:[%s2 + $0x1e0] sm:$0xf]
      %v2622 = vld [vmem:[%s2 + $0x1e4] sm:$0xf]
      %v2623 = vld [vmem:[%s2 + $0x1e8] sm:$0xf]
      %v2624 = vld [vmem:[%s2 + $0x1ec] sm:$0xf]
      %v2625 = vld [vmem:[%s2 + $0x1f0] sm:$0xf]
      %v2626 = vld [vmem:[%s2 + $0x1f4] sm:$0xf]
      %v2627 = vld [vmem:[%s2 + $0x1f8] sm:$0xf]
      %v2628 = vld [vmem:[%s2 + $0x1fc] sm:$0xf]
      %v2629 = vld [vmem:[%s2 + $0x200] sm:$0xf]
      %v2630 = vld [vmem:[%s2 + $0x204] sm:$0xf]
      %v2631 = vld [vmem:[%s2 + $0x208] sm:$0xf]
      %v2632 = vld [vmem:[%s2 + $0x20c] sm:$0xf]
      %v2633 = vld [vmem:[%s2 + $0x210] sm:$0xf]
      %v2634 = vld [vmem:[%s2 + $0x214] sm:$0xf]
      %v2635 = vld [vmem:[%s2 + $0x218] sm:$0xf]
      %v2636 = vld [vmem:[%s2 + $0x21c] sm:$0xf]
      %v2637 = vld [vmem:[%s2 + $0x220] sm:$0xf]
      %v2638 = vld [vmem:[%s2 + $0x224] sm:$0xf]
      %v2639 = vld [vmem:[%s2 + $0x228] sm:$0xf]
      %v2640 = vld [vmem:[%s2 + $0x22c] sm:$0xf]
      %v2641 = vld [vmem:[%s2 + $0x230] sm:$0xf]
      %v2642 = vld [vmem:[%s2 + $0x234] sm:$0xf]
      %v2643 = vld [vmem:[%s2 + $0x238] sm:$0xf]
      %v2644 = vld [vmem:[%s2 + $0x23c] sm:$0xf]
      %v2789 = vunpack.c.l.b16 %v2501
      %v2790 = vunpack.c.l.b16 %v2502
      %v2791 = vunpack.c.l.b16 %v2503
      %v2792 = vunpack.c.l.b16 %v2504
      %v2793 = vunpack.c.l.b16 %v2505
      %v2794 = vunpack.c.l.b16 %v2506
      %v2795 = vunpack.c.l.b16 %v2507
      %v2796 = vunpack.c.l.b16 %v2508
      %v2797 = vunpack.c.l.b16 %v2509
      %v2798 = vunpack.c.l.b16 %v2510
      %v2799 = vunpack.c.l.b16 %v2511
      %v2800 = vunpack.c.l.b16 %v2512
      %v2801 = vunpack.c.l.b16 %v2513
      %v2802 = vunpack.c.l.b16 %v2514
      %v2803 = vunpack.c.l.b16 %v2515
      %v2804 = vunpack.c.l.b16 %v2516
      %v2805 = vunpack.c.l.b16 %v2517
      %v2806 = vunpack.c.l.b16 %v2518
      %v2807 = vunpack.c.l.b16 %v2519
      %v2808 = vunpack.c.l.b16 %v2520
      %v2809 = vunpack.c.l.b16 %v2521
      %v2810 = vunpack.c.l.b16 %v2522
      %v2811 = vunpack.c.l.b16 %v2523
      %v2812 = vunpack.c.l.b16 %v2524
      %v2813 = vunpack.c.l.b16 %v2525
      %v2814 = vunpack.c.l.b16 %v2526
      %v2815 = vunpack.c.l.b16 %v2527
      %v2816 = vunpack.c.l.b16 %v2528
      %v2817 = vunpack.c.l.b16 %v2529
      %v2818 = vunpack.c.l.b16 %v2530
      %v2819 = vunpack.c.l.b16 %v2531
      %v2820 = vunpack.c.l.b16 %v2532
      %v2821 = vunpack.c.l.b16 %v2533
      %v2822 = vunpack.c.l.b16 %v2534
      %v2823 = vunpack.c.l.b16 %v2535
      %v2824 = vunpack.c.l.b16 %v2536
      %v2825 = vunpack.c.l.b16 %v2537
      %v2826 = vunpack.c.l.b16 %v2538
      %v2827 = vunpack.c.l.b16 %v2539
      %v2828 = vunpack.c.l.b16 %v2540
      %v2829 = vunpack.c.l.b16 %v2541
      %v2830 = vunpack.c.l.b16 %v2542
      %v2831 = vunpack.c.l.b16 %v2543
      %v2832 = vunpack.c.l.b16 %v2544
      %v2833 = vunpack.c.l.b16 %v2545
      %v2834 = vunpack.c.l.b16 %v2546
      %v2835 = vunpack.c.l.b16 %v2547
      %v2836 = vunpack.c.l.b16 %v2548
      %v2837 = vunpack.c.l.b16 %v2549
      %v2838 = vunpack.c.l.b16 %v2550
      %v2839 = vunpack.c.l.b16 %v2551
      %v2840 = vunpack.c.l.b16 %v2552
      %v2841 = vunpack.c.l.b16 %v2553
      %v2842 = vunpack.c.l.b16 %v2554
      %v2843 = vunpack.c.l.b16 %v2555
      %v2844 = vunpack.c.l.b16 %v2556
      %v2845 = vunpack.c.l.b16 %v2557
      %v2846 = vunpack.c.l.b16 %v2558
      %v2847 = vunpack.c.l.b16 %v2559
      %v2848 = vunpack.c.l.b16 %v2560
      %v2849 = vunpack.c.l.b16 %v2561
      %v2850 = vunpack.c.l.b16 %v2562
      %v2851 = vunpack.c.l.b16 %v2563
      %v2852 = vunpack.c.l.b16 %v2564
      %v2853 = vunpack.c.l.b16 %v2565
      %v2854 = vunpack.c.l.b16 %v2566
      %v2855 = vunpack.c.l.b16 %v2567
      %v2856 = vunpack.c.l.b16 %v2568
      %v2857 = vunpack.c.l.b16 %v2569
      %v2858 = vunpack.c.l.b16 %v2570
      %v2859 = vunpack.c.l.b16 %v2571
      %v2860 = vunpack.c.l.b16 %v2572
      %v2861 = vunpack.c.l.b16 %v2573
      %v2862 = vunpack.c.l.b16 %v2574
      %v2863 = vunpack.c.l.b16 %v2575
      %v2864 = vunpack.c.l.b16 %v2576
      %v2865 = vunpack.c.l.b16 %v2577
      %v2866 = vunpack.c.l.b16 %v2578
      %v2867 = vunpack.c.l.b16 %v2579
      %v2868 = vunpack.c.l.b16 %v2580
      %v2869 = vunpack.c.l.b16 %v2581
      %v2870 = vunpack.c.l.b16 %v2582
      %v2871 = vunpack.c.l.b16 %v2583
      %v2872 = vunpack.c.l.b16 %v2584
      %v2873 = vunpack.c.l.b16 %v2585
      %v2874 = vunpack.c.l.b16 %v2586
      %v2875 = vunpack.c.l.b16 %v2587
      %v2876 = vunpack.c.l.b16 %v2588
      %v2877 = vunpack.c.l.b16 %v2589
      %v2878 = vunpack.c.l.b16 %v2590
      %v2879 = vunpack.c.l.b16 %v2591
      %v2880 = vunpack.c.l.b16 %v2592
      %v2881 = vunpack.c.l.b16 %v2593
      %v2882 = vunpack.c.l.b16 %v2594
      %v2883 = vunpack.c.l.b16 %v2595
      %v2884 = vunpack.c.l.b16 %v2596
      %v2885 = vunpack.c.l.b16 %v2597
      %v2886 = vunpack.c.l.b16 %v2598
      %v2887 = vunpack.c.l.b16 %v2599
      %v2888 = vunpack.c.l.b16 %v2600
      %v2889 = vunpack.c.l.b16 %v2601
      %v2890 = vunpack.c.l.b16 %v2602
      %v2891 = vunpack.c.l.b16 %v2603
      %v2892 = vunpack.c.l.b16 %v2604
      %v2893 = vunpack.c.l.b16 %v2605
      %v2894 = vunpack.c.l.b16 %v2606
      %v2895 = vunpack.c.l.b16 %v2607
      %v2896 = vunpack.c.l.b16 %v2608
      %v2897 = vunpack.c.l.b16 %v2609
      %v2898 = vunpack.c.l.b16 %v2610
      %v2899 = vunpack.c.l.b16 %v2611
      %v2900 = vunpack.c.l.b16 %v2612
      %v2901 = vunpack.c.l.b16 %v2613
      %v2902 = vunpack.c.l.b16 %v2614
      %v2903 = vunpack.c.l.b16 %v2615
      %v2904 = vunpack.c.l.b16 %v2616
      %v2905 = vunpack.c.l.b16 %v2617
      %v2906 = vunpack.c.l.b16 %v2618
      %v2907 = vunpack.c.l.b16 %v2619
      %v2908 = vunpack.c.l.b16 %v2620
      %v2909 = vunpack.c.l.b16 %v2621
      %v2910 = vunpack.c.l.b16 %v2622
      %v2911 = vunpack.c.l.b16 %v2623
      %v2912 = vunpack.c.l.b16 %v2624
      %v2913 = vunpack.c.l.b16 %v2625
      %v2914 = vunpack.c.l.b16 %v2626
      %v2915 = vunpack.c.l.b16 %v2627
      %v2916 = vunpack.c.l.b16 %v2628
      %v2917 = vunpack.c.l.b16 %v2629
      %v2918 = vunpack.c.l.b16 %v2630
      %v2919 = vunpack.c.l.b16 %v2631
      %v2920 = vunpack.c.l.b16 %v2632
      %v2921 = vunpack.c.l.b16 %v2633
      %v2922 = vunpack.c.l.b16 %v2634
      %v2923 = vunpack.c.l.b16 %v2635
      %v2924 = vunpack.c.l.b16 %v2636
      %v2925 = vunpack.c.l.b16 %v2637
      %v2926 = vunpack.c.l.b16 %v2638
      %v2927 = vunpack.c.l.b16 %v2639
      %v2928 = vunpack.c.l.b16 %v2640
      %v2929 = vunpack.c.l.b16 %v2641
      %v2930 = vunpack.c.l.b16 %v2642
      %v2931 = vunpack.c.l.b16 %v2643
      %v2932 = vunpack.c.l.b16 %v2644
      %v2933 = vpack.c.b16 %v2790, %v2789
      %v2934 = vpack.c.b16 %v2792, %v2791
      %v2935 = vpack.c.b16 %v2794, %v2793
      %v2936 = vpack.c.b16 %v2796, %v2795
      %v2937 = vpack.c.b16 %v2798, %v2797
      %v2938 = vpack.c.b16 %v2800, %v2799
      %v2939 = vpack.c.b16 %v2802, %v2801
      %v2940 = vpack.c.b16 %v2804, %v2803
      %v2941 = vpack.c.b16 %v2806, %v2805
      %v2942 = vpack.c.b16 %v2808, %v2807
      %v2943 = vpack.c.b16 %v2810, %v2809
      %v2944 = vpack.c.b16 %v2812, %v2811
      %v2945 = vpack.c.b16 %v2814, %v2813
      %v2946 = vpack.c.b16 %v2816, %v2815
      %v2947 = vpack.c.b16 %v2818, %v2817
      %v2948 = vpack.c.b16 %v2820, %v2819
      %v2949 = vpack.c.b16 %v2822, %v2821
      %v2950 = vpack.c.b16 %v2824, %v2823
      %v2951 = vpack.c.b16 %v2826, %v2825
      %v2952 = vpack.c.b16 %v2828, %v2827
      %v2953 = vpack.c.b16 %v2830, %v2829
      %v2954 = vpack.c.b16 %v2832, %v2831
      %v2955 = vpack.c.b16 %v2834, %v2833
      %v2956 = vpack.c.b16 %v2836, %v2835
      %v2957 = vpack.c.b16 %v2838, %v2837
      %v2958 = vpack.c.b16 %v2840, %v2839
      %v2959 = vpack.c.b16 %v2842, %v2841
      %v2960 = vpack.c.b16 %v2844, %v2843
      %v2961 = vpack.c.b16 %v2846, %v2845
      %v2962 = vpack.c.b16 %v2848, %v2847
      %v2963 = vpack.c.b16 %v2850, %v2849
      %v2964 = vpack.c.b16 %v2852, %v2851
      %v2965 = vpack.c.b16 %v2854, %v2853
      %v2966 = vpack.c.b16 %v2856, %v2855
      %v2967 = vpack.c.b16 %v2858, %v2857
      %v2968 = vpack.c.b16 %v2860, %v2859
      %v2969 = vpack.c.b16 %v2862, %v2861
      %v2970 = vpack.c.b16 %v2864, %v2863
      %v2971 = vpack.c.b16 %v2866, %v2865
      %v2972 = vpack.c.b16 %v2868, %v2867
      %v2973 = vpack.c.b16 %v2870, %v2869
      %v2974 = vpack.c.b16 %v2872, %v2871
      %v2975 = vpack.c.b16 %v2874, %v2873
      %v2976 = vpack.c.b16 %v2876, %v2875
      %v2977 = vpack.c.b16 %v2878, %v2877
      %v2978 = vpack.c.b16 %v2880, %v2879
      %v2979 = vpack.c.b16 %v2882, %v2881
      %v2980 = vpack.c.b16 %v2884, %v2883
      %v2981 = vpack.c.b16 %v2886, %v2885
      %v2982 = vpack.c.b16 %v2888, %v2887
      %v2983 = vpack.c.b16 %v2890, %v2889
      %v2984 = vpack.c.b16 %v2892, %v2891
      %v2985 = vpack.c.b16 %v2894, %v2893
      %v2986 = vpack.c.b16 %v2896, %v2895
      %v2987 = vpack.c.b16 %v2898, %v2897
      %v2988 = vpack.c.b16 %v2900, %v2899
      %v2989 = vpack.c.b16 %v2902, %v2901
      %v2990 = vpack.c.b16 %v2904, %v2903
      %v2991 = vpack.c.b16 %v2906, %v2905
      %v2992 = vpack.c.b16 %v2908, %v2907
      %v2993 = vpack.c.b16 %v2910, %v2909
      %v2994 = vpack.c.b16 %v2912, %v2911
      %v2995 = vpack.c.b16 %v2914, %v2913
      %v2996 = vpack.c.b16 %v2916, %v2915
      %v2997 = vpack.c.b16 %v2918, %v2917
      %v2998 = vpack.c.b16 %v2920, %v2919
      %v2999 = vpack.c.b16 %v2922, %v2921
      %v3000 = vpack.c.b16 %v2924, %v2923
      %v3001 = vpack.c.b16 %v2926, %v2925
      %v3002 = vpack.c.b16 %v2928, %v2927
      %v3003 = vpack.c.b16 %v2930, %v2929
      %v3004 = vpack.c.b16 %v2932, %v2931
      %3077 = vmatprep.subr.bf16.mxu0 0
      %3078 = vmatpush1.bf16.msra.mxu0 %v2933
      %3079 = vmatprep.subr.bf16.mxu0 0
      %3080 = vmatpush1.bf16.msra.mxu0 %v2934
      %3081 = vmatprep.subr.bf16.mxu0 0
      %3082 = vmatpush1.bf16.msra.mxu0 %v2935
      %3083 = vmatprep.subr.bf16.mxu0 0
      %3084 = vmatpush1.bf16.msra.mxu0 %v2936
      %3085 = vmatprep.subr.bf16.mxu0 0
      %3086 = vmatpush1.bf16.msra.mxu0 %v2937
      %3087 = vmatprep.subr.bf16.mxu0 0
      %3088 = vmatpush1.bf16.msra.mxu0 %v2938
      %3089 = vmatprep.subr.bf16.mxu0 0
      %3090 = vmatpush1.bf16.msra.mxu0 %v2939
      %3091 = vmatprep.subr.bf16.mxu0 0
      %3092 = vmatpush1.bf16.msra.mxu0 %v2940
      %3093 = vmatprep.subr.bf16.mxu0 0
      %3094 = vmatpush1.bf16.msra.mxu0 %v2941
      %3095 = vmatprep.subr.bf16.mxu0 0
      %3096 = vmatpush1.bf16.msra.mxu0 %v2942
      %3097 = vmatprep.subr.bf16.mxu0 0
      %3098 = vmatpush1.bf16.msra.mxu0 %v2943
      %3099 = vmatprep.subr.bf16.mxu0 0
      %3100 = vmatpush1.bf16.msra.mxu0 %v2944
      %3101 = vmatprep.subr.bf16.mxu0 0
      %3102 = vmatpush1.bf16.msra.mxu0 %v2945
      %3103 = vmatprep.subr.bf16.mxu0 0
      %3104 = vmatpush1.bf16.msra.mxu0 %v2946
      %3105 = vmatprep.subr.bf16.mxu0 0
      %3106 = vmatpush1.bf16.msra.mxu0 %v2947
      %3107 = vmatprep.subr.bf16.mxu0 0
      %3108 = vmatpush1.bf16.msra.mxu0 %v2948
      %3109 = vmatprep.mubr.bf16.mxu0 %v2340
      %3110 = vmatmul.mubr.bf16.gmra.mrb[0].mxu0 %v2339
      %v3111 = vpop.f32.mrb[0].mxu0
      %v3112 = vadd.f32 0.0, %v3111
      %v3113 = vpop.f32.mrb[0].mxu0
      %v3114 = vpop.f32.mrb[0].mxu0
      %v3115 = vadd.f32 0.0, %v3114
      %v3116 = vpop.f32.mrb[0].mxu0
      %3117 = vmatprep.mubr.bf16.mxu0 %v2349
      %3118 = vmatmul.mubr.bf16.gmra.mrb[0].mxu0 %v2348
      %v3119 = vpop.f32.mrb[0].mxu0
      %v3120 = vadd.f32 0.0, %v3119
      %v3121 = vpop.f32.mrb[0].mxu0
      %v3122 = vpop.f32.mrb[0].mxu0
      %v3123 = vadd.f32 0.0, %v3122
      %v3124 = vpop.f32.mrb[0].mxu0
      %3125 = vmatprep.mubr.bf16.mxu0 %v2358
      %3126 = vmatmul.mubr.bf16.gmra.mrb[0].mxu0 %v2357
      %v3127 = vpop.f32.mrb[0].mxu0
      %v3128 = vadd.f32 0.0, %v3127
      %v3129 = vpop.f32.mrb[0].mxu0
      %v3130 = vpop.f32.mrb[0].mxu0
      %v3131 = vadd.f32 0.0, %v3130
      %v3132 = vpop.f32.mrb[0].mxu0
      %3133 = vmatprep.mubr.bf16.mxu0 %v2367
      %3134 = vmatmul.mubr.bf16.gmra.mrb[0].mxu0 %v2366
      %v3135 = vpop.f32.mrb[0].mxu0
      %v3136 = vadd.f32 0.0, %v3135
      %v3137 = vpop.f32.mrb[0].mxu0
      %v3138 = vpop.f32.mrb[0].mxu0
      %v3139 = vadd.f32 0.0, %v3138
      %v3140 = vpop.f32.mrb[0].mxu0
      %3141 = vmatprep.mubr.bf16.mxu0 %v2376
      %3142 = vmatmul.mubr.bf16.gmra.mrb[0].mxu0 %v2375
      %v3143 = vpop.f32.mrb[0].mxu0
      %v3144 = vadd.f32 0.0, %v3143
      %v3145 = vpop.f32.mrb[0].mxu0
      %v3146 = vpop.f32.mrb[0].mxu0
      %v3147 = vadd.f32 0.0, %v3146
      %v3148 = vpop.f32.mrb[0].mxu0
      %3149 = vmatprep.mubr.bf16.mxu0 %v2385
      %3150 = vmatmul.mubr.bf16.gmra.mrb[0].mxu0 %v2384
      %v3151 = vpop.f32.mrb[0].mxu0
      %v3152 = vadd.f32 0.0, %v3151
      %v3153 = vpop.f32.mrb[0].mxu0
      %v3154 = vpop.f32.mrb[0].mxu0
      %v3155 = vadd.f32 0.0, %v3154
      %v3156 = vpop.f32.mrb[0].mxu0
      %3157 = vmatprep.mubr.bf16.mxu0 %v2394
      %3158 = vmatmul.mubr.bf16.gmra.mrb[0].mxu0 %v2393
      %v3159 = vpop.f32.mrb[0].mxu0
      %v3160 = vadd.f32 0.0, %v3159
      %v3161 = vpop.f32.mrb[0].mxu0
      %v3162 = vpop.f32.mrb[0].mxu0
      %v3163 = vadd.f32 0.0, %v3162
      %v3164 = vpop.f32.mrb[0].mxu0
      %3165 = vmatprep.mubr.bf16.mxu0 %v2403
      %3166 = vmatmul.mubr.bf16.gmra.mrb[0].mxu0 %v2402
      %v3167 = vpop.f32.mrb[0].mxu0
      %v3168 = vadd.f32 0.0, %v3167
      %v3169 = vpop.f32.mrb[0].mxu0
      %v3170 = vpop.f32.mrb[0].mxu0
      %v3171 = vadd.f32 0.0, %v3170
      %v3172 = vpop.f32.mrb[0].mxu0
      %3173 = vmatprep.mubr.bf16.mxu0 %v2412
      %3174 = vmatmul.mubr.bf16.gmra.mrb[0].mxu0 %v2411
      %v3175 = vpop.f32.mrb[0].mxu0
      %v3176 = vadd.f32 0.0, %v3175
      %v3177 = vpop.f32.mrb[0].mxu0
      %v3178 = vpop.f32.mrb[0].mxu0
      %v3179 = vadd.f32 0.0, %v3178
      %v3180 = vpop.f32.mrb[0].mxu0
      %3181 = vmatprep.mubr.bf16.mxu0 %v2421
      %3182 = vmatmul.mubr.bf16.gmra.mrb[0].mxu0 %v2420
      %v3183 = vpop.f32.mrb[0].mxu0
      %v3184 = vadd.f32 0.0, %v3183
      %v3185 = vpop.f32.mrb[0].mxu0
      %v3186 = vpop.f32.mrb[0].mxu0
      %v3187 = vadd.f32 0.0, %v3186
      %v3188 = vpop.f32.mrb[0].mxu0
      %3189 = vmatprep.mubr.bf16.mxu0 %v2430
      %3190 = vmatmul.mubr.bf16.gmra.mrb[0].mxu0 %v2429
      %v3191 = vpop.f32.mrb[0].mxu0
      %v3192 = vadd.f32 0.0, %v3191
      %v3193 = vpop.f32.mrb[0].mxu0
      %v3194 = vpop.f32.mrb[0].mxu0
      %v3195 = vadd.f32 0.0, %v3194
      %v3196 = vpop.f32.mrb[0].mxu0
      %3197 = vmatprep.mubr.bf16.mxu0 %v2439
      %3198 = vmatmul.mubr.bf16.gmra.mrb[0].mxu0 %v2438
      %v3199 = vpop.f32.mrb[0].mxu0
      %v3200 = vadd.f32 0.0, %v3199
      %v3201 = vpop.f32.mrb[0].mxu0
      %v3202 = vpop.f32.mrb[0].mxu0
      %v3203 = vadd.f32 0.0, %v3202
      %v3204 = vpop.f32.mrb[0].mxu0
      %3205 = vmatprep.mubr.bf16.mxu0 %v2448
      %3206 = vmatmul.mubr.bf16.gmra.mrb[0].mxu0 %v2447
      %v3207 = vpop.f32.mrb[0].mxu0
      %v3208 = vadd.f32 0.0, %v3207
      %v3209 = vpop.f32.mrb[0].mxu0
      %v3210 = vpop.f32.mrb[0].mxu0
      %v3211 = vadd.f32 0.0, %v3210
      %v3212 = vpop.f32.mrb[0].mxu0
      %3213 = vmatprep.mubr.bf16.mxu0 %v2457
      %3214 = vmatmul.mubr.bf16.gmra.mrb[0].mxu0 %v2456
      %v3215 = vpop.f32.mrb[0].mxu0
      %v3216 = vadd.f32 0.0, %v3215
      %v3217 = vpop.f32.mrb[0].mxu0
      %v3218 = vpop.f32.mrb[0].mxu0
      %v3219 = vadd.f32 0.0, %v3218
      %v3220 = vpop.f32.mrb[0].mxu0
      %3221 = vmatprep.mubr.bf16.mxu0 %v2466
      %3222 = vmatmul.mubr.bf16.gmra.mrb[0].mxu0 %v2465
      %v3223 = vpop.f32.mrb[0].mxu0
      %v3224 = vadd.f32 0.0, %v3223
      %v3225 = vpop.f32.mrb[0].mxu0
      %v3226 = vpop.f32.mrb[0].mxu0
      %v3227 = vadd.f32 0.0, %v3226
      %v3228 = vpop.f32.mrb[0].mxu0
      %3229 = vmatprep.mubr.bf16.mxu0 %v2475
      %3230 = vmatmul.mubr.bf16.gmra.mrb[0].mxu0 %v2474
      %v3231 = vpop.f32.mrb[0].mxu0
      %v3232 = vadd.f32 0.0, %v3231
      %v3233 = vpop.f32.mrb[0].mxu0
      %v3234 = vpop.f32.mrb[0].mxu0
      %v3235 = vadd.f32 0.0, %v3234
      %v3236 = vpop.f32.mrb[0].mxu0
      %3237 = vmatprep.mubr.bf16.mxu0 %v2484
      %3238 = vmatmul.mubr.bf16.gmra.mrb[0].mxu0 %v2483
      %v3239 = vpop.f32.mrb[0].mxu0
      %v3240 = vadd.f32 0.0, %v3239
      %v3241 = vpop.f32.mrb[0].mxu0
      %v3242 = vpop.f32.mrb[0].mxu0
      %v3243 = vadd.f32 0.0, %v3242
      %v3244 = vpop.f32.mrb[0].mxu0
      %3245 = vmatprep.mubr.bf16.mxu0 %v2493
      %3246 = vmatmul.mubr.bf16.gmra.mrb[0].mxu0 %v2492
      %v3247 = vpop.f32.mrb[0].mxu0
      %v3248 = vadd.f32 0.0, %v3247
      %v3249 = vpop.f32.mrb[0].mxu0
      %v3250 = vpop.f32.mrb[0].mxu0
      %v3251 = vadd.f32 0.0, %v3250
      %v3252 = vpop.f32.mrb[0].mxu0
      %3253 = vdwg.mxu0
      %3254 = vmatprep.subr.bf16.mxu0 0
      %3255 = vmatpush1.bf16.msra.mxu0 %v2949
      %3256 = vmatprep.subr.bf16.mxu0 0
      %3257 = vmatpush1.bf16.msra.mxu0 %v2950
      %3258 = vmatprep.subr.bf16.mxu0 0
      %3259 = vmatpush1.bf16.msra.mxu0 %v2951
      %3260 = vmatprep.subr.bf16.mxu0 0
      %3261 = vmatpush1.bf16.msra.mxu0 %v2952
      %3262 = vmatprep.subr.bf16.mxu0 0
      %3263 = vmatpush1.bf16.msra.mxu0 %v2953
      %3264 = vmatprep.subr.bf16.mxu0 0
      %3265 = vmatpush1.bf16.msra.mxu0 %v2954
      %3266 = vmatprep.subr.bf16.mxu0 0
      %3267 = vmatpush1.bf16.msra.mxu0 %v2955
      %3268 = vmatprep.subr.bf16.mxu0 0
      %3269 = vmatpush1.bf16.msra.mxu0 %v2956
      %3270 = vmatprep.subr.bf16.mxu0 0
      %3271 = vmatpush1.bf16.msra.mxu0 %v2957
      %3272 = vmatprep.subr.bf16.mxu0 0
      %3273 = vmatpush1.bf16.msra.mxu0 %v2958
      %3274 = vmatprep.subr.bf16.mxu0 0
      %3275 = vmatpush1.bf16.msra.mxu0 %v2959
      %3276 = vmatprep.subr.bf16.mxu0 0
      %3277 = vmatpush1.bf16.msra.mxu0 %v2960
      %3278 = vmatprep.subr.bf16.mxu0 0
      %3279 = vmatpush1.bf16.msra.mxu0 %v2961
      %3280 = vmatprep.subr.bf16.mxu0 0
      %3281 = vmatpush1.bf16.msra.mxu0 %v2962
      %3282 = vmatprep.subr.bf16.mxu0 0
      %3283 = vmatpush1.bf16.msra.mxu0 %v2963
      %3284 = vmatprep.subr.bf16.mxu0 0
      %3285 = vmatpush1.bf16.msra.mxu0 %v2964
      %3286 = vmatprep.mubr.bf16.mxu0 %v2342
      %3287 = vmatmul.mubr.bf16.gmra.mrb[0].mxu0 %v2341
      %v3288 = vpop.f32.mrb[0].mxu0
      %v3289 = vadd.f32 %v3112, %v3288
      %v3290 = vpop.f32.mrb[0].mxu0
      %v3291 = vpop.f32.mrb[0].mxu0
      %v3292 = vadd.f32 %v3115, %v3291
      %v3293 = vpop.f32.mrb[0].mxu0
      %3294 = vmatprep.mubr.bf16.mxu0 %v2351
      %3295 = vmatmul.mubr.bf16.gmra.mrb[0].mxu0 %v2350
      %v3296 = vpop.f32.mrb[0].mxu0
      %v3297 = vadd.f32 %v3120, %v3296
      %v3298 = vpop.f32.mrb[0].mxu0
      %v3299 = vpop.f32.mrb[0].mxu0
      %v3300 = vadd.f32 %v3123, %v3299
      %v3301 = vpop.f32.mrb[0].mxu0
      %3302 = vmatprep.mubr.bf16.mxu0 %v2360
      %3303 = vmatmul.mubr.bf16.gmra.mrb[0].mxu0 %v2359
      %v3304 = vpop.f32.mrb[0].mxu0
      %v3305 = vadd.f32 %v3128, %v3304
      %v3306 = vpop.f32.mrb[0].mxu0
      %v3307 = vpop.f32.mrb[0].mxu0
      %v3308 = vadd.f32 %v3131, %v3307
      %v3309 = vpop.f32.mrb[0].mxu0
      %3310 = vmatprep.mubr.bf16.mxu0 %v2369
      %3311 = vmatmul.mubr.bf16.gmra.mrb[0].mxu0 %v2368
      %v3312 = vpop.f32.mrb[0].mxu0
      %v3313 = vadd.f32 %v3136, %v3312
      %v3314 = vpop.f32.mrb[0].mxu0
      %v3315 = vpop.f32.mrb[0].mxu0
      %v3316 = vadd.f32 %v3139, %v3315
      %v3317 = vpop.f32.mrb[0].mxu0
      %3318 = vmatprep.mubr.bf16.mxu0 %v2378
      %3319 = vmatmul.mubr.bf16.gmra.mrb[0].mxu0 %v2377
      %v3320 = vpop.f32.mrb[0].mxu0
      %v3321 = vadd.f32 %v3144, %v3320
      %v3322 = vpop.f32.mrb[0].mxu0
      %v3323 = vpop.f32.mrb[0].mxu0
      %v3324 = vadd.f32 %v3147, %v3323
      %v3325 = vpop.f32.mrb[0].mxu0
      %3326 = vmatprep.mubr.bf16.mxu0 %v2387
      %3327 = vmatmul.mubr.bf16.gmra.mrb[0].mxu0 %v2386
      %v3328 = vpop.f32.mrb[0].mxu0
      %v3329 = vadd.f32 %v3152, %v3328
      %v3330 = vpop.f32.mrb[0].mxu0
      %v3331 = vpop.f32.mrb[0].mxu0
      %v3332 = vadd.f32 %v3155, %v3331
      %v3333 = vpop.f32.mrb[0].mxu0
      %3334 = vmatprep.mubr.bf16.mxu0 %v2396
      %3335 = vmatmul.mubr.bf16.gmra.mrb[0].mxu0 %v2395
      %v3336 = vpop.f32.mrb[0].mxu0
      %v3337 = vadd.f32 %v3160, %v3336
      %v3338 = vpop.f32.mrb[0].mxu0
      %v3339 = vpop.f32.mrb[0].mxu0
      %v3340 = vadd.f32 %v3163, %v3339
      %v3341 = vpop.f32.mrb[0].mxu0
      %3342 = vmatprep.mubr.bf16.mxu0 %v2405
      %3343 = vmatmul.mubr.bf16.gmra.mrb[0].mxu0 %v2404
      %v3344 = vpop.f32.mrb[0].mxu0
      %v3345 = vadd.f32 %v3168, %v3344
      %v3346 = vpop.f32.mrb[0].mxu0
      %v3347 = vpop.f32.mrb[0].mxu0
      %v3348 = vadd.f32 %v3171, %v3347
      %v3349 = vpop.f32.mrb[0].mxu0
      %3350 = vmatprep.mubr.bf16.mxu0 %v2414
      %3351 = vmatmul.mubr.bf16.gmra.mrb[0].mxu0 %v2413
      %v3352 = vpop.f32.mrb[0].mxu0
      %v3353 = vadd.f32 %v3176, %v3352
      %v3354 = vpop.f32.mrb[0].mxu0
      %v3355 = vpop.f32.mrb[0].mxu0
      %v3356 = vadd.f32 %v3179, %v3355
      %v3357 = vpop.f32.mrb[0].mxu0
      %3358 = vmatprep.mubr.bf16.mxu0 %v2423
      %3359 = vmatmul.mubr.bf16.gmra.mrb[0].mxu0 %v2422
      %v3360 = vpop.f32.mrb[0].mxu0
      %v3361 = vadd.f32 %v3184, %v3360
      %v3362 = vpop.f32.mrb[0].mxu0
      %v3363 = vpop.f32.mrb[0].mxu0
      %v3364 = vadd.f32 %v3187, %v3363
      %v3365 = vpop.f32.mrb[0].mxu0
      %3366 = vmatprep.mubr.bf16.mxu0 %v2432
      %3367 = vmatmul.mubr.bf16.gmra.mrb[0].mxu0 %v2431
      %v3368 = vpop.f32.mrb[0].mxu0
      %v3369 = vadd.f32 %v3192, %v3368
      %v3370 = vpop.f32.mrb[0].mxu0
      %v3371 = vpop.f32.mrb[0].mxu0
      %v3372 = vadd.f32 %v3195, %v3371
      %v3373 = vpop.f32.mrb[0].mxu0
      %3374 = vmatprep.mubr.bf16.mxu0 %v2441
      %3375 = vmatmul.mubr.bf16.gmra.mrb[0].mxu0 %v2440
      %v3376 = vpop.f32.mrb[0].mxu0
      %v3377 = vadd.f32 %v3200, %v3376
      %v3378 = vpop.f32.mrb[0].mxu0
      %v3379 = vpop.f32.mrb[0].mxu0
      %v3380 = vadd.f32 %v3203, %v3379
      %v3381 = vpop.f32.mrb[0].mxu0
      %3382 = vmatprep.mubr.bf16.mxu0 %v2450
      %3383 = vmatmul.mubr.bf16.gmra.mrb[0].mxu0 %v2449
      %v3384 = vpop.f32.mrb[0].mxu0
      %v3385 = vadd.f32 %v3208, %v3384
      %v3386 = vpop.f32.mrb[0].mxu0
      %v3387 = vpop.f32.mrb[0].mxu0
      %v3388 = vadd.f32 %v3211, %v3387
      %v3389 = vpop.f32.mrb[0].mxu0
      %3390 = vmatprep.mubr.bf16.mxu0 %v2459
      %3391 = vmatmul.mubr.bf16.gmra.mrb[0].mxu0 %v2458
      %v3392 = vpop.f32.mrb[0].mxu0
      %v3393 = vadd.f32 %v3216, %v3392
      %v3394 = vpop.f32.mrb[0].mxu0
      %v3395 = vpop.f32.mrb[0].mxu0
      %v3396 = vadd.f32 %v3219, %v3395
      %v3397 = vpop.f32.mrb[0].mxu0
      %3398 = vmatprep.mubr.bf16.mxu0 %v2468
      %3399 = vmatmul.mubr.bf16.gmra.mrb[0].mxu0 %v2467
      %v3400 = vpop.f32.mrb[0].mxu0
      %v3401 = vadd.f32 %v3224, %v3400
      %v3402 = vpop.f32.mrb[0].mxu0
      %v3403 = vpop.f32.mrb[0].mxu0
      %v3404 = vadd.f32 %v3227, %v3403
      %v3405 = vpop.f32.mrb[0].mxu0
      %3406 = vmatprep.mubr.bf16.mxu0 %v2477
      %3407 = vmatmul.mubr.bf16.gmra.mrb[0].mxu0 %v2476
      %v3408 = vpop.f32.mrb[0].mxu0
      %v3409 = vadd.f32 %v3232, %v3408
      %v3410 = vpop.f32.mrb[0].mxu0
      %v3411 = vpop.f32.mrb[0].mxu0
      %v3412 = vadd.f32 %v3235, %v3411
      %v3413 = vpop.f32.mrb[0].mxu0
      %3414 = vmatprep.mubr.bf16.mxu0 %v2486
      %3415 = vmatmul.mubr.bf16.gmra.mrb[0].mxu0 %v2485
      %v3416 = vpop.f32.mrb[0].mxu0
      %v3417 = vadd.f32 %v3240, %v3416
      %v3418 = vpop.f32.mrb[0].mxu0
      %v3419 = vpop.f32.mrb[0].mxu0
      %v3420 = vadd.f32 %v3243, %v3419
      %v3421 = vpop.f32.mrb[0].mxu0
      %3422 = vmatprep.mubr.bf16.mxu0 %v2495
      %3423 = vmatmul.mubr.bf16.gmra.mrb[0].mxu0 %v2494
      %v3424 = vpop.f32.mrb[0].mxu0
      %v3425 = vadd.f32 %v3248, %v3424
      %v3426 = vpop.f32.mrb[0].mxu0
      %v3427 = vpop.f32.mrb[0].mxu0
      %v3428 = vadd.f32 %v3251, %v3427
      %v3429 = vpop.f32.mrb[0].mxu0
      %3430 = vdwg.mxu0
      %3431 = vmatprep.subr.bf16.mxu0 0
      %3432 = vmatpush1.bf16.msra.mxu0 %v2965
      %3433 = vmatprep.subr.bf16.mxu0 0
      %3434 = vmatpush1.bf16.msra.mxu0 %v2966
      %3435 = vmatprep.subr.bf16.mxu0 0
      %3436 = vmatpush1.bf16.msra.mxu0 %v2967
      %3437 = vmatprep.subr.bf16.mxu0 0
      %3438 = vmatpush1.bf16.msra.mxu0 %v2968
      %3439 = vmatprep.subr.bf16.mxu0 0
      %3440 = vmatpush1.bf16.msra.mxu0 %v2969
      %3441 = vmatprep.subr.bf16.mxu0 0
      %3442 = vmatpush1.bf16.msra.mxu0 %v2970
      %3443 = vmatprep.subr.bf16.mxu0 0
      %3444 = vmatpush1.bf16.msra.mxu0 %v2971
      %3445 = vmatprep.subr.bf16.mxu0 0
      %3446 = vmatpush1.bf16.msra.mxu0 %v2972
      %3447 = vmatprep.subr.bf16.mxu0 0
      %3448 = vmatpush1.bf16.msra.mxu0 %v2973
      %3449 = vmatprep.subr.bf16.mxu0 0
      %3450 = vmatpush1.bf16.msra.mxu0 %v2974
      %3451 = vmatprep.subr.bf16.mxu0 0
      %3452 = vmatpush1.bf16.msra.mxu0 %v2975
      %3453 = vmatprep.subr.bf16.mxu0 0
      %3454 = vmatpush1.bf16.msra.mxu0 %v2976
      %3455 = vmatprep.subr.bf16.mxu0 0
      %3456 = vmatpush1.bf16.msra.mxu0 %v2977
      %3457 = vmatprep.subr.bf16.mxu0 0
      %3458 = vmatpush1.bf16.msra.mxu0 %v2978
      %3459 = vmatprep.subr.bf16.mxu0 0
      %3460 = vmatpush1.bf16.msra.mxu0 %v2979
      %3461 = vmatprep.subr.bf16.mxu0 0
      %3462 = vmatpush1.bf16.msra.mxu0 %v2980
      %3463 = vmatprep.mubr.bf16.mxu0 %v2344
      %3464 = vmatmul.mubr.bf16.gmra.mrb[0].mxu0 %v2343
      %v3465 = vpop.f32.mrb[0].mxu0
      %v3466 = vadd.f32 %v3289, %v3465
      %v3467 = vpop.f32.mrb[0].mxu0
      %v3468 = vpop.f32.mrb[0].mxu0
      %v3469 = vadd.f32 %v3292, %v3468
      %v3470 = vpop.f32.mrb[0].mxu0
      %3471 = vmatprep.mubr.bf16.mxu0 %v2353
      %3472 = vmatmul.mubr.bf16.gmra.mrb[0].mxu0 %v2352
      %v3473 = vpop.f32.mrb[0].mxu0
      %v3474 = vadd.f32 %v3297, %v3473
      %v3475 = vpop.f32.mrb[0].mxu0
      %v3476 = vpop.f32.mrb[0].mxu0
      %v3477 = vadd.f32 %v3300, %v3476
      %v3478 = vpop.f32.mrb[0].mxu0
      %3479 = vmatprep.mubr.bf16.mxu0 %v2362
      %3480 = vmatmul.mubr.bf16.gmra.mrb[0].mxu0 %v2361
      %v3481 = vpop.f32.mrb[0].mxu0
      %v3482 = vadd.f32 %v3305, %v3481
      %v3483 = vpop.f32.mrb[0].mxu0
      %v3484 = vpop.f32.mrb[0].mxu0
      %v3485 = vadd.f32 %v3308, %v3484
      %v3486 = vpop.f32.mrb[0].mxu0
      %3487 = vmatprep.mubr.bf16.mxu0 %v2371
      %3488 = vmatmul.mubr.bf16.gmra.mrb[0].mxu0 %v2370
      %v3489 = vpop.f32.mrb[0].mxu0
      %v3490 = vadd.f32 %v3313, %v3489
      %v3491 = vpop.f32.mrb[0].mxu0
      %v3492 = vpop.f32.mrb[0].mxu0
      %v3493 = vadd.f32 %v3316, %v3492
      %v3494 = vpop.f32.mrb[0].mxu0
      %3495 = vmatprep.mubr.bf16.mxu0 %v2380
      %3496 = vmatmul.mubr.bf16.gmra.mrb[0].mxu0 %v2379
      %v3497 = vpop.f32.mrb[0].mxu0
      %v3498 = vadd.f32 %v3321, %v3497
      %v3499 = vpop.f32.mrb[0].mxu0
      %v3500 = vpop.f32.mrb[0].mxu0
      %v3501 = vadd.f32 %v3324, %v3500
      %v3502 = vpop.f32.mrb[0].mxu0
      %3503 = vmatprep.mubr.bf16.mxu0 %v2389
      %3504 = vmatmul.mubr.bf16.gmra.mrb[0].mxu0 %v2388
      %v3505 = vpop.f32.mrb[0].mxu0
      %v3506 = vadd.f32 %v3329, %v3505
      %v3507 = vpop.f32.mrb[0].mxu0
      %v3508 = vpop.f32.mrb[0].mxu0
      %v3509 = vadd.f32 %v3332, %v3508
      %v3510 = vpop.f32.mrb[0].mxu0
      %3511 = vmatprep.mubr.bf16.mxu0 %v2398
      %3512 = vmatmul.mubr.bf16.gmra.mrb[0].mxu0 %v2397
      %v3513 = vpop.f32.mrb[0].mxu0
      %v3514 = vadd.f32 %v3337, %v3513
      %v3515 = vpop.f32.mrb[0].mxu0
      %v3516 = vpop.f32.mrb[0].mxu0
      %v3517 = vadd.f32 %v3340, %v3516
      %v3518 = vpop.f32.mrb[0].mxu0
      %3519 = vmatprep.mubr.bf16.mxu0 %v2407
      %3520 = vmatmul.mubr.bf16.gmra.mrb[0].mxu0 %v2406
      %v3521 = vpop.f32.mrb[0].mxu0
      %v3522 = vadd.f32 %v3345, %v3521
      %v3523 = vpop.f32.mrb[0].mxu0
      %v3524 = vpop.f32.mrb[0].mxu0
      %v3525 = vadd.f32 %v3348, %v3524
      %v3526 = vpop.f32.mrb[0].mxu0
      %3527 = vmatprep.mubr.bf16.mxu0 %v2416
      %3528 = vmatmul.mubr.bf16.gmra.mrb[0].mxu0 %v2415
      %v3529 = vpop.f32.mrb[0].mxu0
      %v3530 = vadd.f32 %v3353, %v3529
      %v3531 = vpop.f32.mrb[0].mxu0
      %v3532 = vpop.f32.mrb[0].mxu0
      %v3533 = vadd.f32 %v3356, %v3532
      %v3534 = vpop.f32.mrb[0].mxu0
      %3535 = vmatprep.mubr.bf16.mxu0 %v2425
      %3536 = vmatmul.mubr.bf16.gmra.mrb[0].mxu0 %v2424
      %v3537 = vpop.f32.mrb[0].mxu0
      %v3538 = vadd.f32 %v3361, %v3537
      %v3539 = vpop.f32.mrb[0].mxu0
      %v3540 = vpop.f32.mrb[0].mxu0
      %v3541 = vadd.f32 %v3364, %v3540
      %v3542 = vpop.f32.mrb[0].mxu0
      %3543 = vmatprep.mubr.bf16.mxu0 %v2434
      %3544 = vmatmul.mubr.bf16.gmra.mrb[0].mxu0 %v2433
      %v3545 = vpop.f32.mrb[0].mxu0
      %v3546 = vadd.f32 %v3369, %v3545
      %v3547 = vpop.f32.mrb[0].mxu0
      %v3548 = vpop.f32.mrb[0].mxu0
      %v3549 = vadd.f32 %v3372, %v3548
      %v3550 = vpop.f32.mrb[0].mxu0
      %3551 = vmatprep.mubr.bf16.mxu0 %v2443
      %3552 = vmatmul.mubr.bf16.gmra.mrb[0].mxu0 %v2442
      %v3553 = vpop.f32.mrb[0].mxu0
      %v3554 = vadd.f32 %v3377, %v3553
      %v3555 = vpop.f32.mrb[0].mxu0
      %v3556 = vpop.f32.mrb[0].mxu0
      %v3557 = vadd.f32 %v3380, %v3556
      %v3558 = vpop.f32.mrb[0].mxu0
      %3559 = vmatprep.mubr.bf16.mxu0 %v2452
      %3560 = vmatmul.mubr.bf16.gmra.mrb[0].mxu0 %v2451
      %v3561 = vpop.f32.mrb[0].mxu0
      %v3562 = vadd.f32 %v3385, %v3561
      %v3563 = vpop.f32.mrb[0].mxu0
      %v3564 = vpop.f32.mrb[0].mxu0
      %v3565 = vadd.f32 %v3388, %v3564
      %v3566 = vpop.f32.mrb[0].mxu0
      %3567 = vmatprep.mubr.bf16.mxu0 %v2461
      %3568 = vmatmul.mubr.bf16.gmra.mrb[0].mxu0 %v2460
      %v3569 = vpop.f32.mrb[0].mxu0
      %v3570 = vadd.f32 %v3393, %v3569
      %v3571 = vpop.f32.mrb[0].mxu0
      %v3572 = vpop.f32.mrb[0].mxu0
      %v3573 = vadd.f32 %v3396, %v3572
      %v3574 = vpop.f32.mrb[0].mxu0
      %3575 = vmatprep.mubr.bf16.mxu0 %v2470
      %3576 = vmatmul.mubr.bf16.gmra.mrb[0].mxu0 %v2469
      %v3577 = vpop.f32.mrb[0].mxu0
      %v3578 = vadd.f32 %v3401, %v3577
      %v3579 = vpop.f32.mrb[0].mxu0
      %v3580 = vpop.f32.mrb[0].mxu0
      %v3581 = vadd.f32 %v3404, %v3580
      %v3582 = vpop.f32.mrb[0].mxu0
      %3583 = vmatprep.mubr.bf16.mxu0 %v2479
      %3584 = vmatmul.mubr.bf16.gmra.mrb[0].mxu0 %v2478
      %v3585 = vpop.f32.mrb[0].mxu0
      %v3586 = vadd.f32 %v3409, %v3585
      %v3587 = vpop.f32.mrb[0].mxu0
      %v3588 = vpop.f32.mrb[0].mxu0
      %v3589 = vadd.f32 %v3412, %v3588
      %v3590 = vpop.f32.mrb[0].mxu0
      %3591 = vmatprep.mubr.bf16.mxu0 %v2488
      %3592 = vmatmul.mubr.bf16.gmra.mrb[0].mxu0 %v2487
      %v3593 = vpop.f32.mrb[0].mxu0
      %v3594 = vadd.f32 %v3417, %v3593
      %v3595 = vpop.f32.mrb[0].mxu0
      %v3596 = vpop.f32.mrb[0].mxu0
      %v3597 = vadd.f32 %v3420, %v3596
      %v3598 = vpop.f32.mrb[0].mxu0
      %3599 = vmatprep.mubr.bf16.mxu0 %v2497
      %3600 = vmatmul.mubr.bf16.gmra.mrb[0].mxu0 %v2496
      %v3601 = vpop.f32.mrb[0].mxu0
      %v3602 = vadd.f32 %v3425, %v3601
      %v3603 = vpop.f32.mrb[0].mxu0
      %v3604 = vpop.f32.mrb[0].mxu0
      %v3605 = vadd.f32 %v3428, %v3604
      %v3606 = vpop.f32.mrb[0].mxu0
      %3607 = vdwg.mxu0
      %3608 = vmatprep.subr.bf16.mxu0 0
      %3609 = vmatpush1.bf16.msra.mxu0 %v2981
      %3610 = vmatprep.subr.bf16.mxu0 0
      %3611 = vmatpush1.bf16.msra.mxu0 %v2982
      %3612 = vmatprep.subr.bf16.mxu0 0
      %3613 = vmatpush1.bf16.msra.mxu0 %v2983
      %3614 = vmatprep.subr.bf16.mxu0 0
      %3615 = vmatpush1.bf16.msra.mxu0 %v2984
      %3616 = vmatprep.subr.bf16.mxu0 0
      %3617 = vmatpush1.bf16.msra.mxu0 %v2985
      %3618 = vmatprep.subr.bf16.mxu0 0
      %3619 = vmatpush1.bf16.msra.mxu0 %v2986
      %3620 = vmatprep.subr.bf16.mxu0 0
      %3621 = vmatpush1.bf16.msra.mxu0 %v2987
      %3622 = vmatprep.subr.bf16.mxu0 0
      %3623 = vmatpush1.bf16.msra.mxu0 %v2988
      %3624 = vmatprep.subr.bf16.mxu0 0
      %3625 = vmatpush1.bf16.msra.mxu0 %v2989
      %3626 = vmatprep.subr.bf16.mxu0 0
      %3627 = vmatpush1.bf16.msra.mxu0 %v2990
      %3628 = vmatprep.subr.bf16.mxu0 0
      %3629 = vmatpush1.bf16.msra.mxu0 %v2991
      %3630 = vmatprep.subr.bf16.mxu0 0
      %3631 = vmatpush1.bf16.msra.mxu0 %v2992
      %3632 = vmatprep.subr.bf16.mxu0 0
      %3633 = vmatpush1.bf16.msra.mxu0 %v2993
      %3634 = vmatprep.subr.bf16.mxu0 0
      %3635 = vmatpush1.bf16.msra.mxu0 %v2994
      %3636 = vmatprep.subr.bf16.mxu0 0
      %3637 = vmatpush1.bf16.msra.mxu0 %v2995
      %3638 = vmatprep.subr.bf16.mxu0 0
      %3639 = vmatpush1.bf16.msra.mxu0 %v2996
      %3640 = vmatprep.mubr.bf16.mxu0 %v2346
      %3641 = vmatmul.mubr.bf16.gmra.mrb[0].mxu0 %v2345
      %v3642 = vpop.f32.mrb[0].mxu0
      %v3643 = vadd.f32 %v3466, %v3642
      %v3644 = vpop.f32.mrb[0].mxu0
      %v3645 = vpop.f32.mrb[0].mxu0
      %v3646 = vadd.f32 %v3469, %v3645
      %v3647 = vpop.f32.mrb[0].mxu0
      %3648 = vmatprep.mubr.bf16.mxu0 %v2355
      %3649 = vmatmul.mubr.bf16.gmra.mrb[0].mxu0 %v2354
      %v3650 = vpop.f32.mrb[0].mxu0
      %v3651 = vadd.f32 %v3474, %v3650
      %v3652 = vpop.f32.mrb[0].mxu0
      %v3653 = vpop.f32.mrb[0].mxu0
      %v3654 = vadd.f32 %v3477, %v3653
      %v3655 = vpop.f32.mrb[0].mxu0
      %3656 = vmatprep.mubr.bf16.mxu0 %v2364
      %3657 = vmatmul.mubr.bf16.gmra.mrb[0].mxu0 %v2363
      %v3658 = vpop.f32.mrb[0].mxu0
      %v3659 = vadd.f32 %v3482, %v3658
      %v3660 = vpop.f32.mrb[0].mxu0
      %v3661 = vpop.f32.mrb[0].mxu0
      %v3662 = vadd.f32 %v3485, %v3661
      %v3663 = vpop.f32.mrb[0].mxu0
      %3664 = vmatprep.mubr.bf16.mxu0 %v2373
      %3665 = vmatmul.mubr.bf16.gmra.mrb[0].mxu0 %v2372
      %v3666 = vpop.f32.mrb[0].mxu0
      %v3667 = vadd.f32 %v3490, %v3666
      %v3668 = vpop.f32.mrb[0].mxu0
      %v3669 = vpop.f32.mrb[0].mxu0
      %v3670 = vadd.f32 %v3493, %v3669
      %v3671 = vpop.f32.mrb[0].mxu0
      %3672 = vmatprep.mubr.bf16.mxu0 %v2382
      %3673 = vmatmul.mubr.bf16.gmra.mrb[0].mxu0 %v2381
      %v3674 = vpop.f32.mrb[0].mxu0
      %v3675 = vadd.f32 %v3498, %v3674
      %v3676 = vpop.f32.mrb[0].mxu0
      %v3677 = vpop.f32.mrb[0].mxu0
      %v3678 = vadd.f32 %v3501, %v3677
      %v3679 = vpop.f32.mrb[0].mxu0
      %3680 = vmatprep.mubr.bf16.mxu0 %v2391
      %3681 = vmatmul.mubr.bf16.gmra.mrb[0].mxu0 %v2390
      %v3682 = vpop.f32.mrb[0].mxu0
      %v3683 = vadd.f32 %v3506, %v3682
      %v3684 = vpop.f32.mrb[0].mxu0
      %v3685 = vpop.f32.mrb[0].mxu0
      %v3686 = vadd.f32 %v3509, %v3685
      %v3687 = vpop.f32.mrb[0].mxu0
      %3688 = vmatprep.mubr.bf16.mxu0 %v2400
      %3689 = vmatmul.mubr.bf16.gmra.mrb[0].mxu0 %v2399
      %v3690 = vpop.f32.mrb[0].mxu0
      %v3691 = vadd.f32 %v3514, %v3690
      %v3692 = vpop.f32.mrb[0].mxu0
      %v3693 = vpop.f32.mrb[0].mxu0
      %v3694 = vadd.f32 %v3517, %v3693
      %v3695 = vpop.f32.mrb[0].mxu0
      %3696 = vmatprep.mubr.bf16.mxu0 %v2409
      %3697 = vmatmul.mubr.bf16.gmra.mrb[0].mxu0 %v2408
      %v3698 = vpop.f32.mrb[0].mxu0
      %v3699 = vadd.f32 %v3522, %v3698
      %v3700 = vpop.f32.mrb[0].mxu0
      %v3701 = vpop.f32.mrb[0].mxu0
      %v3702 = vadd.f32 %v3525, %v3701
      %v3703 = vpop.f32.mrb[0].mxu0
      %3704 = vmatprep.mubr.bf16.mxu0 %v2418
      %3705 = vmatmul.mubr.bf16.gmra.mrb[0].mxu0 %v2417
      %v3706 = vpop.f32.mrb[0].mxu0
      %v3707 = vadd.f32 %v3530, %v3706
      %v3708 = vpop.f32.mrb[0].mxu0
      %v3709 = vpop.f32.mrb[0].mxu0
      %v3710 = vadd.f32 %v3533, %v3709
      %v3711 = vpop.f32.mrb[0].mxu0
      %3712 = vmatprep.mubr.bf16.mxu0 %v2427
      %3713 = vmatmul.mubr.bf16.gmra.mrb[0].mxu0 %v2426
      %v3714 = vpop.f32.mrb[0].mxu0
      %v3715 = vadd.f32 %v3538, %v3714
      %v3716 = vpop.f32.mrb[0].mxu0
      %v3717 = vpop.f32.mrb[0].mxu0
      %v3718 = vadd.f32 %v3541, %v3717
      %v3719 = vpop.f32.mrb[0].mxu0
      %3720 = vmatprep.mubr.bf16.mxu0 %v2436
      %3721 = vmatmul.mubr.bf16.gmra.mrb[0].mxu0 %v2435
      %v3722 = vpop.f32.mrb[0].mxu0
      %v3723 = vadd.f32 %v3546, %v3722
      %v3724 = vpop.f32.mrb[0].mxu0
      %v3725 = vpop.f32.mrb[0].mxu0
      %v3726 = vadd.f32 %v3549, %v3725
      %v3727 = vpop.f32.mrb[0].mxu0
      %3728 = vmatprep.mubr.bf16.mxu0 %v2445
      %3729 = vmatmul.mubr.bf16.gmra.mrb[0].mxu0 %v2444
      %v3730 = vpop.f32.mrb[0].mxu0
      %v3731 = vadd.f32 %v3554, %v3730
      %v3732 = vpop.f32.mrb[0].mxu0
      %v3733 = vpop.f32.mrb[0].mxu0
      %v3734 = vadd.f32 %v3557, %v3733
      %v3735 = vpop.f32.mrb[0].mxu0
      %3736 = vmatprep.mubr.bf16.mxu0 %v2454
      %3737 = vmatmul.mubr.bf16.gmra.mrb[0].mxu0 %v2453
      %v3738 = vpop.f32.mrb[0].mxu0
      %v3739 = vadd.f32 %v3562, %v3738
      %v3740 = vpop.f32.mrb[0].mxu0
      %v3741 = vpop.f32.mrb[0].mxu0
      %v3742 = vadd.f32 %v3565, %v3741
      %v3743 = vpop.f32.mrb[0].mxu0
      %3744 = vmatprep.mubr.bf16.mxu0 %v2463
      %3745 = vmatmul.mubr.bf16.gmra.mrb[0].mxu0 %v2462
      %v3746 = vpop.f32.mrb[0].mxu0
      %v3747 = vadd.f32 %v3570, %v3746
      %v3748 = vpop.f32.mrb[0].mxu0
      %v3749 = vpop.f32.mrb[0].mxu0
      %v3750 = vadd.f32 %v3573, %v3749
      %v3751 = vpop.f32.mrb[0].mxu0
      %3752 = vmatprep.mubr.bf16.mxu0 %v2472
      %3753 = vmatmul.mubr.bf16.gmra.mrb[0].mxu0 %v2471
      %v3754 = vpop.f32.mrb[0].mxu0
      %v3755 = vadd.f32 %v3578, %v3754
      %v3756 = vpop.f32.mrb[0].mxu0
      %v3757 = vpop.f32.mrb[0].mxu0
      %v3758 = vadd.f32 %v3581, %v3757
      %v3759 = vpop.f32.mrb[0].mxu0
      %3760 = vmatprep.mubr.bf16.mxu0 %v2481
      %3761 = vmatmul.mubr.bf16.gmra.mrb[0].mxu0 %v2480
      %v3762 = vpop.f32.mrb[0].mxu0
      %v3763 = vadd.f32 %v3586, %v3762
      %v3764 = vpop.f32.mrb[0].mxu0
      %v3765 = vpop.f32.mrb[0].mxu0
      %v3766 = vadd.f32 %v3589, %v3765
      %v3767 = vpop.f32.mrb[0].mxu0
      %3768 = vmatprep.mubr.bf16.mxu0 %v2490
      %3769 = vmatmul.mubr.bf16.gmra.mrb[0].mxu0 %v2489
      %v3770 = vpop.f32.mrb[0].mxu0
      %v3771 = vadd.f32 %v3594, %v3770
      %v3772 = vpop.f32.mrb[0].mxu0
      %v3773 = vpop.f32.mrb[0].mxu0
      %v3774 = vadd.f32 %v3597, %v3773
      %v3775 = vpop.f32.mrb[0].mxu0
      %3776 = vmatprep.mubr.bf16.mxu0 %v2499
      %3777 = vmatmul.mubr.bf16.gmra.mrb[0].mxu0 %v2498
      %v3778 = vpop.f32.mrb[0].mxu0
      %v3779 = vadd.f32 %v3602, %v3778
      %v3780 = vpop.f32.mrb[0].mxu0
      %v3781 = vpop.f32.mrb[0].mxu0
      %v3782 = vadd.f32 %v3605, %v3781
      %v3783 = vpop.f32.mrb[0].mxu0
      %3784 = vdwg.mxu0
      %3785 = vmatprep.subr.bf16.mxu0 0
      %3786 = vmatpush1.bf16.msra.mxu0 %v2997
      %3787 = vmatprep.subr.bf16.mxu0 0
      %3788 = vmatpush1.bf16.msra.mxu0 %v2998
      %3789 = vmatprep.subr.bf16.mxu0 0
      %3790 = vmatpush1.bf16.msra.mxu0 %v2999
      %3791 = vmatprep.subr.bf16.mxu0 0
      %3792 = vmatpush1.bf16.msra.mxu0 %v3000
      %3793 = vmatprep.subr.bf16.mxu0 0
      %3794 = vmatpush1.bf16.msra.mxu0 %v3001
      %3795 = vmatprep.subr.bf16.mxu0 0
      %3796 = vmatpush1.bf16.msra.mxu0 %v3002
      %3797 = vmatprep.subr.bf16.mxu0 0
      %3798 = vmatpush1.bf16.msra.mxu0 %v3003
      %3799 = vmatprep.subr.bf16.mxu0 0
      %3800 = vmatpush1.bf16.msra.mxu0 %v3004
      %3801 = vmatprep.subr.bf16.mxu0 0
      %3802 = vmatpush1.bf16.msra.mxu0 0
      %3803 = vmatprep.subr.bf16.mxu0 0
      %3804 = vmatpush1.bf16.msra.mxu0 0
      %3805 = vmatprep.subr.bf16.mxu0 0
      %3806 = vmatpush1.bf16.msra.mxu0 0
      %3807 = vmatprep.subr.bf16.mxu0 0
      %3808 = vmatpush1.bf16.msra.mxu0 0
      %3809 = vmatprep.subr.bf16.mxu0 0
      %3810 = vmatpush1.bf16.msra.mxu0 0
      %3811 = vmatprep.subr.bf16.mxu0 0
      %3812 = vmatpush1.bf16.msra.mxu0 0
      %3813 = vmatprep.subr.bf16.mxu0 0
      %3814 = vmatpush1.bf16.msra.mxu0 0
      %3815 = vmatprep.subr.bf16.mxu0 0
      %3816 = vmatpush1.bf16.msra.mxu0 0
      %3817 = vmatprep.mubr.bf16.mxu0 0
      %3818 = vmatmul.mubr.bf16.gmra.mrb[0].mxu0 %v2347
      %v3819 = vpop.f32.mrb[0].mxu0
      %v3820 = vadd.f32 %v3643, %v3819
      %v3821 = vpop.f32.mrb[0].mxu0
      %v3822 = vpop.f32.mrb[0].mxu0
      %v3823 = vadd.f32 %v3646, %v3822
      %v3824 = vpop.f32.mrb[0].mxu0
      %3825 = vmatprep.mubr.bf16.mxu0 0
      %3826 = vmatmul.mubr.bf16.gmra.mrb[0].mxu0 %v2356
      %v3827 = vpop.f32.mrb[0].mxu0
      %v3828 = vadd.f32 %v3651, %v3827
      %v3829 = vpop.f32.mrb[0].mxu0
      %v3830 = vpop.f32.mrb[0].mxu0
      %v3831 = vadd.f32 %v3654, %v3830
      %v3832 = vpop.f32.mrb[0].mxu0
      %3833 = vmatprep.mubr.bf16.mxu0 0
      %3834 = vmatmul.mubr.bf16.gmra.mrb[0].mxu0 %v2365
      %v3835 = vpop.f32.mrb[0].mxu0
      %v3836 = vadd.f32 %v3659, %v3835
      %v3837 = vpop.f32.mrb[0].mxu0
      %v3838 = vpop.f32.mrb[0].mxu0
      %v3839 = vadd.f32 %v3662, %v3838
      %v3840 = vpop.f32.mrb[0].mxu0
      %3841 = vmatprep.mubr.bf16.mxu0 0
      %3842 = vmatmul.mubr.bf16.gmra.mrb[0].mxu0 %v2374
      %v3843 = vpop.f32.mrb[0].mxu0
      %v3844 = vadd.f32 %v3667, %v3843
      %v3845 = vpop.f32.mrb[0].mxu0
      %v3846 = vpop.f32.mrb[0].mxu0
      %v3847 = vadd.f32 %v3670, %v3846
      %v3848 = vpop.f32.mrb[0].mxu0
      %3849 = vmatprep.mubr.bf16.mxu0 0
      %3850 = vmatmul.mubr.bf16.gmra.mrb[0].mxu0 %v2383
      %v3851 = vpop.f32.mrb[0].mxu0
      %v3852 = vadd.f32 %v3675, %v3851
      %v3853 = vpop.f32.mrb[0].mxu0
      %v3854 = vpop.f32.mrb[0].mxu0
      %v3855 = vadd.f32 %v3678, %v3854
      %v3856 = vpop.f32.mrb[0].mxu0
      %3857 = vmatprep.mubr.bf16.mxu0 0
      %3858 = vmatmul.mubr.bf16.gmra.mrb[0].mxu0 %v2392
      %v3859 = vpop.f32.mrb[0].mxu0
      %v3860 = vadd.f32 %v3683, %v3859
      %v3861 = vpop.f32.mrb[0].mxu0
      %v3862 = vpop.f32.mrb[0].mxu0
      %v3863 = vadd.f32 %v3686, %v3862
      %v3864 = vpop.f32.mrb[0].mxu0
      %3865 = vmatprep.mubr.bf16.mxu0 0
      %3866 = vmatmul.mubr.bf16.gmra.mrb[0].mxu0 %v2401
      %v3867 = vpop.f32.mrb[0].mxu0
      %v3868 = vadd.f32 %v3691, %v3867
      %v3869 = vpop.f32.mrb[0].mxu0
      %v3870 = vpop.f32.mrb[0].mxu0
      %v3871 = vadd.f32 %v3694, %v3870
      %v3872 = vpop.f32.mrb[0].mxu0
      %3873 = vmatprep.mubr.bf16.mxu0 0
      %3874 = vmatmul.mubr.bf16.gmra.mrb[0].mxu0 %v2410
      %v3875 = vpop.f32.mrb[0].mxu0
      %v3876 = vadd.f32 %v3699, %v3875
      %v3877 = vpop.f32.mrb[0].mxu0
      %v3878 = vpop.f32.mrb[0].mxu0
      %v3879 = vadd.f32 %v3702, %v3878
      %v3880 = vpop.f32.mrb[0].mxu0
      %3881 = vmatprep.mubr.bf16.mxu0 0
      %3882 = vmatmul.mubr.bf16.gmra.mrb[0].mxu0 %v2419
      %v3883 = vpop.f32.mrb[0].mxu0
      %v3884 = vadd.f32 %v3707, %v3883
      %v3885 = vpop.f32.mrb[0].mxu0
      %v3886 = vpop.f32.mrb[0].mxu0
      %v3887 = vadd.f32 %v3710, %v3886
      %v3888 = vpop.f32.mrb[0].mxu0
      %3889 = vmatprep.mubr.bf16.mxu0 0
      %3890 = vmatmul.mubr.bf16.gmra.mrb[0].mxu0 %v2428
      %v3891 = vpop.f32.mrb[0].mxu0
      %v3892 = vadd.f32 %v3715, %v3891
      %v3893 = vpop.f32.mrb[0].mxu0
      %v3894 = vpop.f32.mrb[0].mxu0
      %v3895 = vadd.f32 %v3718, %v3894
      %v3896 = vpop.f32.mrb[0].mxu0
      %3897 = vmatprep.mubr.bf16.mxu0 0
      %3898 = vmatmul.mubr.bf16.gmra.mrb[0].mxu0 %v2437
      %v3899 = vpop.f32.mrb[0].mxu0
      %v3900 = vadd.f32 %v3723, %v3899
      %v3901 = vpop.f32.mrb[0].mxu0
      %v3902 = vpop.f32.mrb[0].mxu0
      %v3903 = vadd.f32 %v3726, %v3902
      %v3904 = vpop.f32.mrb[0].mxu0
      %3905 = vmatprep.mubr.bf16.mxu0 0
      %3906 = vmatmul.mubr.bf16.gmra.mrb[0].mxu0 %v2446
      %v3907 = vpop.f32.mrb[0].mxu0
      %v3908 = vadd.f32 %v3731, %v3907
      %v3909 = vpop.f32.mrb[0].mxu0
      %v3910 = vpop.f32.mrb[0].mxu0
      %v3911 = vadd.f32 %v3734, %v3910
      %v3912 = vpop.f32.mrb[0].mxu0
      %3913 = vmatprep.mubr.bf16.mxu0 0
      %3914 = vmatmul.mubr.bf16.gmra.mrb[0].mxu0 %v2455
      %v3915 = vpop.f32.mrb[0].mxu0
      %v3916 = vadd.f32 %v3739, %v3915
      %v3917 = vpop.f32.mrb[0].mxu0
      %v3918 = vpop.f32.mrb[0].mxu0
      %v3919 = vadd.f32 %v3742, %v3918
      %v3920 = vpop.f32.mrb[0].mxu0
      %3921 = vmatprep.mubr.bf16.mxu0 0
      %3922 = vmatmul.mubr.bf16.gmra.mrb[0].mxu0 %v2464
      %v3923 = vpop.f32.mrb[0].mxu0
      %v3924 = vadd.f32 %v3747, %v3923
      %v3925 = vpop.f32.mrb[0].mxu0
      %v3926 = vpop.f32.mrb[0].mxu0
      %v3927 = vadd.f32 %v3750, %v3926
      %v3928 = vpop.f32.mrb[0].mxu0
      %3929 = vmatprep.mubr.bf16.mxu0 0
      %3930 = vmatmul.mubr.bf16.gmra.mrb[0].mxu0 %v2473
      %v3931 = vpop.f32.mrb[0].mxu0
      %v3932 = vadd.f32 %v3755, %v3931
      %v3933 = vpop.f32.mrb[0].mxu0
      %v3934 = vpop.f32.mrb[0].mxu0
      %v3935 = vadd.f32 %v3758, %v3934
      %v3936 = vpop.f32.mrb[0].mxu0
      %3937 = vmatprep.mubr.bf16.mxu0 0
      %3938 = vmatmul.mubr.bf16.gmra.mrb[0].mxu0 %v2482
      %v3939 = vpop.f32.mrb[0].mxu0
      %v3940 = vadd.f32 %v3763, %v3939
      %v3941 = vpop.f32.mrb[0].mxu0
      %v3942 = vpop.f32.mrb[0].mxu0
      %v3943 = vadd.f32 %v3766, %v3942
      %v3944 = vpop.f32.mrb[0].mxu0
      %3945 = vmatprep.mubr.bf16.mxu0 0
      %3946 = vmatmul.mubr.bf16.gmra.mrb[0].mxu0 %v2491
      %v3947 = vpop.f32.mrb[0].mxu0
      %v3948 = vadd.f32 %v3771, %v3947
      %v3949 = vpop.f32.mrb[0].mxu0
      %v3950 = vpop.f32.mrb[0].mxu0
      %v3951 = vadd.f32 %v3774, %v3950
      %v3952 = vpop.f32.mrb[0].mxu0
      %3953 = vmatprep.mubr.bf16.mxu0 0
      %3954 = vmatmul.mubr.bf16.gmra.mrb[0].mxu0 %v2500
      %v3955 = vpop.f32.mrb[0].mxu0
      %v3956 = vadd.f32 %v3779, %v3955
      %v3957 = vpop.f32.mrb[0].mxu0
      %v3958 = vpop.f32.mrb[0].mxu0
      %v3959 = vadd.f32 %v3782, %v3958
      %v3960 = vpop.f32.mrb[0].mxu0
      %3961 = vdwg.mxu0
      %v3962 = vld [vmem:[#allocation2 + $0x20] sm:$0xff]
      %v3963 = vld [vmem:[#allocation2 + $0x68] sm:$0xff]
      %v3964 = vld [vmem:[#allocation2 + $0xb0] sm:$0xff]
      %v3965 = vld [vmem:[#allocation2 + $0xf8] sm:$0xff]
      %v3966 = vld [vmem:[#allocation2 + $0x140] sm:$0xff]
      %v3967 = vld [vmem:[#allocation2 + $0x188] sm:$0xff]
      %v3968 = vld [vmem:[#allocation2 + $0x1d0] sm:$0xff]
      %v3969 = vld [vmem:[#allocation2 + $0x218] sm:$0xff]
      %v3970 = vld [vmem:[#allocation2 + $0x260] sm:$0xff]
      %v3971 = vld [vmem:[#allocation2 + $0x2a8] sm:$0xff]
      %v3972 = vld [vmem:[#allocation2 + $0x2f0] sm:$0xff]
      %v3973 = vld [vmem:[#allocation2 + $0x338] sm:$0xff]
      %v3974 = vld [vmem:[#allocation2 + $0x380] sm:$0xff]
      %v3975 = vld [vmem:[#allocation2 + $0x3c8] sm:$0xff]
      %v3976 = vld [vmem:[#allocation2 + $0x410] sm:$0xff]
      %v3977 = vld [vmem:[#allocation2 + $0x458] sm:$0xff]
      %v3978 = vld [vmem:[#allocation2 + $0x4a0] sm:$0xff]
      %v3979 = vld [vmem:[#allocation2 + $0x4e8] sm:$0xff]
      %v3980 = vld [vmem:[%s1] sm:$0xf]
      %v3981 = vld [vmem:[%s1 + $0x4] sm:$0xf]
      %v3982 = vld [vmem:[%s1 + $0x8] sm:$0xf]
      %v3983 = vld [vmem:[%s1 + $0xc] sm:$0xf]
      %v3984 = vld [vmem:[%s1 + $0x10] sm:$0xf]
      %v3985 = vld [vmem:[%s1 + $0x14] sm:$0xf]
      %v3986 = vld [vmem:[%s1 + $0x18] sm:$0xf]
      %v3987 = vld [vmem:[%s1 + $0x1c] sm:$0xf]
      %v3988 = vld [vmem:[%s1 + $0x20] sm:$0xf]
      %v3989 = vld [vmem:[%s1 + $0x24] sm:$0xf]
      %v3990 = vld [vmem:[%s1 + $0x28] sm:$0xf]
      %v3991 = vld [vmem:[%s1 + $0x2c] sm:$0xf]
      %v3992 = vld [vmem:[%s1 + $0x30] sm:$0xf]
      %v3993 = vld [vmem:[%s1 + $0x34] sm:$0xf]
      %v3994 = vld [vmem:[%s1 + $0x38] sm:$0xf]
      %v3995 = vld [vmem:[%s1 + $0x3c] sm:$0xf]
      %v4012 = vunpack.c.l.b16 %v3980
      %v4013 = vunpack.c.l.b16 %v3981
      %v4014 = vunpack.c.l.b16 %v3982
      %v4015 = vunpack.c.l.b16 %v3983
      %v4016 = vunpack.c.l.b16 %v3984
      %v4017 = vunpack.c.l.b16 %v3985
      %v4018 = vunpack.c.l.b16 %v3986
      %v4019 = vunpack.c.l.b16 %v3987
      %v4020 = vunpack.c.l.b16 %v3988
      %v4021 = vunpack.c.l.b16 %v3989
      %v4022 = vunpack.c.l.b16 %v3990
      %v4023 = vunpack.c.l.b16 %v3991
      %v4024 = vunpack.c.l.b16 %v3992
      %v4025 = vunpack.c.l.b16 %v3993
      %v4026 = vunpack.c.l.b16 %v3994
      %v4027 = vunpack.c.l.b16 %v3995
      %v4028 = vpack.c.b16 %v4013, %v4012
      %v4029 = vpack.c.b16 %v4015, %v4014
      %v4030 = vpack.c.b16 %v4017, %v4016
      %v4031 = vpack.c.b16 %v4019, %v4018
      %v4032 = vpack.c.b16 %v4021, %v4020
      %v4033 = vpack.c.b16 %v4023, %v4022
      %v4034 = vpack.c.b16 %v4025, %v4024
      %v4035 = vpack.c.b16 %v4027, %v4026
      %4044 = vmatprep.subr.bf16.mxu0 0
      %4045 = vmatpush1.bf16.msra.mxu0 %v4028
      %4046 = vmatprep.subr.bf16.mxu0 0
      %4047 = vmatpush1.bf16.msra.mxu0 %v4029
      %4048 = vmatprep.subr.bf16.mxu0 0
      %4049 = vmatpush1.bf16.msra.mxu0 %v4030
      %4050 = vmatprep.subr.bf16.mxu0 0
      %4051 = vmatpush1.bf16.msra.mxu0 %v4031
      %4052 = vmatprep.subr.bf16.mxu0 0
      %4053 = vmatpush1.bf16.msra.mxu0 %v4032
      %4054 = vmatprep.subr.bf16.mxu0 0
      %4055 = vmatpush1.bf16.msra.mxu0 %v4033
      %4056 = vmatprep.subr.bf16.mxu0 0
      %4057 = vmatpush1.bf16.msra.mxu0 %v4034
      %4058 = vmatprep.subr.bf16.mxu0 0
      %4059 = vmatpush1.bf16.msra.mxu0 %v4035
      %4060 = vmatprep.subr.bf16.mxu0 0
      %4061 = vmatpush1.bf16.msra.mxu0 0
      %4062 = vmatprep.subr.bf16.mxu0 0
      %4063 = vmatpush1.bf16.msra.mxu0 0
      %4064 = vmatprep.subr.bf16.mxu0 0
      %4065 = vmatpush1.bf16.msra.mxu0 0
      %4066 = vmatprep.subr.bf16.mxu0 0
      %4067 = vmatpush1.bf16.msra.mxu0 0
      %4068 = vmatprep.subr.bf16.mxu0 0
      %4069 = vmatpush1.bf16.msra.mxu0 0
      %4070 = vmatprep.subr.bf16.mxu0 0
      %4071 = vmatpush1.bf16.msra.mxu0 0
      %4072 = vmatprep.subr.bf16.mxu0 0
      %4073 = vmatpush1.bf16.msra.mxu0 0
      %4074 = vmatprep.subr.bf16.mxu0 0
      %4075 = vmatpush1.bf16.msra.mxu0 0
      %4076 = vmatprep.mubr.bf16.mxu0 0
      %4077 = vmatmul.mubr.bf16.gmra.mrb[0].mxu0 %v3962
      %v4078 = vpop.f32.mrb[0].mxu0
      %v4079 = vadd.f32 0.0, %v4078
      %v4080 = vpop.f32.mrb[0].mxu0
      %v4081 = vpop.f32.mrb[0].mxu0
      %v4082 = vadd.f32 0.0, %v4081
      %v4083 = vpop.f32.mrb[0].mxu0
      %4084 = vmatprep.mubr.bf16.mxu0 0
      %4085 = vmatmul.mubr.bf16.gmra.mrb[0].mxu0 %v3963
      %v4086 = vpop.f32.mrb[0].mxu0
      %v4087 = vadd.f32 0.0, %v4086
      %v4088 = vpop.f32.mrb[0].mxu0
      %v4089 = vpop.f32.mrb[0].mxu0
      %v4090 = vadd.f32 0.0, %v4089
      %v4091 = vpop.f32.mrb[0].mxu0
      %4092 = vmatprep.mubr.bf16.mxu0 0
      %4093 = vmatmul.mubr.bf16.gmra.mrb[0].mxu0 %v3964
      %v4094 = vpop.f32.mrb[0].mxu0
      %v4095 = vadd.f32 0.0, %v4094
      %v4096 = vpop.f32.mrb[0].mxu0
      %v4097 = vpop.f32.mrb[0].mxu0
      %v4098 = vadd.f32 0.0, %v4097
      %v4099 = vpop.f32.mrb[0].mxu0
      %4100 = vmatprep.mubr.bf16.mxu0 0
      %4101 = vmatmul.mubr.bf16.gmra.mrb[0].mxu0 %v3965
      %v4102 = vpop.f32.mrb[0].mxu0
      %v4103 = vadd.f32 0.0, %v4102
      %v4104 = vpop.f32.mrb[0].mxu0
      %v4105 = vpop.f32.mrb[0].mxu0
      %v4106 = vadd.f32 0.0, %v4105
      %v4107 = vpop.f32.mrb[0].mxu0
      %4108 = vmatprep.mubr.bf16.mxu0 0
      %4109 = vmatmul.mubr.bf16.gmra.mrb[0].mxu0 %v3966
      %v4110 = vpop.f32.mrb[0].mxu0
      %v4111 = vadd.f32 0.0, %v4110
      %v4112 = vpop.f32.mrb[0].mxu0
      %v4113 = vpop.f32.mrb[0].mxu0
      %v4114 = vadd.f32 0.0, %v4113
      %v4115 = vpop.f32.mrb[0].mxu0
      %4116 = vmatprep.mubr.bf16.mxu0 0
      %4117 = vmatmul.mubr.bf16.gmra.mrb[0].mxu0 %v3967
      %v4118 = vpop.f32.mrb[0].mxu0
      %v4119 = vadd.f32 0.0, %v4118
      %v4120 = vpop.f32.mrb[0].mxu0
      %v4121 = vpop.f32.mrb[0].mxu0
      %v4122 = vadd.f32 0.0, %v4121
      %v4123 = vpop.f32.mrb[0].mxu0
      %4124 = vmatprep.mubr.bf16.mxu0 0
      %4125 = vmatmul.mubr.bf16.gmra.mrb[0].mxu0 %v3968
      %v4126 = vpop.f32.mrb[0].mxu0
      %v4127 = vadd.f32 0.0, %v4126
      %v4128 = vpop.f32.mrb[0].mxu0
      %v4129 = vpop.f32.mrb[0].mxu0
      %v4130 = vadd.f32 0.0, %v4129
      %v4131 = vpop.f32.mrb[0].mxu0
      %4132 = vmatprep.mubr.bf16.mxu0 0
      %4133 = vmatmul.mubr.bf16.gmra.mrb[0].mxu0 %v3969
      %v4134 = vpop.f32.mrb[0].mxu0
      %v4135 = vadd.f32 0.0, %v4134
      %v4136 = vpop.f32.mrb[0].mxu0
      %v4137 = vpop.f32.mrb[0].mxu0
      %v4138 = vadd.f32 0.0, %v4137
      %v4139 = vpop.f32.mrb[0].mxu0
      %4140 = vmatprep.mubr.bf16.mxu0 0
      %4141 = vmatmul.mubr.bf16.gmra.mrb[0].mxu0 %v3970
      %v4142 = vpop.f32.mrb[0].mxu0
      %v4143 = vadd.f32 0.0, %v4142
      %v4144 = vpop.f32.mrb[0].mxu0
      %v4145 = vpop.f32.mrb[0].mxu0
      %v4146 = vadd.f32 0.0, %v4145
      %v4147 = vpop.f32.mrb[0].mxu0
      %4148 = vmatprep.mubr.bf16.mxu0 0
      %4149 = vmatmul.mubr.bf16.gmra.mrb[0].mxu0 %v3971
      %v4150 = vpop.f32.mrb[0].mxu0
      %v4151 = vadd.f32 0.0, %v4150
      %v4152 = vpop.f32.mrb[0].mxu0
      %v4153 = vpop.f32.mrb[0].mxu0
      %v4154 = vadd.f32 0.0, %v4153
      %v4155 = vpop.f32.mrb[0].mxu0
      %4156 = vmatprep.mubr.bf16.mxu0 0
      %4157 = vmatmul.mubr.bf16.gmra.mrb[0].mxu0 %v3972
      %v4158 = vpop.f32.mrb[0].mxu0
      %v4159 = vadd.f32 0.0, %v4158
      %v4160 = vpop.f32.mrb[0].mxu0
      %v4161 = vpop.f32.mrb[0].mxu0
      %v4162 = vadd.f32 0.0, %v4161
      %v4163 = vpop.f32.mrb[0].mxu0
      %4164 = vmatprep.mubr.bf16.mxu0 0
      %4165 = vmatmul.mubr.bf16.gmra.mrb[0].mxu0 %v3973
      %v4166 = vpop.f32.mrb[0].mxu0
      %v4167 = vadd.f32 0.0, %v4166
      %v4168 = vpop.f32.mrb[0].mxu0
      %v4169 = vpop.f32.mrb[0].mxu0
      %v4170 = vadd.f32 0.0, %v4169
      %v4171 = vpop.f32.mrb[0].mxu0
      %4172 = vmatprep.mubr.bf16.mxu0 0
      %4173 = vmatmul.mubr.bf16.gmra.mrb[0].mxu0 %v3974
      %v4174 = vpop.f32.mrb[0].mxu0
      %v4175 = vadd.f32 0.0, %v4174
      %v4176 = vpop.f32.mrb[0].mxu0
      %v4177 = vpop.f32.mrb[0].mxu0
      %v4178 = vadd.f32 0.0, %v4177
      %v4179 = vpop.f32.mrb[0].mxu0
      %4180 = vmatprep.mubr.bf16.mxu0 0
      %4181 = vmatmul.mubr.bf16.gmra.mrb[0].mxu0 %v3975
      %v4182 = vpop.f32.mrb[0].mxu0
      %v4183 = vadd.f32 0.0, %v4182
      %v4184 = vpop.f32.mrb[0].mxu0
      %v4185 = vpop.f32.mrb[0].mxu0
      %v4186 = vadd.f32 0.0, %v4185
      %v4187 = vpop.f32.mrb[0].mxu0
      %4188 = vmatprep.mubr.bf16.mxu0 0
      %4189 = vmatmul.mubr.bf16.gmra.mrb[0].mxu0 %v3976
      %v4190 = vpop.f32.mrb[0].mxu0
      %v4191 = vadd.f32 0.0, %v4190
      %v4192 = vpop.f32.mrb[0].mxu0
      %v4193 = vpop.f32.mrb[0].mxu0
      %v4194 = vadd.f32 0.0, %v4193
      %v4195 = vpop.f32.mrb[0].mxu0
      %4196 = vmatprep.mubr.bf16.mxu0 0
      %4197 = vmatmul.mubr.bf16.gmra.mrb[0].mxu0 %v3977
      %v4198 = vpop.f32.mrb[0].mxu0
      %v4199 = vadd.f32 0.0, %v4198
      %v4200 = vpop.f32.mrb[0].mxu0
      %v4201 = vpop.f32.mrb[0].mxu0
      %v4202 = vadd.f32 0.0, %v4201
      %v4203 = vpop.f32.mrb[0].mxu0
      %4204 = vmatprep.mubr.bf16.mxu0 0
      %4205 = vmatmul.mubr.bf16.gmra.mrb[0].mxu0 %v3978
      %v4206 = vpop.f32.mrb[0].mxu0
      %v4207 = vadd.f32 0.0, %v4206
      %v4208 = vpop.f32.mrb[0].mxu0
      %v4209 = vpop.f32.mrb[0].mxu0
      %v4210 = vadd.f32 0.0, %v4209
      %v4211 = vpop.f32.mrb[0].mxu0
      %4212 = vmatprep.mubr.bf16.mxu0 0
      %4213 = vmatmul.mubr.bf16.gmra.mrb[0].mxu0 %v3979
      %v4214 = vpop.f32.mrb[0].mxu0
      %v4215 = vadd.f32 0.0, %v4214
      %v4216 = vpop.f32.mrb[0].mxu0
      %v4217 = vpop.f32.mrb[0].mxu0
      %v4218 = vadd.f32 0.0, %v4217
      %v4219 = vpop.f32.mrb[0].mxu0
      %4220 = vdwg.mxu0
      %v4221 = vlaneseq
      %v4222 = vshrl.u32 %v4221, 7
      %v4223 = vadd.s32 %v4222, 8
      %v4224 = vadd.s32 %v4222, 16
      %v4225 = vadd.s32 %v4222, 24
      %v4226 = vadd.s32 %v4222, 32
      %v4227 = vadd.s32 %v4222, 40
      %v4228 = vadd.s32 %v4222, 48
      %v4229 = vadd.s32 %v4222, 56
      %v4230 = vadd.s32 %v4222, 64
      %v4231 = vadd.s32 %v4222, 72
      %v4232 = vadd.s32 %v4222, 80
      %v4233 = vadd.s32 %v4222, 88
      %v4234 = vadd.s32 %v4222, 96
      %v4235 = vadd.s32 %v4222, 104
      %v4236 = vadd.s32 %v4222, 112
      %v4237 = vadd.s32 %v4222, 120
      %v4238 = vadd.s32 %v4222, 128
      %v4239 = vadd.s32 %v4222, 136
      %v4240 = vadd.s32 %v4222, 144
      %v4241 = vadd.s32 %v4222, 152
      %v4242 = vadd.s32 %v4222, 160
      %v4243 = vadd.s32 %v4222, 168
      %v4244 = vadd.s32 %v4222, 176
      %v4245 = vadd.s32 %v4222, 184
      %v4246 = vadd.s32 %v4222, 192
      %v4247 = vadd.s32 %v4222, 200
      %v4248 = vadd.s32 %v4222, 208
      %v4249 = vadd.s32 %v4222, 216
      %v4250 = vadd.s32 %v4222, 224
      %v4251 = vadd.s32 %v4222, 232
      %v4252 = vadd.s32 %v4222, 240
      %v4253 = vadd.s32 %v4222, 248
      %v4254 = vadd.s32 %v4222, 256
      %v4255 = vadd.s32 %v4222, 264
      %v4256 = vadd.s32 %v4222, 272
      %v4257 = vadd.s32 %v4222, 280
      %vm4258 = vcmp.lt.s32.totalorder %v4222, 0
      %v4259 = vsub.s32 0, %v4222
      %v4260 = vsel %vm4258, %v4259, %v4222
      %v4261 = vmul.u32.u64.compose %v4260, 3817748708
      %v4262 = vextract.low.u32 %v4261
      %v4263 = vextract.high.u32 %v4261
      %v4264 = vshrl.u32 %v4263, 4
      %v4265 = vmul.u32 %v4264, 18
      %v4266 = vsub.s32 %v4260, %v4265
      %v4267 = vsub.s32 0, %v4266
      %v4268 = vsel %vm4258, %v4267, %v4266
      %vm4269 = vcmp.lt.s32.totalorder %v4223, 0
      %v4270 = vsub.s32 0, %v4223
      %v4271 = vsel %vm4269, %v4270, %v4223
      %v4272 = vmul.u32.u64.compose %v4271, 3817748708
      %v4273 = vextract.low.u32 %v4272
      %v4274 = vextract.high.u32 %v4272
      %v4275 = vshrl.u32 %v4274, 4
      %v4276 = vmul.u32 %v4275, 18
      %v4277 = vsub.s32 %v4271, %v4276
      %v4278 = vsub.s32 0, %v4277
      %v4279 = vsel %vm4269, %v4278, %v4277
      %vm4280 = vcmp.lt.s32.totalorder %v4224, 0
      %v4281 = vsub.s32 0, %v4224
      %v4282 = vsel %vm4280, %v4281, %v4224
      %v4283 = vmul.u32.u64.compose %v4282, 3817748708
      %v4284 = vextract.low.u32 %v4283
      %v4285 = vextract.high.u32 %v4283
      %v4286 = vshrl.u32 %v4285, 4
      %v4287 = vmul.u32 %v4286, 18
      %v4288 = vsub.s32 %v4282, %v4287
      %v4289 = vsub.s32 0, %v4288
      %v4290 = vsel %vm4280, %v4289, %v4288
      %vm4291 = vcmp.lt.s32.totalorder %v4225, 0
      %v4292 = vsub.s32 0, %v4225
      %v4293 = vsel %vm4291, %v4292, %v4225
      %v4294 = vmul.u32.u64.compose %v4293, 3817748708
      %v4295 = vextract.low.u32 %v4294
      %v4296 = vextract.high.u32 %v4294
      %v4297 = vshrl.u32 %v4296, 4
      %v4298 = vmul.u32 %v4297, 18
      %v4299 = vsub.s32 %v4293, %v4298
      %v4300 = vsub.s32 0, %v4299
      %v4301 = vsel %vm4291, %v4300, %v4299
      %vm4302 = vcmp.lt.s32.totalorder %v4226, 0
      %v4303 = vsub.s32 0, %v4226
      %v4304 = vsel %vm4302, %v4303, %v4226
      %v4305 = vmul.u32.u64.compose %v4304, 3817748708
      %v4306 = vextract.low.u32 %v4305
      %v4307 = vextract.high.u32 %v4305
      %v4308 = vshrl.u32 %v4307, 4
      %v4309 = vmul.u32 %v4308, 18
      %v4310 = vsub.s32 %v4304, %v4309
      %v4311 = vsub.s32 0, %v4310
      %v4312 = vsel %vm4302, %v4311, %v4310
      %vm4313 = vcmp.lt.s32.totalorder %v4227, 0
      %v4314 = vsub.s32 0, %v4227
      %v4315 = vsel %vm4313, %v4314, %v4227
      %v4316 = vmul.u32.u64.compose %v4315, 3817748708
      %v4317 = vextract.low.u32 %v4316
      %v4318 = vextract.high.u32 %v4316
      %v4319 = vshrl.u32 %v4318, 4
      %v4320 = vmul.u32 %v4319, 18
      %v4321 = vsub.s32 %v4315, %v4320
      %v4322 = vsub.s32 0, %v4321
      %v4323 = vsel %vm4313, %v4322, %v4321
      %vm4324 = vcmp.lt.s32.totalorder %v4228, 0
      %v4325 = vsub.s32 0, %v4228
      %v4326 = vsel %vm4324, %v4325, %v4228
      %v4327 = vmul.u32.u64.compose %v4326, 3817748708
      %v4328 = vextract.low.u32 %v4327
      %v4329 = vextract.high.u32 %v4327
      %v4330 = vshrl.u32 %v4329, 4
      %v4331 = vmul.u32 %v4330, 18
      %v4332 = vsub.s32 %v4326, %v4331
      %v4333 = vsub.s32 0, %v4332
      %v4334 = vsel %vm4324, %v4333, %v4332
      %vm4335 = vcmp.lt.s32.totalorder %v4229, 0
      %v4336 = vsub.s32 0, %v4229
      %v4337 = vsel %vm4335, %v4336, %v4229
      %v4338 = vmul.u32.u64.compose %v4337, 3817748708
      %v4339 = vextract.low.u32 %v4338
      %v4340 = vextract.high.u32 %v4338
      %v4341 = vshrl.u32 %v4340, 4
      %v4342 = vmul.u32 %v4341, 18
      %v4343 = vsub.s32 %v4337, %v4342
      %v4344 = vsub.s32 0, %v4343
      %v4345 = vsel %vm4335, %v4344, %v4343
      %vm4346 = vcmp.lt.s32.totalorder %v4230, 0
      %v4347 = vsub.s32 0, %v4230
      %v4348 = vsel %vm4346, %v4347, %v4230
      %v4349 = vmul.u32.u64.compose %v4348, 3817748708
      %v4350 = vextract.low.u32 %v4349
      %v4351 = vextract.high.u32 %v4349
      %v4352 = vshrl.u32 %v4351, 4
      %v4353 = vmul.u32 %v4352, 18
      %v4354 = vsub.s32 %v4348, %v4353
      %v4355 = vsub.s32 0, %v4354
      %v4356 = vsel %vm4346, %v4355, %v4354
      %vm4357 = vcmp.lt.s32.totalorder %v4231, 0
      %v4358 = vsub.s32 0, %v4231
      %v4359 = vsel %vm4357, %v4358, %v4231
      %v4360 = vmul.u32.u64.compose %v4359, 3817748708
      %v4361 = vextract.low.u32 %v4360
      %v4362 = vextract.high.u32 %v4360
      %v4363 = vshrl.u32 %v4362, 4
      %v4364 = vmul.u32 %v4363, 18
      %v4365 = vsub.s32 %v4359, %v4364
      %v4366 = vsub.s32 0, %v4365
      %v4367 = vsel %vm4357, %v4366, %v4365
      %vm4368 = vcmp.lt.s32.totalorder %v4232, 0
      %v4369 = vsub.s32 0, %v4232
      %v4370 = vsel %vm4368, %v4369, %v4232
      %v4371 = vmul.u32.u64.compose %v4370, 3817748708
      %v4372 = vextract.low.u32 %v4371
      %v4373 = vextract.high.u32 %v4371
      %v4374 = vshrl.u32 %v4373, 4
      %v4375 = vmul.u32 %v4374, 18
      %v4376 = vsub.s32 %v4370, %v4375
      %v4377 = vsub.s32 0, %v4376
      %v4378 = vsel %vm4368, %v4377, %v4376
      %vm4379 = vcmp.lt.s32.totalorder %v4233, 0
      %v4380 = vsub.s32 0, %v4233
      %v4381 = vsel %vm4379, %v4380, %v4233
      %v4382 = vmul.u32.u64.compose %v4381, 3817748708
      %v4383 = vextract.low.u32 %v4382
      %v4384 = vextract.high.u32 %v4382
      %v4385 = vshrl.u32 %v4384, 4
      %v4386 = vmul.u32 %v4385, 18
      %v4387 = vsub.s32 %v4381, %v4386
      %v4388 = vsub.s32 0, %v4387
      %v4389 = vsel %vm4379, %v4388, %v4387
      %vm4390 = vcmp.lt.s32.totalorder %v4234, 0
      %v4391 = vsub.s32 0, %v4234
      %v4392 = vsel %vm4390, %v4391, %v4234
      %v4393 = vmul.u32.u64.compose %v4392, 3817748708
      %v4394 = vextract.low.u32 %v4393
      %v4395 = vextract.high.u32 %v4393
      %v4396 = vshrl.u32 %v4395, 4
      %v4397 = vmul.u32 %v4396, 18
      %v4398 = vsub.s32 %v4392, %v4397
      %v4399 = vsub.s32 0, %v4398
      %v4400 = vsel %vm4390, %v4399, %v4398
      %vm4401 = vcmp.lt.s32.totalorder %v4235, 0
      %v4402 = vsub.s32 0, %v4235
      %v4403 = vsel %vm4401, %v4402, %v4235
      %v4404 = vmul.u32.u64.compose %v4403, 3817748708
      %v4405 = vextract.low.u32 %v4404
      %v4406 = vextract.high.u32 %v4404
      %v4407 = vshrl.u32 %v4406, 4
      %v4408 = vmul.u32 %v4407, 18
      %v4409 = vsub.s32 %v4403, %v4408
      %v4410 = vsub.s32 0, %v4409
      %v4411 = vsel %vm4401, %v4410, %v4409
      %vm4412 = vcmp.lt.s32.totalorder %v4236, 0
      %v4413 = vsub.s32 0, %v4236
      %v4414 = vsel %vm4412, %v4413, %v4236
      %v4415 = vmul.u32.u64.compose %v4414, 3817748708
      %v4416 = vextract.low.u32 %v4415
      %v4417 = vextract.high.u32 %v4415
      %v4418 = vshrl.u32 %v4417, 4
      %v4419 = vmul.u32 %v4418, 18
      %v4420 = vsub.s32 %v4414, %v4419
      %v4421 = vsub.s32 0, %v4420
      %v4422 = vsel %vm4412, %v4421, %v4420
      %vm4423 = vcmp.lt.s32.totalorder %v4237, 0
      %v4424 = vsub.s32 0, %v4237
      %v4425 = vsel %vm4423, %v4424, %v4237
      %v4426 = vmul.u32.u64.compose %v4425, 3817748708
      %v4427 = vextract.low.u32 %v4426
      %v4428 = vextract.high.u32 %v4426
      %v4429 = vshrl.u32 %v4428, 4
      %v4430 = vmul.u32 %v4429, 18
      %v4431 = vsub.s32 %v4425, %v4430
      %v4432 = vsub.s32 0, %v4431
      %v4433 = vsel %vm4423, %v4432, %v4431
      %vm4434 = vcmp.lt.s32.totalorder %v4238, 0
      %v4435 = vsub.s32 0, %v4238
      %v4436 = vsel %vm4434, %v4435, %v4238
      %v4437 = vmul.u32.u64.compose %v4436, 3817748708
      %v4438 = vextract.low.u32 %v4437
      %v4439 = vextract.high.u32 %v4437
      %v4440 = vshrl.u32 %v4439, 4
      %v4441 = vmul.u32 %v4440, 18
      %v4442 = vsub.s32 %v4436, %v4441
      %v4443 = vsub.s32 0, %v4442
      %v4444 = vsel %vm4434, %v4443, %v4442
      %vm4445 = vcmp.lt.s32.totalorder %v4239, 0
      %v4446 = vsub.s32 0, %v4239
      %v4447 = vsel %vm4445, %v4446, %v4239
      %v4448 = vmul.u32.u64.compose %v4447, 3817748708
      %v4449 = vextract.low.u32 %v4448
      %v4450 = vextract.high.u32 %v4448
      %v4451 = vshrl.u32 %v4450, 4
      %v4452 = vmul.u32 %v4451, 18
      %v4453 = vsub.s32 %v4447, %v4452
      %v4454 = vsub.s32 0, %v4453
      %v4455 = vsel %vm4445, %v4454, %v4453
      %vm4456 = vcmp.lt.s32.totalorder %v4240, 0
      %v4457 = vsub.s32 0, %v4240
      %v4458 = vsel %vm4456, %v4457, %v4240
      %v4459 = vmul.u32.u64.compose %v4458, 3817748708
      %v4460 = vextract.low.u32 %v4459
      %v4461 = vextract.high.u32 %v4459
      %v4462 = vshrl.u32 %v4461, 4
      %v4463 = vmul.u32 %v4462, 18
      %v4464 = vsub.s32 %v4458, %v4463
      %v4465 = vsub.s32 0, %v4464
      %v4466 = vsel %vm4456, %v4465, %v4464
      %vm4467 = vcmp.lt.s32.totalorder %v4241, 0
      %v4468 = vsub.s32 0, %v4241
      %v4469 = vsel %vm4467, %v4468, %v4241
      %v4470 = vmul.u32.u64.compose %v4469, 3817748708
      %v4471 = vextract.low.u32 %v4470
      %v4472 = vextract.high.u32 %v4470
      %v4473 = vshrl.u32 %v4472, 4
      %v4474 = vmul.u32 %v4473, 18
      %v4475 = vsub.s32 %v4469, %v4474
      %v4476 = vsub.s32 0, %v4475
      %v4477 = vsel %vm4467, %v4476, %v4475
      %vm4478 = vcmp.lt.s32.totalorder %v4242, 0
      %v4479 = vsub.s32 0, %v4242
      %v4480 = vsel %vm4478, %v4479, %v4242
      %v4481 = vmul.u32.u64.compose %v4480, 3817748708
      %v4482 = vextract.low.u32 %v4481
      %v4483 = vextract.high.u32 %v4481
      %v4484 = vshrl.u32 %v4483, 4
      %v4485 = vmul.u32 %v4484, 18
      %v4486 = vsub.s32 %v4480, %v4485
      %v4487 = vsub.s32 0, %v4486
      %v4488 = vsel %vm4478, %v4487, %v4486
      %vm4489 = vcmp.lt.s32.totalorder %v4243, 0
      %v4490 = vsub.s32 0, %v4243
      %v4491 = vsel %vm4489, %v4490, %v4243
      %v4492 = vmul.u32.u64.compose %v4491, 3817748708
      %v4493 = vextract.low.u32 %v4492
      %v4494 = vextract.high.u32 %v4492
      %v4495 = vshrl.u32 %v4494, 4
      %v4496 = vmul.u32 %v4495, 18
      %v4497 = vsub.s32 %v4491, %v4496
      %v4498 = vsub.s32 0, %v4497
      %v4499 = vsel %vm4489, %v4498, %v4497
      %vm4500 = vcmp.lt.s32.totalorder %v4244, 0
      %v4501 = vsub.s32 0, %v4244
      %v4502 = vsel %vm4500, %v4501, %v4244
      %v4503 = vmul.u32.u64.compose %v4502, 3817748708
      %v4504 = vextract.low.u32 %v4503
      %v4505 = vextract.high.u32 %v4503
      %v4506 = vshrl.u32 %v4505, 4
      %v4507 = vmul.u32 %v4506, 18
      %v4508 = vsub.s32 %v4502, %v4507
      %v4509 = vsub.s32 0, %v4508
      %v4510 = vsel %vm4500, %v4509, %v4508
      %vm4511 = vcmp.lt.s32.totalorder %v4245, 0
      %v4512 = vsub.s32 0, %v4245
      %v4513 = vsel %vm4511, %v4512, %v4245
      %v4514 = vmul.u32.u64.compose %v4513, 3817748708
      %v4515 = vextract.low.u32 %v4514
      %v4516 = vextract.high.u32 %v4514
      %v4517 = vshrl.u32 %v4516, 4
      %v4518 = vmul.u32 %v4517, 18
      %v4519 = vsub.s32 %v4513, %v4518
      %v4520 = vsub.s32 0, %v4519
      %v4521 = vsel %vm4511, %v4520, %v4519
      %vm4522 = vcmp.lt.s32.totalorder %v4246, 0
      %v4523 = vsub.s32 0, %v4246
      %v4524 = vsel %vm4522, %v4523, %v4246
      %v4525 = vmul.u32.u64.compose %v4524, 3817748708
      %v4526 = vextract.low.u32 %v4525
      %v4527 = vextract.high.u32 %v4525
      %v4528 = vshrl.u32 %v4527, 4
      %v4529 = vmul.u32 %v4528, 18
      %v4530 = vsub.s32 %v4524, %v4529
      %v4531 = vsub.s32 0, %v4530
      %v4532 = vsel %vm4522, %v4531, %v4530
      %vm4533 = vcmp.lt.s32.totalorder %v4247, 0
      %v4534 = vsub.s32 0, %v4247
      %v4535 = vsel %vm4533, %v4534, %v4247
      %v4536 = vmul.u32.u64.compose %v4535, 3817748708
      %v4537 = vextract.low.u32 %v4536
      %v4538 = vextract.high.u32 %v4536
      %v4539 = vshrl.u32 %v4538, 4
      %v4540 = vmul.u32 %v4539, 18
      %v4541 = vsub.s32 %v4535, %v4540
      %v4542 = vsub.s32 0, %v4541
      %v4543 = vsel %vm4533, %v4542, %v4541
      %vm4544 = vcmp.lt.s32.totalorder %v4248, 0
      %v4545 = vsub.s32 0, %v4248
      %v4546 = vsel %vm4544, %v4545, %v4248
      %v4547 = vmul.u32.u64.compose %v4546, 3817748708
      %v4548 = vextract.low.u32 %v4547
      %v4549 = vextract.high.u32 %v4547
      %v4550 = vshrl.u32 %v4549, 4
      %v4551 = vmul.u32 %v4550, 18
      %v4552 = vsub.s32 %v4546, %v4551
      %v4553 = vsub.s32 0, %v4552
      %v4554 = vsel %vm4544, %v4553, %v4552
      %vm4555 = vcmp.lt.s32.totalorder %v4249, 0
      %v4556 = vsub.s32 0, %v4249
      %v4557 = vsel %vm4555, %v4556, %v4249
      %v4558 = vmul.u32.u64.compose %v4557, 3817748708
      %v4559 = vextract.low.u32 %v4558
      %v4560 = vextract.high.u32 %v4558
      %v4561 = vshrl.u32 %v4560, 4
      %v4562 = vmul.u32 %v4561, 18
      %v4563 = vsub.s32 %v4557, %v4562
      %v4564 = vsub.s32 0, %v4563
      %v4565 = vsel %vm4555, %v4564, %v4563
      %vm4566 = vcmp.lt.s32.totalorder %v4250, 0
      %v4567 = vsub.s32 0, %v4250
      %v4568 = vsel %vm4566, %v4567, %v4250
      %v4569 = vmul.u32.u64.compose %v4568, 3817748708
      %v4570 = vextract.low.u32 %v4569
      %v4571 = vextract.high.u32 %v4569
      %v4572 = vshrl.u32 %v4571, 4
      %v4573 = vmul.u32 %v4572, 18
      %v4574 = vsub.s32 %v4568, %v4573
      %v4575 = vsub.s32 0, %v4574
      %v4576 = vsel %vm4566, %v4575, %v4574
      %vm4577 = vcmp.lt.s32.totalorder %v4251, 0
      %v4578 = vsub.s32 0, %v4251
      %v4579 = vsel %vm4577, %v4578, %v4251
      %v4580 = vmul.u32.u64.compose %v4579, 3817748708
      %v4581 = vextract.low.u32 %v4580
      %v4582 = vextract.high.u32 %v4580
      %v4583 = vshrl.u32 %v4582, 4
      %v4584 = vmul.u32 %v4583, 18
      %v4585 = vsub.s32 %v4579, %v4584
      %v4586 = vsub.s32 0, %v4585
      %v4587 = vsel %vm4577, %v4586, %v4585
      %vm4588 = vcmp.lt.s32.totalorder %v4252, 0
      %v4589 = vsub.s32 0, %v4252
      %v4590 = vsel %vm4588, %v4589, %v4252
      %v4591 = vmul.u32.u64.compose %v4590, 3817748708
      %v4592 = vextract.low.u32 %v4591
      %v4593 = vextract.high.u32 %v4591
      %v4594 = vshrl.u32 %v4593, 4
      %v4595 = vmul.u32 %v4594, 18
      %v4596 = vsub.s32 %v4590, %v4595
      %v4597 = vsub.s32 0, %v4596
      %v4598 = vsel %vm4588, %v4597, %v4596
      %vm4599 = vcmp.lt.s32.totalorder %v4253, 0
      %v4600 = vsub.s32 0, %v4253
      %v4601 = vsel %vm4599, %v4600, %v4253
      %v4602 = vmul.u32.u64.compose %v4601, 3817748708
      %v4603 = vextract.low.u32 %v4602
      %v4604 = vextract.high.u32 %v4602
      %v4605 = vshrl.u32 %v4604, 4
      %v4606 = vmul.u32 %v4605, 18
      %v4607 = vsub.s32 %v4601, %v4606
      %v4608 = vsub.s32 0, %v4607
      %v4609 = vsel %vm4599, %v4608, %v4607
      %vm4610 = vcmp.lt.s32.totalorder %v4254, 0
      %v4611 = vsub.s32 0, %v4254
      %v4612 = vsel %vm4610, %v4611, %v4254
      %v4613 = vmul.u32.u64.compose %v4612, 3817748708
      %v4614 = vextract.low.u32 %v4613
      %v4615 = vextract.high.u32 %v4613
      %v4616 = vshrl.u32 %v4615, 4
      %v4617 = vmul.u32 %v4616, 18
      %v4618 = vsub.s32 %v4612, %v4617
      %v4619 = vsub.s32 0, %v4618
      %v4620 = vsel %vm4610, %v4619, %v4618
      %vm4621 = vcmp.lt.s32.totalorder %v4255, 0
      %v4622 = vsub.s32 0, %v4255
      %v4623 = vsel %vm4621, %v4622, %v4255
      %v4624 = vmul.u32.u64.compose %v4623, 3817748708
      %v4625 = vextract.low.u32 %v4624
      %v4626 = vextract.high.u32 %v4624
      %v4627 = vshrl.u32 %v4626, 4
      %v4628 = vmul.u32 %v4627, 18
      %v4629 = vsub.s32 %v4623, %v4628
      %v4630 = vsub.s32 0, %v4629
      %v4631 = vsel %vm4621, %v4630, %v4629
      %vm4632 = vcmp.lt.s32.totalorder %v4256, 0
      %v4633 = vsub.s32 0, %v4256
      %v4634 = vsel %vm4632, %v4633, %v4256
      %v4635 = vmul.u32.u64.compose %v4634, 3817748708
      %v4636 = vextract.low.u32 %v4635
      %v4637 = vextract.high.u32 %v4635
      %v4638 = vshrl.u32 %v4637, 4
      %v4639 = vmul.u32 %v4638, 18
      %v4640 = vsub.s32 %v4634, %v4639
      %v4641 = vsub.s32 0, %v4640
      %v4642 = vsel %vm4632, %v4641, %v4640
      %vm4643 = vcmp.lt.s32.totalorder %v4257, 0
      %v4644 = vsub.s32 0, %v4257
      %v4645 = vsel %vm4643, %v4644, %v4257
      %v4646 = vmul.u32.u64.compose %v4645, 3817748708
      %v4647 = vextract.low.u32 %v4646
      %v4648 = vextract.high.u32 %v4646
      %v4649 = vshrl.u32 %v4648, 4
      %v4650 = vmul.u32 %v4649, 18
      %v4651 = vsub.s32 %v4645, %v4650
      %v4652 = vsub.s32 0, %v4651
      %v4653 = vsel %vm4643, %v4652, %v4651
      %vm4654 = vcmp.ne.s32.totalorder %v4268, 0
      %vm4655 = vcmp.ne.s32.totalorder %v4279, 0
      %vm4656 = vcmp.ne.s32.totalorder %v4290, 0
      %vm4657 = vcmp.ne.s32.totalorder %v4301, 0
      %vm4658 = vcmp.ne.s32.totalorder %v4312, 0
      %vm4659 = vcmp.ne.s32.totalorder %v4323, 0
      %vm4660 = vcmp.ne.s32.totalorder %v4334, 0
      %vm4661 = vcmp.ne.s32.totalorder %v4345, 0
      %vm4662 = vcmp.ne.s32.totalorder %v4356, 0
      %vm4663 = vcmp.ne.s32.totalorder %v4367, 0
      %vm4664 = vcmp.ne.s32.totalorder %v4378, 0
      %vm4665 = vcmp.ne.s32.totalorder %v4389, 0
      %vm4666 = vcmp.ne.s32.totalorder %v4400, 0
      %vm4667 = vcmp.ne.s32.totalorder %v4411, 0
      %vm4668 = vcmp.ne.s32.totalorder %v4422, 0
      %vm4669 = vcmp.ne.s32.totalorder %v4433, 0
      %vm4670 = vcmp.ne.s32.totalorder %v4444, 0
      %vm4671 = vcmp.ne.s32.totalorder %v4455, 0
      %vm4672 = vcmp.ne.s32.totalorder %v4466, 0
      %vm4673 = vcmp.ne.s32.totalorder %v4477, 0
      %vm4674 = vcmp.ne.s32.totalorder %v4488, 0
      %vm4675 = vcmp.ne.s32.totalorder %v4499, 0
      %vm4676 = vcmp.ne.s32.totalorder %v4510, 0
      %vm4677 = vcmp.ne.s32.totalorder %v4521, 0
      %vm4678 = vcmp.ne.s32.totalorder %v4532, 0
      %vm4679 = vcmp.ne.s32.totalorder %v4543, 0
      %vm4680 = vcmp.ne.s32.totalorder %v4554, 0
      %vm4681 = vcmp.ne.s32.totalorder %v4565, 0
      %vm4682 = vcmp.ne.s32.totalorder %v4576, 0
      %vm4683 = vcmp.ne.s32.totalorder %v4587, 0
      %vm4684 = vcmp.ne.s32.totalorder %v4598, 0
      %vm4685 = vcmp.ne.s32.totalorder %v4609, 0
      %vm4686 = vcmp.ne.s32.totalorder %v4620, 0
      %vm4687 = vcmp.ne.s32.totalorder %v4631, 0
      %vm4688 = vcmp.ne.s32.totalorder %v4642, 0
      %vm4689 = vcmp.ne.s32.totalorder %v4653, 0
      %vm4690 = vcmp.lt.s32.totalorder %v4268, 0
      %vm4691 = vcmp.lt.s32.totalorder %v4279, 0
      %vm4692 = vcmp.lt.s32.totalorder %v4290, 0
      %vm4693 = vcmp.lt.s32.totalorder %v4301, 0
      %vm4694 = vcmp.lt.s32.totalorder %v4312, 0
      %vm4695 = vcmp.lt.s32.totalorder %v4323, 0
      %vm4696 = vcmp.lt.s32.totalorder %v4334, 0
      %vm4697 = vcmp.lt.s32.totalorder %v4345, 0
      %vm4698 = vcmp.lt.s32.totalorder %v4356, 0
      %vm4699 = vcmp.lt.s32.totalorder %v4367, 0
      %vm4700 = vcmp.lt.s32.totalorder %v4378, 0
      %vm4701 = vcmp.lt.s32.totalorder %v4389, 0
      %vm4702 = vcmp.lt.s32.totalorder %v4400, 0
      %vm4703 = vcmp.lt.s32.totalorder %v4411, 0
      %vm4704 = vcmp.lt.s32.totalorder %v4422, 0
      %vm4705 = vcmp.lt.s32.totalorder %v4433, 0
      %vm4706 = vcmp.lt.s32.totalorder %v4444, 0
      %vm4707 = vcmp.lt.s32.totalorder %v4455, 0
      %vm4708 = vcmp.lt.s32.totalorder %v4466, 0
      %vm4709 = vcmp.lt.s32.totalorder %v4477, 0
      %vm4710 = vcmp.lt.s32.totalorder %v4488, 0
      %vm4711 = vcmp.lt.s32.totalorder %v4499, 0
      %vm4712 = vcmp.lt.s32.totalorder %v4510, 0
      %vm4713 = vcmp.lt.s32.totalorder %v4521, 0
      %vm4714 = vcmp.lt.s32.totalorder %v4532, 0
      %vm4715 = vcmp.lt.s32.totalorder %v4543, 0
      %vm4716 = vcmp.lt.s32.totalorder %v4554, 0
      %vm4717 = vcmp.lt.s32.totalorder %v4565, 0
      %vm4718 = vcmp.lt.s32.totalorder %v4576, 0
      %vm4719 = vcmp.lt.s32.totalorder %v4587, 0
      %vm4720 = vcmp.lt.s32.totalorder %v4598, 0
      %vm4721 = vcmp.lt.s32.totalorder %v4609, 0
      %vm4722 = vcmp.lt.s32.totalorder %v4620, 0
      %vm4723 = vcmp.lt.s32.totalorder %v4631, 0
      %vm4724 = vcmp.lt.s32.totalorder %v4642, 0
      %vm4725 = vcmp.lt.s32.totalorder %v4653, 0
      %vm4726 = vmand %vm4690, %vm4654
      %vm4727 = vmand %vm4691, %vm4655
      %vm4728 = vmand %vm4692, %vm4656
      %vm4729 = vmand %vm4693, %vm4657
      %vm4730 = vmand %vm4694, %vm4658
      %vm4731 = vmand %vm4695, %vm4659
      %vm4732 = vmand %vm4696, %vm4660
      %vm4733 = vmand %vm4697, %vm4661
      %vm4734 = vmand %vm4698, %vm4662
      %vm4735 = vmand %vm4699, %vm4663
      %vm4736 = vmand %vm4700, %vm4664
      %vm4737 = vmand %vm4701, %vm4665
      %vm4738 = vmand %vm4702, %vm4666
      %vm4739 = vmand %vm4703, %vm4667
      %vm4740 = vmand %vm4704, %vm4668
      %vm4741 = vmand %vm4705, %vm4669
      %vm4742 = vmand %vm4706, %vm4670
      %vm4743 = vmand %vm4707, %vm4671
      %vm4744 = vmand %vm4708, %vm4672
      %vm4745 = vmand %vm4709, %vm4673
      %vm4746 = vmand %vm4710, %vm4674
      %vm4747 = vmand %vm4711, %vm4675
      %vm4748 = vmand %vm4712, %vm4676
      %vm4749 = vmand %vm4713, %vm4677
      %vm4750 = vmand %vm4714, %vm4678
      %vm4751 = vmand %vm4715, %vm4679
      %vm4752 = vmand %vm4716, %vm4680
      %vm4753 = vmand %vm4717, %vm4681
      %vm4754 = vmand %vm4718, %vm4682
      %vm4755 = vmand %vm4719, %vm4683
      %vm4756 = vmand %vm4720, %vm4684
      %vm4757 = vmand %vm4721, %vm4685
      %vm4758 = vmand %vm4722, %vm4686
      %vm4759 = vmand %vm4723, %vm4687
      %vm4760 = vmand %vm4724, %vm4688
      %vm4761 = vmand %vm4725, %vm4689
      %v4762 = vadd.s32 %v4268, 18
      %v4763 = vadd.s32 %v4279, 18
      %v4764 = vadd.s32 %v4290, 18
      %v4765 = vadd.s32 %v4301, 18
      %v4766 = vadd.s32 %v4312, 18
      %v4767 = vadd.s32 %v4323, 18
      %v4768 = vadd.s32 %v4334, 18
      %v4769 = vadd.s32 %v4345, 18
      %v4770 = vadd.s32 %v4356, 18
      %v4771 = vadd.s32 %v4367, 18
      %v4772 = vadd.s32 %v4378, 18
      %v4773 = vadd.s32 %v4389, 18
      %v4774 = vadd.s32 %v4400, 18
      %v4775 = vadd.s32 %v4411, 18
      %v4776 = vadd.s32 %v4422, 18
      %v4777 = vadd.s32 %v4433, 18
      %v4778 = vadd.s32 %v4444, 18
      %v4779 = vadd.s32 %v4455, 18
      %v4780 = vadd.s32 %v4466, 18
      %v4781 = vadd.s32 %v4477, 18
      %v4782 = vadd.s32 %v4488, 18
      %v4783 = vadd.s32 %v4499, 18
      %v4784 = vadd.s32 %v4510, 18
      %v4785 = vadd.s32 %v4521, 18
      %v4786 = vadd.s32 %v4532, 18
      %v4787 = vadd.s32 %v4543, 18
      %v4788 = vadd.s32 %v4554, 18
      %v4789 = vadd.s32 %v4565, 18
      %v4790 = vadd.s32 %v4576, 18
      %v4791 = vadd.s32 %v4587, 18
      %v4792 = vadd.s32 %v4598, 18
      %v4793 = vadd.s32 %v4609, 18
      %v4794 = vadd.s32 %v4620, 18
      %v4795 = vadd.s32 %v4631, 18
      %v4796 = vadd.s32 %v4642, 18
      %v4797 = vadd.s32 %v4653, 18
      %v4798 = vsel %vm4726, %v4762, %v4268
      %v4799 = vsel %vm4727, %v4763, %v4279
      %v4800 = vsel %vm4728, %v4764, %v4290
      %v4801 = vsel %vm4729, %v4765, %v4301
      %v4802 = vsel %vm4730, %v4766, %v4312
      %v4803 = vsel %vm4731, %v4767, %v4323
      %v4804 = vsel %vm4732, %v4768, %v4334
      %v4805 = vsel %vm4733, %v4769, %v4345
      %v4806 = vsel %vm4734, %v4770, %v4356
      %v4807 = vsel %vm4735, %v4771, %v4367
      %v4808 = vsel %vm4736, %v4772, %v4378
      %v4809 = vsel %vm4737, %v4773, %v4389
      %v4810 = vsel %vm4738, %v4774, %v4400
      %v4811 = vsel %vm4739, %v4775, %v4411
      %v4812 = vsel %vm4740, %v4776, %v4422
      %v4813 = vsel %vm4741, %v4777, %v4433
      %v4814 = vsel %vm4742, %v4778, %v4444
      %v4815 = vsel %vm4743, %v4779, %v4455
      %v4816 = vsel %vm4744, %v4780, %v4466
      %v4817 = vsel %vm4745, %v4781, %v4477
      %v4818 = vsel %vm4746, %v4782, %v4488
      %v4819 = vsel %vm4747, %v4783, %v4499
      %v4820 = vsel %vm4748, %v4784, %v4510
      %v4821 = vsel %vm4749, %v4785, %v4521
      %v4822 = vsel %vm4750, %v4786, %v4532
      %v4823 = vsel %vm4751, %v4787, %v4543
      %v4824 = vsel %vm4752, %v4788, %v4554
      %v4825 = vsel %vm4753, %v4789, %v4565
      %v4826 = vsel %vm4754, %v4790, %v4576
      %v4827 = vsel %vm4755, %v4791, %v4587
      %v4828 = vsel %vm4756, %v4792, %v4598
      %v4829 = vsel %vm4757, %v4793, %v4609
      %v4830 = vsel %vm4758, %v4794, %v4620
      %v4831 = vsel %vm4759, %v4795, %v4631
      %v4832 = vsel %vm4760, %v4796, %v4642
      %v4833 = vsel %vm4761, %v4797, %v4653
      %vm4834 = vcmp.lt.s32.totalorder %v4798, 16
      %vm4835 = vcmp.lt.s32.totalorder %v4799, 16
      %vm4836 = vcmp.lt.s32.totalorder %v4800, 16
      %vm4837 = vcmp.lt.s32.totalorder %v4801, 16
      %vm4838 = vcmp.lt.s32.totalorder %v4802, 16
      %vm4839 = vcmp.lt.s32.totalorder %v4803, 16
      %vm4840 = vcmp.lt.s32.totalorder %v4804, 16
      %vm4841 = vcmp.lt.s32.totalorder %v4805, 16
      %vm4842 = vcmp.lt.s32.totalorder %v4806, 16
      %vm4843 = vcmp.lt.s32.totalorder %v4807, 16
      %vm4844 = vcmp.lt.s32.totalorder %v4808, 16
      %vm4845 = vcmp.lt.s32.totalorder %v4809, 16
      %vm4846 = vcmp.lt.s32.totalorder %v4810, 16
      %vm4847 = vcmp.lt.s32.totalorder %v4811, 16
      %vm4848 = vcmp.lt.s32.totalorder %v4812, 16
      %vm4849 = vcmp.lt.s32.totalorder %v4813, 16
      %vm4850 = vcmp.lt.s32.totalorder %v4814, 16
      %vm4851 = vcmp.lt.s32.totalorder %v4815, 16
      %vm4852 = vcmp.lt.s32.totalorder %v4816, 16
      %vm4853 = vcmp.lt.s32.totalorder %v4817, 16
      %vm4854 = vcmp.lt.s32.totalorder %v4818, 16
      %vm4855 = vcmp.lt.s32.totalorder %v4819, 16
      %vm4856 = vcmp.lt.s32.totalorder %v4820, 16
      %vm4857 = vcmp.lt.s32.totalorder %v4821, 16
      %vm4858 = vcmp.lt.s32.totalorder %v4822, 16
      %vm4859 = vcmp.lt.s32.totalorder %v4823, 16
      %vm4860 = vcmp.lt.s32.totalorder %v4824, 16
      %vm4861 = vcmp.lt.s32.totalorder %v4825, 16
      %vm4862 = vcmp.lt.s32.totalorder %v4826, 16
      %vm4863 = vcmp.lt.s32.totalorder %v4827, 16
      %vm4864 = vcmp.lt.s32.totalorder %v4828, 16
      %vm4865 = vcmp.lt.s32.totalorder %v4829, 16
      %vm4866 = vcmp.lt.s32.totalorder %v4830, 16
      %vm4867 = vcmp.lt.s32.totalorder %v4831, 16
      %vm4868 = vcmp.lt.s32.totalorder %v4832, 16
      %vm4869 = vcmp.lt.s32.totalorder %v4833, 16
      %v4870 = vsel %vm4834, 1, 0
      %v4871 = vsel %vm4835, 1, 0
      %v4872 = vsel %vm4836, 1, 0
      %v4873 = vsel %vm4837, 1, 0
      %v4874 = vsel %vm4838, 1, 0
      %v4875 = vsel %vm4839, 1, 0
      %v4876 = vsel %vm4840, 1, 0
      %v4877 = vsel %vm4841, 1, 0
      %v4878 = vsel %vm4842, 1, 0
      %v4879 = vsel %vm4843, 1, 0
      %v4880 = vsel %vm4844, 1, 0
      %v4881 = vsel %vm4845, 1, 0
      %v4882 = vsel %vm4846, 1, 0
      %v4883 = vsel %vm4847, 1, 0
      %v4884 = vsel %vm4848, 1, 0
      %v4885 = vsel %vm4849, 1, 0
      %v4886 = vsel %vm4850, 1, 0
      %v4887 = vsel %vm4851, 1, 0
      %v4888 = vsel %vm4852, 1, 0
      %v4889 = vsel %vm4853, 1, 0
      %v4890 = vsel %vm4854, 1, 0
      %v4891 = vsel %vm4855, 1, 0
      %v4892 = vsel %vm4856, 1, 0
      %v4893 = vsel %vm4857, 1, 0
      %v4894 = vsel %vm4858, 1, 0
      %v4895 = vsel %vm4859, 1, 0
      %v4896 = vsel %vm4860, 1, 0
      %v4897 = vsel %vm4861, 1, 0
      %v4898 = vsel %vm4862, 1, 0
      %v4899 = vsel %vm4863, 1, 0
      %v4900 = vsel %vm4864, 1, 0
      %v4901 = vsel %vm4865, 1, 0
      %v4902 = vsel %vm4866, 1, 0
      %v4903 = vsel %vm4867, 1, 0
      %v4904 = vsel %vm4868, 1, 0
      %v4905 = vsel %vm4869, 1, 0
      %v4906 = vcvt.s32.f32 %v4870
      %v4907 = vcvt.s32.f32 %v4871
      %v4908 = vcvt.s32.f32 %v4872
      %v4909 = vcvt.s32.f32 %v4873
      %v4910 = vcvt.s32.f32 %v4874
      %v4911 = vcvt.s32.f32 %v4875
      %v4912 = vcvt.s32.f32 %v4876
      %v4913 = vcvt.s32.f32 %v4877
      %v4914 = vcvt.s32.f32 %v4878
      %v4915 = vcvt.s32.f32 %v4879
      %v4916 = vcvt.s32.f32 %v4880
      %v4917 = vcvt.s32.f32 %v4881
      %v4918 = vcvt.s32.f32 %v4882
      %v4919 = vcvt.s32.f32 %v4883
      %v4920 = vcvt.s32.f32 %v4884
      %v4921 = vcvt.s32.f32 %v4885
      %v4922 = vcvt.s32.f32 %v4886
      %v4923 = vcvt.s32.f32 %v4887
      %v4924 = vcvt.s32.f32 %v4888
      %v4925 = vcvt.s32.f32 %v4889
      %v4926 = vcvt.s32.f32 %v4890
      %v4927 = vcvt.s32.f32 %v4891
      %v4928 = vcvt.s32.f32 %v4892
      %v4929 = vcvt.s32.f32 %v4893
      %v4930 = vcvt.s32.f32 %v4894
      %v4931 = vcvt.s32.f32 %v4895
      %v4932 = vcvt.s32.f32 %v4896
      %v4933 = vcvt.s32.f32 %v4897
      %v4934 = vcvt.s32.f32 %v4898
      %v4935 = vcvt.s32.f32 %v4899
      %v4936 = vcvt.s32.f32 %v4900
      %v4937 = vcvt.s32.f32 %v4901
      %v4938 = vcvt.s32.f32 %v4902
      %v4939 = vcvt.s32.f32 %v4903
      %v4940 = vcvt.s32.f32 %v4904
      %v4941 = vcvt.s32.f32 %v4905
      %v4942 = vmul.f32 %v4079, %v4906
      %v4943 = vmul.f32 %v4082, %v4907
      %v4944 = vmul.f32 %v4087, %v4908
      %v4945 = vmul.f32 %v4090, %v4909
      %v4946 = vmul.f32 %v4095, %v4910
      %v4947 = vmul.f32 %v4098, %v4911
      %v4948 = vmul.f32 %v4103, %v4912
      %v4949 = vmul.f32 %v4106, %v4913
      %v4950 = vmul.f32 %v4111, %v4914
      %v4951 = vmul.f32 %v4114, %v4915
      %v4952 = vmul.f32 %v4119, %v4916
      %v4953 = vmul.f32 %v4122, %v4917
      %v4954 = vmul.f32 %v4127, %v4918
      %v4955 = vmul.f32 %v4130, %v4919
      %v4956 = vmul.f32 %v4135, %v4920
      %v4957 = vmul.f32 %v4138, %v4921
      %v4958 = vmul.f32 %v4143, %v4922
      %v4959 = vmul.f32 %v4146, %v4923
      %v4960 = vmul.f32 %v4151, %v4924
      %v4961 = vmul.f32 %v4154, %v4925
      %v4962 = vmul.f32 %v4159, %v4926
      %v4963 = vmul.f32 %v4162, %v4927
      %v4964 = vmul.f32 %v4167, %v4928
      %v4965 = vmul.f32 %v4170, %v4929
      %v4966 = vmul.f32 %v4175, %v4930
      %v4967 = vmul.f32 %v4178, %v4931
      %v4968 = vmul.f32 %v4183, %v4932
      %v4969 = vmul.f32 %v4186, %v4933
      %v4970 = vmul.f32 %v4191, %v4934
      %v4971 = vmul.f32 %v4194, %v4935
      %v4972 = vmul.f32 %v4199, %v4936
      %v4973 = vmul.f32 %v4202, %v4937
      %v4974 = vmul.f32 %v4207, %v4938
      %v4975 = vmul.f32 %v4210, %v4939
      %v4976 = vmul.f32 %v4215, %v4940
      %v4977 = vmul.f32 %v4218, %v4941
      %v4978 = vmul.f32 %v3820, %v4906
      %v4979 = vmul.f32 %v3823, %v4907
      %v4980 = vmul.f32 %v3828, %v4908
      %v4981 = vmul.f32 %v3831, %v4909
      %v4982 = vmul.f32 %v3836, %v4910
      %v4983 = vmul.f32 %v3839, %v4911
      %v4984 = vmul.f32 %v3844, %v4912
      %v4985 = vmul.f32 %v3847, %v4913
      %v4986 = vmul.f32 %v3852, %v4914
      %v4987 = vmul.f32 %v3855, %v4915
      %v4988 = vmul.f32 %v3860, %v4916
      %v4989 = vmul.f32 %v3863, %v4917
      %v4990 = vmul.f32 %v3868, %v4918
      %v4991 = vmul.f32 %v3871, %v4919
      %v4992 = vmul.f32 %v3876, %v4920
      %v4993 = vmul.f32 %v3879, %v4921
      %v4994 = vmul.f32 %v3884, %v4922
      %v4995 = vmul.f32 %v3887, %v4923
      %v4996 = vmul.f32 %v3892, %v4924
      %v4997 = vmul.f32 %v3895, %v4925
      %v4998 = vmul.f32 %v3900, %v4926
      %v4999 = vmul.f32 %v3903, %v4927
      %v5000 = vmul.f32 %v3908, %v4928
      %v5001 = vmul.f32 %v3911, %v4929
      %v5002 = vmul.f32 %v3916, %v4930
      %v5003 = vmul.f32 %v3919, %v4931
      %v5004 = vmul.f32 %v3924, %v4932
      %v5005 = vmul.f32 %v3927, %v4933
      %v5006 = vmul.f32 %v3932, %v4934
      %v5007 = vmul.f32 %v3935, %v4935
      %v5008 = vmul.f32 %v3940, %v4936
      %v5009 = vmul.f32 %v3943, %v4937
      %v5010 = vmul.f32 %v3948, %v4938
      %v5011 = vmul.f32 %v3951, %v4939
      %v5012 = vmul.f32 %v3956, %v4940
      %v5013 = vmul.f32 %v3959, %v4941
      %v5014 = vadd.f32 %v4942, %v4943
      %v5015 = vadd.f32 %v5014, %v4944
      %v5016 = vadd.f32 %v5015, %v4945
      %v5017 = vadd.f32 %v5016, %v4946
      %v5018 = vadd.f32 %v5017, %v4947
      %v5019 = vadd.f32 %v5018, %v4948
      %v5020 = vadd.f32 %v5019, %v4949
      %v5021 = vadd.f32 %v5020, %v4950
      %v5022 = vadd.f32 %v5021, %v4951
      %v5023 = vadd.f32 %v5022, %v4952
      %v5024 = vadd.f32 %v5023, %v4953
      %v5025 = vadd.f32 %v5024, %v4954
      %v5026 = vadd.f32 %v5025, %v4955
      %v5027 = vadd.f32 %v5026, %v4956
      %v5028 = vadd.f32 %v5027, %v4957
      %v5029 = vadd.f32 %v5028, %v4958
      %v5030 = vadd.f32 %v5029, %v4959
      %v5031 = vadd.f32 %v5030, %v4960
      %v5032 = vadd.f32 %v5031, %v4961
      %v5033 = vadd.f32 %v5032, %v4962
      %v5034 = vadd.f32 %v5033, %v4963
      %v5035 = vadd.f32 %v5034, %v4964
      %v5036 = vadd.f32 %v5035, %v4965
      %v5037 = vadd.f32 %v5036, %v4966
      %v5038 = vadd.f32 %v5037, %v4967
      %v5039 = vadd.f32 %v5038, %v4968
      %v5040 = vadd.f32 %v5039, %v4969
      %v5041 = vadd.f32 %v5040, %v4970
      %v5042 = vadd.f32 %v5041, %v4971
      %v5043 = vadd.f32 %v5042, %v4972
      %v5044 = vadd.f32 %v5043, %v4973
      %v5045 = vadd.f32 %v5044, %v4974
      %v5046 = vadd.f32 %v5045, %v4975
      %v5047 = vadd.f32 %v5046, %v4976
      %v5048 = vadd.f32 %v5047, %v4977
      %v5049 = vrot.slane %v5048, 4
      %v5050 = vadd.f32 %v5048, %v5049
      %v5051 = vrot.slane %v5050, 2
      %v5052 = vadd.f32 %v5050, %v5051
      %v5053 = vrot.slane %v5052, 1
      %v5054 = vadd.f32 %v5052, %v5053
      %v5055 = vmul.f32 %v4942, %v4079
      %v5056 = vmul.f32 %v4943, %v4082
      %v5057 = vmul.f32 %v4944, %v4087
      %v5058 = vmul.f32 %v4945, %v4090
      %v5059 = vmul.f32 %v4946, %v4095
      %v5060 = vmul.f32 %v4947, %v4098
      %v5061 = vmul.f32 %v4948, %v4103
      %v5062 = vmul.f32 %v4949, %v4106
      %v5063 = vmul.f32 %v4950, %v4111
      %v5064 = vmul.f32 %v4951, %v4114
      %v5065 = vmul.f32 %v4952, %v4119
      %v5066 = vmul.f32 %v4953, %v4122
      %v5067 = vmul.f32 %v4954, %v4127
      %v5068 = vmul.f32 %v4955, %v4130
      %v5069 = vmul.f32 %v4956, %v4135
      %v5070 = vmul.f32 %v4957, %v4138
      %v5071 = vmul.f32 %v4958, %v4143
      %v5072 = vmul.f32 %v4959, %v4146
      %v5073 = vmul.f32 %v4960, %v4151
      %v5074 = vmul.f32 %v4961, %v4154
      %v5075 = vmul.f32 %v4962, %v4159
      %v5076 = vmul.f32 %v4963, %v4162
      %v5077 = vmul.f32 %v4964, %v4167
      %v5078 = vmul.f32 %v4965, %v4170
      %v5079 = vmul.f32 %v4966, %v4175
      %v5080 = vmul.f32 %v4967, %v4178
      %v5081 = vmul.f32 %v4968, %v4183
      %v5082 = vmul.f32 %v4969, %v4186
      %v5083 = vmul.f32 %v4970, %v4191
      %v5084 = vmul.f32 %v4971, %v4194
      %v5085 = vmul.f32 %v4972, %v4199
      %v5086 = vmul.f32 %v4973, %v4202
      %v5087 = vmul.f32 %v4974, %v4207
      %v5088 = vmul.f32 %v4975, %v4210
      %v5089 = vmul.f32 %v4976, %v4215
      %v5090 = vmul.f32 %v4977, %v4218
      %v5091 = vadd.f32 %v5055, %v5056
      %v5092 = vadd.f32 %v5091, %v5057
      %v5093 = vadd.f32 %v5092, %v5058
      %v5094 = vadd.f32 %v5093, %v5059
      %v5095 = vadd.f32 %v5094, %v5060
      %v5096 = vadd.f32 %v5095, %v5061
      %v5097 = vadd.f32 %v5096, %v5062
      %v5098 = vadd.f32 %v5097, %v5063
      %v5099 = vadd.f32 %v5098, %v5064
      %v5100 = vadd.f32 %v5099, %v5065
      %v5101 = vadd.f32 %v5100, %v5066
      %v5102 = vadd.f32 %v5101, %v5067
      %v5103 = vadd.f32 %v5102, %v5068
      %v5104 = vadd.f32 %v5103, %v5069
      %v5105 = vadd.f32 %v5104, %v5070
      %v5106 = vadd.f32 %v5105, %v5071
      %v5107 = vadd.f32 %v5106, %v5072
      %v5108 = vadd.f32 %v5107, %v5073
      %v5109 = vadd.f32 %v5108, %v5074
      %v5110 = vadd.f32 %v5109, %v5075
      %v5111 = vadd.f32 %v5110, %v5076
      %v5112 = vadd.f32 %v5111, %v5077
      %v5113 = vadd.f32 %v5112, %v5078
      %v5114 = vadd.f32 %v5113, %v5079
      %v5115 = vadd.f32 %v5114, %v5080
      %v5116 = vadd.f32 %v5115, %v5081
      %v5117 = vadd.f32 %v5116, %v5082
      %v5118 = vadd.f32 %v5117, %v5083
      %v5119 = vadd.f32 %v5118, %v5084
      %v5120 = vadd.f32 %v5119, %v5085
      %v5121 = vadd.f32 %v5120, %v5086
      %v5122 = vadd.f32 %v5121, %v5087
      %v5123 = vadd.f32 %v5122, %v5088
      %v5124 = vadd.f32 %v5123, %v5089
      %v5125 = vadd.f32 %v5124, %v5090
      %v5126 = vrot.slane %v5125, 4
      %v5127 = vadd.f32 %v5125, %v5126
      %v5128 = vrot.slane %v5127, 2
      %v5129 = vadd.f32 %v5127, %v5128
      %v5130 = vrot.slane %v5129, 1
      %v5131 = vadd.f32 %v5129, %v5130
      %v5132 = vadd.f32 %v4978, %v4979
      %v5133 = vadd.f32 %v5132, %v4980
      %v5134 = vadd.f32 %v5133, %v4981
      %v5135 = vadd.f32 %v5134, %v4982
      %v5136 = vadd.f32 %v5135, %v4983
      %v5137 = vadd.f32 %v5136, %v4984
      %v5138 = vadd.f32 %v5137, %v4985
      %v5139 = vadd.f32 %v5138, %v4986
      %v5140 = vadd.f32 %v5139, %v4987
      %v5141 = vadd.f32 %v5140, %v4988
      %v5142 = vadd.f32 %v5141, %v4989
      %v5143 = vadd.f32 %v5142, %v4990
      %v5144 = vadd.f32 %v5143, %v4991
      %v5145 = vadd.f32 %v5144, %v4992
      %v5146 = vadd.f32 %v5145, %v4993
      %v5147 = vadd.f32 %v5146, %v4994
      %v5148 = vadd.f32 %v5147, %v4995
      %v5149 = vadd.f32 %v5148, %v4996
      %v5150 = vadd.f32 %v5149, %v4997
      %v5151 = vadd.f32 %v5150, %v4998
      %v5152 = vadd.f32 %v5151, %v4999
      %v5153 = vadd.f32 %v5152, %v5000
      %v5154 = vadd.f32 %v5153, %v5001
      %v5155 = vadd.f32 %v5154, %v5002
      %v5156 = vadd.f32 %v5155, %v5003
      %v5157 = vadd.f32 %v5156, %v5004
      %v5158 = vadd.f32 %v5157, %v5005
      %v5159 = vadd.f32 %v5158, %v5006
      %v5160 = vadd.f32 %v5159, %v5007
      %v5161 = vadd.f32 %v5160, %v5008
      %v5162 = vadd.f32 %v5161, %v5009
      %v5163 = vadd.f32 %v5162, %v5010
      %v5164 = vadd.f32 %v5163, %v5011
      %v5165 = vadd.f32 %v5164, %v5012
      %v5166 = vadd.f32 %v5165, %v5013
      %v5167 = vrot.slane %v5166, 4
      %v5168 = vadd.f32 %v5166, %v5167
      %v5169 = vrot.slane %v5168, 2
      %v5170 = vadd.f32 %v5168, %v5169
      %v5171 = vrot.slane %v5170, 1
      %v5172 = vadd.f32 %v5170, %v5171
      %v5173 = vmul.f32 %v4978, %v3820
      %v5174 = vmul.f32 %v4979, %v3823
      %v5175 = vmul.f32 %v4980, %v3828
      %v5176 = vmul.f32 %v4981, %v3831
      %v5177 = vmul.f32 %v4982, %v3836
      %v5178 = vmul.f32 %v4983, %v3839
      %v5179 = vmul.f32 %v4984, %v3844
      %v5180 = vmul.f32 %v4985, %v3847
      %v5181 = vmul.f32 %v4986, %v3852
      %v5182 = vmul.f32 %v4987, %v3855
      %v5183 = vmul.f32 %v4988, %v3860
      %v5184 = vmul.f32 %v4989, %v3863
      %v5185 = vmul.f32 %v4990, %v3868
      %v5186 = vmul.f32 %v4991, %v3871
      %v5187 = vmul.f32 %v4992, %v3876
      %v5188 = vmul.f32 %v4993, %v3879
      %v5189 = vmul.f32 %v4994, %v3884
      %v5190 = vmul.f32 %v4995, %v3887
      %v5191 = vmul.f32 %v4996, %v3892
      %v5192 = vmul.f32 %v4997, %v3895
      %v5193 = vmul.f32 %v4998, %v3900
      %v5194 = vmul.f32 %v4999, %v3903
      %v5195 = vmul.f32 %v5000, %v3908
      %v5196 = vmul.f32 %v5001, %v3911
      %v5197 = vmul.f32 %v5002, %v3916
      %v5198 = vmul.f32 %v5003, %v3919
      %v5199 = vmul.f32 %v5004, %v3924
      %v5200 = vmul.f32 %v5005, %v3927
      %v5201 = vmul.f32 %v5006, %v3932
      %v5202 = vmul.f32 %v5007, %v3935
      %v5203 = vmul.f32 %v5008, %v3940
      %v5204 = vmul.f32 %v5009, %v3943
      %v5205 = vmul.f32 %v5010, %v3948
      %v5206 = vmul.f32 %v5011, %v3951
      %v5207 = vmul.f32 %v5012, %v3956
      %v5208 = vmul.f32 %v5013, %v3959
      %v5209 = vadd.f32 %v5173, %v5174
      %v5210 = vadd.f32 %v5209, %v5175
      %v5211 = vadd.f32 %v5210, %v5176
      %v5212 = vadd.f32 %v5211, %v5177
      %v5213 = vadd.f32 %v5212, %v5178
      %v5214 = vadd.f32 %v5213, %v5179
      %v5215 = vadd.f32 %v5214, %v5180
      %v5216 = vadd.f32 %v5215, %v5181
      %v5217 = vadd.f32 %v5216, %v5182
      %v5218 = vadd.f32 %v5217, %v5183
      %v5219 = vadd.f32 %v5218, %v5184
      %v5220 = vadd.f32 %v5219, %v5185
      %v5221 = vadd.f32 %v5220, %v5186
      %v5222 = vadd.f32 %v5221, %v5187
      %v5223 = vadd.f32 %v5222, %v5188
      %v5224 = vadd.f32 %v5223, %v5189
      %v5225 = vadd.f32 %v5224, %v5190
      %v5226 = vadd.f32 %v5225, %v5191
      %v5227 = vadd.f32 %v5226, %v5192
      %v5228 = vadd.f32 %v5227, %v5193
      %v5229 = vadd.f32 %v5228, %v5194
      %v5230 = vadd.f32 %v5229, %v5195
      %v5231 = vadd.f32 %v5230, %v5196
      %v5232 = vadd.f32 %v5231, %v5197
      %v5233 = vadd.f32 %v5232, %v5198
      %v5234 = vadd.f32 %v5233, %v5199
      %v5235 = vadd.f32 %v5234, %v5200
      %v5236 = vadd.f32 %v5235, %v5201
      %v5237 = vadd.f32 %v5236, %v5202
      %v5238 = vadd.f32 %v5237, %v5203
      %v5239 = vadd.f32 %v5238, %v5204
      %v5240 = vadd.f32 %v5239, %v5205
      %v5241 = vadd.f32 %v5240, %v5206
      %v5242 = vadd.f32 %v5241, %v5207
      %v5243 = vadd.f32 %v5242, %v5208
      %v5244 = vrot.slane %v5243, 4
      %v5245 = vadd.f32 %v5243, %v5244
      %v5246 = vrot.slane %v5245, 2
      %v5247 = vadd.f32 %v5245, %v5246
      %v5248 = vrot.slane %v5247, 1
      %v5249 = vadd.f32 %v5247, %v5248
      %vm5250 = vcmask 1040384
      %v5251 = vsel %vm5250, %v5054, %v5131
      %vm5252 = vcmask 1041408
      %v5253 = vsel %vm5252, %v5251, %v5172
      %vm5254 = vcmask 1042432
      %v5255 = vsel %vm5254, %v5253, %v5249
      %5256 = vst [vmem:[%s168] sm:$0xf] %v5255
      %p5257 = scmp.lt.s32.totalorder %s14, 1
      %s5258 = scalar_select %p5257, %s14, 1
      %s5259 = smul.addr %s5258, 4
      %s5260 = scalar_lea.vmem %s3, %s5259
      // Predicated region
      $region33: #{rb_forward.2} parent=31 // pred_check
        %p5261 = pneg %p100
      $region34: #{rb_forward.2} parent=31 // pred_check_branch
        %5263 = sbr.rel (%p5261) target = $region36
      $region35: #{rb_forward.2} parent=31 // pred_region
        _
      $region36: #{rb_forward.2} parent=31 // pred_fallthru
        _
    $region32: #{rb_forward.2} parent=5 // pred_fallthru
      _
    %p5264 = scmp.le.s32.totalorder 2, %s9
    // Predicated region
    $region37: #{rb_forward.2} parent=5 // pred_check
      %p5265 = pneg %p5264
    $region38: #{rb_forward.2} parent=5 // pred_check_branch
      %5267 = sbr.rel (%p5265) target = $region40
    $region39: #{rb_forward.2} parent=5 // pred_region
      %s5268 = ssub.s32 %s9, 2
      // Predicated region
      $region41: #{rb_forward.2} parent=39 // pred_check
        %p5269 = pneg %p106
      $region42: #{rb_forward.2} parent=39 // pred_check_branch
        %5271 = sbr.rel (%p5269) target = $region44
      $region43: #{rb_forward.2} parent=39 // pred_region
        %p5272 = scmp.lt.s32.totalorder %s15, 1
        %s5273 = scalar_select %p5272, %s15, 1
        %s5274 = smul.addr %s5273, 4
        %s5275 = scalar_lea.vmem %s3, %s5274
      $region44: #{rb_forward.2} parent=39 // pred_fallthru
        _
    $region40: #{rb_forward.2} parent=5 // pred_fallthru
      _
  $region6: #{rb_forward.2} parent=0 // loop_footer
    %s13 = sadd.s32 1, %s9
  $region7: #{rb_forward.2} parent=0 // loop_footer_branch
    %8 = sbr.rel target = $region3
  $region8: #{rb_forward.2} parent=0 // loop_exit
    _

</llo_original>
